<compile_context>
chip_gen: v6e
topology: v6e:2x2x1
jax: 0.10.0
libtpu: 0.0.40
codegen_flags: <defaults>
</compile_context>

<pallas_src>
import functools

import jax
import jax.numpy as jnp
from jax.experimental import pallas as pl
from jax.experimental.pallas import tpu as pltpu


# ----------------------------- helpers --------------------------------------

def _round_up(x, m):
    return (x + m - 1) // m * m


def _pick_tile(size, target, mult):
    """Largest divisor of `size` that is a multiple of `mult` and <= target.

    `size` must itself be a multiple of `mult` (callers guarantee this), so the
    search always terminates (worst case at `mult`).
    """
    t = min(max(target, mult), size)
    t = (t // mult) * mult
    while t > mult and size % t:
        t -= mult
    return t


def _vmem_limit_bytes(need):
    # Generous headroom over the computed tile footprint, but never request
    # more than 48 MiB: v7x has only 64 MiB of physical VMEM per TensorCore
    # (v5e/v6e have 128 MiB, where this is merely slack).
    return int(min(48 * 1024 * 1024, max(2 * need + (4 << 20), 32 * 1024 * 1024)))


# ----------------------------- Pallas kernels -------------------------------

def _mm_bias_act_kernel(x_ref, w_ref, b_ref, o_ref, *, relu):
    """One (tm, tn) output tile; the full K dim is VMEM-resident (no K axis)."""
    y = jnp.dot(x_ref[...], w_ref[...], preferred_element_type=jnp.float32)
    y = y + b_ref[...]
    if relu:
        y = jnp.maximum(y, 0.0)
    o_ref[...] = y.astype(o_ref.dtype)


def _mm_bias_act_kacc_kernel(x_ref, w_ref, b_ref, o_ref, acc_ref, *, relu):
    """K-tiled weight-streaming variant with an f32 VMEM accumulator."""
    @pl.when(pl.program_id(2) == 0)
    def _init():
        acc_ref[...] = jnp.zeros_like(acc_ref)

    acc_ref[...] += jnp.dot(x_ref[...], w_ref[...],
                            preferred_element_type=jnp.float32)

    @pl.when(pl.program_id(2) == pl.num_programs(2) - 1)
    def _finish():
        y = acc_ref[...] + b_ref[...]
        if relu:
            y = jnp.maximum(y, 0.0)
        o_ref[...] = y.astype(o_ref.dtype)


_FULL_K_MAX = 4096   # largest K kept fully VMEM-resident (all conv layers)


def fused_matmul(x, w, b, *, relu=True, out_dtype=jnp.float32):
    """y = relu(x @ w + b) as a tiled Pallas TPU matmul (bf16 MXU, f32 acc).

    Expects w already bf16 (K, N) and b already f32 (1, N) — prepared once by
    prepare_params().  Only the activation x is (possibly) padded per call,
    and only along M when M is not a multiple of 8.
    """
    M, K = x.shape
    K2, N = w.shape
    assert K == K2, (K, K2)
    assert b.shape == (1, N), b.shape

    x = x.astype(jnp.bfloat16)          # no-op on the hot path (already bf16)

    Mp = _round_up(M, 8)
    if Mp != M:
        x = jnp.pad(x, ((0, Mp - M), (0, 0)))   # zero rows; relu(bias) rows sliced off below

    # Row tile: large (weight stays resident), budgeted by K, and a divisor of
    # Mp so no padded output rows / post-kernel slice are needed.
    tm_target = min(2048, max(256, (4 * 1024 * 1024) // (2 * max(K, 1))))
    tm = _pick_tile(Mp, tm_target, 8)

    # Column tile: N < 128 -> full-dim block (legal, no padded stores);
    # otherwise N is a multiple of 128 in this model.
    tn = N if N <= 256 else _pick_tile(N, 256, 128)
    if Mp // tm == 1 and tn % 256 == 0:
        tn //= 2   # give v7x's second TensorCore a parallel j-step

    out_shape = jax.ShapeDtypeStruct((Mp, N), out_dtype)
    dsize = jnp.dtype(out_dtype).itemsize

    if K <= _FULL_K_MAX:
        # Whole-K path: all conv layers (and the FC at small spatial sizes).
        need = (2 * tm * K * 2 + 2 * K * tn * 2 + 2 * 8 * 128 * 4
                + 2 * tm * tn * dsize)
        out = pl.pallas_call(
            functools.partial(_mm_bias_act_kernel, relu=relu),
            out_shape=out_shape,
            grid_spec=pltpu.PrefetchScalarGridSpec(
                num_scalar_prefetch=0,
                grid=(Mp // tm, N // tn),
                in_specs=[
                    pl.BlockSpec((tm, K), lambda i, j: (i, 0)),
                    pl.BlockSpec((K, tn), lambda i, j: (0, j)),
                    pl.BlockSpec((1, tn), lambda i, j: (0, j)),
                ],
                out_specs=pl.BlockSpec((tm, tn), lambda i, j: (i, j)),
            ),
            compiler_params=pltpu.CompilerParams(
                dimension_semantics=("parallel", "parallel"),
                vmem_limit_bytes=_vmem_limit_bytes(need),
            ),
        )(x, w, b)
    else:
        # Weight-streaming path (224x224 FC, K ~ 50k): big K tiles + deeper
        # buffering so the layer becomes genuinely HBM-bandwidth bound.
        assert K % 128 == 0, K
        tk = _pick_tile(K, 8192, 128)
        need = (2 * tm * tk * 2 + 3 * tk * tn * 2 + 2 * 8 * 128 * 4
                + 2 * tm * tn * dsize + tm * tn * 4)
        out = pl.pallas_call(
            functools.partial(_mm_bias_act_kacc_kernel, relu=relu),
            out_shape=out_shape,
            grid_spec=pltpu.PrefetchScalarGridSpec(
                num_scalar_prefetch=0,
                grid=(Mp // tm, N // tn, K // tk),
                in_specs=[
                    pl.BlockSpec((tm, tk), lambda i, j, k: (i, k)),
                    pl.BlockSpec((tk, tn), lambda i, j, k: (k, j),
                                 pipeline_mode=pl.Buffered(3)),
                    pl.BlockSpec((1, tn), lambda i, j, k: (0, j)),
                ],
                out_specs=pl.BlockSpec((tm, tn), lambda i, j, k: (i, j)),
                scratch_shapes=[pltpu.VMEM((tm, tn), jnp.float32)],
            ),
            compiler_params=pltpu.CompilerParams(
                dimension_semantics=("parallel", "parallel", "arbitrary"),
                vmem_limit_bytes=_vmem_limit_bytes(need),
            ),
        )(x, w, b)

    if Mp != M:
        out = out[:M]
    return out


# ------------------------------ glue (JAX) -----------------------------------

def _im2col(x_nhwc, k, stride, pad):
    """Patch extraction (wrapper-side XLA).  Returns ((B*Ho*Wo, k*k*C), Ho, Wo)."""
    x = jnp.pad(x_nhwc, ((0, 0), (pad, pad), (pad, pad), (0, 0)))
    B, H, W, C = x.shape
    Ho = (H - k) // stride + 1
    Wo = (W - k) // stride + 1
    cols = []
    for kh in range(k):
        for kw in range(k):
            cols.append(
                x[:, kh:kh + stride * Ho:stride, kw:kw + stride * Wo:stride, :]
            )
    cols = jnp.concatenate(cols, axis=-1)          # (B, Ho, Wo, k*k*C)
    return cols.reshape(B * Ho * Wo, k * k * C), Ho, Wo


def conv_layer(x_nhwc, w_mat, b_row, *, k=4, stride=2, pad=1):
    """ConvLayer: Conv2d(k=4, s=2, p=1) + ReLU; hot matmul path in Pallas."""
    BO = x_nhwc.shape[0]
    cout = w_mat.shape[-1]
    cols, Ho, Wo = _im2col(x_nhwc, k, stride, pad)
    # Intermediate activations stay bf16 (halves inter-layer HBM traffic).
    y = fused_matmul(cols, w_mat, b_row, relu=True, out_dtype=jnp.bfloat16)
    return y.reshape(BO, Ho, Wo, cout)


def _conv_out_size(w, k=4, stride=2, pad=1):
    return (w + 2 * pad - k) // stride + 1


def init_params(key, *, in_hw, cin=3, num_chn=(32, 64, 128, 256), fc_out=256):
    """Weights in 'native' layout: conv (KH,KW,Cin,Cout); fc rows in PyTorch
    NCHW-flatten order (what loading a torch state_dict would give).  Real
    torch Conv2d weights (Cout,Cin,KH,KW) must be permuted with
    .transpose(2, 3, 1, 0) to match."""
    params = {}
    keys = jax.random.split(key, 2 * len(num_chn) + 2)
    w = in_hw
    c = cin
    ki = 0
    for li, cout in enumerate(num_chn):
        fan_in = 4 * 4 * c
        params[f"conv{li + 1}_w"] = (
            jax.random.normal(keys[ki], (4, 4, c, cout), jnp.float32)
            / jnp.sqrt(float(fan_in))
        )
        ki += 1
        params[f"conv{li + 1}_b"] = (
            0.01 * jax.random.normal(keys[ki], (cout,), jnp.float32)
        )
        ki += 1
        c = cout
        w = _conv_out_size(w)
    fc_in = w * w * num_chn[-1]
    params["fc_w"] = (
        jax.random.normal(keys[ki], (fc_in, fc_out), jnp.float32)
        / jnp.sqrt(float(fc_in))
    )
    params["fc_b"] = 0.01 * jax.random.normal(keys[ki + 1], (fc_out,), jnp.float32)
    return params, w, num_chn[-1], fc_out


def prepare_params(params, *, final_hw, final_c, fc_out, num_layers=4):
    """One-time (outside jit) weight plumbing so the forward pass touches only
    activations:
      - conv weights reshaped to (k*k*Cin, Cout) matmul layout, cast bf16;
      - the PyTorch NCHW .view() flatten is folded into the fc weight rows
        (NHWC order), cast bf16 — no runtime activation transpose;
      - biases reshaped to (1, N) f32 rows.
    No K/N padding is needed anywhere for this architecture, so nothing is
    padded per call."""
    p = {}
    for li in range(num_layers):
        w = params[f"conv{li + 1}_w"]
        p[f"conv{li + 1}_w"] = w.reshape(-1, w.shape[-1]).astype(jnp.bfloat16)
        p[f"conv{li + 1}_b"] = (
            params[f"conv{li + 1}_b"].reshape(1, -1).astype(jnp.float32)
        )
    wfc = params["fc_w"].reshape(final_c, final_hw, final_hw, fc_out)   # (C,H,W,O)
    p["fc_w"] = jnp.transpose(wfc, (1, 2, 0, 3)).reshape(-1, fc_out).astype(jnp.bfloat16)
    p["fc_b"] = params["fc_b"].reshape(1, -1).astype(jnp.float32)
    return p


def percept_forward(params, seg):
    """seg: (B, O, C, H, W) float32 (PyTorch NCHW per object).

    Returns (O, B, 256) — matches torch.stack over objects in the reference.
    All O objects are folded into the batch (identical math, 5 kernels total).
    """
    B, O = seg.shape[0], seg.shape[1]
    objects = jnp.swapaxes(seg, 0, 1)                        # seg.transpose(0, 1)
    x = objects.reshape((O * B,) + objects.shape[2:])        # (O*B, C, H, W)
    x = jnp.transpose(x, (0, 2, 3, 1)).astype(jnp.bfloat16)  # NCHW -> NHWC, bf16
    for li in range(4):
        x = conv_layer(x, params[f"conv{li + 1}_w"], params[f"conv{li + 1}_b"])
    # fc_w rows were pre-permuted to NHWC order, so a plain reshape is
    # semantically identical to PyTorch's .view(-1, fc_input_size) on NCHW.
    x = x.reshape(O * B, -1)
    y = fused_matmul(x, params["fc_w"], params["fc_b"],
                     relu=True, out_dtype=jnp.float32)        # act=True
    return y.reshape(O, B, -1)                                # (O, B, 256)


# --------------------------------- main --------------------------------------

if __name__ == "__main__":
    key = jax.random.PRNGKey(0)
    kp, kx = jax.random.split(key)

    B, O, C, HW = 2, 2, 3, 32          # small shapes (module default HW=224)
    raw_params, final_hw, final_c, fc_out = init_params(kp, in_hw=HW, cin=C)
    params = prepare_params(raw_params, final_hw=final_hw,
                            final_c=final_c, fc_out=fc_out)

    seg = jax.random.normal(kx, (B, O, C, HW, HW), jnp.float32)

    fwd = jax.jit(percept_forward)
    out = jax.block_until_ready(fwd(params, seg))

    assert out.shape == (O, B, 256), out.shape
    assert bool(jnp.all(jnp.isfinite(out)))
    print("KERNEL_OK")
</pallas_src>

<mosaic_0001>
module attributes {stable_mosaic.version = 11 : i64} {
  func.func @_mm_bias_act_kernel(%arg0: i32, %arg1: i32, %arg2: memref<1024x48xbf16, #tpu.memory_space<vmem>>, %arg3: memref<48x32xbf16, #tpu.memory_space<vmem>>, %arg4: memref<1x32xf32, #tpu.memory_space<vmem>>, %arg5: memref<1024x32xbf16, #tpu.memory_space<vmem>>) attributes {dimension_semantics = [#tpu.dimension_semantics<parallel>, #tpu.dimension_semantics<parallel>], iteration_bounds = array<i64: 1, 1>, scalar_prefetch = 0 : i64, scratch_operands = 0 : i64, tpu.core_type = #tpu.core_type<tc>, window_params = [{transform_indices = @transform_0, window_bounds = array<i64: 1024, 48>}, {transform_indices = @transform_1, window_bounds = array<i64: 48, 32>}, {transform_indices = @transform_2, window_bounds = array<i64: 1, 32>}, {transform_indices = @transform_3, window_bounds = array<i64: 1024, 32>}]} {
    %c0 = arith.constant 0 : index
    %c0_0 = arith.constant 0 : index
    %0 = vector.load %arg2[%c0, %c0_0] : memref<1024x48xbf16, #tpu.memory_space<vmem>>, vector<1024x48xbf16>
    %c0_1 = arith.constant 0 : index
    %c0_2 = arith.constant 0 : index
    %1 = vector.load %arg3[%c0_1, %c0_2] : memref<48x32xbf16, #tpu.memory_space<vmem>>, vector<48x32xbf16>
    %cst = arith.constant dense<0.000000e+00> : vector<1024x32xf32>
    %2 = tpu.matmul %0, %1, %cst {dimension_numbers = #tpu.dot_dimension_numbers<[1], [0], [0], [1], [0, 0, 1, 1], [], []>} : vector<1024x48xbf16>, vector<48x32xbf16>, vector<1024x32xf32> -> vector<1024x32xf32>
    %c0_3 = arith.constant 0 : index
    %c0_4 = arith.constant 0 : index
    %3 = vector.load %arg4[%c0_3, %c0_4] : memref<1x32xf32, #tpu.memory_space<vmem>>, vector<1x32xf32>
    %4 = vector.broadcast %3 : vector<1x32xf32> to vector<1024x32xf32>
    %5 = arith.addf %2, %4 : vector<1024x32xf32>
    %cst_5 = arith.constant 0.000000e+00 : f32
    %6 = vector.broadcast %cst_5 : f32 to vector<1024x32xf32>
    %7 = arith.maximumf %5, %6 : vector<1024x32xf32>
    %8 = arith.truncf %7 : vector<1024x32xf32> to vector<1024x32xbf16>
    %c0_6 = arith.constant 0 : index
    %c0_7 = arith.constant 0 : index
    %9 = vector.load %arg5[%c0_6, %c0_7] : memref<1024x32xbf16, #tpu.memory_space<vmem>>, vector<1024x32xbf16>
    tpu.vector_store %arg5[%c0_6, %c0_7], %8 {strides = array<i32>} : memref<1024x32xbf16, #tpu.memory_space<vmem>>, vector<1024x32xbf16>,
    return
  }
  func.func @transform_0(%arg0: i32, %arg1: i32) -> (i32, i32) {
    %c0_i32 = arith.constant 0 : i32
    %c0_i32_0 = arith.constant 0 : i32
    return %arg0, %c0_i32 : i32, i32
  }
  func.func @transform_1(%arg0: i32, %arg1: i32) -> (i32, i32) {
    %c0_i32 = arith.constant 0 : i32
    %c0_i32_0 = arith.constant 0 : i32
    return %c0_i32, %arg1 : i32, i32
  }
  func.func @transform_2(%arg0: i32, %arg1: i32) -> (i32, i32) {
    %c0_i32 = arith.constant 0 : i32
    %c0_i32_0 = arith.constant 0 : i32
    return %c0_i32, %arg1 : i32, i32
  }
  func.func @transform_3(%arg0: i32, %arg1: i32) -> (i32, i32) {
    %c0_i32 = arith.constant 0 : i32
    return %arg0, %arg1 : i32, i32
  }
}

module attributes {stable_mosaic.version = 11 : i64} {
  func.func @_mm_bias_act_kernel(%arg0: i32, %arg1: i32, %arg2: memref<256x512xbf16, #tpu.memory_space<vmem>>, %arg3: memref<512x64xbf16, #tpu.memory_space<vmem>>, %arg4: memref<1x64xf32, #tpu.memory_space<vmem>>, %arg5: memref<256x64xbf16, #tpu.memory_space<vmem>>) attributes {dimension_semantics = [#tpu.dimension_semantics<parallel>, #tpu.dimension_semantics<parallel>], iteration_bounds = array<i64: 1, 1>, scalar_prefetch = 0 : i64, scratch_operands = 0 : i64, tpu.core_type = #tpu.core_type<tc>, window_params = [{transform_indices = @transform_0, window_bounds = array<i64: 256, 512>}, {transform_indices = @transform_1, window_bounds = array<i64: 512, 64>}, {transform_indices = @transform_2, window_bounds = array<i64: 1, 64>}, {transform_indices = @transform_3, window_bounds = array<i64: 256, 64>}]} {
    %c0 = arith.constant 0 : index
    %c0_0 = arith.constant 0 : index
    %0 = vector.load %arg2[%c0, %c0_0] : memref<256x512xbf16, #tpu.memory_space<vmem>>, vector<256x512xbf16>
    %c0_1 = arith.constant 0 : index
    %c0_2 = arith.constant 0 : index
    %1 = vector.load %arg3[%c0_1, %c0_2] : memref<512x64xbf16, #tpu.memory_space<vmem>>, vector<512x64xbf16>
    %cst = arith.constant dense<0.000000e+00> : vector<256x64xf32>
    %2 = tpu.matmul %0, %1, %cst {dimension_numbers = #tpu.dot_dimension_numbers<[1], [0], [0], [1], [0, 0, 1, 1], [], []>} : vector<256x512xbf16>, vector<512x64xbf16>, vector<256x64xf32> -> vector<256x64xf32>
    %c0_3 = arith.constant 0 : index
    %c0_4 = arith.constant 0 : index
    %3 = vector.load %arg4[%c0_3, %c0_4] : memref<1x64xf32, #tpu.memory_space<vmem>>, vector<1x64xf32>
    %4 = vector.broadcast %3 : vector<1x64xf32> to vector<256x64xf32>
    %5 = arith.addf %2, %4 : vector<256x64xf32>
    %cst_5 = arith.constant 0.000000e+00 : f32
    %6 = vector.broadcast %cst_5 : f32 to vector<256x64xf32>
    %7 = arith.maximumf %5, %6 : vector<256x64xf32>
    %8 = arith.truncf %7 : vector<256x64xf32> to vector<256x64xbf16>
    %c0_6 = arith.constant 0 : index
    %c0_7 = arith.constant 0 : index
    %9 = vector.load %arg5[%c0_6, %c0_7] : memref<256x64xbf16, #tpu.memory_space<vmem>>, vector<256x64xbf16>
    tpu.vector_store %arg5[%c0_6, %c0_7], %8 {strides = array<i32>} : memref<256x64xbf16, #tpu.memory_space<vmem>>, vector<256x64xbf16>,
    return
  }
  func.func @transform_0(%arg0: i32, %arg1: i32) -> (i32, i32) {
    %c0_i32 = arith.constant 0 : i32
    %c0_i32_0 = arith.constant 0 : i32
    return %arg0, %c0_i32 : i32, i32
  }
  func.func @transform_1(%arg0: i32, %arg1: i32) -> (i32, i32) {
    %c0_i32 = arith.constant 0 : i32
    %c0_i32_0 = arith.constant 0 : i32
    return %c0_i32, %arg1 : i32, i32
  }
  func.func @transform_2(%arg0: i32, %arg1: i32) -> (i32, i32) {
    %c0_i32 = arith.constant 0 : i32
    %c0_i32_0 = arith.constant 0 : i32
    return %c0_i32, %arg1 : i32, i32
  }
  func.func @transform_3(%arg0: i32, %arg1: i32) -> (i32, i32) {
    %c0_i32 = arith.constant 0 : i32
    return %arg0, %arg1 : i32, i32
  }
}

module attributes {stable_mosaic.version = 11 : i64} {
  func.func @_mm_bias_act_kernel(%arg0: i32, %arg1: i32, %arg2: memref<64x1024xbf16, #tpu.memory_space<vmem>>, %arg3: memref<1024x128xbf16, #tpu.memory_space<vmem>>, %arg4: memref<1x128xf32, #tpu.memory_space<vmem>>, %arg5: memref<64x128xbf16, #tpu.memory_space<vmem>>) attributes {dimension_semantics = [#tpu.dimension_semantics<parallel>, #tpu.dimension_semantics<parallel>], iteration_bounds = array<i64: 1, 1>, scalar_prefetch = 0 : i64, scratch_operands = 0 : i64, tpu.core_type = #tpu.core_type<tc>, window_params = [{transform_indices = @transform_0, window_bounds = array<i64: 64, 1024>}, {transform_indices = @transform_1, window_bounds = array<i64: 1024, 128>}, {transform_indices = @transform_2, window_bounds = array<i64: 1, 128>}, {transform_indices = @transform_3, window_bounds = array<i64: 64, 128>}]} {
    %c0 = arith.constant 0 : index
    %c0_0 = arith.constant 0 : index
    %0 = vector.load %arg2[%c0, %c0_0] : memref<64x1024xbf16, #tpu.memory_space<vmem>>, vector<64x1024xbf16>
    %c0_1 = arith.constant 0 : index
    %c0_2 = arith.constant 0 : index
    %1 = vector.load %arg3[%c0_1, %c0_2] : memref<1024x128xbf16, #tpu.memory_space<vmem>>, vector<1024x128xbf16>
    %cst = arith.constant dense<0.000000e+00> : vector<64x128xf32>
    %2 = tpu.matmul %0, %1, %cst {dimension_numbers = #tpu.dot_dimension_numbers<[1], [0], [0], [1], [0, 0, 1, 1], [], []>} : vector<64x1024xbf16>, vector<1024x128xbf16>, vector<64x128xf32> -> vector<64x128xf32>
    %c0_3 = arith.constant 0 : index
    %c0_4 = arith.constant 0 : index
    %3 = vector.load %arg4[%c0_3, %c0_4] : memref<1x128xf32, #tpu.memory_space<vmem>>, vector<1x128xf32>
    %4 = vector.broadcast %3 : vector<1x128xf32> to vector<64x128xf32>
    %5 = arith.addf %2, %4 : vector<64x128xf32>
    %cst_5 = arith.constant 0.000000e+00 : f32
    %6 = vector.broadcast %cst_5 : f32 to vector<64x128xf32>
    %7 = arith.maximumf %5, %6 : vector<64x128xf32>
    %8 = arith.truncf %7 : vector<64x128xf32> to vector<64x128xbf16>
    %c0_6 = arith.constant 0 : index
    %c0_7 = arith.constant 0 : index
    %9 = vector.load %arg5[%c0_6, %c0_7] : memref<64x128xbf16, #tpu.memory_space<vmem>>, vector<64x128xbf16>
    tpu.vector_store %arg5[%c0_6, %c0_7], %8 {strides = array<i32>} : memref<64x128xbf16, #tpu.memory_space<vmem>>, vector<64x128xbf16>,
    return
  }
  func.func @transform_0(%arg0: i32, %arg1: i32) -> (i32, i32) {
    %c0_i32 = arith.constant 0 : i32
    %c0_i32_0 = arith.constant 0 : i32
    return %arg0, %c0_i32 : i32, i32
  }
  func.func @transform_1(%arg0: i32, %arg1: i32) -> (i32, i32) {
    %c0_i32 = arith.constant 0 : i32
    %c0_i32_0 = arith.constant 0 : i32
    return %c0_i32, %arg1 : i32, i32
  }
  func.func @transform_2(%arg0: i32, %arg1: i32) -> (i32, i32) {
    %c0_i32 = arith.constant 0 : i32
    %c0_i32_0 = arith.constant 0 : i32
    return %c0_i32, %arg1 : i32, i32
  }
  func.func @transform_3(%arg0: i32, %arg1: i32) -> (i32, i32) {
    %c0_i32 = arith.constant 0 : i32
    return %arg0, %arg1 : i32, i32
  }
}

module attributes {stable_mosaic.version = 11 : i64} {
  func.func @_mm_bias_act_kernel(%arg0: i32, %arg1: i32, %arg2: memref<16x2048xbf16, #tpu.memory_space<vmem>>, %arg3: memref<2048x128xbf16, #tpu.memory_space<vmem>>, %arg4: memref<1x128xf32, #tpu.memory_space<vmem>>, %arg5: memref<16x128xbf16, #tpu.memory_space<vmem>>) attributes {dimension_semantics = [#tpu.dimension_semantics<parallel>, #tpu.dimension_semantics<parallel>], iteration_bounds = array<i64: 1, 2>, scalar_prefetch = 0 : i64, scratch_operands = 0 : i64, tpu.core_type = #tpu.core_type<tc>, window_params = [{transform_indices = @transform_0, window_bounds = array<i64: 16, 2048>}, {transform_indices = @transform_1, window_bounds = array<i64: 2048, 128>}, {transform_indices = @transform_2, window_bounds = array<i64: 1, 128>}, {transform_indices = @transform_3, window_bounds = array<i64: 16, 128>}]} {
    %c0 = arith.constant 0 : index
    %c0_0 = arith.constant 0 : index
    %0 = vector.load %arg2[%c0, %c0_0] : memref<16x2048xbf16, #tpu.memory_space<vmem>>, vector<16x2048xbf16>
    %c0_1 = arith.constant 0 : index
    %c0_2 = arith.constant 0 : index
    %1 = vector.load %arg3[%c0_1, %c0_2] : memref<2048x128xbf16, #tpu.memory_space<vmem>>, vector<2048x128xbf16>
    %cst = arith.constant dense<0.000000e+00> : vector<16x128xf32>
    %2 = tpu.matmul %0, %1, %cst {dimension_numbers = #tpu.dot_dimension_numbers<[1], [0], [0], [1], [0, 0, 1, 1], [], []>} : vector<16x2048xbf16>, vector<2048x128xbf16>, vector<16x128xf32> -> vector<16x128xf32>
    %c0_3 = arith.constant 0 : index
    %c0_4 = arith.constant 0 : index
    %3 = vector.load %arg4[%c0_3, %c0_4] : memref<1x128xf32, #tpu.memory_space<vmem>>, vector<1x128xf32>
    %4 = vector.broadcast %3 : vector<1x128xf32> to vector<16x128xf32>
    %5 = arith.addf %2, %4 : vector<16x128xf32>
    %cst_5 = arith.constant 0.000000e+00 : f32
    %6 = vector.broadcast %cst_5 : f32 to vector<16x128xf32>
    %7 = arith.maximumf %5, %6 : vector<16x128xf32>
    %8 = arith.truncf %7 : vector<16x128xf32> to vector<16x128xbf16>
    %c0_6 = arith.constant 0 : index
    %c0_7 = arith.constant 0 : index
    %9 = vector.load %arg5[%c0_6, %c0_7] : memref<16x128xbf16, #tpu.memory_space<vmem>>, vector<16x128xbf16>
    tpu.vector_store %arg5[%c0_6, %c0_7], %8 {strides = array<i32>} : memref<16x128xbf16, #tpu.memory_space<vmem>>, vector<16x128xbf16>,
    return
  }
  func.func @transform_0(%arg0: i32, %arg1: i32) -> (i32, i32) {
    %c0_i32 = arith.constant 0 : i32
    %c0_i32_0 = arith.constant 0 : i32
    return %arg0, %c0_i32 : i32, i32
  }
  func.func @transform_1(%arg0: i32, %arg1: i32) -> (i32, i32) {
    %c0_i32 = arith.constant 0 : i32
    %c0_i32_0 = arith.constant 0 : i32
    return %c0_i32, %arg1 : i32, i32
  }
  func.func @transform_2(%arg0: i32, %arg1: i32) -> (i32, i32) {
    %c0_i32 = arith.constant 0 : i32
    %c0_i32_0 = arith.constant 0 : i32
    return %c0_i32, %arg1 : i32, i32
  }
  func.func @transform_3(%arg0: i32, %arg1: i32) -> (i32, i32) {
    %c0_i32 = arith.constant 0 : i32
    return %arg0, %arg1 : i32, i32
  }
}

module attributes {stable_mosaic.version = 11 : i64} {
  func.func @_mm_bias_act_kernel(%arg0: i32, %arg1: i32, %arg2: memref<8x1024xbf16, #tpu.memory_space<vmem>>, %arg3: memref<1024x128xbf16, #tpu.memory_space<vmem>>, %arg4: memref<1x128xf32, #tpu.memory_space<vmem>>, %arg5: memref<8x128xf32, #tpu.memory_space<vmem>>) attributes {dimension_semantics = [#tpu.dimension_semantics<parallel>, #tpu.dimension_semantics<parallel>], iteration_bounds = array<i64: 1, 2>, scalar_prefetch = 0 : i64, scratch_operands = 0 : i64, tpu.core_type = #tpu.core_type<tc>, window_params = [{transform_indices = @transform_0, window_bounds = array<i64: 8, 1024>}, {transform_indices = @transform_1, window_bounds = array<i64: 1024, 128>}, {transform_indices = @transform_2, window_bounds = array<i64: 1, 128>}, {transform_indices = @transform_3, window_bounds = array<i64: 8, 128>}]} {
    %c0 = arith.constant 0 : index
    %c0_0 = arith.constant 0 : index
    %0 = vector.load %arg2[%c0, %c0_0] : memref<8x1024xbf16, #tpu.memory_space<vmem>>, vector<8x1024xbf16>
    %c0_1 = arith.constant 0 : index
    %c0_2 = arith.constant 0 : index
    %1 = vector.load %arg3[%c0_1, %c0_2] : memref<1024x128xbf16, #tpu.memory_space<vmem>>, vector<1024x128xbf16>
    %cst = arith.constant dense<0.000000e+00> : vector<8x128xf32>
    %2 = tpu.matmul %0, %1, %cst {dimension_numbers = #tpu.dot_dimension_numbers<[1], [0], [0], [1], [0, 0, 1, 1], [], []>} : vector<8x1024xbf16>, vector<1024x128xbf16>, vector<8x128xf32> -> vector<8x128xf32>
    %c0_3 = arith.constant 0 : index
    %c0_4 = arith.constant 0 : index
    %3 = vector.load %arg4[%c0_3, %c0_4] : memref<1x128xf32, #tpu.memory_space<vmem>>, vector<1x128xf32>
    %4 = vector.broadcast %3 : vector<1x128xf32> to vector<8x128xf32>
    %5 = arith.addf %2, %4 : vector<8x128xf32>
    %cst_5 = arith.constant 0.000000e+00 : f32
    %6 = vector.broadcast %cst_5 : f32 to vector<8x128xf32>
    %7 = arith.maximumf %5, %6 : vector<8x128xf32>
    %c0_6 = arith.constant 0 : index
    %c0_7 = arith.constant 0 : index
    %8 = vector.load %arg5[%c0_6, %c0_7] : memref<8x128xf32, #tpu.memory_space<vmem>>, vector<8x128xf32>
    tpu.vector_store %arg5[%c0_6, %c0_7], %7 {strides = array<i32>} : memref<8x128xf32, #tpu.memory_space<vmem>>, vector<8x128xf32>,
    return
  }
  func.func @transform_0(%arg0: i32, %arg1: i32) -> (i32, i32) {
    %c0_i32 = arith.constant 0 : i32
    %c0_i32_0 = arith.constant 0 : i32
    return %arg0, %c0_i32 : i32, i32
  }
  func.func @transform_1(%arg0: i32, %arg1: i32) -> (i32, i32) {
    %c0_i32 = arith.constant 0 : i32
    %c0_i32_0 = arith.constant 0 : i32
    return %c0_i32, %arg1 : i32, i32
  }
  func.func @transform_2(%arg0: i32, %arg1: i32) -> (i32, i32) {
    %c0_i32 = arith.constant 0 : i32
    %c0_i32_0 = arith.constant 0 : i32
    return %c0_i32, %arg1 : i32, i32
  }
  func.func @transform_3(%arg0: i32, %arg1: i32) -> (i32, i32) {
    %c0_i32 = arith.constant 0 : i32
    return %arg0, %arg1 : i32, i32
  }
}

</mosaic_0001>

<llo_original>
// kernel: percept_forward.5
$region0: #{percept_forward.5}
  #allocation0 [shape = 'u32[]', space=smem, size = 0x4, offset = 0x4, fixed_abs, tag = 'smem constant byte address 0x4 - core index']
  #allocation1 [shape = 'u32[144,128]{1,0:T(1,128)}', space=vmem, size = 0x12000, scoped, tag = 'internal scratch']
  %s0 = inlined_call_operand.vmem [shape: bf16[1024,48], index: 0, kind: input, shape index: {}]
  %s1 = inlined_call_operand.vmem [shape: bf16[48,32], index: 1, kind: input, shape index: {}]
  %s2 = inlined_call_operand.vmem [shape: f32[1,32], index: 2, kind: input, shape index: {}]
  %s3 = inlined_call_operand.vmem [shape: bf16[1024,32], index: 3, kind: output, shape index: {}]
  %s4 = sld [smem:[#allocation0]]
  $region22: #{percept_forward.5} parent=0
    _
  %s6 = ssub.s32 1, %s4
  %s7 = scalar_select 0, %s6, %s4
  // Predicated region
  $region2: #{percept_forward.5} parent=0 // pred_check
    _
  $region3: #{percept_forward.5} parent=0 // pred_check_branch
    %9 = sbr.rel (0) target = $region5
  $region4: #{percept_forward.5} parent=0 // pred_region
    _
  $region5: #{percept_forward.5} parent=0 // pred_fallthru
    _
  // Predicated region
  $region6: #{percept_forward.5} parent=0 // pred_check
    _
  $region7: #{percept_forward.5} parent=0 // pred_check_branch
    %11 = sbr.rel (0) target = $region9
  $region8: #{percept_forward.5} parent=0 // pred_region
    _
  $region9: #{percept_forward.5} parent=0 // pred_fallthru
    _
  // Predicated region
  $region10: #{percept_forward.5} parent=0 // pred_check
    _
  $region11: #{percept_forward.5} parent=0 // pred_check_branch
    %13 = sbr.rel (0) target = $region13
  $region12: #{percept_forward.5} parent=0 // pred_region
    _
  $region13: #{percept_forward.5} parent=0 // pred_fallthru
    _
  %v15 = vld [vmem:[%s0] sm:$0xf]
  %v16 = vld [vmem:[%s0 + $0x4] sm:$0xf]
  %v17 = vld [vmem:[%s0 + $0x8] sm:$0xf]
  %v18 = vld [vmem:[%s0 + $0xc] sm:$0xf]
  %v19 = vld [vmem:[%s0 + $0x10] sm:$0xf]
  %v20 = vld [vmem:[%s0 + $0x14] sm:$0xf]
  %v21 = vld [vmem:[%s0 + $0x18] sm:$0xf]
  %v22 = vld [vmem:[%s0 + $0x1c] sm:$0xf]
  %v23 = vld [vmem:[%s0 + $0x20] sm:$0xf]
  %v24 = vld [vmem:[%s0 + $0x24] sm:$0xf]
  %v25 = vld [vmem:[%s0 + $0x28] sm:$0xf]
  %v26 = vld [vmem:[%s0 + $0x2c] sm:$0xf]
  %v27 = vld [vmem:[%s0 + $0x30] sm:$0xf]
  %v28 = vld [vmem:[%s0 + $0x34] sm:$0xf]
  %v29 = vld [vmem:[%s0 + $0x38] sm:$0xf]
  %v30 = vld [vmem:[%s0 + $0x3c] sm:$0xf]
  %v31 = vld [vmem:[%s0 + $0x40] sm:$0xf]
  %v32 = vld [vmem:[%s0 + $0x44] sm:$0xf]
  %v33 = vld [vmem:[%s0 + $0x48] sm:$0xf]
  %v34 = vld [vmem:[%s0 + $0x4c] sm:$0xf]
  %v35 = vld [vmem:[%s0 + $0x50] sm:$0xf]
  %v36 = vld [vmem:[%s0 + $0x54] sm:$0xf]
  %v37 = vld [vmem:[%s0 + $0x58] sm:$0xf]
  %v38 = vld [vmem:[%s0 + $0x5c] sm:$0xf]
  %v39 = vld [vmem:[%s0 + $0x60] sm:$0xf]
  %v40 = vld [vmem:[%s0 + $0x64] sm:$0xf]
  %v41 = vld [vmem:[%s0 + $0x68] sm:$0xf]
  %v42 = vld [vmem:[%s0 + $0x6c] sm:$0xf]
  %v43 = vld [vmem:[%s0 + $0x70] sm:$0xf]
  %v44 = vld [vmem:[%s0 + $0x74] sm:$0xf]
  %v45 = vld [vmem:[%s0 + $0x78] sm:$0xf]
  %v46 = vld [vmem:[%s0 + $0x7c] sm:$0xf]
  %v47 = vld [vmem:[%s0 + $0x80] sm:$0xf]
  %v48 = vld [vmem:[%s0 + $0x84] sm:$0xf]
  %v49 = vld [vmem:[%s0 + $0x88] sm:$0xf]
  %v50 = vld [vmem:[%s0 + $0x8c] sm:$0xf]
  %v51 = vld [vmem:[%s0 + $0x90] sm:$0xf]
  %v52 = vld [vmem:[%s0 + $0x94] sm:$0xf]
  %v53 = vld [vmem:[%s0 + $0x98] sm:$0xf]
  %v54 = vld [vmem:[%s0 + $0x9c] sm:$0xf]
  %v55 = vld [vmem:[%s0 + $0xa0] sm:$0xf]
  %v56 = vld [vmem:[%s0 + $0xa4] sm:$0xf]
  %v57 = vld [vmem:[%s0 + $0xa8] sm:$0xf]
  %v58 = vld [vmem:[%s0 + $0xac] sm:$0xf]
  %v59 = vld [vmem:[%s0 + $0xb0] sm:$0xf]
  %v60 = vld [vmem:[%s0 + $0xb4] sm:$0xf]
  %v61 = vld [vmem:[%s0 + $0xb8] sm:$0xf]
  %v62 = vld [vmem:[%s0 + $0xbc] sm:$0xf]
  %v63 = vld [vmem:[%s0 + $0xc0] sm:$0xf]
  %v64 = vld [vmem:[%s0 + $0xc4] sm:$0xf]
  %v65 = vld [vmem:[%s0 + $0xc8] sm:$0xf]
  %v66 = vld [vmem:[%s0 + $0xcc] sm:$0xf]
  %v67 = vld [vmem:[%s0 + $0xd0] sm:$0xf]
  %v68 = vld [vmem:[%s0 + $0xd4] sm:$0xf]
  %v69 = vld [vmem:[%s0 + $0xd8] sm:$0xf]
  %v70 = vld [vmem:[%s0 + $0xdc] sm:$0xf]
  %v71 = vld [vmem:[%s0 + $0xe0] sm:$0xf]
  %v72 = vld [vmem:[%s0 + $0xe4] sm:$0xf]
  %v73 = vld [vmem:[%s0 + $0xe8] sm:$0xf]
  %v74 = vld [vmem:[%s0 + $0xec] sm:$0xf]
  %v75 = vld [vmem:[%s0 + $0xf0] sm:$0xf]
  %v76 = vld [vmem:[%s0 + $0xf4] sm:$0xf]
  %v77 = vld [vmem:[%s0 + $0xf8] sm:$0xf]
  %v78 = vld [vmem:[%s0 + $0xfc] sm:$0xf]
  %v79 = vld [vmem:[%s0 + $0x100] sm:$0xf]
  %v80 = vld [vmem:[%s0 + $0x104] sm:$0xf]
  %v81 = vld [vmem:[%s0 + $0x108] sm:$0xf]
  %v82 = vld [vmem:[%s0 + $0x10c] sm:$0xf]
  %v83 = vld [vmem:[%s0 + $0x110] sm:$0xf]
  %v84 = vld [vmem:[%s0 + $0x114] sm:$0xf]
  %v85 = vld [vmem:[%s0 + $0x118] sm:$0xf]
  %v86 = vld [vmem:[%s0 + $0x11c] sm:$0xf]
  %v87 = vld [vmem:[%s0 + $0x120] sm:$0xf]
  %v88 = vld [vmem:[%s0 + $0x124] sm:$0xf]
  %v89 = vld [vmem:[%s0 + $0x128] sm:$0xf]
  %v90 = vld [vmem:[%s0 + $0x12c] sm:$0xf]
  %v91 = vld [vmem:[%s0 + $0x130] sm:$0xf]
  %v92 = vld [vmem:[%s0 + $0x134] sm:$0xf]
  %v93 = vld [vmem:[%s0 + $0x138] sm:$0xf]
  %v94 = vld [vmem:[%s0 + $0x13c] sm:$0xf]
  %v95 = vld [vmem:[%s0 + $0x140] sm:$0xf]
  %v96 = vld [vmem:[%s0 + $0x144] sm:$0xf]
  %v97 = vld [vmem:[%s0 + $0x148] sm:$0xf]
  %v98 = vld [vmem:[%s0 + $0x14c] sm:$0xf]
  %v99 = vld [vmem:[%s0 + $0x150] sm:$0xf]
  %v100 = vld [vmem:[%s0 + $0x154] sm:$0xf]
  %v101 = vld [vmem:[%s0 + $0x158] sm:$0xf]
  %v102 = vld [vmem:[%s0 + $0x15c] sm:$0xf]
  %v103 = vld [vmem:[%s0 + $0x160] sm:$0xf]
  %v104 = vld [vmem:[%s0 + $0x164] sm:$0xf]
  %v105 = vld [vmem:[%s0 + $0x168] sm:$0xf]
  %v106 = vld [vmem:[%s0 + $0x16c] sm:$0xf]
  %v107 = vld [vmem:[%s0 + $0x170] sm:$0xf]
  %v108 = vld [vmem:[%s0 + $0x174] sm:$0xf]
  %v109 = vld [vmem:[%s0 + $0x178] sm:$0xf]
  %v110 = vld [vmem:[%s0 + $0x17c] sm:$0xf]
  %v111 = vld [vmem:[%s0 + $0x180] sm:$0xf]
  %v112 = vld [vmem:[%s0 + $0x184] sm:$0xf]
  %v113 = vld [vmem:[%s0 + $0x188] sm:$0xf]
  %v114 = vld [vmem:[%s0 + $0x18c] sm:$0xf]
  %v115 = vld [vmem:[%s0 + $0x190] sm:$0xf]
  %v116 = vld [vmem:[%s0 + $0x194] sm:$0xf]
  %v117 = vld [vmem:[%s0 + $0x198] sm:$0xf]
  %v118 = vld [vmem:[%s0 + $0x19c] sm:$0xf]
  %v119 = vld [vmem:[%s0 + $0x1a0] sm:$0xf]
  %v120 = vld [vmem:[%s0 + $0x1a4] sm:$0xf]
  %v121 = vld [vmem:[%s0 + $0x1a8] sm:$0xf]
  %v122 = vld [vmem:[%s0 + $0x1ac] sm:$0xf]
  %v123 = vld [vmem:[%s0 + $0x1b0] sm:$0xf]
  %v124 = vld [vmem:[%s0 + $0x1b4] sm:$0xf]
  %v125 = vld [vmem:[%s0 + $0x1b8] sm:$0xf]
  %v126 = vld [vmem:[%s0 + $0x1bc] sm:$0xf]
  %v127 = vld [vmem:[%s0 + $0x1c0] sm:$0xf]
  %v128 = vld [vmem:[%s0 + $0x1c4] sm:$0xf]
  %v129 = vld [vmem:[%s0 + $0x1c8] sm:$0xf]
  %v130 = vld [vmem:[%s0 + $0x1cc] sm:$0xf]
  %v131 = vld [vmem:[%s0 + $0x1d0] sm:$0xf]
  %v132 = vld [vmem:[%s0 + $0x1d4] sm:$0xf]
  %v133 = vld [vmem:[%s0 + $0x1d8] sm:$0xf]
  %v134 = vld [vmem:[%s0 + $0x1dc] sm:$0xf]
  %v135 = vld [vmem:[%s0 + $0x1e0] sm:$0xf]
  %v136 = vld [vmem:[%s0 + $0x1e4] sm:$0xf]
  %v137 = vld [vmem:[%s0 + $0x1e8] sm:$0xf]
  %v138 = vld [vmem:[%s0 + $0x1ec] sm:$0xf]
  %v139 = vld [vmem:[%s0 + $0x1f0] sm:$0xf]
  %v140 = vld [vmem:[%s0 + $0x1f4] sm:$0xf]
  %v141 = vld [vmem:[%s0 + $0x1f8] sm:$0xf]
  %v142 = vld [vmem:[%s0 + $0x1fc] sm:$0xf]
  %v143 = vld [vmem:[%s1] sm:$0xf]
  %v144 = vld [vmem:[%s1 + $0x4] sm:$0xf]
  %v145 = vld [vmem:[%s1 + $0x8] sm:$0xf]
  %v146 = vld [vmem:[%s1 + $0xc] sm:$0xf]
  %v147 = vld [vmem:[%s1 + $0x10] sm:$0xf]
  %v148 = vld [vmem:[%s1 + $0x14] sm:$0xf]
  %v149 = vld [vmem:[%s2] sm:$0x1]
  %v151 = vlaneseq
  %v152 = vshrl.u32 %v151, 7
  %v153 = vsub.s32 0, %v152
  %v154 = vrot.slane %v149, %v153
  %v284 = vunpack.c.l.b16 %v15
  %v285 = vunpack.c.l.b16 %v16
  %v286 = vunpack.c.l.b16 %v17
  %v287 = vunpack.c.l.b16 %v18
  %v288 = vunpack.c.l.b16 %v19
  %v289 = vunpack.c.l.b16 %v20
  %v290 = vunpack.c.l.b16 %v21
  %v291 = vunpack.c.l.b16 %v22
  %v292 = vunpack.c.l.b16 %v23
  %v293 = vunpack.c.l.b16 %v24
  %v294 = vunpack.c.l.b16 %v25
  %v295 = vunpack.c.l.b16 %v26
  %v296 = vunpack.c.l.b16 %v27
  %v297 = vunpack.c.l.b16 %v28
  %v298 = vunpack.c.l.b16 %v29
  %v299 = vunpack.c.l.b16 %v30
  %v300 = vunpack.c.l.b16 %v31
  %v301 = vunpack.c.l.b16 %v32
  %v302 = vunpack.c.l.b16 %v33
  %v303 = vunpack.c.l.b16 %v34
  %v304 = vunpack.c.l.b16 %v35
  %v305 = vunpack.c.l.b16 %v36
  %v306 = vunpack.c.l.b16 %v37
  %v307 = vunpack.c.l.b16 %v38
  %v308 = vunpack.c.l.b16 %v39
  %v309 = vunpack.c.l.b16 %v40
  %v310 = vunpack.c.l.b16 %v41
  %v311 = vunpack.c.l.b16 %v42
  %v312 = vunpack.c.l.b16 %v43
  %v313 = vunpack.c.l.b16 %v44
  %v314 = vunpack.c.l.b16 %v45
  %v315 = vunpack.c.l.b16 %v46
  %v316 = vunpack.c.l.b16 %v47
  %v317 = vunpack.c.l.b16 %v48
  %v318 = vunpack.c.l.b16 %v49
  %v319 = vunpack.c.l.b16 %v50
  %v320 = vunpack.c.l.b16 %v51
  %v321 = vunpack.c.l.b16 %v52
  %v322 = vunpack.c.l.b16 %v53
  %v323 = vunpack.c.l.b16 %v54
  %v324 = vunpack.c.l.b16 %v55
  %v325 = vunpack.c.l.b16 %v56
  %v326 = vunpack.c.l.b16 %v57
  %v327 = vunpack.c.l.b16 %v58
  %v328 = vunpack.c.l.b16 %v59
  %v329 = vunpack.c.l.b16 %v60
  %v330 = vunpack.c.l.b16 %v61
  %v331 = vunpack.c.l.b16 %v62
  %v332 = vunpack.c.l.b16 %v63
  %v333 = vunpack.c.l.b16 %v64
  %v334 = vunpack.c.l.b16 %v65
  %v335 = vunpack.c.l.b16 %v66
  %v336 = vunpack.c.l.b16 %v67
  %v337 = vunpack.c.l.b16 %v68
  %v338 = vunpack.c.l.b16 %v69
  %v339 = vunpack.c.l.b16 %v70
  %v340 = vunpack.c.l.b16 %v71
  %v341 = vunpack.c.l.b16 %v72
  %v342 = vunpack.c.l.b16 %v73
  %v343 = vunpack.c.l.b16 %v74
  %v344 = vunpack.c.l.b16 %v75
  %v345 = vunpack.c.l.b16 %v76
  %v346 = vunpack.c.l.b16 %v77
  %v347 = vunpack.c.l.b16 %v78
  %v348 = vunpack.c.l.b16 %v79
  %v349 = vunpack.c.l.b16 %v80
  %v350 = vunpack.c.l.b16 %v81
  %v351 = vunpack.c.l.b16 %v82
  %v352 = vunpack.c.l.b16 %v83
  %v353 = vunpack.c.l.b16 %v84
  %v354 = vunpack.c.l.b16 %v85
  %v355 = vunpack.c.l.b16 %v86
  %v356 = vunpack.c.l.b16 %v87
  %v357 = vunpack.c.l.b16 %v88
  %v358 = vunpack.c.l.b16 %v89
  %v359 = vunpack.c.l.b16 %v90
  %v360 = vunpack.c.l.b16 %v91
  %v361 = vunpack.c.l.b16 %v92
  %v362 = vunpack.c.l.b16 %v93
  %v363 = vunpack.c.l.b16 %v94
  %v364 = vunpack.c.l.b16 %v95
  %v365 = vunpack.c.l.b16 %v96
  %v366 = vunpack.c.l.b16 %v97
  %v367 = vunpack.c.l.b16 %v98
  %v368 = vunpack.c.l.b16 %v99
  %v369 = vunpack.c.l.b16 %v100
  %v370 = vunpack.c.l.b16 %v101
  %v371 = vunpack.c.l.b16 %v102
  %v372 = vunpack.c.l.b16 %v103
  %v373 = vunpack.c.l.b16 %v104
  %v374 = vunpack.c.l.b16 %v105
  %v375 = vunpack.c.l.b16 %v106
  %v376 = vunpack.c.l.b16 %v107
  %v377 = vunpack.c.l.b16 %v108
  %v378 = vunpack.c.l.b16 %v109
  %v379 = vunpack.c.l.b16 %v110
  %v380 = vunpack.c.l.b16 %v111
  %v381 = vunpack.c.l.b16 %v112
  %v382 = vunpack.c.l.b16 %v113
  %v383 = vunpack.c.l.b16 %v114
  %v384 = vunpack.c.l.b16 %v115
  %v385 = vunpack.c.l.b16 %v116
  %v386 = vunpack.c.l.b16 %v117
  %v387 = vunpack.c.l.b16 %v118
  %v388 = vunpack.c.l.b16 %v119
  %v389 = vunpack.c.l.b16 %v120
  %v390 = vunpack.c.l.b16 %v121
  %v391 = vunpack.c.l.b16 %v122
  %v392 = vunpack.c.l.b16 %v123
  %v393 = vunpack.c.l.b16 %v124
  %v394 = vunpack.c.l.b16 %v125
  %v395 = vunpack.c.l.b16 %v126
  %v396 = vunpack.c.l.b16 %v127
  %v397 = vunpack.c.l.b16 %v128
  %v398 = vunpack.c.l.b16 %v129
  %v399 = vunpack.c.l.b16 %v130
  %v400 = vunpack.c.l.b16 %v131
  %v401 = vunpack.c.l.b16 %v132
  %v402 = vunpack.c.l.b16 %v133
  %v403 = vunpack.c.l.b16 %v134
  %v404 = vunpack.c.l.b16 %v135
  %v405 = vunpack.c.l.b16 %v136
  %v406 = vunpack.c.l.b16 %v137
  %v407 = vunpack.c.l.b16 %v138
  %v408 = vunpack.c.l.b16 %v139
  %v409 = vunpack.c.l.b16 %v140
  %v410 = vunpack.c.l.b16 %v141
  %v411 = vunpack.c.l.b16 %v142
  %v412 = vpack.c.b16 %v285, %v284
  %v413 = vpack.c.b16 %v287, %v286
  %v414 = vpack.c.b16 %v289, %v288
  %v415 = vpack.c.b16 %v291, %v290
  %v416 = vpack.c.b16 %v293, %v292
  %v417 = vpack.c.b16 %v295, %v294
  %v418 = vpack.c.b16 %v297, %v296
  %v419 = vpack.c.b16 %v299, %v298
  %v420 = vpack.c.b16 %v301, %v300
  %v421 = vpack.c.b16 %v303, %v302
  %v422 = vpack.c.b16 %v305, %v304
  %v423 = vpack.c.b16 %v307, %v306
  %v424 = vpack.c.b16 %v309, %v308
  %v425 = vpack.c.b16 %v311, %v310
  %v426 = vpack.c.b16 %v313, %v312
  %v427 = vpack.c.b16 %v315, %v314
  %v428 = vpack.c.b16 %v317, %v316
  %v429 = vpack.c.b16 %v319, %v318
  %v430 = vpack.c.b16 %v321, %v320
  %v431 = vpack.c.b16 %v323, %v322
  %v432 = vpack.c.b16 %v325, %v324
  %v433 = vpack.c.b16 %v327, %v326
  %v434 = vpack.c.b16 %v329, %v328
  %v435 = vpack.c.b16 %v331, %v330
  %v436 = vpack.c.b16 %v333, %v332
  %v437 = vpack.c.b16 %v335, %v334
  %v438 = vpack.c.b16 %v337, %v336
  %v439 = vpack.c.b16 %v339, %v338
  %v440 = vpack.c.b16 %v341, %v340
  %v441 = vpack.c.b16 %v343, %v342
  %v442 = vpack.c.b16 %v345, %v344
  %v443 = vpack.c.b16 %v347, %v346
  %v444 = vpack.c.b16 %v349, %v348
  %v445 = vpack.c.b16 %v351, %v350
  %v446 = vpack.c.b16 %v353, %v352
  %v447 = vpack.c.b16 %v355, %v354
  %v448 = vpack.c.b16 %v357, %v356
  %v449 = vpack.c.b16 %v359, %v358
  %v450 = vpack.c.b16 %v361, %v360
  %v451 = vpack.c.b16 %v363, %v362
  %v452 = vpack.c.b16 %v365, %v364
  %v453 = vpack.c.b16 %v367, %v366
  %v454 = vpack.c.b16 %v369, %v368
  %v455 = vpack.c.b16 %v371, %v370
  %v456 = vpack.c.b16 %v373, %v372
  %v457 = vpack.c.b16 %v375, %v374
  %v458 = vpack.c.b16 %v377, %v376
  %v459 = vpack.c.b16 %v379, %v378
  %v460 = vpack.c.b16 %v381, %v380
  %v461 = vpack.c.b16 %v383, %v382
  %v462 = vpack.c.b16 %v385, %v384
  %v463 = vpack.c.b16 %v387, %v386
  %v464 = vpack.c.b16 %v389, %v388
  %v465 = vpack.c.b16 %v391, %v390
  %v466 = vpack.c.b16 %v393, %v392
  %v467 = vpack.c.b16 %v395, %v394
  %v468 = vpack.c.b16 %v397, %v396
  %v469 = vpack.c.b16 %v399, %v398
  %v470 = vpack.c.b16 %v401, %v400
  %v471 = vpack.c.b16 %v403, %v402
  %v472 = vpack.c.b16 %v405, %v404
  %v473 = vpack.c.b16 %v407, %v406
  %v474 = vpack.c.b16 %v409, %v408
  %v475 = vpack.c.b16 %v411, %v410
  %v482 = vunpack.c.l.b16 %v143
  %v483 = vunpack.c.l.b16 %v144
  %v484 = vunpack.c.l.b16 %v145
  %v485 = vunpack.c.l.b16 %v146
  %v486 = vunpack.c.l.b16 %v147
  %v487 = vunpack.c.l.b16 %v148
  %v488 = vpack.c.b16 %v483, %v482
  %v489 = vpack.c.b16 %v485, %v484
  %v490 = vpack.c.b16 %v487, %v486
  %vm494 = vcmask 392192
  %v496 = vsel %vm494, %v412, 0
  %v499 = vsel %vm494, %v413, 0
  %v502 = vsel %vm494, %v414, 0
  %v505 = vsel %vm494, %v415, 0
  %v508 = vsel %vm494, %v416, 0
  %v511 = vsel %vm494, %v417, 0
  %v514 = vsel %vm494, %v418, 0
  %v517 = vsel %vm494, %v419, 0
  %v520 = vsel %vm494, %v420, 0
  %v523 = vsel %vm494, %v421, 0
  %v526 = vsel %vm494, %v422, 0
  %v529 = vsel %vm494, %v423, 0
  %v532 = vsel %vm494, %v424, 0
  %v535 = vsel %vm494, %v425, 0
  %v538 = vsel %vm494, %v426, 0
  %v541 = vsel %vm494, %v427, 0
  %v544 = vsel %vm494, %v428, 0
  %v547 = vsel %vm494, %v429, 0
  %v550 = vsel %vm494, %v430, 0
  %v553 = vsel %vm494, %v431, 0
  %v556 = vsel %vm494, %v432, 0
  %v559 = vsel %vm494, %v433, 0
  %v562 = vsel %vm494, %v434, 0
  %v565 = vsel %vm494, %v435, 0
  %v568 = vsel %vm494, %v436, 0
  %v571 = vsel %vm494, %v437, 0
  %v574 = vsel %vm494, %v438, 0
  %v577 = vsel %vm494, %v439, 0
  %v580 = vsel %vm494, %v440, 0
  %v583 = vsel %vm494, %v441, 0
  %v586 = vsel %vm494, %v442, 0
  %v589 = vsel %vm494, %v443, 0
  %v592 = vsel %vm494, %v444, 0
  %v595 = vsel %vm494, %v445, 0
  %v598 = vsel %vm494, %v446, 0
  %v601 = vsel %vm494, %v447, 0
  %v604 = vsel %vm494, %v448, 0
  %v607 = vsel %vm494, %v449, 0
  %v610 = vsel %vm494, %v450, 0
  %v613 = vsel %vm494, %v451, 0
  %v616 = vsel %vm494, %v452, 0
  %v619 = vsel %vm494, %v453, 0
  %v622 = vsel %vm494, %v454, 0
  %v625 = vsel %vm494, %v455, 0
  %v628 = vsel %vm494, %v456, 0
  %v631 = vsel %vm494, %v457, 0
  %v634 = vsel %vm494, %v458, 0
  %v637 = vsel %vm494, %v459, 0
  %v640 = vsel %vm494, %v460, 0
  %v643 = vsel %vm494, %v461, 0
  %v646 = vsel %vm494, %v462, 0
  %v649 = vsel %vm494, %v463, 0
  %v652 = vsel %vm494, %v464, 0
  %v655 = vsel %vm494, %v465, 0
  %v658 = vsel %vm494, %v466, 0
  %v661 = vsel %vm494, %v467, 0
  %v664 = vsel %vm494, %v468, 0
  %v667 = vsel %vm494, %v469, 0
  %v670 = vsel %vm494, %v470, 0
  %v673 = vsel %vm494, %v471, 0
  %v676 = vsel %vm494, %v472, 0
  %v679 = vsel %vm494, %v473, 0
  %v682 = vsel %vm494, %v474, 0
  %v685 = vsel %vm494, %v475, 0
  %687 = vmatprep.subr.bf16.mxu0 0
  %688 = vmatpush1.bf16.msra.mxu0 0
  %689 = vmatprep.subr.bf16.mxu0 0
  %690 = vmatpush1.bf16.msra.mxu0 0
  %691 = vmatprep.subr.bf16.mxu0 0
  %692 = vmatpush1.bf16.msra.mxu0 0
  %693 = vmatprep.subr.bf16.mxu0 0
  %694 = vmatpush1.bf16.msra.mxu0 0
  %695 = vmatprep.subr.bf16.mxu0 0
  %696 = vmatpush1.bf16.msra.mxu0 0
  %697 = vmatprep.subr.bf16.mxu0 0
  %698 = vmatpush1.bf16.msra.mxu0 %v490
  %699 = vmatprep.subr.bf16.mxu0 0
  %700 = vmatpush1.bf16.msra.mxu0 %v489
  %701 = vmatprep.subr.bf16.mxu0 0
  %702 = vmatpush1.bf16.msra.mxu0 %v488
  %703 = vmatprep.subr.bf16.mxu0 0
  %704 = vmatpush2.bf16.msra.mxu0 0
  %705 = vmatprep.subr.bf16.mxu0 0
  %706 = vmatpush2.bf16.msra.mxu0 0
  %707 = vmatprep.subr.bf16.mxu0 0
  %708 = vmatpush2.bf16.msra.mxu0 0
  %709 = vmatprep.subr.bf16.mxu0 0
  %710 = vmatpush2.bf16.msra.mxu0 0
  %711 = vmatprep.subr.bf16.mxu0 0
  %712 = vmatpush2.bf16.msra.mxu0 0
  %713 = vmatprep.subr.bf16.mxu0 0
  %714 = vmatpush2.bf16.msra.mxu0 0
  %715 = vmatprep.subr.bf16.mxu0 0
  %716 = vmatpush2.bf16.msra.mxu0 0
  %717 = vmatprep.subr.bf16.mxu0 0
  %718 = vmatpush2.bf16.msra.mxu0 0
  %719 = vmatprep.mubr.bf16.mxu0 0
  %720 = vmatmul.mubr.bf16.gmra.mxu0 %v496
  %v721 = vpop.f32.mrf.mxu0
  %v722 = vadd.f32 %v154, %v721
  %v723 = vpop.f32.mrf.mxu0
  %v724 = vpop.f32.mrf.mxu0
  %v725 = vadd.f32 %v154, %v724
  %v726 = vpop.f32.mrf.mxu0
  %727 = vmatprep.mubr.bf16.mxu0 0
  %728 = vmatmul.mubr.bf16.gmra.mxu0 %v499
  %v729 = vpop.f32.mrf.mxu0
  %v730 = vadd.f32 %v154, %v729
  %v731 = vpop.f32.mrf.mxu0
  %v732 = vpop.f32.mrf.mxu0
  %v733 = vadd.f32 %v154, %v732
  %v734 = vpop.f32.mrf.mxu0
  %735 = vmatprep.mubr.bf16.mxu0 0
  %736 = vmatmul.mubr.bf16.gmra.mxu0 %v502
  %v737 = vpop.f32.mrf.mxu0
  %v738 = vadd.f32 %v154, %v737
  %v739 = vpop.f32.mrf.mxu0
  %v740 = vpop.f32.mrf.mxu0
  %v741 = vadd.f32 %v154, %v740
  %v742 = vpop.f32.mrf.mxu0
  %743 = vmatprep.mubr.bf16.mxu0 0
  %744 = vmatmul.mubr.bf16.gmra.mxu0 %v505
  %v745 = vpop.f32.mrf.mxu0
  %v746 = vadd.f32 %v154, %v745
  %v747 = vpop.f32.mrf.mxu0
  %v748 = vpop.f32.mrf.mxu0
  %v749 = vadd.f32 %v154, %v748
  %v750 = vpop.f32.mrf.mxu0
  %751 = vmatprep.mubr.bf16.mxu0 0
  %752 = vmatmul.mubr.bf16.gmra.mxu0 %v508
  %v753 = vpop.f32.mrf.mxu0
  %v754 = vadd.f32 %v154, %v753
  %v755 = vpop.f32.mrf.mxu0
  %v756 = vpop.f32.mrf.mxu0
  %v757 = vadd.f32 %v154, %v756
  %v758 = vpop.f32.mrf.mxu0
  %759 = vmatprep.mubr.bf16.mxu0 0
  %760 = vmatmul.mubr.bf16.gmra.mxu0 %v511
  %v761 = vpop.f32.mrf.mxu0
  %v762 = vadd.f32 %v154, %v761
  %v763 = vpop.f32.mrf.mxu0
  %v764 = vpop.f32.mrf.mxu0
  %v765 = vadd.f32 %v154, %v764
  %v766 = vpop.f32.mrf.mxu0
  %767 = vmatprep.mubr.bf16.mxu0 0
  %768 = vmatmul.mubr.bf16.gmra.mxu0 %v514
  %v769 = vpop.f32.mrf.mxu0
  %v770 = vadd.f32 %v154, %v769
  %v771 = vpop.f32.mrf.mxu0
  %v772 = vpop.f32.mrf.mxu0
  %v773 = vadd.f32 %v154, %v772
  %v774 = vpop.f32.mrf.mxu0
  %775 = vmatprep.mubr.bf16.mxu0 0
  %776 = vmatmul.mubr.bf16.gmra.mxu0 %v517
  %v777 = vpop.f32.mrf.mxu0
  %v778 = vadd.f32 %v154, %v777
  %v779 = vpop.f32.mrf.mxu0
  %v780 = vpop.f32.mrf.mxu0
  %v781 = vadd.f32 %v154, %v780
  %v782 = vpop.f32.mrf.mxu0
  %783 = vmatprep.mubr.bf16.mxu0 0
  %784 = vmatmul.mubr.bf16.gmra.mxu0 %v520
  %v785 = vpop.f32.mrf.mxu0
  %v786 = vadd.f32 %v154, %v785
  %v787 = vpop.f32.mrf.mxu0
  %v788 = vpop.f32.mrf.mxu0
  %v789 = vadd.f32 %v154, %v788
  %v790 = vpop.f32.mrf.mxu0
  %791 = vmatprep.mubr.bf16.mxu0 0
  %792 = vmatmul.mubr.bf16.gmra.mxu0 %v523
  %v793 = vpop.f32.mrf.mxu0
  %v794 = vadd.f32 %v154, %v793
  %v795 = vpop.f32.mrf.mxu0
  %v796 = vpop.f32.mrf.mxu0
  %v797 = vadd.f32 %v154, %v796
  %v798 = vpop.f32.mrf.mxu0
  %799 = vmatprep.mubr.bf16.mxu0 0
  %800 = vmatmul.mubr.bf16.gmra.mxu0 %v526
  %v801 = vpop.f32.mrf.mxu0
  %v802 = vadd.f32 %v154, %v801
  %v803 = vpop.f32.mrf.mxu0
  %v804 = vpop.f32.mrf.mxu0
  %v805 = vadd.f32 %v154, %v804
  %v806 = vpop.f32.mrf.mxu0
  %807 = vmatprep.mubr.bf16.mxu0 0
  %808 = vmatmul.mubr.bf16.gmra.mxu0 %v529
  %v809 = vpop.f32.mrf.mxu0
  %v810 = vadd.f32 %v154, %v809
  %v811 = vpop.f32.mrf.mxu0
  %v812 = vpop.f32.mrf.mxu0
  %v813 = vadd.f32 %v154, %v812
  %v814 = vpop.f32.mrf.mxu0
  %815 = vmatprep.mubr.bf16.mxu0 0
  %816 = vmatmul.mubr.bf16.gmra.mxu0 %v532
  %v817 = vpop.f32.mrf.mxu0
  %v818 = vadd.f32 %v154, %v817
  %v819 = vpop.f32.mrf.mxu0
  %v820 = vpop.f32.mrf.mxu0
  %v821 = vadd.f32 %v154, %v820
  %v822 = vpop.f32.mrf.mxu0
  %823 = vmatprep.mubr.bf16.mxu0 0
  %824 = vmatmul.mubr.bf16.gmra.mxu0 %v535
  %v825 = vpop.f32.mrf.mxu0
  %v826 = vadd.f32 %v154, %v825
  %v827 = vpop.f32.mrf.mxu0
  %v828 = vpop.f32.mrf.mxu0
  %v829 = vadd.f32 %v154, %v828
  %v830 = vpop.f32.mrf.mxu0
  %831 = vmatprep.mubr.bf16.mxu0 0
  %832 = vmatmul.mubr.bf16.gmra.mxu0 %v538
  %v833 = vpop.f32.mrf.mxu0
  %v834 = vadd.f32 %v154, %v833
  %v835 = vpop.f32.mrf.mxu0
  %v836 = vpop.f32.mrf.mxu0
  %v837 = vadd.f32 %v154, %v836
  %v838 = vpop.f32.mrf.mxu0
  %839 = vmatprep.mubr.bf16.mxu0 0
  %840 = vmatmul.mubr.bf16.gmra.mxu0 %v541
  %v841 = vpop.f32.mrf.mxu0
  %v842 = vadd.f32 %v154, %v841
  %v843 = vpop.f32.mrf.mxu0
  %v844 = vpop.f32.mrf.mxu0
  %v845 = vadd.f32 %v154, %v844
  %v846 = vpop.f32.mrf.mxu0
  %847 = vmatprep.mubr.bf16.mxu0 0
  %848 = vmatmul.mubr.bf16.gmra.mxu0 %v544
  %v849 = vpop.f32.mrf.mxu0
  %v850 = vadd.f32 %v154, %v849
  %v851 = vpop.f32.mrf.mxu0
  %v852 = vpop.f32.mrf.mxu0
  %v853 = vadd.f32 %v154, %v852
  %v854 = vpop.f32.mrf.mxu0
  %855 = vmatprep.mubr.bf16.mxu0 0
  %856 = vmatmul.mubr.bf16.gmra.mxu0 %v547
  %v857 = vpop.f32.mrf.mxu0
  %v858 = vadd.f32 %v154, %v857
  %v859 = vpop.f32.mrf.mxu0
  %v860 = vpop.f32.mrf.mxu0
  %v861 = vadd.f32 %v154, %v860
  %v862 = vpop.f32.mrf.mxu0
  %863 = vmatprep.mubr.bf16.mxu0 0
  %864 = vmatmul.mubr.bf16.gmra.mxu0 %v550
  %v865 = vpop.f32.mrf.mxu0
  %v866 = vadd.f32 %v154, %v865
  %v867 = vpop.f32.mrf.mxu0
  %v868 = vpop.f32.mrf.mxu0
  %v869 = vadd.f32 %v154, %v868
  %v870 = vpop.f32.mrf.mxu0
  %871 = vmatprep.mubr.bf16.mxu0 0
  %872 = vmatmul.mubr.bf16.gmra.mxu0 %v553
  %v873 = vpop.f32.mrf.mxu0
  %v874 = vadd.f32 %v154, %v873
  %v875 = vpop.f32.mrf.mxu0
  %v876 = vpop.f32.mrf.mxu0
  %v877 = vadd.f32 %v154, %v876
  %v878 = vpop.f32.mrf.mxu0
  %879 = vmatprep.mubr.bf16.mxu0 0
  %880 = vmatmul.mubr.bf16.gmra.mxu0 %v556
  %v881 = vpop.f32.mrf.mxu0
  %v882 = vadd.f32 %v154, %v881
  %v883 = vpop.f32.mrf.mxu0
  %v884 = vpop.f32.mrf.mxu0
  %v885 = vadd.f32 %v154, %v884
  %v886 = vpop.f32.mrf.mxu0
  %887 = vmatprep.mubr.bf16.mxu0 0
  %888 = vmatmul.mubr.bf16.gmra.mxu0 %v559
  %v889 = vpop.f32.mrf.mxu0
  %v890 = vadd.f32 %v154, %v889
  %v891 = vpop.f32.mrf.mxu0
  %v892 = vpop.f32.mrf.mxu0
  %v893 = vadd.f32 %v154, %v892
  %v894 = vpop.f32.mrf.mxu0
  %895 = vmatprep.mubr.bf16.mxu0 0
  %896 = vmatmul.mubr.bf16.gmra.mxu0 %v562
  %v897 = vpop.f32.mrf.mxu0
  %v898 = vadd.f32 %v154, %v897
  %v899 = vpop.f32.mrf.mxu0
  %v900 = vpop.f32.mrf.mxu0
  %v901 = vadd.f32 %v154, %v900
  %v902 = vpop.f32.mrf.mxu0
  %903 = vmatprep.mubr.bf16.mxu0 0
  %904 = vmatmul.mubr.bf16.gmra.mxu0 %v565
  %v905 = vpop.f32.mrf.mxu0
  %v906 = vadd.f32 %v154, %v905
  %v907 = vpop.f32.mrf.mxu0
  %v908 = vpop.f32.mrf.mxu0
  %v909 = vadd.f32 %v154, %v908
  %v910 = vpop.f32.mrf.mxu0
  %911 = vmatprep.mubr.bf16.mxu0 0
  %912 = vmatmul.mubr.bf16.gmra.mxu0 %v568
  %v913 = vpop.f32.mrf.mxu0
  %v914 = vadd.f32 %v154, %v913
  %v915 = vpop.f32.mrf.mxu0
  %v916 = vpop.f32.mrf.mxu0
  %v917 = vadd.f32 %v154, %v916
  %v918 = vpop.f32.mrf.mxu0
  %919 = vmatprep.mubr.bf16.mxu0 0
  %920 = vmatmul.mubr.bf16.gmra.mxu0 %v571
  %v921 = vpop.f32.mrf.mxu0
  %v922 = vadd.f32 %v154, %v921
  %v923 = vpop.f32.mrf.mxu0
  %v924 = vpop.f32.mrf.mxu0
  %v925 = vadd.f32 %v154, %v924
  %v926 = vpop.f32.mrf.mxu0
  %927 = vmatprep.mubr.bf16.mxu0 0
  %928 = vmatmul.mubr.bf16.gmra.mxu0 %v574
  %v929 = vpop.f32.mrf.mxu0
  %v930 = vadd.f32 %v154, %v929
  %v931 = vpop.f32.mrf.mxu0
  %v932 = vpop.f32.mrf.mxu0
  %v933 = vadd.f32 %v154, %v932
  %v934 = vpop.f32.mrf.mxu0
  %935 = vmatprep.mubr.bf16.mxu0 0
  %936 = vmatmul.mubr.bf16.gmra.mxu0 %v577
  %v937 = vpop.f32.mrf.mxu0
  %v938 = vadd.f32 %v154, %v937
  %v939 = vpop.f32.mrf.mxu0
  %v940 = vpop.f32.mrf.mxu0
  %v941 = vadd.f32 %v154, %v940
  %v942 = vpop.f32.mrf.mxu0
  %943 = vmatprep.mubr.bf16.mxu0 0
  %944 = vmatmul.mubr.bf16.gmra.mxu0 %v580
  %v945 = vpop.f32.mrf.mxu0
  %v946 = vadd.f32 %v154, %v945
  %v947 = vpop.f32.mrf.mxu0
  %v948 = vpop.f32.mrf.mxu0
  %v949 = vadd.f32 %v154, %v948
  %v950 = vpop.f32.mrf.mxu0
  %951 = vmatprep.mubr.bf16.mxu0 0
  %952 = vmatmul.mubr.bf16.gmra.mxu0 %v583
  %v953 = vpop.f32.mrf.mxu0
  %v954 = vadd.f32 %v154, %v953
  %v955 = vpop.f32.mrf.mxu0
  %v956 = vpop.f32.mrf.mxu0
  %v957 = vadd.f32 %v154, %v956
  %v958 = vpop.f32.mrf.mxu0
  %959 = vmatprep.mubr.bf16.mxu0 0
  %960 = vmatmul.mubr.bf16.gmra.mxu0 %v586
  %v961 = vpop.f32.mrf.mxu0
  %v962 = vadd.f32 %v154, %v961
  %v963 = vpop.f32.mrf.mxu0
  %v964 = vpop.f32.mrf.mxu0
  %v965 = vadd.f32 %v154, %v964
  %v966 = vpop.f32.mrf.mxu0
  %967 = vmatprep.mubr.bf16.mxu0 0
  %968 = vmatmul.mubr.bf16.gmra.mxu0 %v589
  %v969 = vpop.f32.mrf.mxu0
  %v970 = vadd.f32 %v154, %v969
  %v971 = vpop.f32.mrf.mxu0
  %v972 = vpop.f32.mrf.mxu0
  %v973 = vadd.f32 %v154, %v972
  %v974 = vpop.f32.mrf.mxu0
  %975 = vmatprep.mubr.bf16.mxu0 0
  %976 = vmatmul.mubr.bf16.gmra.mxu0 %v592
  %v977 = vpop.f32.mrf.mxu0
  %v978 = vadd.f32 %v154, %v977
  %v979 = vpop.f32.mrf.mxu0
  %v980 = vpop.f32.mrf.mxu0
  %v981 = vadd.f32 %v154, %v980
  %v982 = vpop.f32.mrf.mxu0
  %983 = vmatprep.mubr.bf16.mxu0 0
  %984 = vmatmul.mubr.bf16.gmra.mxu0 %v595
  %v985 = vpop.f32.mrf.mxu0
  %v986 = vadd.f32 %v154, %v985
  %v987 = vpop.f32.mrf.mxu0
  %v988 = vpop.f32.mrf.mxu0
  %v989 = vadd.f32 %v154, %v988
  %v990 = vpop.f32.mrf.mxu0
  %991 = vmatprep.mubr.bf16.mxu0 0
  %992 = vmatmul.mubr.bf16.gmra.mxu0 %v598
  %v993 = vpop.f32.mrf.mxu0
  %v994 = vadd.f32 %v154, %v993
  %v995 = vpop.f32.mrf.mxu0
  %v996 = vpop.f32.mrf.mxu0
  %v997 = vadd.f32 %v154, %v996
  %v998 = vpop.f32.mrf.mxu0
  %999 = vmatprep.mubr.bf16.mxu0 0
  %1000 = vmatmul.mubr.bf16.gmra.mxu0 %v601
  %v1001 = vpop.f32.mrf.mxu0
  %v1002 = vadd.f32 %v154, %v1001
  %v1003 = vpop.f32.mrf.mxu0
  %v1004 = vpop.f32.mrf.mxu0
  %v1005 = vadd.f32 %v154, %v1004
  %v1006 = vpop.f32.mrf.mxu0
  %1007 = vmatprep.mubr.bf16.mxu0 0
  %1008 = vmatmul.mubr.bf16.gmra.mxu0 %v604
  %v1009 = vpop.f32.mrf.mxu0
  %v1010 = vadd.f32 %v154, %v1009
  %v1011 = vpop.f32.mrf.mxu0
  %v1012 = vpop.f32.mrf.mxu0
  %v1013 = vadd.f32 %v154, %v1012
  %v1014 = vpop.f32.mrf.mxu0
  %1015 = vmatprep.mubr.bf16.mxu0 0
  %1016 = vmatmul.mubr.bf16.gmra.mxu0 %v607
  %v1017 = vpop.f32.mrf.mxu0
  %v1018 = vadd.f32 %v154, %v1017
  %v1019 = vpop.f32.mrf.mxu0
  %v1020 = vpop.f32.mrf.mxu0
  %v1021 = vadd.f32 %v154, %v1020
  %v1022 = vpop.f32.mrf.mxu0
  %1023 = vmatprep.mubr.bf16.mxu0 0
  %1024 = vmatmul.mubr.bf16.gmra.mxu0 %v610
  %v1025 = vpop.f32.mrf.mxu0
  %v1026 = vadd.f32 %v154, %v1025
  %v1027 = vpop.f32.mrf.mxu0
  %v1028 = vpop.f32.mrf.mxu0
  %v1029 = vadd.f32 %v154, %v1028
  %v1030 = vpop.f32.mrf.mxu0
  %1031 = vmatprep.mubr.bf16.mxu0 0
  %1032 = vmatmul.mubr.bf16.gmra.mxu0 %v613
  %v1033 = vpop.f32.mrf.mxu0
  %v1034 = vadd.f32 %v154, %v1033
  %v1035 = vpop.f32.mrf.mxu0
  %v1036 = vpop.f32.mrf.mxu0
  %v1037 = vadd.f32 %v154, %v1036
  %v1038 = vpop.f32.mrf.mxu0
  %1039 = vmatprep.mubr.bf16.mxu0 0
  %1040 = vmatmul.mubr.bf16.gmra.mxu0 %v616
  %v1041 = vpop.f32.mrf.mxu0
  %v1042 = vadd.f32 %v154, %v1041
  %v1043 = vpop.f32.mrf.mxu0
  %v1044 = vpop.f32.mrf.mxu0
  %v1045 = vadd.f32 %v154, %v1044
  %v1046 = vpop.f32.mrf.mxu0
  %1047 = vmatprep.mubr.bf16.mxu0 0
  %1048 = vmatmul.mubr.bf16.gmra.mxu0 %v619
  %v1049 = vpop.f32.mrf.mxu0
  %v1050 = vadd.f32 %v154, %v1049
  %v1051 = vpop.f32.mrf.mxu0
  %v1052 = vpop.f32.mrf.mxu0
  %v1053 = vadd.f32 %v154, %v1052
  %v1054 = vpop.f32.mrf.mxu0
  %1055 = vmatprep.mubr.bf16.mxu0 0
  %1056 = vmatmul.mubr.bf16.gmra.mxu0 %v622
  %v1057 = vpop.f32.mrf.mxu0
  %v1058 = vadd.f32 %v154, %v1057
  %v1059 = vpop.f32.mrf.mxu0
  %v1060 = vpop.f32.mrf.mxu0
  %v1061 = vadd.f32 %v154, %v1060
  %v1062 = vpop.f32.mrf.mxu0
  %1063 = vmatprep.mubr.bf16.mxu0 0
  %1064 = vmatmul.mubr.bf16.gmra.mxu0 %v625
  %v1065 = vpop.f32.mrf.mxu0
  %v1066 = vadd.f32 %v154, %v1065
  %v1067 = vpop.f32.mrf.mxu0
  %v1068 = vpop.f32.mrf.mxu0
  %v1069 = vadd.f32 %v154, %v1068
  %v1070 = vpop.f32.mrf.mxu0
  %1071 = vmatprep.mubr.bf16.mxu0 0
  %1072 = vmatmul.mubr.bf16.gmra.mxu0 %v628
  %v1073 = vpop.f32.mrf.mxu0
  %v1074 = vadd.f32 %v154, %v1073
  %v1075 = vpop.f32.mrf.mxu0
  %v1076 = vpop.f32.mrf.mxu0
  %v1077 = vadd.f32 %v154, %v1076
  %v1078 = vpop.f32.mrf.mxu0
  %1079 = vmatprep.mubr.bf16.mxu0 0
  %1080 = vmatmul.mubr.bf16.gmra.mxu0 %v631
  %v1081 = vpop.f32.mrf.mxu0
  %v1082 = vadd.f32 %v154, %v1081
  %v1083 = vpop.f32.mrf.mxu0
  %v1084 = vpop.f32.mrf.mxu0
  %v1085 = vadd.f32 %v154, %v1084
  %v1086 = vpop.f32.mrf.mxu0
  %1087 = vmatprep.mubr.bf16.mxu0 0
  %1088 = vmatmul.mubr.bf16.gmra.mxu0 %v634
  %v1089 = vpop.f32.mrf.mxu0
  %v1090 = vadd.f32 %v154, %v1089
  %v1091 = vpop.f32.mrf.mxu0
  %v1092 = vpop.f32.mrf.mxu0
  %v1093 = vadd.f32 %v154, %v1092
  %v1094 = vpop.f32.mrf.mxu0
  %1095 = vmatprep.mubr.bf16.mxu0 0
  %1096 = vmatmul.mubr.bf16.gmra.mxu0 %v637
  %v1097 = vpop.f32.mrf.mxu0
  %v1098 = vadd.f32 %v154, %v1097
  %v1099 = vpop.f32.mrf.mxu0
  %v1100 = vpop.f32.mrf.mxu0
  %v1101 = vadd.f32 %v154, %v1100
  %v1102 = vpop.f32.mrf.mxu0
  %1103 = vmatprep.mubr.bf16.mxu0 0
  %1104 = vmatmul.mubr.bf16.gmra.mxu0 %v640
  %v1105 = vpop.f32.mrf.mxu0
  %v1106 = vadd.f32 %v154, %v1105
  %v1107 = vpop.f32.mrf.mxu0
  %v1108 = vpop.f32.mrf.mxu0
  %v1109 = vadd.f32 %v154, %v1108
  %v1110 = vpop.f32.mrf.mxu0
  %1111 = vmatprep.mubr.bf16.mxu0 0
  %1112 = vmatmul.mubr.bf16.gmra.mxu0 %v643
  %v1113 = vpop.f32.mrf.mxu0
  %v1114 = vadd.f32 %v154, %v1113
  %v1115 = vpop.f32.mrf.mxu0
  %v1116 = vpop.f32.mrf.mxu0
  %v1117 = vadd.f32 %v154, %v1116
  %v1118 = vpop.f32.mrf.mxu0
  %1119 = vmatprep.mubr.bf16.mxu0 0
  %1120 = vmatmul.mubr.bf16.gmra.mxu0 %v646
  %v1121 = vpop.f32.mrf.mxu0
  %v1122 = vadd.f32 %v154, %v1121
  %v1123 = vpop.f32.mrf.mxu0
  %v1124 = vpop.f32.mrf.mxu0
  %v1125 = vadd.f32 %v154, %v1124
  %v1126 = vpop.f32.mrf.mxu0
  %1127 = vmatprep.mubr.bf16.mxu0 0
  %1128 = vmatmul.mubr.bf16.gmra.mxu0 %v649
  %v1129 = vpop.f32.mrf.mxu0
  %v1130 = vadd.f32 %v154, %v1129
  %v1131 = vpop.f32.mrf.mxu0
  %v1132 = vpop.f32.mrf.mxu0
  %v1133 = vadd.f32 %v154, %v1132
  %v1134 = vpop.f32.mrf.mxu0
  %1135 = vmatprep.mubr.bf16.mxu0 0
  %1136 = vmatmul.mubr.bf16.gmra.mxu0 %v652
  %v1137 = vpop.f32.mrf.mxu0
  %v1138 = vadd.f32 %v154, %v1137
  %v1139 = vpop.f32.mrf.mxu0
  %v1140 = vpop.f32.mrf.mxu0
  %v1141 = vadd.f32 %v154, %v1140
  %v1142 = vpop.f32.mrf.mxu0
  %1143 = vmatprep.mubr.bf16.mxu0 0
  %1144 = vmatmul.mubr.bf16.gmra.mxu0 %v655
  %v1145 = vpop.f32.mrf.mxu0
  %v1146 = vadd.f32 %v154, %v1145
  %v1147 = vpop.f32.mrf.mxu0
  %v1148 = vpop.f32.mrf.mxu0
  %v1149 = vadd.f32 %v154, %v1148
  %v1150 = vpop.f32.mrf.mxu0
  %1151 = vmatprep.mubr.bf16.mxu0 0
  %1152 = vmatmul.mubr.bf16.gmra.mxu0 %v658
  %v1153 = vpop.f32.mrf.mxu0
  %v1154 = vadd.f32 %v154, %v1153
  %v1155 = vpop.f32.mrf.mxu0
  %v1156 = vpop.f32.mrf.mxu0
  %v1157 = vadd.f32 %v154, %v1156
  %v1158 = vpop.f32.mrf.mxu0
  %1159 = vmatprep.mubr.bf16.mxu0 0
  %1160 = vmatmul.mubr.bf16.gmra.mxu0 %v661
  %v1161 = vpop.f32.mrf.mxu0
  %v1162 = vadd.f32 %v154, %v1161
  %v1163 = vpop.f32.mrf.mxu0
  %v1164 = vpop.f32.mrf.mxu0
  %v1165 = vadd.f32 %v154, %v1164
  %v1166 = vpop.f32.mrf.mxu0
  %1167 = vmatprep.mubr.bf16.mxu0 0
  %1168 = vmatmul.mubr.bf16.gmra.mxu0 %v664
  %v1169 = vpop.f32.mrf.mxu0
  %v1170 = vadd.f32 %v154, %v1169
  %v1171 = vpop.f32.mrf.mxu0
  %v1172 = vpop.f32.mrf.mxu0
  %v1173 = vadd.f32 %v154, %v1172
  %v1174 = vpop.f32.mrf.mxu0
  %1175 = vmatprep.mubr.bf16.mxu0 0
  %1176 = vmatmul.mubr.bf16.gmra.mxu0 %v667
  %v1177 = vpop.f32.mrf.mxu0
  %v1178 = vadd.f32 %v154, %v1177
  %v1179 = vpop.f32.mrf.mxu0
  %v1180 = vpop.f32.mrf.mxu0
  %v1181 = vadd.f32 %v154, %v1180
  %v1182 = vpop.f32.mrf.mxu0
  %1183 = vmatprep.mubr.bf16.mxu0 0
  %1184 = vmatmul.mubr.bf16.gmra.mxu0 %v670
  %v1185 = vpop.f32.mrf.mxu0
  %v1186 = vadd.f32 %v154, %v1185
  %v1187 = vpop.f32.mrf.mxu0
  %v1188 = vpop.f32.mrf.mxu0
  %v1189 = vadd.f32 %v154, %v1188
  %v1190 = vpop.f32.mrf.mxu0
  %1191 = vmatprep.mubr.bf16.mxu0 0
  %1192 = vmatmul.mubr.bf16.gmra.mxu0 %v673
  %v1193 = vpop.f32.mrf.mxu0
  %v1194 = vadd.f32 %v154, %v1193
  %v1195 = vpop.f32.mrf.mxu0
  %v1196 = vpop.f32.mrf.mxu0
  %v1197 = vadd.f32 %v154, %v1196
  %v1198 = vpop.f32.mrf.mxu0
  %1199 = vmatprep.mubr.bf16.mxu0 0
  %1200 = vmatmul.mubr.bf16.gmra.mxu0 %v676
  %v1201 = vpop.f32.mrf.mxu0
  %v1202 = vadd.f32 %v154, %v1201
  %v1203 = vpop.f32.mrf.mxu0
  %v1204 = vpop.f32.mrf.mxu0
  %v1205 = vadd.f32 %v154, %v1204
  %v1206 = vpop.f32.mrf.mxu0
  %1207 = vmatprep.mubr.bf16.mxu0 0
  %1208 = vmatmul.mubr.bf16.gmra.mxu0 %v679
  %v1209 = vpop.f32.mrf.mxu0
  %v1210 = vadd.f32 %v154, %v1209
  %v1211 = vpop.f32.mrf.mxu0
  %v1212 = vpop.f32.mrf.mxu0
  %v1213 = vadd.f32 %v154, %v1212
  %v1214 = vpop.f32.mrf.mxu0
  %1215 = vmatprep.mubr.bf16.mxu0 0
  %1216 = vmatmul.mubr.bf16.gmra.mxu0 %v682
  %v1217 = vpop.f32.mrf.mxu0
  %v1218 = vadd.f32 %v154, %v1217
  %v1219 = vpop.f32.mrf.mxu0
  %v1220 = vpop.f32.mrf.mxu0
  %v1221 = vadd.f32 %v154, %v1220
  %v1222 = vpop.f32.mrf.mxu0
  %1223 = vmatprep.mubr.bf16.mxu0 0
  %1224 = vmatmul.mubr.bf16.gmra.mxu0 %v685
  %v1225 = vpop.f32.mrf.mxu0
  %v1226 = vadd.f32 %v154, %v1225
  %v1227 = vpop.f32.mrf.mxu0
  %v1228 = vpop.f32.mrf.mxu0
  %v1229 = vadd.f32 %v154, %v1228
  %v1230 = vpop.f32.mrf.mxu0
  %1231 = vdwg.mxu0
  %v1232 = vmax.f32 %v722, 0.0
  %v1233 = vmax.f32 %v725, 0.0
  %v1234 = vmax.f32 %v730, 0.0
  %v1235 = vmax.f32 %v733, 0.0
  %v1236 = vmax.f32 %v738, 0.0
  %v1237 = vmax.f32 %v741, 0.0
  %v1238 = vmax.f32 %v746, 0.0
  %v1239 = vmax.f32 %v749, 0.0
  %v1240 = vmax.f32 %v754, 0.0
  %v1241 = vmax.f32 %v757, 0.0
  %v1242 = vmax.f32 %v762, 0.0
  %v1243 = vmax.f32 %v765, 0.0
  %v1244 = vmax.f32 %v770, 0.0
  %v1245 = vmax.f32 %v773, 0.0
  %v1246 = vmax.f32 %v778, 0.0
  %v1247 = vmax.f32 %v781, 0.0
  %v1248 = vmax.f32 %v786, 0.0
  %v1249 = vmax.f32 %v789, 0.0
  %v1250 = vmax.f32 %v794, 0.0
  %v1251 = vmax.f32 %v797, 0.0
  %v1252 = vmax.f32 %v802, 0.0
  %v1253 = vmax.f32 %v805, 0.0
  %v1254 = vmax.f32 %v810, 0.0
  %v1255 = vmax.f32 %v813, 0.0
  %v1256 = vmax.f32 %v818, 0.0
  %v1257 = vmax.f32 %v821, 0.0
  %v1258 = vmax.f32 %v826, 0.0
  %v1259 = vmax.f32 %v829, 0.0
  %v1260 = vmax.f32 %v834, 0.0
  %v1261 = vmax.f32 %v837, 0.0
  %v1262 = vmax.f32 %v842, 0.0
  %v1263 = vmax.f32 %v845, 0.0
  %v1264 = vmax.f32 %v850, 0.0
  %v1265 = vmax.f32 %v853, 0.0
  %v1266 = vmax.f32 %v858, 0.0
  %v1267 = vmax.f32 %v861, 0.0
  %v1268 = vmax.f32 %v866, 0.0
  %v1269 = vmax.f32 %v869, 0.0
  %v1270 = vmax.f32 %v874, 0.0
  %v1271 = vmax.f32 %v877, 0.0
  %v1272 = vmax.f32 %v882, 0.0
  %v1273 = vmax.f32 %v885, 0.0
  %v1274 = vmax.f32 %v890, 0.0
  %v1275 = vmax.f32 %v893, 0.0
  %v1276 = vmax.f32 %v898, 0.0
  %v1277 = vmax.f32 %v901, 0.0
  %v1278 = vmax.f32 %v906, 0.0
  %v1279 = vmax.f32 %v909, 0.0
  %v1280 = vmax.f32 %v914, 0.0
  %v1281 = vmax.f32 %v917, 0.0
  %v1282 = vmax.f32 %v922, 0.0
  %v1283 = vmax.f32 %v925, 0.0
  %v1284 = vmax.f32 %v930, 0.0
  %v1285 = vmax.f32 %v933, 0.0
  %v1286 = vmax.f32 %v938, 0.0
  %v1287 = vmax.f32 %v941, 0.0
  %v1288 = vmax.f32 %v946, 0.0
  %v1289 = vmax.f32 %v949, 0.0
  %v1290 = vmax.f32 %v954, 0.0
  %v1291 = vmax.f32 %v957, 0.0
  %v1292 = vmax.f32 %v962, 0.0
  %v1293 = vmax.f32 %v965, 0.0
  %v1294 = vmax.f32 %v970, 0.0
  %v1295 = vmax.f32 %v973, 0.0
  %v1296 = vmax.f32 %v978, 0.0
  %v1297 = vmax.f32 %v981, 0.0
  %v1298 = vmax.f32 %v986, 0.0
  %v1299 = vmax.f32 %v989, 0.0
  %v1300 = vmax.f32 %v994, 0.0
  %v1301 = vmax.f32 %v997, 0.0
  %v1302 = vmax.f32 %v1002, 0.0
  %v1303 = vmax.f32 %v1005, 0.0
  %v1304 = vmax.f32 %v1010, 0.0
  %v1305 = vmax.f32 %v1013, 0.0
  %v1306 = vmax.f32 %v1018, 0.0
  %v1307 = vmax.f32 %v1021, 0.0
  %v1308 = vmax.f32 %v1026, 0.0
  %v1309 = vmax.f32 %v1029, 0.0
  %v1310 = vmax.f32 %v1034, 0.0
  %v1311 = vmax.f32 %v1037, 0.0
  %v1312 = vmax.f32 %v1042, 0.0
  %v1313 = vmax.f32 %v1045, 0.0
  %v1314 = vmax.f32 %v1050, 0.0
  %v1315 = vmax.f32 %v1053, 0.0
  %v1316 = vmax.f32 %v1058, 0.0
  %v1317 = vmax.f32 %v1061, 0.0
  %v1318 = vmax.f32 %v1066, 0.0
  %v1319 = vmax.f32 %v1069, 0.0
  %v1320 = vmax.f32 %v1074, 0.0
  %v1321 = vmax.f32 %v1077, 0.0
  %v1322 = vmax.f32 %v1082, 0.0
  %v1323 = vmax.f32 %v1085, 0.0
  %v1324 = vmax.f32 %v1090, 0.0
  %v1325 = vmax.f32 %v1093, 0.0
  %v1326 = vmax.f32 %v1098, 0.0
  %v1327 = vmax.f32 %v1101, 0.0
  %v1328 = vmax.f32 %v1106, 0.0
  %v1329 = vmax.f32 %v1109, 0.0
  %v1330 = vmax.f32 %v1114, 0.0
  %v1331 = vmax.f32 %v1117, 0.0
  %v1332 = vmax.f32 %v1122, 0.0
  %v1333 = vmax.f32 %v1125, 0.0
  %v1334 = vmax.f32 %v1130, 0.0
  %v1335 = vmax.f32 %v1133, 0.0
  %v1336 = vmax.f32 %v1138, 0.0
  %v1337 = vmax.f32 %v1141, 0.0
  %v1338 = vmax.f32 %v1146, 0.0
  %v1339 = vmax.f32 %v1149, 0.0
  %v1340 = vmax.f32 %v1154, 0.0
  %v1341 = vmax.f32 %v1157, 0.0
  %v1342 = vmax.f32 %v1162, 0.0
  %v1343 = vmax.f32 %v1165, 0.0
  %v1344 = vmax.f32 %v1170, 0.0
  %v1345 = vmax.f32 %v1173, 0.0
  %v1346 = vmax.f32 %v1178, 0.0
  %v1347 = vmax.f32 %v1181, 0.0
  %v1348 = vmax.f32 %v1186, 0.0
  %v1349 = vmax.f32 %v1189, 0.0
  %v1350 = vmax.f32 %v1194, 0.0
  %v1351 = vmax.f32 %v1197, 0.0
  %v1352 = vmax.f32 %v1202, 0.0
  %v1353 = vmax.f32 %v1205, 0.0
  %v1354 = vmax.f32 %v1210, 0.0
  %v1355 = vmax.f32 %v1213, 0.0
  %v1356 = vmax.f32 %v1218, 0.0
  %v1357 = vmax.f32 %v1221, 0.0
  %v1358 = vmax.f32 %v1226, 0.0
  %v1359 = vmax.f32 %v1229, 0.0
  %v1360 = vpack.c.bf16 %v1233, %v1232
  %v1361 = vpack.c.bf16 %v1235, %v1234
  %v1362 = vpack.c.bf16 %v1237, %v1236
  %v1363 = vpack.c.bf16 %v1239, %v1238
  %v1364 = vpack.c.bf16 %v1241, %v1240
  %v1365 = vpack.c.bf16 %v1243, %v1242
  %v1366 = vpack.c.bf16 %v1245, %v1244
  %v1367 = vpack.c.bf16 %v1247, %v1246
  %v1368 = vpack.c.bf16 %v1249, %v1248
  %v1369 = vpack.c.bf16 %v1251, %v1250
  %v1370 = vpack.c.bf16 %v1253, %v1252
  %v1371 = vpack.c.bf16 %v1255, %v1254
  %v1372 = vpack.c.bf16 %v1257, %v1256
  %v1373 = vpack.c.bf16 %v1259, %v1258
  %v1374 = vpack.c.bf16 %v1261, %v1260
  %v1375 = vpack.c.bf16 %v1263, %v1262
  %v1376 = vpack.c.bf16 %v1265, %v1264
  %v1377 = vpack.c.bf16 %v1267, %v1266
  %v1378 = vpack.c.bf16 %v1269, %v1268
  %v1379 = vpack.c.bf16 %v1271, %v1270
  %v1380 = vpack.c.bf16 %v1273, %v1272
  %v1381 = vpack.c.bf16 %v1275, %v1274
  %v1382 = vpack.c.bf16 %v1277, %v1276
  %v1383 = vpack.c.bf16 %v1279, %v1278
  %v1384 = vpack.c.bf16 %v1281, %v1280
  %v1385 = vpack.c.bf16 %v1283, %v1282
  %v1386 = vpack.c.bf16 %v1285, %v1284
  %v1387 = vpack.c.bf16 %v1287, %v1286
  %v1388 = vpack.c.bf16 %v1289, %v1288
  %v1389 = vpack.c.bf16 %v1291, %v1290
  %v1390 = vpack.c.bf16 %v1293, %v1292
  %v1391 = vpack.c.bf16 %v1295, %v1294
  %v1392 = vpack.c.bf16 %v1297, %v1296
  %v1393 = vpack.c.bf16 %v1299, %v1298
  %v1394 = vpack.c.bf16 %v1301, %v1300
  %v1395 = vpack.c.bf16 %v1303, %v1302
  %v1396 = vpack.c.bf16 %v1305, %v1304
  %v1397 = vpack.c.bf16 %v1307, %v1306
  %v1398 = vpack.c.bf16 %v1309, %v1308
  %v1399 = vpack.c.bf16 %v1311, %v1310
  %v1400 = vpack.c.bf16 %v1313, %v1312
  %v1401 = vpack.c.bf16 %v1315, %v1314
  %v1402 = vpack.c.bf16 %v1317, %v1316
  %v1403 = vpack.c.bf16 %v1319, %v1318
  %v1404 = vpack.c.bf16 %v1321, %v1320
  %v1405 = vpack.c.bf16 %v1323, %v1322
  %v1406 = vpack.c.bf16 %v1325, %v1324
  %v1407 = vpack.c.bf16 %v1327, %v1326
  %v1408 = vpack.c.bf16 %v1329, %v1328
  %v1409 = vpack.c.bf16 %v1331, %v1330
  %v1410 = vpack.c.bf16 %v1333, %v1332
  %v1411 = vpack.c.bf16 %v1335, %v1334
  %v1412 = vpack.c.bf16 %v1337, %v1336
  %v1413 = vpack.c.bf16 %v1339, %v1338
  %v1414 = vpack.c.bf16 %v1341, %v1340
  %v1415 = vpack.c.bf16 %v1343, %v1342
  %v1416 = vpack.c.bf16 %v1345, %v1344
  %v1417 = vpack.c.bf16 %v1347, %v1346
  %v1418 = vpack.c.bf16 %v1349, %v1348
  %v1419 = vpack.c.bf16 %v1351, %v1350
  %v1420 = vpack.c.bf16 %v1353, %v1352
  %v1421 = vpack.c.bf16 %v1355, %v1354
  %v1422 = vpack.c.bf16 %v1357, %v1356
  %v1423 = vpack.c.bf16 %v1359, %v1358
  %v1488 = vunpack.c.l.b16 %v1360
  %v1489 = vunpack.c.h.b16 %v1360
  %v1490 = vunpack.c.l.b16 %v1361
  %v1491 = vunpack.c.h.b16 %v1361
  %v1492 = vunpack.c.l.b16 %v1362
  %v1493 = vunpack.c.h.b16 %v1362
  %v1494 = vunpack.c.l.b16 %v1363
  %v1495 = vunpack.c.h.b16 %v1363
  %v1496 = vunpack.c.l.b16 %v1364
  %v1497 = vunpack.c.h.b16 %v1364
  %v1498 = vunpack.c.l.b16 %v1365
  %v1499 = vunpack.c.h.b16 %v1365
  %v1500 = vunpack.c.l.b16 %v1366
  %v1501 = vunpack.c.h.b16 %v1366
  %v1502 = vunpack.c.l.b16 %v1367
  %v1503 = vunpack.c.h.b16 %v1367
  %v1504 = vunpack.c.l.b16 %v1368
  %v1505 = vunpack.c.h.b16 %v1368
  %v1506 = vunpack.c.l.b16 %v1369
  %v1507 = vunpack.c.h.b16 %v1369
  %v1508 = vunpack.c.l.b16 %v1370
  %v1509 = vunpack.c.h.b16 %v1370
  %v1510 = vunpack.c.l.b16 %v1371
  %v1511 = vunpack.c.h.b16 %v1371
  %v1512 = vunpack.c.l.b16 %v1372
  %v1513 = vunpack.c.h.b16 %v1372
  %v1514 = vunpack.c.l.b16 %v1373
  %v1515 = vunpack.c.h.b16 %v1373
  %v1516 = vunpack.c.l.b16 %v1374
  %v1517 = vunpack.c.h.b16 %v1374
  %v1518 = vunpack.c.l.b16 %v1375
  %v1519 = vunpack.c.h.b16 %v1375
  %v1520 = vunpack.c.l.b16 %v1376
  %v1521 = vunpack.c.h.b16 %v1376
  %v1522 = vunpack.c.l.b16 %v1377
  %v1523 = vunpack.c.h.b16 %v1377
  %v1524 = vunpack.c.l.b16 %v1378
  %v1525 = vunpack.c.h.b16 %v1378
  %v1526 = vunpack.c.l.b16 %v1379
  %v1527 = vunpack.c.h.b16 %v1379
  %v1528 = vunpack.c.l.b16 %v1380
  %v1529 = vunpack.c.h.b16 %v1380
  %v1530 = vunpack.c.l.b16 %v1381
  %v1531 = vunpack.c.h.b16 %v1381
  %v1532 = vunpack.c.l.b16 %v1382
  %v1533 = vunpack.c.h.b16 %v1382
  %v1534 = vunpack.c.l.b16 %v1383
  %v1535 = vunpack.c.h.b16 %v1383
  %v1536 = vunpack.c.l.b16 %v1384
  %v1537 = vunpack.c.h.b16 %v1384
  %v1538 = vunpack.c.l.b16 %v1385
  %v1539 = vunpack.c.h.b16 %v1385
  %v1540 = vunpack.c.l.b16 %v1386
  %v1541 = vunpack.c.h.b16 %v1386
  %v1542 = vunpack.c.l.b16 %v1387
  %v1543 = vunpack.c.h.b16 %v1387
  %v1544 = vunpack.c.l.b16 %v1388
  %v1545 = vunpack.c.h.b16 %v1388
  %v1546 = vunpack.c.l.b16 %v1389
  %v1547 = vunpack.c.h.b16 %v1389
  %v1548 = vunpack.c.l.b16 %v1390
  %v1549 = vunpack.c.h.b16 %v1390
  %v1550 = vunpack.c.l.b16 %v1391
  %v1551 = vunpack.c.h.b16 %v1391
  %v1552 = vunpack.c.l.b16 %v1392
  %v1553 = vunpack.c.h.b16 %v1392
  %v1554 = vunpack.c.l.b16 %v1393
  %v1555 = vunpack.c.h.b16 %v1393
  %v1556 = vunpack.c.l.b16 %v1394
  %v1557 = vunpack.c.h.b16 %v1394
  %v1558 = vunpack.c.l.b16 %v1395
  %v1559 = vunpack.c.h.b16 %v1395
  %v1560 = vunpack.c.l.b16 %v1396
  %v1561 = vunpack.c.h.b16 %v1396
  %v1562 = vunpack.c.l.b16 %v1397
  %v1563 = vunpack.c.h.b16 %v1397
  %v1564 = vunpack.c.l.b16 %v1398
  %v1565 = vunpack.c.h.b16 %v1398
  %v1566 = vunpack.c.l.b16 %v1399
  %v1567 = vunpack.c.h.b16 %v1399
  %v1568 = vunpack.c.l.b16 %v1400
  %v1569 = vunpack.c.h.b16 %v1400
  %v1570 = vunpack.c.l.b16 %v1401
  %v1571 = vunpack.c.h.b16 %v1401
  %v1572 = vunpack.c.l.b16 %v1402
  %v1573 = vunpack.c.h.b16 %v1402
  %v1574 = vunpack.c.l.b16 %v1403
  %v1575 = vunpack.c.h.b16 %v1403
  %v1576 = vunpack.c.l.b16 %v1404
  %v1577 = vunpack.c.h.b16 %v1404
  %v1578 = vunpack.c.l.b16 %v1405
  %v1579 = vunpack.c.h.b16 %v1405
  %v1580 = vunpack.c.l.b16 %v1406
  %v1581 = vunpack.c.h.b16 %v1406
  %v1582 = vunpack.c.l.b16 %v1407
  %v1583 = vunpack.c.h.b16 %v1407
  %v1584 = vunpack.c.l.b16 %v1408
  %v1585 = vunpack.c.h.b16 %v1408
  %v1586 = vunpack.c.l.b16 %v1409
  %v1587 = vunpack.c.h.b16 %v1409
  %v1588 = vunpack.c.l.b16 %v1410
  %v1589 = vunpack.c.h.b16 %v1410
  %v1590 = vunpack.c.l.b16 %v1411
  %v1591 = vunpack.c.h.b16 %v1411
  %v1592 = vunpack.c.l.b16 %v1412
  %v1593 = vunpack.c.h.b16 %v1412
  %v1594 = vunpack.c.l.b16 %v1413
  %v1595 = vunpack.c.h.b16 %v1413
  %v1596 = vunpack.c.l.b16 %v1414
  %v1597 = vunpack.c.h.b16 %v1414
  %v1598 = vunpack.c.l.b16 %v1415
  %v1599 = vunpack.c.h.b16 %v1415
  %v1600 = vunpack.c.l.b16 %v1416
  %v1601 = vunpack.c.h.b16 %v1416
  %v1602 = vunpack.c.l.b16 %v1417
  %v1603 = vunpack.c.h.b16 %v1417
  %v1604 = vunpack.c.l.b16 %v1418
  %v1605 = vunpack.c.h.b16 %v1418
  %v1606 = vunpack.c.l.b16 %v1419
  %v1607 = vunpack.c.h.b16 %v1419
  %v1608 = vunpack.c.l.b16 %v1420
  %v1609 = vunpack.c.h.b16 %v1420
  %v1610 = vunpack.c.l.b16 %v1421
  %v1611 = vunpack.c.h.b16 %v1421
  %v1612 = vunpack.c.l.b16 %v1422
  %v1613 = vunpack.c.h.b16 %v1422
  %v1614 = vunpack.c.l.b16 %v1423
  %v1615 = vunpack.c.h.b16 %v1423
  %v1616 = vpack.c.b16 %v1488, %v1488
  %v1617 = vpack.c.b16 %v1489, %v1489
  %v1618 = vpack.c.b16 %v1490, %v1490
  %v1619 = vpack.c.b16 %v1491, %v1491
  %v1620 = vpack.c.b16 %v1492, %v1492
  %v1621 = vpack.c.b16 %v1493, %v1493
  %v1622 = vpack.c.b16 %v1494, %v1494
  %v1623 = vpack.c.b16 %v1495, %v1495
  %v1624 = vpack.c.b16 %v1496, %v1496
  %v1625 = vpack.c.b16 %v1497, %v1497
  %v1626 = vpack.c.b16 %v1498, %v1498
  %v1627 = vpack.c.b16 %v1499, %v1499
  %v1628 = vpack.c.b16 %v1500, %v1500
  %v1629 = vpack.c.b16 %v1501, %v1501
  %v1630 = vpack.c.b16 %v1502, %v1502
  %v1631 = vpack.c.b16 %v1503, %v1503
  %v1632 = vpack.c.b16 %v1504, %v1504
  %v1633 = vpack.c.b16 %v1505, %v1505
  %v1634 = vpack.c.b16 %v1506, %v1506
  %v1635 = vpack.c.b16 %v1507, %v1507
  %v1636 = vpack.c.b16 %v1508, %v1508
  %v1637 = vpack.c.b16 %v1509, %v1509
  %v1638 = vpack.c.b16 %v1510, %v1510
  %v1639 = vpack.c.b16 %v1511, %v1511
  %v1640 = vpack.c.b16 %v1512, %v1512
  %v1641 = vpack.c.b16 %v1513, %v1513
  %v1642 = vpack.c.b16 %v1514, %v1514
  %v1643 = vpack.c.b16 %v1515, %v1515
  %v1644 = vpack.c.b16 %v1516, %v1516
  %v1645 = vpack.c.b16 %v1517, %v1517
  %v1646 = vpack.c.b16 %v1518, %v1518
  %v1647 = vpack.c.b16 %v1519, %v1519
  %v1648 = vpack.c.b16 %v1520, %v1520
  %v1649 = vpack.c.b16 %v1521, %v1521
  %v1650 = vpack.c.b16 %v1522, %v1522
  %v1651 = vpack.c.b16 %v1523, %v1523
  %v1652 = vpack.c.b16 %v1524, %v1524
  %v1653 = vpack.c.b16 %v1525, %v1525
  %v1654 = vpack.c.b16 %v1526, %v1526
  %v1655 = vpack.c.b16 %v1527, %v1527
  %v1656 = vpack.c.b16 %v1528, %v1528
  %v1657 = vpack.c.b16 %v1529, %v1529
  %v1658 = vpack.c.b16 %v1530, %v1530
  %v1659 = vpack.c.b16 %v1531, %v1531
  %v1660 = vpack.c.b16 %v1532, %v1532
  %v1661 = vpack.c.b16 %v1533, %v1533
  %v1662 = vpack.c.b16 %v1534, %v1534
  %v1663 = vpack.c.b16 %v1535, %v1535
  %v1664 = vpack.c.b16 %v1536, %v1536
  %v1665 = vpack.c.b16 %v1537, %v1537
  %v1666 = vpack.c.b16 %v1538, %v1538
  %v1667 = vpack.c.b16 %v1539, %v1539
  %v1668 = vpack.c.b16 %v1540, %v1540
  %v1669 = vpack.c.b16 %v1541, %v1541
  %v1670 = vpack.c.b16 %v1542, %v1542
  %v1671 = vpack.c.b16 %v1543, %v1543
  %v1672 = vpack.c.b16 %v1544, %v1544
  %v1673 = vpack.c.b16 %v1545, %v1545
  %v1674 = vpack.c.b16 %v1546, %v1546
  %v1675 = vpack.c.b16 %v1547, %v1547
  %v1676 = vpack.c.b16 %v1548, %v1548
  %v1677 = vpack.c.b16 %v1549, %v1549
  %v1678 = vpack.c.b16 %v1550, %v1550
  %v1679 = vpack.c.b16 %v1551, %v1551
  %v1680 = vpack.c.b16 %v1552, %v1552
  %v1681 = vpack.c.b16 %v1553, %v1553
  %v1682 = vpack.c.b16 %v1554, %v1554
  %v1683 = vpack.c.b16 %v1555, %v1555
  %v1684 = vpack.c.b16 %v1556, %v1556
  %v1685 = vpack.c.b16 %v1557, %v1557
  %v1686 = vpack.c.b16 %v1558, %v1558
  %v1687 = vpack.c.b16 %v1559, %v1559
  %v1688 = vpack.c.b16 %v1560, %v1560
  %v1689 = vpack.c.b16 %v1561, %v1561
  %v1690 = vpack.c.b16 %v1562, %v1562
  %v1691 = vpack.c.b16 %v1563, %v1563
  %v1692 = vpack.c.b16 %v1564, %v1564
  %v1693 = vpack.c.b16 %v1565, %v1565
  %v1694 = vpack.c.b16 %v1566, %v1566
  %v1695 = vpack.c.b16 %v1567, %v1567
  %v1696 = vpack.c.b16 %v1568, %v1568
  %v1697 = vpack.c.b16 %v1569, %v1569
  %v1698 = vpack.c.b16 %v1570, %v1570
  %v1699 = vpack.c.b16 %v1571, %v1571
  %v1700 = vpack.c.b16 %v1572, %v1572
  %v1701 = vpack.c.b16 %v1573, %v1573
  %v1702 = vpack.c.b16 %v1574, %v1574
  %v1703 = vpack.c.b16 %v1575, %v1575
  %v1704 = vpack.c.b16 %v1576, %v1576
  %v1705 = vpack.c.b16 %v1577, %v1577
  %v1706 = vpack.c.b16 %v1578, %v1578
  %v1707 = vpack.c.b16 %v1579, %v1579
  %v1708 = vpack.c.b16 %v1580, %v1580
  %v1709 = vpack.c.b16 %v1581, %v1581
  %v1710 = vpack.c.b16 %v1582, %v1582
  %v1711 = vpack.c.b16 %v1583, %v1583
  %v1712 = vpack.c.b16 %v1584, %v1584
  %v1713 = vpack.c.b16 %v1585, %v1585
  %v1714 = vpack.c.b16 %v1586, %v1586
  %v1715 = vpack.c.b16 %v1587, %v1587
  %v1716 = vpack.c.b16 %v1588, %v1588
  %v1717 = vpack.c.b16 %v1589, %v1589
  %v1718 = vpack.c.b16 %v1590, %v1590
  %v1719 = vpack.c.b16 %v1591, %v1591
  %v1720 = vpack.c.b16 %v1592, %v1592
  %v1721 = vpack.c.b16 %v1593, %v1593
  %v1722 = vpack.c.b16 %v1594, %v1594
  %v1723 = vpack.c.b16 %v1595, %v1595
  %v1724 = vpack.c.b16 %v1596, %v1596
  %v1725 = vpack.c.b16 %v1597, %v1597
  %v1726 = vpack.c.b16 %v1598, %v1598
  %v1727 = vpack.c.b16 %v1599, %v1599
  %v1728 = vpack.c.b16 %v1600, %v1600
  %v1729 = vpack.c.b16 %v1601, %v1601
  %v1730 = vpack.c.b16 %v1602, %v1602
  %v1731 = vpack.c.b16 %v1603, %v1603
  %v1732 = vpack.c.b16 %v1604, %v1604
  %v1733 = vpack.c.b16 %v1605, %v1605
  %v1734 = vpack.c.b16 %v1606, %v1606
  %v1735 = vpack.c.b16 %v1607, %v1607
  %v1736 = vpack.c.b16 %v1608, %v1608
  %v1737 = vpack.c.b16 %v1609, %v1609
  %v1738 = vpack.c.b16 %v1610, %v1610
  %v1739 = vpack.c.b16 %v1611, %v1611
  %v1740 = vpack.c.b16 %v1612, %v1612
  %v1741 = vpack.c.b16 %v1613, %v1613
  %v1742 = vpack.c.b16 %v1614, %v1614
  %v1743 = vpack.c.b16 %v1615, %v1615
  %vm1872 = vcmask 257024
  %1873 = vst.msk [vmem:[%s3] sm:$0xf] %vm1872, %v1616
  %1874 = vst.msk [vmem:[%s3 + $0x4] sm:$0xf] %vm1872, %v1617
  %1875 = vst.msk [vmem:[%s3 + $0x8] sm:$0xf] %vm1872, %v1618
  %1876 = vst.msk [vmem:[%s3 + $0xc] sm:$0xf] %vm1872, %v1619
  %1877 = vst.msk [vmem:[%s3 + $0x10] sm:$0xf] %vm1872, %v1620
  %1878 = vst.msk [vmem:[%s3 + $0x14] sm:$0xf] %vm1872, %v1621
  %1879 = vst.msk [vmem:[%s3 + $0x18] sm:$0xf] %vm1872, %v1622
  %1880 = vst.msk [vmem:[%s3 + $0x1c] sm:$0xf] %vm1872, %v1623
  %1881 = vst.msk [vmem:[%s3 + $0x20] sm:$0xf] %vm1872, %v1624
  %1882 = vst.msk [vmem:[%s3 + $0x24] sm:$0xf] %vm1872, %v1625
  %1883 = vst.msk [vmem:[%s3 + $0x28] sm:$0xf] %vm1872, %v1626
  %1884 = vst.msk [vmem:[%s3 + $0x2c] sm:$0xf] %vm1872, %v1627
  %1885 = vst.msk [vmem:[%s3 + $0x30] sm:$0xf] %vm1872, %v1628
  %1886 = vst.msk [vmem:[%s3 + $0x34] sm:$0xf] %vm1872, %v1629
  %1887 = vst.msk [vmem:[%s3 + $0x38] sm:$0xf] %vm1872, %v1630
  %1888 = vst.msk [vmem:[%s3 + $0x3c] sm:$0xf] %vm1872, %v1631
  %1889 = vst.msk [vmem:[%s3 + $0x40] sm:$0xf] %vm1872, %v1632
  %1890 = vst.msk [vmem:[%s3 + $0x44] sm:$0xf] %vm1872, %v1633
  %1891 = vst.msk [vmem:[%s3 + $0x48] sm:$0xf] %vm1872, %v1634
  %1892 = vst.msk [vmem:[%s3 + $0x4c] sm:$0xf] %vm1872, %v1635
  %1893 = vst.msk [vmem:[%s3 + $0x50] sm:$0xf] %vm1872, %v1636
  %1894 = vst.msk [vmem:[%s3 + $0x54] sm:$0xf] %vm1872, %v1637
  %1895 = vst.msk [vmem:[%s3 + $0x58] sm:$0xf] %vm1872, %v1638
  %1896 = vst.msk [vmem:[%s3 + $0x5c] sm:$0xf] %vm1872, %v1639
  %1897 = vst.msk [vmem:[%s3 + $0x60] sm:$0xf] %vm1872, %v1640
  %1898 = vst.msk [vmem:[%s3 + $0x64] sm:$0xf] %vm1872, %v1641
  %1899 = vst.msk [vmem:[%s3 + $0x68] sm:$0xf] %vm1872, %v1642
  %1900 = vst.msk [vmem:[%s3 + $0x6c] sm:$0xf] %vm1872, %v1643
  %1901 = vst.msk [vmem:[%s3 + $0x70] sm:$0xf] %vm1872, %v1644
  %1902 = vst.msk [vmem:[%s3 + $0x74] sm:$0xf] %vm1872, %v1645
  %1903 = vst.msk [vmem:[%s3 + $0x78] sm:$0xf] %vm1872, %v1646
  %1904 = vst.msk [vmem:[%s3 + $0x7c] sm:$0xf] %vm1872, %v1647
  %1905 = vst.msk [vmem:[%s3 + $0x80] sm:$0xf] %vm1872, %v1648
  %1906 = vst.msk [vmem:[%s3 + $0x84] sm:$0xf] %vm1872, %v1649
  %1907 = vst.msk [vmem:[%s3 + $0x88] sm:$0xf] %vm1872, %v1650
  %1908 = vst.msk [vmem:[%s3 + $0x8c] sm:$0xf] %vm1872, %v1651
  %1909 = vst.msk [vmem:[%s3 + $0x90] sm:$0xf] %vm1872, %v1652
  %1910 = vst.msk [vmem:[%s3 + $0x94] sm:$0xf] %vm1872, %v1653
  %1911 = vst.msk [vmem:[%s3 + $0x98] sm:$0xf] %vm1872, %v1654
  %1912 = vst.msk [vmem:[%s3 + $0x9c] sm:$0xf] %vm1872, %v1655
  %1913 = vst.msk [vmem:[%s3 + $0xa0] sm:$0xf] %vm1872, %v1656
  %1914 = vst.msk [vmem:[%s3 + $0xa4] sm:$0xf] %vm1872, %v1657
  %1915 = vst.msk [vmem:[%s3 + $0xa8] sm:$0xf] %vm1872, %v1658
  %1916 = vst.msk [vmem:[%s3 + $0xac] sm:$0xf] %vm1872, %v1659
  %1917 = vst.msk [vmem:[%s3 + $0xb0] sm:$0xf] %vm1872, %v1660
  %1918 = vst.msk [vmem:[%s3 + $0xb4] sm:$0xf] %vm1872, %v1661
  %1919 = vst.msk [vmem:[%s3 + $0xb8] sm:$0xf] %vm1872, %v1662
  %1920 = vst.msk [vmem:[%s3 + $0xbc] sm:$0xf] %vm1872, %v1663
  %1921 = vst.msk [vmem:[%s3 + $0xc0] sm:$0xf] %vm1872, %v1664
  %1922 = vst.msk [vmem:[%s3 + $0xc4] sm:$0xf] %vm1872, %v1665
  %1923 = vst.msk [vmem:[%s3 + $0xc8] sm:$0xf] %vm1872, %v1666
  %1924 = vst.msk [vmem:[%s3 + $0xcc] sm:$0xf] %vm1872, %v1667
  %1925 = vst.msk [vmem:[%s3 + $0xd0] sm:$0xf] %vm1872, %v1668
  %1926 = vst.msk [vmem:[%s3 + $0xd4] sm:$0xf] %vm1872, %v1669
  %1927 = vst.msk [vmem:[%s3 + $0xd8] sm:$0xf] %vm1872, %v1670
  %1928 = vst.msk [vmem:[%s3 + $0xdc] sm:$0xf] %vm1872, %v1671
  %1929 = vst.msk [vmem:[%s3 + $0xe0] sm:$0xf] %vm1872, %v1672
  %1930 = vst.msk [vmem:[%s3 + $0xe4] sm:$0xf] %vm1872, %v1673
  %1931 = vst.msk [vmem:[%s3 + $0xe8] sm:$0xf] %vm1872, %v1674
  %1932 = vst.msk [vmem:[%s3 + $0xec] sm:$0xf] %vm1872, %v1675
  %1933 = vst.msk [vmem:[%s3 + $0xf0] sm:$0xf] %vm1872, %v1676
  %1934 = vst.msk [vmem:[%s3 + $0xf4] sm:$0xf] %vm1872, %v1677
  %1935 = vst.msk [vmem:[%s3 + $0xf8] sm:$0xf] %vm1872, %v1678
  %1936 = vst.msk [vmem:[%s3 + $0xfc] sm:$0xf] %vm1872, %v1679
  %1937 = vst.msk [vmem:[%s3 + $0x100] sm:$0xf] %vm1872, %v1680
  %1938 = vst.msk [vmem:[%s3 + $0x104] sm:$0xf] %vm1872, %v1681
  %1939 = vst.msk [vmem:[%s3 + $0x108] sm:$0xf] %vm1872, %v1682
  %1940 = vst.msk [vmem:[%s3 + $0x10c] sm:$0xf] %vm1872, %v1683
  %1941 = vst.msk [vmem:[%s3 + $0x110] sm:$0xf] %vm1872, %v1684
  %1942 = vst.msk [vmem:[%s3 + $0x114] sm:$0xf] %vm1872, %v1685
  %1943 = vst.msk [vmem:[%s3 + $0x118] sm:$0xf] %vm1872, %v1686
  %1944 = vst.msk [vmem:[%s3 + $0x11c] sm:$0xf] %vm1872, %v1687
  %1945 = vst.msk [vmem:[%s3 + $0x120] sm:$0xf] %vm1872, %v1688
  %1946 = vst.msk [vmem:[%s3 + $0x124] sm:$0xf] %vm1872, %v1689
  %1947 = vst.msk [vmem:[%s3 + $0x128] sm:$0xf] %vm1872, %v1690
  %1948 = vst.msk [vmem:[%s3 + $0x12c] sm:$0xf] %vm1872, %v1691
  %1949 = vst.msk [vmem:[%s3 + $0x130] sm:$0xf] %vm1872, %v1692
  %1950 = vst.msk [vmem:[%s3 + $0x134] sm:$0xf] %vm1872, %v1693
  %1951 = vst.msk [vmem:[%s3 + $0x138] sm:$0xf] %vm1872, %v1694
  %1952 = vst.msk [vmem:[%s3 + $0x13c] sm:$0xf] %vm1872, %v1695
  %1953 = vst.msk [vmem:[%s3 + $0x140] sm:$0xf] %vm1872, %v1696
  %1954 = vst.msk [vmem:[%s3 + $0x144] sm:$0xf] %vm1872, %v1697
  %1955 = vst.msk [vmem:[%s3 + $0x148] sm:$0xf] %vm1872, %v1698
  %1956 = vst.msk [vmem:[%s3 + $0x14c] sm:$0xf] %vm1872, %v1699
  %1957 = vst.msk [vmem:[%s3 + $0x150] sm:$0xf] %vm1872, %v1700
  %1958 = vst.msk [vmem:[%s3 + $0x154] sm:$0xf] %vm1872, %v1701
  %1959 = vst.msk [vmem:[%s3 + $0x158] sm:$0xf] %vm1872, %v1702
  %1960 = vst.msk [vmem:[%s3 + $0x15c] sm:$0xf] %vm1872, %v1703
  %1961 = vst.msk [vmem:[%s3 + $0x160] sm:$0xf] %vm1872, %v1704
  %1962 = vst.msk [vmem:[%s3 + $0x164] sm:$0xf] %vm1872, %v1705
  %1963 = vst.msk [vmem:[%s3 + $0x168] sm:$0xf] %vm1872, %v1706
  %1964 = vst.msk [vmem:[%s3 + $0x16c] sm:$0xf] %vm1872, %v1707
  %1965 = vst.msk [vmem:[%s3 + $0x170] sm:$0xf] %vm1872, %v1708
  %1966 = vst.msk [vmem:[%s3 + $0x174] sm:$0xf] %vm1872, %v1709
  %1967 = vst.msk [vmem:[%s3 + $0x178] sm:$0xf] %vm1872, %v1710
  %1968 = vst.msk [vmem:[%s3 + $0x17c] sm:$0xf] %vm1872, %v1711
  %1969 = vst.msk [vmem:[%s3 + $0x180] sm:$0xf] %vm1872, %v1712
  %1970 = vst.msk [vmem:[%s3 + $0x184] sm:$0xf] %vm1872, %v1713
  %1971 = vst.msk [vmem:[%s3 + $0x188] sm:$0xf] %vm1872, %v1714
  %1972 = vst.msk [vmem:[%s3 + $0x18c] sm:$0xf] %vm1872, %v1715
  %1973 = vst.msk [vmem:[%s3 + $0x190] sm:$0xf] %vm1872, %v1716
  %1974 = vst.msk [vmem:[%s3 + $0x194] sm:$0xf] %vm1872, %v1717
  %1975 = vst.msk [vmem:[%s3 + $0x198] sm:$0xf] %vm1872, %v1718
  %1976 = vst.msk [vmem:[%s3 + $0x19c] sm:$0xf] %vm1872, %v1719
  %1977 = vst.msk [vmem:[%s3 + $0x1a0] sm:$0xf] %vm1872, %v1720
  %1978 = vst.msk [vmem:[%s3 + $0x1a4] sm:$0xf] %vm1872, %v1721
  %1979 = vst.msk [vmem:[%s3 + $0x1a8] sm:$0xf] %vm1872, %v1722
  %1980 = vst.msk [vmem:[%s3 + $0x1ac] sm:$0xf] %vm1872, %v1723
  %1981 = vst.msk [vmem:[%s3 + $0x1b0] sm:$0xf] %vm1872, %v1724
  %1982 = vst.msk [vmem:[%s3 + $0x1b4] sm:$0xf] %vm1872, %v1725
  %1983 = vst.msk [vmem:[%s3 + $0x1b8] sm:$0xf] %vm1872, %v1726
  %1984 = vst.msk [vmem:[%s3 + $0x1bc] sm:$0xf] %vm1872, %v1727
  %1985 = vst.msk [vmem:[%s3 + $0x1c0] sm:$0xf] %vm1872, %v1728
  %1986 = vst.msk [vmem:[%s3 + $0x1c4] sm:$0xf] %vm1872, %v1729
  %1987 = vst.msk [vmem:[%s3 + $0x1c8] sm:$0xf] %vm1872, %v1730
  %1988 = vst.msk [vmem:[%s3 + $0x1cc] sm:$0xf] %vm1872, %v1731
  %1989 = vst.msk [vmem:[%s3 + $0x1d0] sm:$0xf] %vm1872, %v1732
  %1990 = vst.msk [vmem:[%s3 + $0x1d4] sm:$0xf] %vm1872, %v1733
  %1991 = vst.msk [vmem:[%s3 + $0x1d8] sm:$0xf] %vm1872, %v1734
  %1992 = vst.msk [vmem:[%s3 + $0x1dc] sm:$0xf] %vm1872, %v1735
  %1993 = vst.msk [vmem:[%s3 + $0x1e0] sm:$0xf] %vm1872, %v1736
  %1994 = vst.msk [vmem:[%s3 + $0x1e4] sm:$0xf] %vm1872, %v1737
  %1995 = vst.msk [vmem:[%s3 + $0x1e8] sm:$0xf] %vm1872, %v1738
  %1996 = vst.msk [vmem:[%s3 + $0x1ec] sm:$0xf] %vm1872, %v1739
  %1997 = vst.msk [vmem:[%s3 + $0x1f0] sm:$0xf] %vm1872, %v1740
  %1998 = vst.msk [vmem:[%s3 + $0x1f4] sm:$0xf] %vm1872, %v1741
  %1999 = vst.msk [vmem:[%s3 + $0x1f8] sm:$0xf] %vm1872, %v1742
  %2000 = vst.msk [vmem:[%s3 + $0x1fc] sm:$0xf] %vm1872, %v1743
  // Predicated region
  $region14: #{percept_forward.5} parent=0 // pred_check
    _
  $region15: #{percept_forward.5} parent=0 // pred_check_branch
    %2002 = sbr.rel (0) target = $region17
  $region16: #{percept_forward.5} parent=0 // pred_region
    _
  $region17: #{percept_forward.5} parent=0 // pred_fallthru
    _
  // Predicated region
  $region18: #{percept_forward.5} parent=0 // pred_check
    _
  $region19: #{percept_forward.5} parent=0 // pred_check_branch
    %2004 = sbr.rel (0) target = $region21
  $region20: #{percept_forward.5} parent=0 // pred_region
    _
  $region21: #{percept_forward.5} parent=0 // pred_fallthru
    _

// kernel: percept_forward.6
$region0: #{percept_forward.6}
  #allocation0 [shape = 'u32[]', space=smem, size = 0x4, offset = 0x4, fixed_abs, tag = 'smem constant byte address 0x4 - core index']
  #allocation1 [shape = 'u32[144,128]{1,0:T(1,128)}', space=vmem, size = 0x12000, scoped, tag = 'internal scratch']
  %s0 = inlined_call_operand.vmem [shape: bf16[256,512], index: 0, kind: input, shape index: {}]
  %s1 = inlined_call_operand.vmem [shape: bf16[512,64], index: 1, kind: input, shape index: {}]
  %s2 = inlined_call_operand.vmem [shape: f32[1,64], index: 2, kind: input, shape index: {}]
  %s3 = inlined_call_operand.vmem [shape: bf16[256,64], index: 3, kind: output, shape index: {}]
  %s4 = sld [smem:[#allocation0]]
  $region22: #{percept_forward.6} parent=0
    _
  %s6 = ssub.s32 1, %s4
  %s7 = scalar_select 0, %s6, %s4
  // Predicated region
  $region2: #{percept_forward.6} parent=0 // pred_check
    _
  $region3: #{percept_forward.6} parent=0 // pred_check_branch
    %9 = sbr.rel (0) target = $region5
  $region4: #{percept_forward.6} parent=0 // pred_region
    _
  $region5: #{percept_forward.6} parent=0 // pred_fallthru
    _
  // Predicated region
  $region6: #{percept_forward.6} parent=0 // pred_check
    _
  $region7: #{percept_forward.6} parent=0 // pred_check_branch
    %11 = sbr.rel (0) target = $region9
  $region8: #{percept_forward.6} parent=0 // pred_region
    _
  $region9: #{percept_forward.6} parent=0 // pred_fallthru
    _
  // Predicated region
  $region10: #{percept_forward.6} parent=0 // pred_check
    _
  $region11: #{percept_forward.6} parent=0 // pred_check_branch
    %13 = sbr.rel (0) target = $region13
  $region12: #{percept_forward.6} parent=0 // pred_region
    _
  $region13: #{percept_forward.6} parent=0 // pred_fallthru
    _
  %v15 = vld [vmem:[%s0] sm:$0xff]
  %v16 = vld [vmem:[%s0 + $0x8] sm:$0xff]
  %v17 = vld [vmem:[%s0 + $0x10] sm:$0xff]
  %v18 = vld [vmem:[%s0 + $0x18] sm:$0xff]
  %v19 = vld [vmem:[%s0 + $0x20] sm:$0xff]
  %v20 = vld [vmem:[%s0 + $0x28] sm:$0xff]
  %v21 = vld [vmem:[%s0 + $0x30] sm:$0xff]
  %v22 = vld [vmem:[%s0 + $0x38] sm:$0xff]
  %v23 = vld [vmem:[%s0 + $0x40] sm:$0xff]
  %v24 = vld [vmem:[%s0 + $0x48] sm:$0xff]
  %v25 = vld [vmem:[%s0 + $0x50] sm:$0xff]
  %v26 = vld [vmem:[%s0 + $0x58] sm:$0xff]
  %v27 = vld [vmem:[%s0 + $0x60] sm:$0xff]
  %v28 = vld [vmem:[%s0 + $0x68] sm:$0xff]
  %v29 = vld [vmem:[%s0 + $0x70] sm:$0xff]
  %v30 = vld [vmem:[%s0 + $0x78] sm:$0xff]
  %v31 = vld [vmem:[%s0 + $0x80] sm:$0xff]
  %v32 = vld [vmem:[%s0 + $0x88] sm:$0xff]
  %v33 = vld [vmem:[%s0 + $0x90] sm:$0xff]
  %v34 = vld [vmem:[%s0 + $0x98] sm:$0xff]
  %v35 = vld [vmem:[%s0 + $0xa0] sm:$0xff]
  %v36 = vld [vmem:[%s0 + $0xa8] sm:$0xff]
  %v37 = vld [vmem:[%s0 + $0xb0] sm:$0xff]
  %v38 = vld [vmem:[%s0 + $0xb8] sm:$0xff]
  %v39 = vld [vmem:[%s0 + $0xc0] sm:$0xff]
  %v40 = vld [vmem:[%s0 + $0xc8] sm:$0xff]
  %v41 = vld [vmem:[%s0 + $0xd0] sm:$0xff]
  %v42 = vld [vmem:[%s0 + $0xd8] sm:$0xff]
  %v43 = vld [vmem:[%s0 + $0xe0] sm:$0xff]
  %v44 = vld [vmem:[%s0 + $0xe8] sm:$0xff]
  %v45 = vld [vmem:[%s0 + $0xf0] sm:$0xff]
  %v46 = vld [vmem:[%s0 + $0xf8] sm:$0xff]
  %v47 = vld [vmem:[%s0 + $0x100] sm:$0xff]
  %v48 = vld [vmem:[%s0 + $0x108] sm:$0xff]
  %v49 = vld [vmem:[%s0 + $0x110] sm:$0xff]
  %v50 = vld [vmem:[%s0 + $0x118] sm:$0xff]
  %v51 = vld [vmem:[%s0 + $0x120] sm:$0xff]
  %v52 = vld [vmem:[%s0 + $0x128] sm:$0xff]
  %v53 = vld [vmem:[%s0 + $0x130] sm:$0xff]
  %v54 = vld [vmem:[%s0 + $0x138] sm:$0xff]
  %v55 = vld [vmem:[%s0 + $0x140] sm:$0xff]
  %v56 = vld [vmem:[%s0 + $0x148] sm:$0xff]
  %v57 = vld [vmem:[%s0 + $0x150] sm:$0xff]
  %v58 = vld [vmem:[%s0 + $0x158] sm:$0xff]
  %v59 = vld [vmem:[%s0 + $0x160] sm:$0xff]
  %v60 = vld [vmem:[%s0 + $0x168] sm:$0xff]
  %v61 = vld [vmem:[%s0 + $0x170] sm:$0xff]
  %v62 = vld [vmem:[%s0 + $0x178] sm:$0xff]
  %v63 = vld [vmem:[%s0 + $0x180] sm:$0xff]
  %v64 = vld [vmem:[%s0 + $0x188] sm:$0xff]
  %v65 = vld [vmem:[%s0 + $0x190] sm:$0xff]
  %v66 = vld [vmem:[%s0 + $0x198] sm:$0xff]
  %v67 = vld [vmem:[%s0 + $0x1a0] sm:$0xff]
  %v68 = vld [vmem:[%s0 + $0x1a8] sm:$0xff]
  %v69 = vld [vmem:[%s0 + $0x1b0] sm:$0xff]
  %v70 = vld [vmem:[%s0 + $0x1b8] sm:$0xff]
  %v71 = vld [vmem:[%s0 + $0x1c0] sm:$0xff]
  %v72 = vld [vmem:[%s0 + $0x1c8] sm:$0xff]
  %v73 = vld [vmem:[%s0 + $0x1d0] sm:$0xff]
  %v74 = vld [vmem:[%s0 + $0x1d8] sm:$0xff]
  %v75 = vld [vmem:[%s0 + $0x1e0] sm:$0xff]
  %v76 = vld [vmem:[%s0 + $0x1e8] sm:$0xff]
  %v77 = vld [vmem:[%s0 + $0x1f0] sm:$0xff]
  %v78 = vld [vmem:[%s0 + $0x1f8] sm:$0xff]
  %v79 = vld [vmem:[%s1] sm:$0xf]
  %v80 = vld [vmem:[%s1 + $0x4] sm:$0xf]
  %v81 = vld [vmem:[%s1 + $0x8] sm:$0xf]
  %v82 = vld [vmem:[%s1 + $0xc] sm:$0xf]
  %v83 = vld [vmem:[%s1 + $0x10] sm:$0xf]
  %v84 = vld [vmem:[%s1 + $0x14] sm:$0xf]
  %v85 = vld [vmem:[%s1 + $0x18] sm:$0xf]
  %v86 = vld [vmem:[%s1 + $0x1c] sm:$0xf]
  %v87 = vld [vmem:[%s1 + $0x20] sm:$0xf]
  %v88 = vld [vmem:[%s1 + $0x24] sm:$0xf]
  %v89 = vld [vmem:[%s1 + $0x28] sm:$0xf]
  %v90 = vld [vmem:[%s1 + $0x2c] sm:$0xf]
  %v91 = vld [vmem:[%s1 + $0x30] sm:$0xf]
  %v92 = vld [vmem:[%s1 + $0x34] sm:$0xf]
  %v93 = vld [vmem:[%s1 + $0x38] sm:$0xf]
  %v94 = vld [vmem:[%s1 + $0x3c] sm:$0xf]
  %v95 = vld [vmem:[%s1 + $0x40] sm:$0xf]
  %v96 = vld [vmem:[%s1 + $0x44] sm:$0xf]
  %v97 = vld [vmem:[%s1 + $0x48] sm:$0xf]
  %v98 = vld [vmem:[%s1 + $0x4c] sm:$0xf]
  %v99 = vld [vmem:[%s1 + $0x50] sm:$0xf]
  %v100 = vld [vmem:[%s1 + $0x54] sm:$0xf]
  %v101 = vld [vmem:[%s1 + $0x58] sm:$0xf]
  %v102 = vld [vmem:[%s1 + $0x5c] sm:$0xf]
  %v103 = vld [vmem:[%s1 + $0x60] sm:$0xf]
  %v104 = vld [vmem:[%s1 + $0x64] sm:$0xf]
  %v105 = vld [vmem:[%s1 + $0x68] sm:$0xf]
  %v106 = vld [vmem:[%s1 + $0x6c] sm:$0xf]
  %v107 = vld [vmem:[%s1 + $0x70] sm:$0xf]
  %v108 = vld [vmem:[%s1 + $0x74] sm:$0xf]
  %v109 = vld [vmem:[%s1 + $0x78] sm:$0xf]
  %v110 = vld [vmem:[%s1 + $0x7c] sm:$0xf]
  %v111 = vld [vmem:[%s1 + $0x80] sm:$0xf]
  %v112 = vld [vmem:[%s1 + $0x84] sm:$0xf]
  %v113 = vld [vmem:[%s1 + $0x88] sm:$0xf]
  %v114 = vld [vmem:[%s1 + $0x8c] sm:$0xf]
  %v115 = vld [vmem:[%s1 + $0x90] sm:$0xf]
  %v116 = vld [vmem:[%s1 + $0x94] sm:$0xf]
  %v117 = vld [vmem:[%s1 + $0x98] sm:$0xf]
  %v118 = vld [vmem:[%s1 + $0x9c] sm:$0xf]
  %v119 = vld [vmem:[%s1 + $0xa0] sm:$0xf]
  %v120 = vld [vmem:[%s1 + $0xa4] sm:$0xf]
  %v121 = vld [vmem:[%s1 + $0xa8] sm:$0xf]
  %v122 = vld [vmem:[%s1 + $0xac] sm:$0xf]
  %v123 = vld [vmem:[%s1 + $0xb0] sm:$0xf]
  %v124 = vld [vmem:[%s1 + $0xb4] sm:$0xf]
  %v125 = vld [vmem:[%s1 + $0xb8] sm:$0xf]
  %v126 = vld [vmem:[%s1 + $0xbc] sm:$0xf]
  %v127 = vld [vmem:[%s1 + $0xc0] sm:$0xf]
  %v128 = vld [vmem:[%s1 + $0xc4] sm:$0xf]
  %v129 = vld [vmem:[%s1 + $0xc8] sm:$0xf]
  %v130 = vld [vmem:[%s1 + $0xcc] sm:$0xf]
  %v131 = vld [vmem:[%s1 + $0xd0] sm:$0xf]
  %v132 = vld [vmem:[%s1 + $0xd4] sm:$0xf]
  %v133 = vld [vmem:[%s1 + $0xd8] sm:$0xf]
  %v134 = vld [vmem:[%s1 + $0xdc] sm:$0xf]
  %v135 = vld [vmem:[%s1 + $0xe0] sm:$0xf]
  %v136 = vld [vmem:[%s1 + $0xe4] sm:$0xf]
  %v137 = vld [vmem:[%s1 + $0xe8] sm:$0xf]
  %v138 = vld [vmem:[%s1 + $0xec] sm:$0xf]
  %v139 = vld [vmem:[%s1 + $0xf0] sm:$0xf]
  %v140 = vld [vmem:[%s1 + $0xf4] sm:$0xf]
  %v141 = vld [vmem:[%s1 + $0xf8] sm:$0xf]
  %v142 = vld [vmem:[%s1 + $0xfc] sm:$0xf]
  %v143 = vld [vmem:[%s2] sm:$0x1]
  %v145 = vlaneseq
  %v146 = vshrl.u32 %v145, 7
  %v147 = vsub.s32 0, %v146
  %v148 = vrot.slane %v143, %v147
  %v214 = vunpack.c.l.b16 %v15
  %v215 = vunpack.c.h.b16 %v15
  %v216 = vunpack.c.l.b16 %v16
  %v217 = vunpack.c.h.b16 %v16
  %v218 = vunpack.c.l.b16 %v17
  %v219 = vunpack.c.h.b16 %v17
  %v220 = vunpack.c.l.b16 %v18
  %v221 = vunpack.c.h.b16 %v18
  %v222 = vunpack.c.l.b16 %v19
  %v223 = vunpack.c.h.b16 %v19
  %v224 = vunpack.c.l.b16 %v20
  %v225 = vunpack.c.h.b16 %v20
  %v226 = vunpack.c.l.b16 %v21
  %v227 = vunpack.c.h.b16 %v21
  %v228 = vunpack.c.l.b16 %v22
  %v229 = vunpack.c.h.b16 %v22
  %v230 = vunpack.c.l.b16 %v23
  %v231 = vunpack.c.h.b16 %v23
  %v232 = vunpack.c.l.b16 %v24
  %v233 = vunpack.c.h.b16 %v24
  %v234 = vunpack.c.l.b16 %v25
  %v235 = vunpack.c.h.b16 %v25
  %v236 = vunpack.c.l.b16 %v26
  %v237 = vunpack.c.h.b16 %v26
  %v238 = vunpack.c.l.b16 %v27
  %v239 = vunpack.c.h.b16 %v27
  %v240 = vunpack.c.l.b16 %v28
  %v241 = vunpack.c.h.b16 %v28
  %v242 = vunpack.c.l.b16 %v29
  %v243 = vunpack.c.h.b16 %v29
  %v244 = vunpack.c.l.b16 %v30
  %v245 = vunpack.c.h.b16 %v30
  %v246 = vunpack.c.l.b16 %v31
  %v247 = vunpack.c.h.b16 %v31
  %v248 = vunpack.c.l.b16 %v32
  %v249 = vunpack.c.h.b16 %v32
  %v250 = vunpack.c.l.b16 %v33
  %v251 = vunpack.c.h.b16 %v33
  %v252 = vunpack.c.l.b16 %v34
  %v253 = vunpack.c.h.b16 %v34
  %v254 = vunpack.c.l.b16 %v35
  %v255 = vunpack.c.h.b16 %v35
  %v256 = vunpack.c.l.b16 %v36
  %v257 = vunpack.c.h.b16 %v36
  %v258 = vunpack.c.l.b16 %v37
  %v259 = vunpack.c.h.b16 %v37
  %v260 = vunpack.c.l.b16 %v38
  %v261 = vunpack.c.h.b16 %v38
  %v262 = vunpack.c.l.b16 %v39
  %v263 = vunpack.c.h.b16 %v39
  %v264 = vunpack.c.l.b16 %v40
  %v265 = vunpack.c.h.b16 %v40
  %v266 = vunpack.c.l.b16 %v41
  %v267 = vunpack.c.h.b16 %v41
  %v268 = vunpack.c.l.b16 %v42
  %v269 = vunpack.c.h.b16 %v42
  %v270 = vunpack.c.l.b16 %v43
  %v271 = vunpack.c.h.b16 %v43
  %v272 = vunpack.c.l.b16 %v44
  %v273 = vunpack.c.h.b16 %v44
  %v274 = vunpack.c.l.b16 %v45
  %v275 = vunpack.c.h.b16 %v45
  %v276 = vunpack.c.l.b16 %v46
  %v277 = vunpack.c.h.b16 %v46
  %v278 = vunpack.c.l.b16 %v47
  %v279 = vunpack.c.h.b16 %v47
  %v280 = vunpack.c.l.b16 %v48
  %v281 = vunpack.c.h.b16 %v48
  %v282 = vunpack.c.l.b16 %v49
  %v283 = vunpack.c.h.b16 %v49
  %v284 = vunpack.c.l.b16 %v50
  %v285 = vunpack.c.h.b16 %v50
  %v286 = vunpack.c.l.b16 %v51
  %v287 = vunpack.c.h.b16 %v51
  %v288 = vunpack.c.l.b16 %v52
  %v289 = vunpack.c.h.b16 %v52
  %v290 = vunpack.c.l.b16 %v53
  %v291 = vunpack.c.h.b16 %v53
  %v292 = vunpack.c.l.b16 %v54
  %v293 = vunpack.c.h.b16 %v54
  %v294 = vunpack.c.l.b16 %v55
  %v295 = vunpack.c.h.b16 %v55
  %v296 = vunpack.c.l.b16 %v56
  %v297 = vunpack.c.h.b16 %v56
  %v298 = vunpack.c.l.b16 %v57
  %v299 = vunpack.c.h.b16 %v57
  %v300 = vunpack.c.l.b16 %v58
  %v301 = vunpack.c.h.b16 %v58
  %v302 = vunpack.c.l.b16 %v59
  %v303 = vunpack.c.h.b16 %v59
  %v304 = vunpack.c.l.b16 %v60
  %v305 = vunpack.c.h.b16 %v60
  %v306 = vunpack.c.l.b16 %v61
  %v307 = vunpack.c.h.b16 %v61
  %v308 = vunpack.c.l.b16 %v62
  %v309 = vunpack.c.h.b16 %v62
  %v310 = vunpack.c.l.b16 %v63
  %v311 = vunpack.c.h.b16 %v63
  %v312 = vunpack.c.l.b16 %v64
  %v313 = vunpack.c.h.b16 %v64
  %v314 = vunpack.c.l.b16 %v65
  %v315 = vunpack.c.h.b16 %v65
  %v316 = vunpack.c.l.b16 %v66
  %v317 = vunpack.c.h.b16 %v66
  %v318 = vunpack.c.l.b16 %v67
  %v319 = vunpack.c.h.b16 %v67
  %v320 = vunpack.c.l.b16 %v68
  %v321 = vunpack.c.h.b16 %v68
  %v322 = vunpack.c.l.b16 %v69
  %v323 = vunpack.c.h.b16 %v69
  %v324 = vunpack.c.l.b16 %v70
  %v325 = vunpack.c.h.b16 %v70
  %v326 = vunpack.c.l.b16 %v71
  %v327 = vunpack.c.h.b16 %v71
  %v328 = vunpack.c.l.b16 %v72
  %v329 = vunpack.c.h.b16 %v72
  %v330 = vunpack.c.l.b16 %v73
  %v331 = vunpack.c.h.b16 %v73
  %v332 = vunpack.c.l.b16 %v74
  %v333 = vunpack.c.h.b16 %v74
  %v334 = vunpack.c.l.b16 %v75
  %v335 = vunpack.c.h.b16 %v75
  %v336 = vunpack.c.l.b16 %v76
  %v337 = vunpack.c.h.b16 %v76
  %v338 = vunpack.c.l.b16 %v77
  %v339 = vunpack.c.h.b16 %v77
  %v340 = vunpack.c.l.b16 %v78
  %v341 = vunpack.c.h.b16 %v78
  %v342 = vpack.c.b16 %v218, %v214
  %v343 = vpack.c.b16 %v219, %v215
  %v344 = vpack.c.b16 %v220, %v216
  %v345 = vpack.c.b16 %v221, %v217
  %v346 = vpack.c.b16 %v226, %v222
  %v347 = vpack.c.b16 %v227, %v223
  %v348 = vpack.c.b16 %v228, %v224
  %v349 = vpack.c.b16 %v229, %v225
  %v350 = vpack.c.b16 %v234, %v230
  %v351 = vpack.c.b16 %v235, %v231
  %v352 = vpack.c.b16 %v236, %v232
  %v353 = vpack.c.b16 %v237, %v233
  %v354 = vpack.c.b16 %v242, %v238
  %v355 = vpack.c.b16 %v243, %v239
  %v356 = vpack.c.b16 %v244, %v240
  %v357 = vpack.c.b16 %v245, %v241
  %v358 = vpack.c.b16 %v250, %v246
  %v359 = vpack.c.b16 %v251, %v247
  %v360 = vpack.c.b16 %v252, %v248
  %v361 = vpack.c.b16 %v253, %v249
  %v362 = vpack.c.b16 %v258, %v254
  %v363 = vpack.c.b16 %v259, %v255
  %v364 = vpack.c.b16 %v260, %v256
  %v365 = vpack.c.b16 %v261, %v257
  %v366 = vpack.c.b16 %v266, %v262
  %v367 = vpack.c.b16 %v267, %v263
  %v368 = vpack.c.b16 %v268, %v264
  %v369 = vpack.c.b16 %v269, %v265
  %v370 = vpack.c.b16 %v274, %v270
  %v371 = vpack.c.b16 %v275, %v271
  %v372 = vpack.c.b16 %v276, %v272
  %v373 = vpack.c.b16 %v277, %v273
  %v374 = vpack.c.b16 %v282, %v278
  %v375 = vpack.c.b16 %v283, %v279
  %v376 = vpack.c.b16 %v284, %v280
  %v377 = vpack.c.b16 %v285, %v281
  %v378 = vpack.c.b16 %v290, %v286
  %v379 = vpack.c.b16 %v291, %v287
  %v380 = vpack.c.b16 %v292, %v288
  %v381 = vpack.c.b16 %v293, %v289
  %v382 = vpack.c.b16 %v298, %v294
  %v383 = vpack.c.b16 %v299, %v295
  %v384 = vpack.c.b16 %v300, %v296
  %v385 = vpack.c.b16 %v301, %v297
  %v386 = vpack.c.b16 %v306, %v302
  %v387 = vpack.c.b16 %v307, %v303
  %v388 = vpack.c.b16 %v308, %v304
  %v389 = vpack.c.b16 %v309, %v305
  %v390 = vpack.c.b16 %v314, %v310
  %v391 = vpack.c.b16 %v315, %v311
  %v392 = vpack.c.b16 %v316, %v312
  %v393 = vpack.c.b16 %v317, %v313
  %v394 = vpack.c.b16 %v322, %v318
  %v395 = vpack.c.b16 %v323, %v319
  %v396 = vpack.c.b16 %v324, %v320
  %v397 = vpack.c.b16 %v325, %v321
  %v398 = vpack.c.b16 %v330, %v326
  %v399 = vpack.c.b16 %v331, %v327
  %v400 = vpack.c.b16 %v332, %v328
  %v401 = vpack.c.b16 %v333, %v329
  %v402 = vpack.c.b16 %v338, %v334
  %v403 = vpack.c.b16 %v339, %v335
  %v404 = vpack.c.b16 %v340, %v336
  %v405 = vpack.c.b16 %v341, %v337
  %v534 = vunpack.c.l.b16 %v79
  %v535 = vunpack.c.l.b16 %v80
  %v536 = vunpack.c.l.b16 %v81
  %v537 = vunpack.c.l.b16 %v82
  %v538 = vunpack.c.l.b16 %v83
  %v539 = vunpack.c.l.b16 %v84
  %v540 = vunpack.c.l.b16 %v85
  %v541 = vunpack.c.l.b16 %v86
  %v542 = vunpack.c.l.b16 %v87
  %v543 = vunpack.c.l.b16 %v88
  %v544 = vunpack.c.l.b16 %v89
  %v545 = vunpack.c.l.b16 %v90
  %v546 = vunpack.c.l.b16 %v91
  %v547 = vunpack.c.l.b16 %v92
  %v548 = vunpack.c.l.b16 %v93
  %v549 = vunpack.c.l.b16 %v94
  %v550 = vunpack.c.l.b16 %v95
  %v551 = vunpack.c.l.b16 %v96
  %v552 = vunpack.c.l.b16 %v97
  %v553 = vunpack.c.l.b16 %v98
  %v554 = vunpack.c.l.b16 %v99
  %v555 = vunpack.c.l.b16 %v100
  %v556 = vunpack.c.l.b16 %v101
  %v557 = vunpack.c.l.b16 %v102
  %v558 = vunpack.c.l.b16 %v103
  %v559 = vunpack.c.l.b16 %v104
  %v560 = vunpack.c.l.b16 %v105
  %v561 = vunpack.c.l.b16 %v106
  %v562 = vunpack.c.l.b16 %v107
  %v563 = vunpack.c.l.b16 %v108
  %v564 = vunpack.c.l.b16 %v109
  %v565 = vunpack.c.l.b16 %v110
  %v566 = vunpack.c.l.b16 %v111
  %v567 = vunpack.c.l.b16 %v112
  %v568 = vunpack.c.l.b16 %v113
  %v569 = vunpack.c.l.b16 %v114
  %v570 = vunpack.c.l.b16 %v115
  %v571 = vunpack.c.l.b16 %v116
  %v572 = vunpack.c.l.b16 %v117
  %v573 = vunpack.c.l.b16 %v118
  %v574 = vunpack.c.l.b16 %v119
  %v575 = vunpack.c.l.b16 %v120
  %v576 = vunpack.c.l.b16 %v121
  %v577 = vunpack.c.l.b16 %v122
  %v578 = vunpack.c.l.b16 %v123
  %v579 = vunpack.c.l.b16 %v124
  %v580 = vunpack.c.l.b16 %v125
  %v581 = vunpack.c.l.b16 %v126
  %v582 = vunpack.c.l.b16 %v127
  %v583 = vunpack.c.l.b16 %v128
  %v584 = vunpack.c.l.b16 %v129
  %v585 = vunpack.c.l.b16 %v130
  %v586 = vunpack.c.l.b16 %v131
  %v587 = vunpack.c.l.b16 %v132
  %v588 = vunpack.c.l.b16 %v133
  %v589 = vunpack.c.l.b16 %v134
  %v590 = vunpack.c.l.b16 %v135
  %v591 = vunpack.c.l.b16 %v136
  %v592 = vunpack.c.l.b16 %v137
  %v593 = vunpack.c.l.b16 %v138
  %v594 = vunpack.c.l.b16 %v139
  %v595 = vunpack.c.l.b16 %v140
  %v596 = vunpack.c.l.b16 %v141
  %v597 = vunpack.c.l.b16 %v142
  %v598 = vpack.c.b16 %v535, %v534
  %v599 = vpack.c.b16 %v537, %v536
  %v600 = vpack.c.b16 %v539, %v538
  %v601 = vpack.c.b16 %v541, %v540
  %v602 = vpack.c.b16 %v543, %v542
  %v603 = vpack.c.b16 %v545, %v544
  %v604 = vpack.c.b16 %v547, %v546
  %v605 = vpack.c.b16 %v549, %v548
  %v606 = vpack.c.b16 %v551, %v550
  %v607 = vpack.c.b16 %v553, %v552
  %v608 = vpack.c.b16 %v555, %v554
  %v609 = vpack.c.b16 %v557, %v556
  %v610 = vpack.c.b16 %v559, %v558
  %v611 = vpack.c.b16 %v561, %v560
  %v612 = vpack.c.b16 %v563, %v562
  %v613 = vpack.c.b16 %v565, %v564
  %v614 = vpack.c.b16 %v567, %v566
  %v615 = vpack.c.b16 %v569, %v568
  %v616 = vpack.c.b16 %v571, %v570
  %v617 = vpack.c.b16 %v573, %v572
  %v618 = vpack.c.b16 %v575, %v574
  %v619 = vpack.c.b16 %v577, %v576
  %v620 = vpack.c.b16 %v579, %v578
  %v621 = vpack.c.b16 %v581, %v580
  %v622 = vpack.c.b16 %v583, %v582
  %v623 = vpack.c.b16 %v585, %v584
  %v624 = vpack.c.b16 %v587, %v586
  %v625 = vpack.c.b16 %v589, %v588
  %v626 = vpack.c.b16 %v591, %v590
  %v627 = vpack.c.b16 %v593, %v592
  %v628 = vpack.c.b16 %v595, %v594
  %v629 = vpack.c.b16 %v597, %v596
  %662 = vmatprep.subr.bf16.mxu0 0
  %663 = vmatpush1.bf16.msra.mxu0 %v605
  %664 = vmatprep.subr.bf16.mxu0 0
  %665 = vmatpush1.bf16.msra.mxu0 %v604
  %666 = vmatprep.subr.bf16.mxu0 0
  %667 = vmatpush1.bf16.msra.mxu0 %v603
  %668 = vmatprep.subr.bf16.mxu0 0
  %669 = vmatpush1.bf16.msra.mxu0 %v602
  %670 = vmatprep.subr.bf16.mxu0 0
  %671 = vmatpush1.bf16.msra.mxu0 %v601
  %672 = vmatprep.subr.bf16.mxu0 0
  %673 = vmatpush1.bf16.msra.mxu0 %v600
  %674 = vmatprep.subr.bf16.mxu0 0
  %675 = vmatpush1.bf16.msra.mxu0 %v599
  %676 = vmatprep.subr.bf16.mxu0 0
  %677 = vmatpush1.bf16.msra.mxu0 %v598
  %678 = vmatprep.subr.bf16.mxu0 0
  %679 = vmatpush2.bf16.msra.mxu0 %v613
  %680 = vmatprep.subr.bf16.mxu0 0
  %681 = vmatpush2.bf16.msra.mxu0 %v612
  %682 = vmatprep.subr.bf16.mxu0 0
  %683 = vmatpush2.bf16.msra.mxu0 %v611
  %684 = vmatprep.subr.bf16.mxu0 0
  %685 = vmatpush2.bf16.msra.mxu0 %v610
  %686 = vmatprep.subr.bf16.mxu0 0
  %687 = vmatpush2.bf16.msra.mxu0 %v609
  %688 = vmatprep.subr.bf16.mxu0 0
  %689 = vmatpush2.bf16.msra.mxu0 %v608
  %690 = vmatprep.subr.bf16.mxu0 0
  %691 = vmatpush2.bf16.msra.mxu0 %v607
  %692 = vmatprep.subr.bf16.mxu0 0
  %693 = vmatpush2.bf16.msra.mxu0 %v606
  %694 = vmatprep.mubr.bf16.mxu0 %v343
  %695 = vmatmul.mubr.bf16.gmra.mxu0 %v342
  %v696 = vpop.f32.mrf.mxu0
  %v697 = vadd.f32 %v148, %v696
  %v698 = vpop.f32.mrf.mxu0
  %v699 = vpop.f32.mrf.mxu0
  %v700 = vadd.f32 %v148, %v699
  %v701 = vpop.f32.mrf.mxu0
  %702 = vmatprep.mubr.bf16.mxu0 %v347
  %703 = vmatmul.mubr.bf16.gmra.mxu0 %v346
  %v704 = vpop.f32.mrf.mxu0
  %v705 = vadd.f32 %v148, %v704
  %v706 = vpop.f32.mrf.mxu0
  %v707 = vpop.f32.mrf.mxu0
  %v708 = vadd.f32 %v148, %v707
  %v709 = vpop.f32.mrf.mxu0
  %710 = vmatprep.mubr.bf16.mxu0 %v351
  %711 = vmatmul.mubr.bf16.gmra.mxu0 %v350
  %v712 = vpop.f32.mrf.mxu0
  %v713 = vadd.f32 %v148, %v712
  %v714 = vpop.f32.mrf.mxu0
  %v715 = vpop.f32.mrf.mxu0
  %v716 = vadd.f32 %v148, %v715
  %v717 = vpop.f32.mrf.mxu0
  %718 = vmatprep.mubr.bf16.mxu0 %v355
  %719 = vmatmul.mubr.bf16.gmra.mxu0 %v354
  %v720 = vpop.f32.mrf.mxu0
  %v721 = vadd.f32 %v148, %v720
  %v722 = vpop.f32.mrf.mxu0
  %v723 = vpop.f32.mrf.mxu0
  %v724 = vadd.f32 %v148, %v723
  %v725 = vpop.f32.mrf.mxu0
  %726 = vmatprep.mubr.bf16.mxu0 %v359
  %727 = vmatmul.mubr.bf16.gmra.mxu0 %v358
  %v728 = vpop.f32.mrf.mxu0
  %v729 = vadd.f32 %v148, %v728
  %v730 = vpop.f32.mrf.mxu0
  %v731 = vpop.f32.mrf.mxu0
  %v732 = vadd.f32 %v148, %v731
  %v733 = vpop.f32.mrf.mxu0
  %734 = vmatprep.mubr.bf16.mxu0 %v363
  %735 = vmatmul.mubr.bf16.gmra.mxu0 %v362
  %v736 = vpop.f32.mrf.mxu0
  %v737 = vadd.f32 %v148, %v736
  %v738 = vpop.f32.mrf.mxu0
  %v739 = vpop.f32.mrf.mxu0
  %v740 = vadd.f32 %v148, %v739
  %v741 = vpop.f32.mrf.mxu0
  %742 = vmatprep.mubr.bf16.mxu0 %v367
  %743 = vmatmul.mubr.bf16.gmra.mxu0 %v366
  %v744 = vpop.f32.mrf.mxu0
  %v745 = vadd.f32 %v148, %v744
  %v746 = vpop.f32.mrf.mxu0
  %v747 = vpop.f32.mrf.mxu0
  %v748 = vadd.f32 %v148, %v747
  %v749 = vpop.f32.mrf.mxu0
  %750 = vmatprep.mubr.bf16.mxu0 %v371
  %751 = vmatmul.mubr.bf16.gmra.mxu0 %v370
  %v752 = vpop.f32.mrf.mxu0
  %v753 = vadd.f32 %v148, %v752
  %v754 = vpop.f32.mrf.mxu0
  %v755 = vpop.f32.mrf.mxu0
  %v756 = vadd.f32 %v148, %v755
  %v757 = vpop.f32.mrf.mxu0
  %758 = vmatprep.mubr.bf16.mxu0 %v375
  %759 = vmatmul.mubr.bf16.gmra.mxu0 %v374
  %v760 = vpop.f32.mrf.mxu0
  %v761 = vadd.f32 %v148, %v760
  %v762 = vpop.f32.mrf.mxu0
  %v763 = vpop.f32.mrf.mxu0
  %v764 = vadd.f32 %v148, %v763
  %v765 = vpop.f32.mrf.mxu0
  %766 = vmatprep.mubr.bf16.mxu0 %v379
  %767 = vmatmul.mubr.bf16.gmra.mxu0 %v378
  %v768 = vpop.f32.mrf.mxu0
  %v769 = vadd.f32 %v148, %v768
  %v770 = vpop.f32.mrf.mxu0
  %v771 = vpop.f32.mrf.mxu0
  %v772 = vadd.f32 %v148, %v771
  %v773 = vpop.f32.mrf.mxu0
  %774 = vmatprep.mubr.bf16.mxu0 %v383
  %775 = vmatmul.mubr.bf16.gmra.mxu0 %v382
  %v776 = vpop.f32.mrf.mxu0
  %v777 = vadd.f32 %v148, %v776
  %v778 = vpop.f32.mrf.mxu0
  %v779 = vpop.f32.mrf.mxu0
  %v780 = vadd.f32 %v148, %v779
  %v781 = vpop.f32.mrf.mxu0
  %782 = vmatprep.mubr.bf16.mxu0 %v387
  %783 = vmatmul.mubr.bf16.gmra.mxu0 %v386
  %v784 = vpop.f32.mrf.mxu0
  %v785 = vadd.f32 %v148, %v784
  %v786 = vpop.f32.mrf.mxu0
  %v787 = vpop.f32.mrf.mxu0
  %v788 = vadd.f32 %v148, %v787
  %v789 = vpop.f32.mrf.mxu0
  %790 = vmatprep.mubr.bf16.mxu0 %v391
  %791 = vmatmul.mubr.bf16.gmra.mxu0 %v390
  %v792 = vpop.f32.mrf.mxu0
  %v793 = vadd.f32 %v148, %v792
  %v794 = vpop.f32.mrf.mxu0
  %v795 = vpop.f32.mrf.mxu0
  %v796 = vadd.f32 %v148, %v795
  %v797 = vpop.f32.mrf.mxu0
  %798 = vmatprep.mubr.bf16.mxu0 %v395
  %799 = vmatmul.mubr.bf16.gmra.mxu0 %v394
  %v800 = vpop.f32.mrf.mxu0
  %v801 = vadd.f32 %v148, %v800
  %v802 = vpop.f32.mrf.mxu0
  %v803 = vpop.f32.mrf.mxu0
  %v804 = vadd.f32 %v148, %v803
  %v805 = vpop.f32.mrf.mxu0
  %806 = vmatprep.mubr.bf16.mxu0 %v399
  %807 = vmatmul.mubr.bf16.gmra.mxu0 %v398
  %v808 = vpop.f32.mrf.mxu0
  %v809 = vadd.f32 %v148, %v808
  %v810 = vpop.f32.mrf.mxu0
  %v811 = vpop.f32.mrf.mxu0
  %v812 = vadd.f32 %v148, %v811
  %v813 = vpop.f32.mrf.mxu0
  %814 = vmatprep.mubr.bf16.mxu0 %v403
  %815 = vmatmul.mubr.bf16.gmra.mxu0 %v402
  %v816 = vpop.f32.mrf.mxu0
  %v817 = vadd.f32 %v148, %v816
  %v818 = vpop.f32.mrf.mxu0
  %v819 = vpop.f32.mrf.mxu0
  %v820 = vadd.f32 %v148, %v819
  %v821 = vpop.f32.mrf.mxu0
  %822 = vdwg.mxu0
  %823 = vmatprep.subr.bf16.mxu0 0
  %824 = vmatpush1.bf16.msra.mxu0 %v621
  %825 = vmatprep.subr.bf16.mxu0 0
  %826 = vmatpush1.bf16.msra.mxu0 %v620
  %827 = vmatprep.subr.bf16.mxu0 0
  %828 = vmatpush1.bf16.msra.mxu0 %v619
  %829 = vmatprep.subr.bf16.mxu0 0
  %830 = vmatpush1.bf16.msra.mxu0 %v618
  %831 = vmatprep.subr.bf16.mxu0 0
  %832 = vmatpush1.bf16.msra.mxu0 %v617
  %833 = vmatprep.subr.bf16.mxu0 0
  %834 = vmatpush1.bf16.msra.mxu0 %v616
  %835 = vmatprep.subr.bf16.mxu0 0
  %836 = vmatpush1.bf16.msra.mxu0 %v615
  %837 = vmatprep.subr.bf16.mxu0 0
  %838 = vmatpush1.bf16.msra.mxu0 %v614
  %839 = vmatprep.subr.bf16.mxu0 0
  %840 = vmatpush2.bf16.msra.mxu0 %v629
  %841 = vmatprep.subr.bf16.mxu0 0
  %842 = vmatpush2.bf16.msra.mxu0 %v628
  %843 = vmatprep.subr.bf16.mxu0 0
  %844 = vmatpush2.bf16.msra.mxu0 %v627
  %845 = vmatprep.subr.bf16.mxu0 0
  %846 = vmatpush2.bf16.msra.mxu0 %v626
  %847 = vmatprep.subr.bf16.mxu0 0
  %848 = vmatpush2.bf16.msra.mxu0 %v625
  %849 = vmatprep.subr.bf16.mxu0 0
  %850 = vmatpush2.bf16.msra.mxu0 %v624
  %851 = vmatprep.subr.bf16.mxu0 0
  %852 = vmatpush2.bf16.msra.mxu0 %v623
  %853 = vmatprep.subr.bf16.mxu0 0
  %854 = vmatpush2.bf16.msra.mxu0 %v622
  %855 = vmatprep.mubr.bf16.mxu0 %v345
  %856 = vmatmul.mubr.bf16.gmra.mxu0 %v344
  %v857 = vpop.f32.mrf.mxu0
  %v858 = vadd.f32 %v697, %v857
  %v859 = vpop.f32.mrf.mxu0
  %v860 = vpop.f32.mrf.mxu0
  %v861 = vadd.f32 %v700, %v860
  %v862 = vpop.f32.mrf.mxu0
  %863 = vmatprep.mubr.bf16.mxu0 %v349
  %864 = vmatmul.mubr.bf16.gmra.mxu0 %v348
  %v865 = vpop.f32.mrf.mxu0
  %v866 = vadd.f32 %v705, %v865
  %v867 = vpop.f32.mrf.mxu0
  %v868 = vpop.f32.mrf.mxu0
  %v869 = vadd.f32 %v708, %v868
  %v870 = vpop.f32.mrf.mxu0
  %871 = vmatprep.mubr.bf16.mxu0 %v353
  %872 = vmatmul.mubr.bf16.gmra.mxu0 %v352
  %v873 = vpop.f32.mrf.mxu0
  %v874 = vadd.f32 %v713, %v873
  %v875 = vpop.f32.mrf.mxu0
  %v876 = vpop.f32.mrf.mxu0
  %v877 = vadd.f32 %v716, %v876
  %v878 = vpop.f32.mrf.mxu0
  %879 = vmatprep.mubr.bf16.mxu0 %v357
  %880 = vmatmul.mubr.bf16.gmra.mxu0 %v356
  %v881 = vpop.f32.mrf.mxu0
  %v882 = vadd.f32 %v721, %v881
  %v883 = vpop.f32.mrf.mxu0
  %v884 = vpop.f32.mrf.mxu0
  %v885 = vadd.f32 %v724, %v884
  %v886 = vpop.f32.mrf.mxu0
  %887 = vmatprep.mubr.bf16.mxu0 %v361
  %888 = vmatmul.mubr.bf16.gmra.mxu0 %v360
  %v889 = vpop.f32.mrf.mxu0
  %v890 = vadd.f32 %v729, %v889
  %v891 = vpop.f32.mrf.mxu0
  %v892 = vpop.f32.mrf.mxu0
  %v893 = vadd.f32 %v732, %v892
  %v894 = vpop.f32.mrf.mxu0
  %895 = vmatprep.mubr.bf16.mxu0 %v365
  %896 = vmatmul.mubr.bf16.gmra.mxu0 %v364
  %v897 = vpop.f32.mrf.mxu0
  %v898 = vadd.f32 %v737, %v897
  %v899 = vpop.f32.mrf.mxu0
  %v900 = vpop.f32.mrf.mxu0
  %v901 = vadd.f32 %v740, %v900
  %v902 = vpop.f32.mrf.mxu0
  %903 = vmatprep.mubr.bf16.mxu0 %v369
  %904 = vmatmul.mubr.bf16.gmra.mxu0 %v368
  %v905 = vpop.f32.mrf.mxu0
  %v906 = vadd.f32 %v745, %v905
  %v907 = vpop.f32.mrf.mxu0
  %v908 = vpop.f32.mrf.mxu0
  %v909 = vadd.f32 %v748, %v908
  %v910 = vpop.f32.mrf.mxu0
  %911 = vmatprep.mubr.bf16.mxu0 %v373
  %912 = vmatmul.mubr.bf16.gmra.mxu0 %v372
  %v913 = vpop.f32.mrf.mxu0
  %v914 = vadd.f32 %v753, %v913
  %v915 = vpop.f32.mrf.mxu0
  %v916 = vpop.f32.mrf.mxu0
  %v917 = vadd.f32 %v756, %v916
  %v918 = vpop.f32.mrf.mxu0
  %919 = vmatprep.mubr.bf16.mxu0 %v377
  %920 = vmatmul.mubr.bf16.gmra.mxu0 %v376
  %v921 = vpop.f32.mrf.mxu0
  %v922 = vadd.f32 %v761, %v921
  %v923 = vpop.f32.mrf.mxu0
  %v924 = vpop.f32.mrf.mxu0
  %v925 = vadd.f32 %v764, %v924
  %v926 = vpop.f32.mrf.mxu0
  %927 = vmatprep.mubr.bf16.mxu0 %v381
  %928 = vmatmul.mubr.bf16.gmra.mxu0 %v380
  %v929 = vpop.f32.mrf.mxu0
  %v930 = vadd.f32 %v769, %v929
  %v931 = vpop.f32.mrf.mxu0
  %v932 = vpop.f32.mrf.mxu0
  %v933 = vadd.f32 %v772, %v932
  %v934 = vpop.f32.mrf.mxu0
  %935 = vmatprep.mubr.bf16.mxu0 %v385
  %936 = vmatmul.mubr.bf16.gmra.mxu0 %v384
  %v937 = vpop.f32.mrf.mxu0
  %v938 = vadd.f32 %v777, %v937
  %v939 = vpop.f32.mrf.mxu0
  %v940 = vpop.f32.mrf.mxu0
  %v941 = vadd.f32 %v780, %v940
  %v942 = vpop.f32.mrf.mxu0
  %943 = vmatprep.mubr.bf16.mxu0 %v389
  %944 = vmatmul.mubr.bf16.gmra.mxu0 %v388
  %v945 = vpop.f32.mrf.mxu0
  %v946 = vadd.f32 %v785, %v945
  %v947 = vpop.f32.mrf.mxu0
  %v948 = vpop.f32.mrf.mxu0
  %v949 = vadd.f32 %v788, %v948
  %v950 = vpop.f32.mrf.mxu0
  %951 = vmatprep.mubr.bf16.mxu0 %v393
  %952 = vmatmul.mubr.bf16.gmra.mxu0 %v392
  %v953 = vpop.f32.mrf.mxu0
  %v954 = vadd.f32 %v793, %v953
  %v955 = vpop.f32.mrf.mxu0
  %v956 = vpop.f32.mrf.mxu0
  %v957 = vadd.f32 %v796, %v956
  %v958 = vpop.f32.mrf.mxu0
  %959 = vmatprep.mubr.bf16.mxu0 %v397
  %960 = vmatmul.mubr.bf16.gmra.mxu0 %v396
  %v961 = vpop.f32.mrf.mxu0
  %v962 = vadd.f32 %v801, %v961
  %v963 = vpop.f32.mrf.mxu0
  %v964 = vpop.f32.mrf.mxu0
  %v965 = vadd.f32 %v804, %v964
  %v966 = vpop.f32.mrf.mxu0
  %967 = vmatprep.mubr.bf16.mxu0 %v401
  %968 = vmatmul.mubr.bf16.gmra.mxu0 %v400
  %v969 = vpop.f32.mrf.mxu0
  %v970 = vadd.f32 %v809, %v969
  %v971 = vpop.f32.mrf.mxu0
  %v972 = vpop.f32.mrf.mxu0
  %v973 = vadd.f32 %v812, %v972
  %v974 = vpop.f32.mrf.mxu0
  %975 = vmatprep.mubr.bf16.mxu0 %v405
  %976 = vmatmul.mubr.bf16.gmra.mxu0 %v404
  %v977 = vpop.f32.mrf.mxu0
  %v978 = vadd.f32 %v817, %v977
  %v979 = vpop.f32.mrf.mxu0
  %v980 = vpop.f32.mrf.mxu0
  %v981 = vadd.f32 %v820, %v980
  %v982 = vpop.f32.mrf.mxu0
  %983 = vdwg.mxu0
  %v984 = vmax.f32 %v858, 0.0
  %v985 = vmax.f32 %v861, 0.0
  %v986 = vmax.f32 %v866, 0.0
  %v987 = vmax.f32 %v869, 0.0
  %v988 = vmax.f32 %v874, 0.0
  %v989 = vmax.f32 %v877, 0.0
  %v990 = vmax.f32 %v882, 0.0
  %v991 = vmax.f32 %v885, 0.0
  %v992 = vmax.f32 %v890, 0.0
  %v993 = vmax.f32 %v893, 0.0
  %v994 = vmax.f32 %v898, 0.0
  %v995 = vmax.f32 %v901, 0.0
  %v996 = vmax.f32 %v906, 0.0
  %v997 = vmax.f32 %v909, 0.0
  %v998 = vmax.f32 %v914, 0.0
  %v999 = vmax.f32 %v917, 0.0
  %v1000 = vmax.f32 %v922, 0.0
  %v1001 = vmax.f32 %v925, 0.0
  %v1002 = vmax.f32 %v930, 0.0
  %v1003 = vmax.f32 %v933, 0.0
  %v1004 = vmax.f32 %v938, 0.0
  %v1005 = vmax.f32 %v941, 0.0
  %v1006 = vmax.f32 %v946, 0.0
  %v1007 = vmax.f32 %v949, 0.0
  %v1008 = vmax.f32 %v954, 0.0
  %v1009 = vmax.f32 %v957, 0.0
  %v1010 = vmax.f32 %v962, 0.0
  %v1011 = vmax.f32 %v965, 0.0
  %v1012 = vmax.f32 %v970, 0.0
  %v1013 = vmax.f32 %v973, 0.0
  %v1014 = vmax.f32 %v978, 0.0
  %v1015 = vmax.f32 %v981, 0.0
  %v1016 = vpack.c.bf16 %v985, %v984
  %v1017 = vpack.c.bf16 %v987, %v986
  %v1018 = vpack.c.bf16 %v989, %v988
  %v1019 = vpack.c.bf16 %v991, %v990
  %v1020 = vpack.c.bf16 %v993, %v992
  %v1021 = vpack.c.bf16 %v995, %v994
  %v1022 = vpack.c.bf16 %v997, %v996
  %v1023 = vpack.c.bf16 %v999, %v998
  %v1024 = vpack.c.bf16 %v1001, %v1000
  %v1025 = vpack.c.bf16 %v1003, %v1002
  %v1026 = vpack.c.bf16 %v1005, %v1004
  %v1027 = vpack.c.bf16 %v1007, %v1006
  %v1028 = vpack.c.bf16 %v1009, %v1008
  %v1029 = vpack.c.bf16 %v1011, %v1010
  %v1030 = vpack.c.bf16 %v1013, %v1012
  %v1031 = vpack.c.bf16 %v1015, %v1014
  %v1048 = vunpack.c.l.b16 %v1016
  %v1049 = vunpack.c.h.b16 %v1016
  %v1050 = vunpack.c.l.b16 %v1017
  %v1051 = vunpack.c.h.b16 %v1017
  %v1052 = vunpack.c.l.b16 %v1018
  %v1053 = vunpack.c.h.b16 %v1018
  %v1054 = vunpack.c.l.b16 %v1019
  %v1055 = vunpack.c.h.b16 %v1019
  %v1056 = vunpack.c.l.b16 %v1020
  %v1057 = vunpack.c.h.b16 %v1020
  %v1058 = vunpack.c.l.b16 %v1021
  %v1059 = vunpack.c.h.b16 %v1021
  %v1060 = vunpack.c.l.b16 %v1022
  %v1061 = vunpack.c.h.b16 %v1022
  %v1062 = vunpack.c.l.b16 %v1023
  %v1063 = vunpack.c.h.b16 %v1023
  %v1064 = vunpack.c.l.b16 %v1024
  %v1065 = vunpack.c.h.b16 %v1024
  %v1066 = vunpack.c.l.b16 %v1025
  %v1067 = vunpack.c.h.b16 %v1025
  %v1068 = vunpack.c.l.b16 %v1026
  %v1069 = vunpack.c.h.b16 %v1026
  %v1070 = vunpack.c.l.b16 %v1027
  %v1071 = vunpack.c.h.b16 %v1027
  %v1072 = vunpack.c.l.b16 %v1028
  %v1073 = vunpack.c.h.b16 %v1028
  %v1074 = vunpack.c.l.b16 %v1029
  %v1075 = vunpack.c.h.b16 %v1029
  %v1076 = vunpack.c.l.b16 %v1030
  %v1077 = vunpack.c.h.b16 %v1030
  %v1078 = vunpack.c.l.b16 %v1031
  %v1079 = vunpack.c.h.b16 %v1031
  %v1080 = vpack.c.b16 %v1048, %v1048
  %v1081 = vpack.c.b16 %v1049, %v1049
  %v1082 = vpack.c.b16 %v1050, %v1050
  %v1083 = vpack.c.b16 %v1051, %v1051
  %v1084 = vpack.c.b16 %v1052, %v1052
  %v1085 = vpack.c.b16 %v1053, %v1053
  %v1086 = vpack.c.b16 %v1054, %v1054
  %v1087 = vpack.c.b16 %v1055, %v1055
  %v1088 = vpack.c.b16 %v1056, %v1056
  %v1089 = vpack.c.b16 %v1057, %v1057
  %v1090 = vpack.c.b16 %v1058, %v1058
  %v1091 = vpack.c.b16 %v1059, %v1059
  %v1092 = vpack.c.b16 %v1060, %v1060
  %v1093 = vpack.c.b16 %v1061, %v1061
  %v1094 = vpack.c.b16 %v1062, %v1062
  %v1095 = vpack.c.b16 %v1063, %v1063
  %v1096 = vpack.c.b16 %v1064, %v1064
  %v1097 = vpack.c.b16 %v1065, %v1065
  %v1098 = vpack.c.b16 %v1066, %v1066
  %v1099 = vpack.c.b16 %v1067, %v1067
  %v1100 = vpack.c.b16 %v1068, %v1068
  %v1101 = vpack.c.b16 %v1069, %v1069
  %v1102 = vpack.c.b16 %v1070, %v1070
  %v1103 = vpack.c.b16 %v1071, %v1071
  %v1104 = vpack.c.b16 %v1072, %v1072
  %v1105 = vpack.c.b16 %v1073, %v1073
  %v1106 = vpack.c.b16 %v1074, %v1074
  %v1107 = vpack.c.b16 %v1075, %v1075
  %v1108 = vpack.c.b16 %v1076, %v1076
  %v1109 = vpack.c.b16 %v1077, %v1077
  %v1110 = vpack.c.b16 %v1078, %v1078
  %v1111 = vpack.c.b16 %v1079, %v1079
  %vm1144 = vcmask 519168
  %1145 = vst.msk [vmem:[%s3] sm:$0xf] %vm1144, %v1080
  %1146 = vst.msk [vmem:[%s3 + $0x4] sm:$0xf] %vm1144, %v1081
  %1147 = vst.msk [vmem:[%s3 + $0x8] sm:$0xf] %vm1144, %v1082
  %1148 = vst.msk [vmem:[%s3 + $0xc] sm:$0xf] %vm1144, %v1083
  %1149 = vst.msk [vmem:[%s3 + $0x10] sm:$0xf] %vm1144, %v1084
  %1150 = vst.msk [vmem:[%s3 + $0x14] sm:$0xf] %vm1144, %v1085
  %1151 = vst.msk [vmem:[%s3 + $0x18] sm:$0xf] %vm1144, %v1086
  %1152 = vst.msk [vmem:[%s3 + $0x1c] sm:$0xf] %vm1144, %v1087
  %1153 = vst.msk [vmem:[%s3 + $0x20] sm:$0xf] %vm1144, %v1088
  %1154 = vst.msk [vmem:[%s3 + $0x24] sm:$0xf] %vm1144, %v1089
  %1155 = vst.msk [vmem:[%s3 + $0x28] sm:$0xf] %vm1144, %v1090
  %1156 = vst.msk [vmem:[%s3 + $0x2c] sm:$0xf] %vm1144, %v1091
  %1157 = vst.msk [vmem:[%s3 + $0x30] sm:$0xf] %vm1144, %v1092
  %1158 = vst.msk [vmem:[%s3 + $0x34] sm:$0xf] %vm1144, %v1093
  %1159 = vst.msk [vmem:[%s3 + $0x38] sm:$0xf] %vm1144, %v1094
  %1160 = vst.msk [vmem:[%s3 + $0x3c] sm:$0xf] %vm1144, %v1095
  %1161 = vst.msk [vmem:[%s3 + $0x40] sm:$0xf] %vm1144, %v1096
  %1162 = vst.msk [vmem:[%s3 + $0x44] sm:$0xf] %vm1144, %v1097
  %1163 = vst.msk [vmem:[%s3 + $0x48] sm:$0xf] %vm1144, %v1098
  %1164 = vst.msk [vmem:[%s3 + $0x4c] sm:$0xf] %vm1144, %v1099
  %1165 = vst.msk [vmem:[%s3 + $0x50] sm:$0xf] %vm1144, %v1100
  %1166 = vst.msk [vmem:[%s3 + $0x54] sm:$0xf] %vm1144, %v1101
  %1167 = vst.msk [vmem:[%s3 + $0x58] sm:$0xf] %vm1144, %v1102
  %1168 = vst.msk [vmem:[%s3 + $0x5c] sm:$0xf] %vm1144, %v1103
  %1169 = vst.msk [vmem:[%s3 + $0x60] sm:$0xf] %vm1144, %v1104
  %1170 = vst.msk [vmem:[%s3 + $0x64] sm:$0xf] %vm1144, %v1105
  %1171 = vst.msk [vmem:[%s3 + $0x68] sm:$0xf] %vm1144, %v1106
  %1172 = vst.msk [vmem:[%s3 + $0x6c] sm:$0xf] %vm1144, %v1107
  %1173 = vst.msk [vmem:[%s3 + $0x70] sm:$0xf] %vm1144, %v1108
  %1174 = vst.msk [vmem:[%s3 + $0x74] sm:$0xf] %vm1144, %v1109
  %1175 = vst.msk [vmem:[%s3 + $0x78] sm:$0xf] %vm1144, %v1110
  %1176 = vst.msk [vmem:[%s3 + $0x7c] sm:$0xf] %vm1144, %v1111
  // Predicated region
  $region14: #{percept_forward.6} parent=0 // pred_check
    _
  $region15: #{percept_forward.6} parent=0 // pred_check_branch
    %1178 = sbr.rel (0) target = $region17
  $region16: #{percept_forward.6} parent=0 // pred_region
    _
  $region17: #{percept_forward.6} parent=0 // pred_fallthru
    _
  // Predicated region
  $region18: #{percept_forward.6} parent=0 // pred_check
    _
  $region19: #{percept_forward.6} parent=0 // pred_check_branch
    %1180 = sbr.rel (0) target = $region21
  $region20: #{percept_forward.6} parent=0 // pred_region
    _
  $region21: #{percept_forward.6} parent=0 // pred_fallthru
    _

// kernel: percept_forward.7
$region0: #{percept_forward.7}
  #allocation0 [shape = 'u32[]', space=smem, size = 0x4, offset = 0x4, fixed_abs, tag = 'smem constant byte address 0x4 - core index']
  #allocation1 [shape = 'u32[144,128]{1,0:T(1,128)}', space=vmem, size = 0x12000, scoped, tag = 'internal scratch']
  %s0 = inlined_call_operand.vmem [shape: bf16[64,1024], index: 0, kind: input, shape index: {}]
  %s1 = inlined_call_operand.vmem [shape: bf16[1024,128], index: 1, kind: input, shape index: {}]
  %s2 = inlined_call_operand.vmem [shape: f32[1,128], index: 2, kind: input, shape index: {}]
  %s3 = inlined_call_operand.vmem [shape: bf16[64,128], index: 3, kind: output, shape index: {}]
  %s4 = sld [smem:[#allocation0]]
  $region22: #{percept_forward.7} parent=0
    _
  %s6 = ssub.s32 1, %s4
  %s7 = scalar_select 0, %s6, %s4
  // Predicated region
  $region2: #{percept_forward.7} parent=0 // pred_check
    _
  $region3: #{percept_forward.7} parent=0 // pred_check_branch
    %9 = sbr.rel (0) target = $region5
  $region4: #{percept_forward.7} parent=0 // pred_region
    _
  $region5: #{percept_forward.7} parent=0 // pred_fallthru
    _
  // Predicated region
  $region6: #{percept_forward.7} parent=0 // pred_check
    _
  $region7: #{percept_forward.7} parent=0 // pred_check_branch
    %11 = sbr.rel (0) target = $region9
  $region8: #{percept_forward.7} parent=0 // pred_region
    _
  $region9: #{percept_forward.7} parent=0 // pred_fallthru
    _
  // Predicated region
  $region10: #{percept_forward.7} parent=0 // pred_check
    _
  $region11: #{percept_forward.7} parent=0 // pred_check_branch
    %13 = sbr.rel (0) target = $region13
  $region12: #{percept_forward.7} parent=0 // pred_region
    _
  $region13: #{percept_forward.7} parent=0 // pred_fallthru
    _
  %v15 = vld [vmem:[%s0] sm:$0xff]
  %v16 = vld [vmem:[%s0 + $0x8] sm:$0xff]
  %v17 = vld [vmem:[%s0 + $0x10] sm:$0xff]
  %v18 = vld [vmem:[%s0 + $0x18] sm:$0xff]
  %v19 = vld [vmem:[%s0 + $0x20] sm:$0xff]
  %v20 = vld [vmem:[%s0 + $0x28] sm:$0xff]
  %v21 = vld [vmem:[%s0 + $0x30] sm:$0xff]
  %v22 = vld [vmem:[%s0 + $0x38] sm:$0xff]
  %v23 = vld [vmem:[%s0 + $0x40] sm:$0xff]
  %v24 = vld [vmem:[%s0 + $0x48] sm:$0xff]
  %v25 = vld [vmem:[%s0 + $0x50] sm:$0xff]
  %v26 = vld [vmem:[%s0 + $0x58] sm:$0xff]
  %v27 = vld [vmem:[%s0 + $0x60] sm:$0xff]
  %v28 = vld [vmem:[%s0 + $0x68] sm:$0xff]
  %v29 = vld [vmem:[%s0 + $0x70] sm:$0xff]
  %v30 = vld [vmem:[%s0 + $0x78] sm:$0xff]
  %v31 = vld [vmem:[%s0 + $0x80] sm:$0xff]
  %v32 = vld [vmem:[%s0 + $0x88] sm:$0xff]
  %v33 = vld [vmem:[%s0 + $0x90] sm:$0xff]
  %v34 = vld [vmem:[%s0 + $0x98] sm:$0xff]
  %v35 = vld [vmem:[%s0 + $0xa0] sm:$0xff]
  %v36 = vld [vmem:[%s0 + $0xa8] sm:$0xff]
  %v37 = vld [vmem:[%s0 + $0xb0] sm:$0xff]
  %v38 = vld [vmem:[%s0 + $0xb8] sm:$0xff]
  %v39 = vld [vmem:[%s0 + $0xc0] sm:$0xff]
  %v40 = vld [vmem:[%s0 + $0xc8] sm:$0xff]
  %v41 = vld [vmem:[%s0 + $0xd0] sm:$0xff]
  %v42 = vld [vmem:[%s0 + $0xd8] sm:$0xff]
  %v43 = vld [vmem:[%s0 + $0xe0] sm:$0xff]
  %v44 = vld [vmem:[%s0 + $0xe8] sm:$0xff]
  %v45 = vld [vmem:[%s0 + $0xf0] sm:$0xff]
  %v46 = vld [vmem:[%s0 + $0xf8] sm:$0xff]
  %v47 = vld [vmem:[%s1] sm:$0xf]
  %v48 = vld [vmem:[%s1 + $0x4] sm:$0xf]
  %v49 = vld [vmem:[%s1 + $0x8] sm:$0xf]
  %v50 = vld [vmem:[%s1 + $0xc] sm:$0xf]
  %v51 = vld [vmem:[%s1 + $0x10] sm:$0xf]
  %v52 = vld [vmem:[%s1 + $0x14] sm:$0xf]
  %v53 = vld [vmem:[%s1 + $0x18] sm:$0xf]
  %v54 = vld [vmem:[%s1 + $0x1c] sm:$0xf]
  %v55 = vld [vmem:[%s1 + $0x20] sm:$0xf]
  %v56 = vld [vmem:[%s1 + $0x24] sm:$0xf]
  %v57 = vld [vmem:[%s1 + $0x28] sm:$0xf]
  %v58 = vld [vmem:[%s1 + $0x2c] sm:$0xf]
  %v59 = vld [vmem:[%s1 + $0x30] sm:$0xf]
  %v60 = vld [vmem:[%s1 + $0x34] sm:$0xf]
  %v61 = vld [vmem:[%s1 + $0x38] sm:$0xf]
  %v62 = vld [vmem:[%s1 + $0x3c] sm:$0xf]
  %v63 = vld [vmem:[%s1 + $0x40] sm:$0xf]
  %v64 = vld [vmem:[%s1 + $0x44] sm:$0xf]
  %v65 = vld [vmem:[%s1 + $0x48] sm:$0xf]
  %v66 = vld [vmem:[%s1 + $0x4c] sm:$0xf]
  %v67 = vld [vmem:[%s1 + $0x50] sm:$0xf]
  %v68 = vld [vmem:[%s1 + $0x54] sm:$0xf]
  %v69 = vld [vmem:[%s1 + $0x58] sm:$0xf]
  %v70 = vld [vmem:[%s1 + $0x5c] sm:$0xf]
  %v71 = vld [vmem:[%s1 + $0x60] sm:$0xf]
  %v72 = vld [vmem:[%s1 + $0x64] sm:$0xf]
  %v73 = vld [vmem:[%s1 + $0x68] sm:$0xf]
  %v74 = vld [vmem:[%s1 + $0x6c] sm:$0xf]
  %v75 = vld [vmem:[%s1 + $0x70] sm:$0xf]
  %v76 = vld [vmem:[%s1 + $0x74] sm:$0xf]
  %v77 = vld [vmem:[%s1 + $0x78] sm:$0xf]
  %v78 = vld [vmem:[%s1 + $0x7c] sm:$0xf]
  %v79 = vld [vmem:[%s1 + $0x80] sm:$0xf]
  %v80 = vld [vmem:[%s1 + $0x84] sm:$0xf]
  %v81 = vld [vmem:[%s1 + $0x88] sm:$0xf]
  %v82 = vld [vmem:[%s1 + $0x8c] sm:$0xf]
  %v83 = vld [vmem:[%s1 + $0x90] sm:$0xf]
  %v84 = vld [vmem:[%s1 + $0x94] sm:$0xf]
  %v85 = vld [vmem:[%s1 + $0x98] sm:$0xf]
  %v86 = vld [vmem:[%s1 + $0x9c] sm:$0xf]
  %v87 = vld [vmem:[%s1 + $0xa0] sm:$0xf]
  %v88 = vld [vmem:[%s1 + $0xa4] sm:$0xf]
  %v89 = vld [vmem:[%s1 + $0xa8] sm:$0xf]
  %v90 = vld [vmem:[%s1 + $0xac] sm:$0xf]
  %v91 = vld [vmem:[%s1 + $0xb0] sm:$0xf]
  %v92 = vld [vmem:[%s1 + $0xb4] sm:$0xf]
  %v93 = vld [vmem:[%s1 + $0xb8] sm:$0xf]
  %v94 = vld [vmem:[%s1 + $0xbc] sm:$0xf]
  %v95 = vld [vmem:[%s1 + $0xc0] sm:$0xf]
  %v96 = vld [vmem:[%s1 + $0xc4] sm:$0xf]
  %v97 = vld [vmem:[%s1 + $0xc8] sm:$0xf]
  %v98 = vld [vmem:[%s1 + $0xcc] sm:$0xf]
  %v99 = vld [vmem:[%s1 + $0xd0] sm:$0xf]
  %v100 = vld [vmem:[%s1 + $0xd4] sm:$0xf]
  %v101 = vld [vmem:[%s1 + $0xd8] sm:$0xf]
  %v102 = vld [vmem:[%s1 + $0xdc] sm:$0xf]
  %v103 = vld [vmem:[%s1 + $0xe0] sm:$0xf]
  %v104 = vld [vmem:[%s1 + $0xe4] sm:$0xf]
  %v105 = vld [vmem:[%s1 + $0xe8] sm:$0xf]
  %v106 = vld [vmem:[%s1 + $0xec] sm:$0xf]
  %v107 = vld [vmem:[%s1 + $0xf0] sm:$0xf]
  %v108 = vld [vmem:[%s1 + $0xf4] sm:$0xf]
  %v109 = vld [vmem:[%s1 + $0xf8] sm:$0xf]
  %v110 = vld [vmem:[%s1 + $0xfc] sm:$0xf]
  %v111 = vld [vmem:[%s1 + $0x100] sm:$0xf]
  %v112 = vld [vmem:[%s1 + $0x104] sm:$0xf]
  %v113 = vld [vmem:[%s1 + $0x108] sm:$0xf]
  %v114 = vld [vmem:[%s1 + $0x10c] sm:$0xf]
  %v115 = vld [vmem:[%s1 + $0x110] sm:$0xf]
  %v116 = vld [vmem:[%s1 + $0x114] sm:$0xf]
  %v117 = vld [vmem:[%s1 + $0x118] sm:$0xf]
  %v118 = vld [vmem:[%s1 + $0x11c] sm:$0xf]
  %v119 = vld [vmem:[%s1 + $0x120] sm:$0xf]
  %v120 = vld [vmem:[%s1 + $0x124] sm:$0xf]
  %v121 = vld [vmem:[%s1 + $0x128] sm:$0xf]
  %v122 = vld [vmem:[%s1 + $0x12c] sm:$0xf]
  %v123 = vld [vmem:[%s1 + $0x130] sm:$0xf]
  %v124 = vld [vmem:[%s1 + $0x134] sm:$0xf]
  %v125 = vld [vmem:[%s1 + $0x138] sm:$0xf]
  %v126 = vld [vmem:[%s1 + $0x13c] sm:$0xf]
  %v127 = vld [vmem:[%s1 + $0x140] sm:$0xf]
  %v128 = vld [vmem:[%s1 + $0x144] sm:$0xf]
  %v129 = vld [vmem:[%s1 + $0x148] sm:$0xf]
  %v130 = vld [vmem:[%s1 + $0x14c] sm:$0xf]
  %v131 = vld [vmem:[%s1 + $0x150] sm:$0xf]
  %v132 = vld [vmem:[%s1 + $0x154] sm:$0xf]
  %v133 = vld [vmem:[%s1 + $0x158] sm:$0xf]
  %v134 = vld [vmem:[%s1 + $0x15c] sm:$0xf]
  %v135 = vld [vmem:[%s1 + $0x160] sm:$0xf]
  %v136 = vld [vmem:[%s1 + $0x164] sm:$0xf]
  %v137 = vld [vmem:[%s1 + $0x168] sm:$0xf]
  %v138 = vld [vmem:[%s1 + $0x16c] sm:$0xf]
  %v139 = vld [vmem:[%s1 + $0x170] sm:$0xf]
  %v140 = vld [vmem:[%s1 + $0x174] sm:$0xf]
  %v141 = vld [vmem:[%s1 + $0x178] sm:$0xf]
  %v142 = vld [vmem:[%s1 + $0x17c] sm:$0xf]
  %v143 = vld [vmem:[%s1 + $0x180] sm:$0xf]
  %v144 = vld [vmem:[%s1 + $0x184] sm:$0xf]
  %v145 = vld [vmem:[%s1 + $0x188] sm:$0xf]
  %v146 = vld [vmem:[%s1 + $0x18c] sm:$0xf]
  %v147 = vld [vmem:[%s1 + $0x190] sm:$0xf]
  %v148 = vld [vmem:[%s1 + $0x194] sm:$0xf]
  %v149 = vld [vmem:[%s1 + $0x198] sm:$0xf]
  %v150 = vld [vmem:[%s1 + $0x19c] sm:$0xf]
  %v151 = vld [vmem:[%s1 + $0x1a0] sm:$0xf]
  %v152 = vld [vmem:[%s1 + $0x1a4] sm:$0xf]
  %v153 = vld [vmem:[%s1 + $0x1a8] sm:$0xf]
  %v154 = vld [vmem:[%s1 + $0x1ac] sm:$0xf]
  %v155 = vld [vmem:[%s1 + $0x1b0] sm:$0xf]
  %v156 = vld [vmem:[%s1 + $0x1b4] sm:$0xf]
  %v157 = vld [vmem:[%s1 + $0x1b8] sm:$0xf]
  %v158 = vld [vmem:[%s1 + $0x1bc] sm:$0xf]
  %v159 = vld [vmem:[%s1 + $0x1c0] sm:$0xf]
  %v160 = vld [vmem:[%s1 + $0x1c4] sm:$0xf]
  %v161 = vld [vmem:[%s1 + $0x1c8] sm:$0xf]
  %v162 = vld [vmem:[%s1 + $0x1cc] sm:$0xf]
  %v163 = vld [vmem:[%s1 + $0x1d0] sm:$0xf]
  %v164 = vld [vmem:[%s1 + $0x1d4] sm:$0xf]
  %v165 = vld [vmem:[%s1 + $0x1d8] sm:$0xf]
  %v166 = vld [vmem:[%s1 + $0x1dc] sm:$0xf]
  %v167 = vld [vmem:[%s1 + $0x1e0] sm:$0xf]
  %v168 = vld [vmem:[%s1 + $0x1e4] sm:$0xf]
  %v169 = vld [vmem:[%s1 + $0x1e8] sm:$0xf]
  %v170 = vld [vmem:[%s1 + $0x1ec] sm:$0xf]
  %v171 = vld [vmem:[%s1 + $0x1f0] sm:$0xf]
  %v172 = vld [vmem:[%s1 + $0x1f4] sm:$0xf]
  %v173 = vld [vmem:[%s1 + $0x1f8] sm:$0xf]
  %v174 = vld [vmem:[%s1 + $0x1fc] sm:$0xf]
  %v175 = vld [vmem:[%s2] sm:$0x1]
  %v177 = vlaneseq
  %v178 = vshrl.u32 %v177, 7
  %v179 = vsub.s32 0, %v178
  %v180 = vrot.slane %v175, %v179
  %v214 = vunpack.c.l.b16 %v15
  %v215 = vunpack.c.h.b16 %v15
  %v216 = vunpack.c.l.b16 %v16
  %v217 = vunpack.c.h.b16 %v16
  %v218 = vunpack.c.l.b16 %v17
  %v219 = vunpack.c.h.b16 %v17
  %v220 = vunpack.c.l.b16 %v18
  %v221 = vunpack.c.h.b16 %v18
  %v222 = vunpack.c.l.b16 %v19
  %v223 = vunpack.c.h.b16 %v19
  %v224 = vunpack.c.l.b16 %v20
  %v225 = vunpack.c.h.b16 %v20
  %v226 = vunpack.c.l.b16 %v21
  %v227 = vunpack.c.h.b16 %v21
  %v228 = vunpack.c.l.b16 %v22
  %v229 = vunpack.c.h.b16 %v22
  %v230 = vunpack.c.l.b16 %v23
  %v231 = vunpack.c.h.b16 %v23
  %v232 = vunpack.c.l.b16 %v24
  %v233 = vunpack.c.h.b16 %v24
  %v234 = vunpack.c.l.b16 %v25
  %v235 = vunpack.c.h.b16 %v25
  %v236 = vunpack.c.l.b16 %v26
  %v237 = vunpack.c.h.b16 %v26
  %v238 = vunpack.c.l.b16 %v27
  %v239 = vunpack.c.h.b16 %v27
  %v240 = vunpack.c.l.b16 %v28
  %v241 = vunpack.c.h.b16 %v28
  %v242 = vunpack.c.l.b16 %v29
  %v243 = vunpack.c.h.b16 %v29
  %v244 = vunpack.c.l.b16 %v30
  %v245 = vunpack.c.h.b16 %v30
  %v246 = vunpack.c.l.b16 %v31
  %v247 = vunpack.c.h.b16 %v31
  %v248 = vunpack.c.l.b16 %v32
  %v249 = vunpack.c.h.b16 %v32
  %v250 = vunpack.c.l.b16 %v33
  %v251 = vunpack.c.h.b16 %v33
  %v252 = vunpack.c.l.b16 %v34
  %v253 = vunpack.c.h.b16 %v34
  %v254 = vunpack.c.l.b16 %v35
  %v255 = vunpack.c.h.b16 %v35
  %v256 = vunpack.c.l.b16 %v36
  %v257 = vunpack.c.h.b16 %v36
  %v258 = vunpack.c.l.b16 %v37
  %v259 = vunpack.c.h.b16 %v37
  %v260 = vunpack.c.l.b16 %v38
  %v261 = vunpack.c.h.b16 %v38
  %v262 = vunpack.c.l.b16 %v39
  %v263 = vunpack.c.h.b16 %v39
  %v264 = vunpack.c.l.b16 %v40
  %v265 = vunpack.c.h.b16 %v40
  %v266 = vunpack.c.l.b16 %v41
  %v267 = vunpack.c.h.b16 %v41
  %v268 = vunpack.c.l.b16 %v42
  %v269 = vunpack.c.h.b16 %v42
  %v270 = vunpack.c.l.b16 %v43
  %v271 = vunpack.c.h.b16 %v43
  %v272 = vunpack.c.l.b16 %v44
  %v273 = vunpack.c.h.b16 %v44
  %v274 = vunpack.c.l.b16 %v45
  %v275 = vunpack.c.h.b16 %v45
  %v276 = vunpack.c.l.b16 %v46
  %v277 = vunpack.c.h.b16 %v46
  %v278 = vpack.c.b16 %v222, %v214
  %v279 = vpack.c.b16 %v223, %v215
  %v280 = vpack.c.b16 %v224, %v216
  %v281 = vpack.c.b16 %v225, %v217
  %v282 = vpack.c.b16 %v226, %v218
  %v283 = vpack.c.b16 %v227, %v219
  %v284 = vpack.c.b16 %v228, %v220
  %v285 = vpack.c.b16 %v229, %v221
  %v286 = vpack.c.b16 %v238, %v230
  %v287 = vpack.c.b16 %v239, %v231
  %v288 = vpack.c.b16 %v240, %v232
  %v289 = vpack.c.b16 %v241, %v233
  %v290 = vpack.c.b16 %v242, %v234
  %v291 = vpack.c.b16 %v243, %v235
  %v292 = vpack.c.b16 %v244, %v236
  %v293 = vpack.c.b16 %v245, %v237
  %v294 = vpack.c.b16 %v254, %v246
  %v295 = vpack.c.b16 %v255, %v247
  %v296 = vpack.c.b16 %v256, %v248
  %v297 = vpack.c.b16 %v257, %v249
  %v298 = vpack.c.b16 %v258, %v250
  %v299 = vpack.c.b16 %v259, %v251
  %v300 = vpack.c.b16 %v260, %v252
  %v301 = vpack.c.b16 %v261, %v253
  %v302 = vpack.c.b16 %v270, %v262
  %v303 = vpack.c.b16 %v271, %v263
  %v304 = vpack.c.b16 %v272, %v264
  %v305 = vpack.c.b16 %v273, %v265
  %v306 = vpack.c.b16 %v274, %v266
  %v307 = vpack.c.b16 %v275, %v267
  %v308 = vpack.c.b16 %v276, %v268
  %v309 = vpack.c.b16 %v277, %v269
  %v470 = vunpack.c.l.b16 %v47
  %v471 = vunpack.c.l.b16 %v48
  %v472 = vunpack.c.l.b16 %v49
  %v473 = vunpack.c.l.b16 %v50
  %v474 = vunpack.c.l.b16 %v51
  %v475 = vunpack.c.l.b16 %v52
  %v476 = vunpack.c.l.b16 %v53
  %v477 = vunpack.c.l.b16 %v54
  %v478 = vunpack.c.l.b16 %v55
  %v479 = vunpack.c.l.b16 %v56
  %v480 = vunpack.c.l.b16 %v57
  %v481 = vunpack.c.l.b16 %v58
  %v482 = vunpack.c.l.b16 %v59
  %v483 = vunpack.c.l.b16 %v60
  %v484 = vunpack.c.l.b16 %v61
  %v485 = vunpack.c.l.b16 %v62
  %v486 = vunpack.c.l.b16 %v63
  %v487 = vunpack.c.l.b16 %v64
  %v488 = vunpack.c.l.b16 %v65
  %v489 = vunpack.c.l.b16 %v66
  %v490 = vunpack.c.l.b16 %v67
  %v491 = vunpack.c.l.b16 %v68
  %v492 = vunpack.c.l.b16 %v69
  %v493 = vunpack.c.l.b16 %v70
  %v494 = vunpack.c.l.b16 %v71
  %v495 = vunpack.c.l.b16 %v72
  %v496 = vunpack.c.l.b16 %v73
  %v497 = vunpack.c.l.b16 %v74
  %v498 = vunpack.c.l.b16 %v75
  %v499 = vunpack.c.l.b16 %v76
  %v500 = vunpack.c.l.b16 %v77
  %v501 = vunpack.c.l.b16 %v78
  %v502 = vunpack.c.l.b16 %v79
  %v503 = vunpack.c.l.b16 %v80
  %v504 = vunpack.c.l.b16 %v81
  %v505 = vunpack.c.l.b16 %v82
  %v506 = vunpack.c.l.b16 %v83
  %v507 = vunpack.c.l.b16 %v84
  %v508 = vunpack.c.l.b16 %v85
  %v509 = vunpack.c.l.b16 %v86
  %v510 = vunpack.c.l.b16 %v87
  %v511 = vunpack.c.l.b16 %v88
  %v512 = vunpack.c.l.b16 %v89
  %v513 = vunpack.c.l.b16 %v90
  %v514 = vunpack.c.l.b16 %v91
  %v515 = vunpack.c.l.b16 %v92
  %v516 = vunpack.c.l.b16 %v93
  %v517 = vunpack.c.l.b16 %v94
  %v518 = vunpack.c.l.b16 %v95
  %v519 = vunpack.c.l.b16 %v96
  %v520 = vunpack.c.l.b16 %v97
  %v521 = vunpack.c.l.b16 %v98
  %v522 = vunpack.c.l.b16 %v99
  %v523 = vunpack.c.l.b16 %v100
  %v524 = vunpack.c.l.b16 %v101
  %v525 = vunpack.c.l.b16 %v102
  %v526 = vunpack.c.l.b16 %v103
  %v527 = vunpack.c.l.b16 %v104
  %v528 = vunpack.c.l.b16 %v105
  %v529 = vunpack.c.l.b16 %v106
  %v530 = vunpack.c.l.b16 %v107
  %v531 = vunpack.c.l.b16 %v108
  %v532 = vunpack.c.l.b16 %v109
  %v533 = vunpack.c.l.b16 %v110
  %v534 = vunpack.c.l.b16 %v111
  %v535 = vunpack.c.l.b16 %v112
  %v536 = vunpack.c.l.b16 %v113
  %v537 = vunpack.c.l.b16 %v114
  %v538 = vunpack.c.l.b16 %v115
  %v539 = vunpack.c.l.b16 %v116
  %v540 = vunpack.c.l.b16 %v117
  %v541 = vunpack.c.l.b16 %v118
  %v542 = vunpack.c.l.b16 %v119
  %v543 = vunpack.c.l.b16 %v120
  %v544 = vunpack.c.l.b16 %v121
  %v545 = vunpack.c.l.b16 %v122
  %v546 = vunpack.c.l.b16 %v123
  %v547 = vunpack.c.l.b16 %v124
  %v548 = vunpack.c.l.b16 %v125
  %v549 = vunpack.c.l.b16 %v126
  %v550 = vunpack.c.l.b16 %v127
  %v551 = vunpack.c.l.b16 %v128
  %v552 = vunpack.c.l.b16 %v129
  %v553 = vunpack.c.l.b16 %v130
  %v554 = vunpack.c.l.b16 %v131
  %v555 = vunpack.c.l.b16 %v132
  %v556 = vunpack.c.l.b16 %v133
  %v557 = vunpack.c.l.b16 %v134
  %v558 = vunpack.c.l.b16 %v135
  %v559 = vunpack.c.l.b16 %v136
  %v560 = vunpack.c.l.b16 %v137
  %v561 = vunpack.c.l.b16 %v138
  %v562 = vunpack.c.l.b16 %v139
  %v563 = vunpack.c.l.b16 %v140
  %v564 = vunpack.c.l.b16 %v141
  %v565 = vunpack.c.l.b16 %v142
  %v566 = vunpack.c.l.b16 %v143
  %v567 = vunpack.c.l.b16 %v144
  %v568 = vunpack.c.l.b16 %v145
  %v569 = vunpack.c.l.b16 %v146
  %v570 = vunpack.c.l.b16 %v147
  %v571 = vunpack.c.l.b16 %v148
  %v572 = vunpack.c.l.b16 %v149
  %v573 = vunpack.c.l.b16 %v150
  %v574 = vunpack.c.l.b16 %v151
  %v575 = vunpack.c.l.b16 %v152
  %v576 = vunpack.c.l.b16 %v153
  %v577 = vunpack.c.l.b16 %v154
  %v578 = vunpack.c.l.b16 %v155
  %v579 = vunpack.c.l.b16 %v156
  %v580 = vunpack.c.l.b16 %v157
  %v581 = vunpack.c.l.b16 %v158
  %v582 = vunpack.c.l.b16 %v159
  %v583 = vunpack.c.l.b16 %v160
  %v584 = vunpack.c.l.b16 %v161
  %v585 = vunpack.c.l.b16 %v162
  %v586 = vunpack.c.l.b16 %v163
  %v587 = vunpack.c.l.b16 %v164
  %v588 = vunpack.c.l.b16 %v165
  %v589 = vunpack.c.l.b16 %v166
  %v590 = vunpack.c.l.b16 %v167
  %v591 = vunpack.c.l.b16 %v168
  %v592 = vunpack.c.l.b16 %v169
  %v593 = vunpack.c.l.b16 %v170
  %v594 = vunpack.c.l.b16 %v171
  %v595 = vunpack.c.l.b16 %v172
  %v596 = vunpack.c.l.b16 %v173
  %v597 = vunpack.c.l.b16 %v174
  %v598 = vpack.c.b16 %v471, %v470
  %v599 = vpack.c.b16 %v473, %v472
  %v600 = vpack.c.b16 %v475, %v474
  %v601 = vpack.c.b16 %v477, %v476
  %v602 = vpack.c.b16 %v479, %v478
  %v603 = vpack.c.b16 %v481, %v480
  %v604 = vpack.c.b16 %v483, %v482
  %v605 = vpack.c.b16 %v485, %v484
  %v606 = vpack.c.b16 %v487, %v486
  %v607 = vpack.c.b16 %v489, %v488
  %v608 = vpack.c.b16 %v491, %v490
  %v609 = vpack.c.b16 %v493, %v492
  %v610 = vpack.c.b16 %v495, %v494
  %v611 = vpack.c.b16 %v497, %v496
  %v612 = vpack.c.b16 %v499, %v498
  %v613 = vpack.c.b16 %v501, %v500
  %v614 = vpack.c.b16 %v503, %v502
  %v615 = vpack.c.b16 %v505, %v504
  %v616 = vpack.c.b16 %v507, %v506
  %v617 = vpack.c.b16 %v509, %v508
  %v618 = vpack.c.b16 %v511, %v510
  %v619 = vpack.c.b16 %v513, %v512
  %v620 = vpack.c.b16 %v515, %v514
  %v621 = vpack.c.b16 %v517, %v516
  %v622 = vpack.c.b16 %v519, %v518
  %v623 = vpack.c.b16 %v521, %v520
  %v624 = vpack.c.b16 %v523, %v522
  %v625 = vpack.c.b16 %v525, %v524
  %v626 = vpack.c.b16 %v527, %v526
  %v627 = vpack.c.b16 %v529, %v528
  %v628 = vpack.c.b16 %v531, %v530
  %v629 = vpack.c.b16 %v533, %v532
  %v630 = vpack.c.b16 %v535, %v534
  %v631 = vpack.c.b16 %v537, %v536
  %v632 = vpack.c.b16 %v539, %v538
  %v633 = vpack.c.b16 %v541, %v540
  %v634 = vpack.c.b16 %v543, %v542
  %v635 = vpack.c.b16 %v545, %v544
  %v636 = vpack.c.b16 %v547, %v546
  %v637 = vpack.c.b16 %v549, %v548
  %v638 = vpack.c.b16 %v551, %v550
  %v639 = vpack.c.b16 %v553, %v552
  %v640 = vpack.c.b16 %v555, %v554
  %v641 = vpack.c.b16 %v557, %v556
  %v642 = vpack.c.b16 %v559, %v558
  %v643 = vpack.c.b16 %v561, %v560
  %v644 = vpack.c.b16 %v563, %v562
  %v645 = vpack.c.b16 %v565, %v564
  %v646 = vpack.c.b16 %v567, %v566
  %v647 = vpack.c.b16 %v569, %v568
  %v648 = vpack.c.b16 %v571, %v570
  %v649 = vpack.c.b16 %v573, %v572
  %v650 = vpack.c.b16 %v575, %v574
  %v651 = vpack.c.b16 %v577, %v576
  %v652 = vpack.c.b16 %v579, %v578
  %v653 = vpack.c.b16 %v581, %v580
  %v654 = vpack.c.b16 %v583, %v582
  %v655 = vpack.c.b16 %v585, %v584
  %v656 = vpack.c.b16 %v587, %v586
  %v657 = vpack.c.b16 %v589, %v588
  %v658 = vpack.c.b16 %v591, %v590
  %v659 = vpack.c.b16 %v593, %v592
  %v660 = vpack.c.b16 %v595, %v594
  %v661 = vpack.c.b16 %v597, %v596
  %726 = vmatprep.subr.bf16.mxu0 0
  %727 = vmatpush1.bf16.msra.mxu0 %v605
  %728 = vmatprep.subr.bf16.mxu0 0
  %729 = vmatpush1.bf16.msra.mxu0 %v604
  %730 = vmatprep.subr.bf16.mxu0 0
  %731 = vmatpush1.bf16.msra.mxu0 %v603
  %732 = vmatprep.subr.bf16.mxu0 0
  %733 = vmatpush1.bf16.msra.mxu0 %v602
  %734 = vmatprep.subr.bf16.mxu0 0
  %735 = vmatpush1.bf16.msra.mxu0 %v601
  %736 = vmatprep.subr.bf16.mxu0 0
  %737 = vmatpush1.bf16.msra.mxu0 %v600
  %738 = vmatprep.subr.bf16.mxu0 0
  %739 = vmatpush1.bf16.msra.mxu0 %v599
  %740 = vmatprep.subr.bf16.mxu0 0
  %741 = vmatpush1.bf16.msra.mxu0 %v598
  %742 = vmatprep.subr.bf16.mxu0 0
  %743 = vmatpush2.bf16.msra.mxu0 %v613
  %744 = vmatprep.subr.bf16.mxu0 0
  %745 = vmatpush2.bf16.msra.mxu0 %v612
  %746 = vmatprep.subr.bf16.mxu0 0
  %747 = vmatpush2.bf16.msra.mxu0 %v611
  %748 = vmatprep.subr.bf16.mxu0 0
  %749 = vmatpush2.bf16.msra.mxu0 %v610
  %750 = vmatprep.subr.bf16.mxu0 0
  %751 = vmatpush2.bf16.msra.mxu0 %v609
  %752 = vmatprep.subr.bf16.mxu0 0
  %753 = vmatpush2.bf16.msra.mxu0 %v608
  %754 = vmatprep.subr.bf16.mxu0 0
  %755 = vmatpush2.bf16.msra.mxu0 %v607
  %756 = vmatprep.subr.bf16.mxu0 0
  %757 = vmatpush2.bf16.msra.mxu0 %v606
  %758 = vmatprep.mubr.bf16.mxu0 %v279
  %759 = vmatmul.mubr.bf16.gmra.mxu0 %v278
  %v760 = vpop.f32.mrf.mxu0
  %v761 = vadd.f32 %v180, %v760
  %v762 = vpop.f32.mrf.mxu0
  %v763 = vpop.f32.mrf.mxu0
  %v764 = vadd.f32 %v180, %v763
  %v765 = vpop.f32.mrf.mxu0
  %766 = vmatprep.mubr.bf16.mxu0 %v287
  %767 = vmatmul.mubr.bf16.gmra.mxu0 %v286
  %v768 = vpop.f32.mrf.mxu0
  %v769 = vadd.f32 %v180, %v768
  %v770 = vpop.f32.mrf.mxu0
  %v771 = vpop.f32.mrf.mxu0
  %v772 = vadd.f32 %v180, %v771
  %v773 = vpop.f32.mrf.mxu0
  %774 = vmatprep.mubr.bf16.mxu0 %v295
  %775 = vmatmul.mubr.bf16.gmra.mxu0 %v294
  %v776 = vpop.f32.mrf.mxu0
  %v777 = vadd.f32 %v180, %v776
  %v778 = vpop.f32.mrf.mxu0
  %v779 = vpop.f32.mrf.mxu0
  %v780 = vadd.f32 %v180, %v779
  %v781 = vpop.f32.mrf.mxu0
  %782 = vmatprep.mubr.bf16.mxu0 %v303
  %783 = vmatmul.mubr.bf16.gmra.mxu0 %v302
  %v784 = vpop.f32.mrf.mxu0
  %v785 = vadd.f32 %v180, %v784
  %v786 = vpop.f32.mrf.mxu0
  %v787 = vpop.f32.mrf.mxu0
  %v788 = vadd.f32 %v180, %v787
  %v789 = vpop.f32.mrf.mxu0
  %790 = vdwg.mxu0
  %791 = vmatprep.subr.bf16.mxu0 0
  %792 = vmatpush1.bf16.msra.mxu0 %v621
  %793 = vmatprep.subr.bf16.mxu0 0
  %794 = vmatpush1.bf16.msra.mxu0 %v620
  %795 = vmatprep.subr.bf16.mxu0 0
  %796 = vmatpush1.bf16.msra.mxu0 %v619
  %797 = vmatprep.subr.bf16.mxu0 0
  %798 = vmatpush1.bf16.msra.mxu0 %v618
  %799 = vmatprep.subr.bf16.mxu0 0
  %800 = vmatpush1.bf16.msra.mxu0 %v617
  %801 = vmatprep.subr.bf16.mxu0 0
  %802 = vmatpush1.bf16.msra.mxu0 %v616
  %803 = vmatprep.subr.bf16.mxu0 0
  %804 = vmatpush1.bf16.msra.mxu0 %v615
  %805 = vmatprep.subr.bf16.mxu0 0
  %806 = vmatpush1.bf16.msra.mxu0 %v614
  %807 = vmatprep.subr.bf16.mxu0 0
  %808 = vmatpush2.bf16.msra.mxu0 %v629
  %809 = vmatprep.subr.bf16.mxu0 0
  %810 = vmatpush2.bf16.msra.mxu0 %v628
  %811 = vmatprep.subr.bf16.mxu0 0
  %812 = vmatpush2.bf16.msra.mxu0 %v627
  %813 = vmatprep.subr.bf16.mxu0 0
  %814 = vmatpush2.bf16.msra.mxu0 %v626
  %815 = vmatprep.subr.bf16.mxu0 0
  %816 = vmatpush2.bf16.msra.mxu0 %v625
  %817 = vmatprep.subr.bf16.mxu0 0
  %818 = vmatpush2.bf16.msra.mxu0 %v624
  %819 = vmatprep.subr.bf16.mxu0 0
  %820 = vmatpush2.bf16.msra.mxu0 %v623
  %821 = vmatprep.subr.bf16.mxu0 0
  %822 = vmatpush2.bf16.msra.mxu0 %v622
  %823 = vmatprep.mubr.bf16.mxu0 %v281
  %824 = vmatmul.mubr.bf16.gmra.mxu0 %v280
  %v825 = vpop.f32.mrf.mxu0
  %v826 = vadd.f32 %v761, %v825
  %v827 = vpop.f32.mrf.mxu0
  %v828 = vpop.f32.mrf.mxu0
  %v829 = vadd.f32 %v764, %v828
  %v830 = vpop.f32.mrf.mxu0
  %831 = vmatprep.mubr.bf16.mxu0 %v289
  %832 = vmatmul.mubr.bf16.gmra.mxu0 %v288
  %v833 = vpop.f32.mrf.mxu0
  %v834 = vadd.f32 %v769, %v833
  %v835 = vpop.f32.mrf.mxu0
  %v836 = vpop.f32.mrf.mxu0
  %v837 = vadd.f32 %v772, %v836
  %v838 = vpop.f32.mrf.mxu0
  %839 = vmatprep.mubr.bf16.mxu0 %v297
  %840 = vmatmul.mubr.bf16.gmra.mxu0 %v296
  %v841 = vpop.f32.mrf.mxu0
  %v842 = vadd.f32 %v777, %v841
  %v843 = vpop.f32.mrf.mxu0
  %v844 = vpop.f32.mrf.mxu0
  %v845 = vadd.f32 %v780, %v844
  %v846 = vpop.f32.mrf.mxu0
  %847 = vmatprep.mubr.bf16.mxu0 %v305
  %848 = vmatmul.mubr.bf16.gmra.mxu0 %v304
  %v849 = vpop.f32.mrf.mxu0
  %v850 = vadd.f32 %v785, %v849
  %v851 = vpop.f32.mrf.mxu0
  %v852 = vpop.f32.mrf.mxu0
  %v853 = vadd.f32 %v788, %v852
  %v854 = vpop.f32.mrf.mxu0
  %855 = vdwg.mxu0
  %856 = vmatprep.subr.bf16.mxu0 0
  %857 = vmatpush1.bf16.msra.mxu0 %v637
  %858 = vmatprep.subr.bf16.mxu0 0
  %859 = vmatpush1.bf16.msra.mxu0 %v636
  %860 = vmatprep.subr.bf16.mxu0 0
  %861 = vmatpush1.bf16.msra.mxu0 %v635
  %862 = vmatprep.subr.bf16.mxu0 0
  %863 = vmatpush1.bf16.msra.mxu0 %v634
  %864 = vmatprep.subr.bf16.mxu0 0
  %865 = vmatpush1.bf16.msra.mxu0 %v633
  %866 = vmatprep.subr.bf16.mxu0 0
  %867 = vmatpush1.bf16.msra.mxu0 %v632
  %868 = vmatprep.subr.bf16.mxu0 0
  %869 = vmatpush1.bf16.msra.mxu0 %v631
  %870 = vmatprep.subr.bf16.mxu0 0
  %871 = vmatpush1.bf16.msra.mxu0 %v630
  %872 = vmatprep.subr.bf16.mxu0 0
  %873 = vmatpush2.bf16.msra.mxu0 %v645
  %874 = vmatprep.subr.bf16.mxu0 0
  %875 = vmatpush2.bf16.msra.mxu0 %v644
  %876 = vmatprep.subr.bf16.mxu0 0
  %877 = vmatpush2.bf16.msra.mxu0 %v643
  %878 = vmatprep.subr.bf16.mxu0 0
  %879 = vmatpush2.bf16.msra.mxu0 %v642
  %880 = vmatprep.subr.bf16.mxu0 0
  %881 = vmatpush2.bf16.msra.mxu0 %v641
  %882 = vmatprep.subr.bf16.mxu0 0
  %883 = vmatpush2.bf16.msra.mxu0 %v640
  %884 = vmatprep.subr.bf16.mxu0 0
  %885 = vmatpush2.bf16.msra.mxu0 %v639
  %886 = vmatprep.subr.bf16.mxu0 0
  %887 = vmatpush2.bf16.msra.mxu0 %v638
  %888 = vmatprep.mubr.bf16.mxu0 %v283
  %889 = vmatmul.mubr.bf16.gmra.mxu0 %v282
  %v890 = vpop.f32.mrf.mxu0
  %v891 = vadd.f32 %v826, %v890
  %v892 = vpop.f32.mrf.mxu0
  %v893 = vpop.f32.mrf.mxu0
  %v894 = vadd.f32 %v829, %v893
  %v895 = vpop.f32.mrf.mxu0
  %896 = vmatprep.mubr.bf16.mxu0 %v291
  %897 = vmatmul.mubr.bf16.gmra.mxu0 %v290
  %v898 = vpop.f32.mrf.mxu0
  %v899 = vadd.f32 %v834, %v898
  %v900 = vpop.f32.mrf.mxu0
  %v901 = vpop.f32.mrf.mxu0
  %v902 = vadd.f32 %v837, %v901
  %v903 = vpop.f32.mrf.mxu0
  %904 = vmatprep.mubr.bf16.mxu0 %v299
  %905 = vmatmul.mubr.bf16.gmra.mxu0 %v298
  %v906 = vpop.f32.mrf.mxu0
  %v907 = vadd.f32 %v842, %v906
  %v908 = vpop.f32.mrf.mxu0
  %v909 = vpop.f32.mrf.mxu0
  %v910 = vadd.f32 %v845, %v909
  %v911 = vpop.f32.mrf.mxu0
  %912 = vmatprep.mubr.bf16.mxu0 %v307
  %913 = vmatmul.mubr.bf16.gmra.mxu0 %v306
  %v914 = vpop.f32.mrf.mxu0
  %v915 = vadd.f32 %v850, %v914
  %v916 = vpop.f32.mrf.mxu0
  %v917 = vpop.f32.mrf.mxu0
  %v918 = vadd.f32 %v853, %v917
  %v919 = vpop.f32.mrf.mxu0
  %920 = vdwg.mxu0
  %921 = vmatprep.subr.bf16.mxu0 0
  %922 = vmatpush1.bf16.msra.mxu0 %v653
  %923 = vmatprep.subr.bf16.mxu0 0
  %924 = vmatpush1.bf16.msra.mxu0 %v652
  %925 = vmatprep.subr.bf16.mxu0 0
  %926 = vmatpush1.bf16.msra.mxu0 %v651
  %927 = vmatprep.subr.bf16.mxu0 0
  %928 = vmatpush1.bf16.msra.mxu0 %v650
  %929 = vmatprep.subr.bf16.mxu0 0
  %930 = vmatpush1.bf16.msra.mxu0 %v649
  %931 = vmatprep.subr.bf16.mxu0 0
  %932 = vmatpush1.bf16.msra.mxu0 %v648
  %933 = vmatprep.subr.bf16.mxu0 0
  %934 = vmatpush1.bf16.msra.mxu0 %v647
  %935 = vmatprep.subr.bf16.mxu0 0
  %936 = vmatpush1.bf16.msra.mxu0 %v646
  %937 = vmatprep.subr.bf16.mxu0 0
  %938 = vmatpush2.bf16.msra.mxu0 %v661
  %939 = vmatprep.subr.bf16.mxu0 0
  %940 = vmatpush2.bf16.msra.mxu0 %v660
  %941 = vmatprep.subr.bf16.mxu0 0
  %942 = vmatpush2.bf16.msra.mxu0 %v659
  %943 = vmatprep.subr.bf16.mxu0 0
  %944 = vmatpush2.bf16.msra.mxu0 %v658
  %945 = vmatprep.subr.bf16.mxu0 0
  %946 = vmatpush2.bf16.msra.mxu0 %v657
  %947 = vmatprep.subr.bf16.mxu0 0
  %948 = vmatpush2.bf16.msra.mxu0 %v656
  %949 = vmatprep.subr.bf16.mxu0 0
  %950 = vmatpush2.bf16.msra.mxu0 %v655
  %951 = vmatprep.subr.bf16.mxu0 0
  %952 = vmatpush2.bf16.msra.mxu0 %v654
  %953 = vmatprep.mubr.bf16.mxu0 %v285
  %954 = vmatmul.mubr.bf16.gmra.mxu0 %v284
  %v955 = vpop.f32.mrf.mxu0
  %v956 = vadd.f32 %v891, %v955
  %v957 = vpop.f32.mrf.mxu0
  %v958 = vpop.f32.mrf.mxu0
  %v959 = vadd.f32 %v894, %v958
  %v960 = vpop.f32.mrf.mxu0
  %961 = vmatprep.mubr.bf16.mxu0 %v293
  %962 = vmatmul.mubr.bf16.gmra.mxu0 %v292
  %v963 = vpop.f32.mrf.mxu0
  %v964 = vadd.f32 %v899, %v963
  %v965 = vpop.f32.mrf.mxu0
  %v966 = vpop.f32.mrf.mxu0
  %v967 = vadd.f32 %v902, %v966
  %v968 = vpop.f32.mrf.mxu0
  %969 = vmatprep.mubr.bf16.mxu0 %v301
  %970 = vmatmul.mubr.bf16.gmra.mxu0 %v300
  %v971 = vpop.f32.mrf.mxu0
  %v972 = vadd.f32 %v907, %v971
  %v973 = vpop.f32.mrf.mxu0
  %v974 = vpop.f32.mrf.mxu0
  %v975 = vadd.f32 %v910, %v974
  %v976 = vpop.f32.mrf.mxu0
  %977 = vmatprep.mubr.bf16.mxu0 %v309
  %978 = vmatmul.mubr.bf16.gmra.mxu0 %v308
  %v979 = vpop.f32.mrf.mxu0
  %v980 = vadd.f32 %v915, %v979
  %v981 = vpop.f32.mrf.mxu0
  %v982 = vpop.f32.mrf.mxu0
  %v983 = vadd.f32 %v918, %v982
  %v984 = vpop.f32.mrf.mxu0
  %985 = vdwg.mxu0
  %v986 = vmax.f32 %v956, 0.0
  %v987 = vmax.f32 %v959, 0.0
  %v988 = vmax.f32 %v964, 0.0
  %v989 = vmax.f32 %v967, 0.0
  %v990 = vmax.f32 %v972, 0.0
  %v991 = vmax.f32 %v975, 0.0
  %v992 = vmax.f32 %v980, 0.0
  %v993 = vmax.f32 %v983, 0.0
  %v994 = vpack.c.bf16 %v987, %v986
  %v995 = vpack.c.bf16 %v989, %v988
  %v996 = vpack.c.bf16 %v991, %v990
  %v997 = vpack.c.bf16 %v993, %v992
  %v1002 = vunpack.c.l.b16 %v994
  %v1003 = vunpack.c.h.b16 %v994
  %v1004 = vunpack.c.l.b16 %v995
  %v1005 = vunpack.c.h.b16 %v995
  %v1006 = vunpack.c.l.b16 %v996
  %v1007 = vunpack.c.h.b16 %v996
  %v1008 = vunpack.c.l.b16 %v997
  %v1009 = vunpack.c.h.b16 %v997
  %v1010 = vpack.c.b16 %v1002, %v1002
  %v1011 = vpack.c.b16 %v1003, %v1003
  %v1012 = vpack.c.b16 %v1004, %v1004
  %v1013 = vpack.c.b16 %v1005, %v1005
  %v1014 = vpack.c.b16 %v1006, %v1006
  %v1015 = vpack.c.b16 %v1007, %v1007
  %v1016 = vpack.c.b16 %v1008, %v1008
  %v1017 = vpack.c.b16 %v1009, %v1009
  %1026 = vst [vmem:[%s3] sm:$0xf] %v1010
  %1027 = vst [vmem:[%s3 + $0x4] sm:$0xf] %v1011
  %1028 = vst [vmem:[%s3 + $0x8] sm:$0xf] %v1012
  %1029 = vst [vmem:[%s3 + $0xc] sm:$0xf] %v1013
  %1030 = vst [vmem:[%s3 + $0x10] sm:$0xf] %v1014
  %1031 = vst [vmem:[%s3 + $0x14] sm:$0xf] %v1015
  %1032 = vst [vmem:[%s3 + $0x18] sm:$0xf] %v1016
  %1033 = vst [vmem:[%s3 + $0x1c] sm:$0xf] %v1017
  // Predicated region
  $region14: #{percept_forward.7} parent=0 // pred_check
    _
  $region15: #{percept_forward.7} parent=0 // pred_check_branch
    %1035 = sbr.rel (0) target = $region17
  $region16: #{percept_forward.7} parent=0 // pred_region
    _
  $region17: #{percept_forward.7} parent=0 // pred_fallthru
    _
  // Predicated region
  $region18: #{percept_forward.7} parent=0 // pred_check
    _
  $region19: #{percept_forward.7} parent=0 // pred_check_branch
    %1037 = sbr.rel (0) target = $region21
  $region20: #{percept_forward.7} parent=0 // pred_region
    _
  $region21: #{percept_forward.7} parent=0 // pred_fallthru
    _

// kernel: percept_forward.9
$region0: #{percept_forward.9}
  #allocation0 [shape = 'u32[]', space=smem, size = 0x4, offset = 0x4, fixed_abs, tag = 'smem constant byte address 0x4 - core index']
  #allocation1 [shape = 'u32[144,128]{1,0:T(1,128)}', space=vmem, size = 0x12000, scoped, tag = 'internal scratch']
  %s0 = inlined_call_operand.vmem [shape: bf16[8,1024], index: 0, kind: input, shape index: {}]
  %s1 = inlined_call_operand.vmem [shape: bf16[1024,256], index: 1, kind: input, shape index: {}]
  %s2 = inlined_call_operand.vmem [shape: f32[1,256], index: 2, kind: input, shape index: {}]
  %s3 = inlined_call_operand.vmem [shape: f32[8,256], index: 3, kind: output, shape index: {}]
  %s4 = sld [smem:[#allocation0]]
  $region86: #{percept_forward.9} parent=0
    _
  %s6 = ssub.s32 1, %s4
  %s7 = scalar_select 0, %s6, %s4
  $region1: #{percept_forward.9} parent=0
    #allocation2 [shape = 'u8[524288]{0}', space=vmem, size = 0x80000, scoped, tag = 'input window, operand 1']
    loop: start=0, step=1, limit=4
    $region2: #{percept_forward.9} parent=1 // loop_pre_header
      _
    $region3: #{percept_forward.9} parent=1 // loop_header
      %s9 = sphi 0, %s13
      %p10 = scmp.ge.s32.totalorder %s9, 4
      %s16 = sphi 0, %s28
      %s17 = sphi 0, %s24
      %s18 = sphi 0, %s16
      %s19 = sphi 0, %s17
      %s20 = sphi 0, %s18
      %s21 = sphi 0, %s19
      %s31 = sphi 0, %s33
      %s34 = sphi 0, %s31
      %s35 = sphi 0, %s34
      %s51 = sphi 0, %s35
      %s57 = sphi 0, %s59
      %s60 = sphi 0, %s57
      %s61 = sphi 0, %s60
      %s77 = sphi 0, %s61
      %s83 = sphi 0, %s85
      %s86 = sphi 0, %s83
      %s87 = sphi 0, %s86
      %s103 = sphi 0, %s87
      %s111 = sphi 0, %s113
      %s114 = sphi 0, %s111
      %s115 = sphi 0, %s114
      %s131 = sphi 0, %s115
    $region4: #{percept_forward.9} parent=1 // loop_header_branch
      %12 = sbr.rel (%p10) target = $region8
    $region5: #{percept_forward.9} parent=1 // loop_body
      %s14 = ssub.s32 %s9, 1
      %s15 = ssub.s32 %s9, 2
      %s22 = sadd.s32 1, %s17
      %p23 = scmp.ge.s32.totalorder %s22, 2
      %s24 = scalar_select %p23, 0, %s22
      %s25 = sadd.s32 1, %s16
      %s26 = scalar_select %p23, %s25, %s16
      %p27 = scmp.ge.s32.totalorder %s26, 1
      %s28 = scalar_select %p27, 0, %s26
      %s29 = ssub.s32 %s16, %s28
      %p30 = scmp.eq.s32.totalorder %s29, 0
      %s32 = sadd.s32 %s31, 1
      %s33 = scalar_select %p30, %s31, %s32
      %p36 = pneg %p30
      %p37 = scmp.eq.s32.totalorder %s9, 1
      %p38 = por %p36, %p37
      %p39 = scmp.ne.s32.totalorder %s31, %s34
      %p40 = scmp.eq.s32.totalorder %s9, 0
      %p41 = por %p39, %p40
      %p42 = scmp.ne.s32.totalorder %s31, %s34
      %p43 = scmp.eq.s32.totalorder %s14, 1
      %p44 = por %p42, %p43
      %p45 = scmp.ne.s32.totalorder %s34, %s35
      %p46 = scmp.eq.s32.totalorder %s14, 0
      %p47 = por %p45, %p46
      %p48 = scmp.ne.s32.totalorder %s34, %s35
      %p49 = scmp.eq.s32.totalorder %s15, 1
      %p50 = por %p48, %p49
      %p52 = scmp.ne.s32.totalorder %s35, %s51
      %p53 = scmp.eq.s32.totalorder %s15, 0
      %p54 = por %p52, %p53
      %s55 = ssub.s32 %s17, %s24
      %p56 = scmp.eq.s32.totalorder %s55, 0
      %s58 = sadd.s32 %s57, 1
      %s59 = scalar_select %p56, %s57, %s58
      %p62 = pneg %p56
      %p63 = scmp.eq.s32.totalorder %s9, 1
      %p64 = por %p62, %p63
      %p65 = scmp.ne.s32.totalorder %s57, %s60
      %p66 = scmp.eq.s32.totalorder %s9, 0
      %p67 = por %p65, %p66
      %p68 = scmp.ne.s32.totalorder %s57, %s60
      %p69 = scmp.eq.s32.totalorder %s14, 1
      %p70 = por %p68, %p69
      %p71 = scmp.ne.s32.totalorder %s60, %s61
      %p72 = scmp.eq.s32.totalorder %s14, 0
      %p73 = por %p71, %p72
      %p74 = scmp.ne.s32.totalorder %s60, %s61
      %p75 = scmp.eq.s32.totalorder %s15, 1
      %p76 = por %p74, %p75
      %p78 = scmp.ne.s32.totalorder %s61, %s77
      %p79 = scmp.eq.s32.totalorder %s15, 0
      %p80 = por %p78, %p79
      %s81 = ssub.s32 %s17, %s24
      %p82 = scmp.eq.s32.totalorder %s81, 0
      %s84 = sadd.s32 %s83, 1
      %s85 = scalar_select %p82, %s83, %s84
      %p88 = pneg %p82
      %p89 = scmp.eq.s32.totalorder %s9, 1
      %p90 = por %p88, %p89
      %p91 = scmp.ne.s32.totalorder %s83, %s86
      %p92 = scmp.eq.s32.totalorder %s9, 0
      %p93 = por %p91, %p92
      %p94 = scmp.ne.s32.totalorder %s83, %s86
      %p95 = scmp.eq.s32.totalorder %s14, 1
      %p96 = por %p94, %p95
      %p97 = scmp.ne.s32.totalorder %s86, %s87
      %p98 = scmp.eq.s32.totalorder %s14, 0
      %p99 = por %p97, %p98
      %p100 = scmp.ne.s32.totalorder %s86, %s87
      %p101 = scmp.eq.s32.totalorder %s15, 1
      %p102 = por %p100, %p101
      %p104 = scmp.ne.s32.totalorder %s87, %s103
      %p105 = scmp.eq.s32.totalorder %s15, 0
      %p106 = por %p104, %p105
      %s107 = ssub.s32 %s16, %s28
      %s108 = ssub.s32 %s17, %s24
      %s109 = sor.u32 %s107, %s108
      %p110 = scmp.eq.s32.totalorder %s109, 0
      %s112 = sadd.s32 %s111, 1
      %s113 = scalar_select %p110, %s111, %s112
      %p116 = pneg %p110
      %p117 = scmp.eq.s32.totalorder %s9, 1
      %p118 = por %p116, %p117
      %p119 = scmp.ne.s32.totalorder %s111, %s114
      %p120 = scmp.eq.s32.totalorder %s9, 0
      %p121 = por %p119, %p120
      %p122 = scmp.ne.s32.totalorder %s111, %s114
      %p123 = scmp.eq.s32.totalorder %s14, 1
      %p124 = por %p122, %p123
      %p125 = scmp.ne.s32.totalorder %s114, %s115
      %p126 = scmp.eq.s32.totalorder %s14, 0
      %p127 = por %p125, %p126
      %p128 = scmp.ne.s32.totalorder %s114, %s115
      %p129 = scmp.eq.s32.totalorder %s15, 1
      %p130 = por %p128, %p129
      %p132 = scmp.ne.s32.totalorder %s115, %s131
      %p133 = scmp.eq.s32.totalorder %s15, 0
      %p134 = por %p132, %p133
      %p135 = scmp.le.s32.totalorder 1, %s9
      %p136 = scmp.lt.s32.totalorder %s9, 3
      %p137 = pnand %p135, %p136
      %p138 = pneg %p137
      // Predicated region
      $region9: #{percept_forward.9} parent=5 // pred_check
        _
      $region10: #{percept_forward.9} parent=5 // pred_check_branch
        %140 = sbr.rel (%p137) target = $region12
      $region11: #{percept_forward.9} parent=5 // pred_region
        %s141 = ssub.s32 %s9, 1
        // Predicated region
        $region13: #{percept_forward.9} parent=11 // pred_check
          %p142 = pneg %p47
        $region14: #{percept_forward.9} parent=11 // pred_check_branch
          %144 = sbr.rel (%p142) target = $region16
        $region15: #{percept_forward.9} parent=11 // pred_region
          %p145 = scmp.lt.s32.totalorder %s18, 0
          %s146 = scalar_select %p145, %s18, 0
          %s147 = smul.addr %s146, 8
          %s148 = smul.addr %s147, 4
          %s149 = scalar_lea.vmem %s0, %s148
        $region16: #{percept_forward.9} parent=11 // pred_fallthru
          _
      $region12: #{percept_forward.9} parent=5 // pred_fallthru
        _
      %p150 = scmp.lt.s32.totalorder %s9, 2
      // Predicated region
      $region17: #{percept_forward.9} parent=5 // pred_check
        %p151 = pneg %p150
      $region18: #{percept_forward.9} parent=5 // pred_check_branch
        %153 = sbr.rel (%p151) target = $region20
      $region19: #{percept_forward.9} parent=5 // pred_region
        // Predicated region
        $region21: #{percept_forward.9} parent=19 // pred_check
          %p154 = pneg %p67
        $region22: #{percept_forward.9} parent=19 // pred_check_branch
          %156 = sbr.rel (%p154) target = $region24
        $region23: #{percept_forward.9} parent=19 // pred_region
          %s157 = sand.u32 %s57, 1
          %s158 = sand.u32 %s57, 1
          %s159 = smul.addr %s158, 512
          %s160 = scalar_lea.vmem [#allocation2], %s159
          %s161 = smul.addr %s17, 4
          %s162 = scalar_lea.vmem %s1, %s161
          // Predicated region
          $region25: #{percept_forward.9} parent=23 // pred_check
            _
          $region26: #{percept_forward.9} parent=23 // pred_check_branch
            %164 = sbr.rel (0) target = $region28
          $region27: #{percept_forward.9} parent=23 // pred_region
            // Predicated region
            $region29: #{percept_forward.9} parent=27 // pred_check
              _
            $region30: #{percept_forward.9} parent=27 // pred_check_branch
              %166 = sbr.rel target = $region32
            $region31: #{percept_forward.9} parent=27 // pred_region
              // Predicated region
              $region44: #{percept_forward.9} parent=31 // pred_check
                _
              $region45: #{percept_forward.9} parent=31 // pred_check_branch
                %436 = sbr.rel (0) target = $region47
              $region46: #{percept_forward.9} parent=31 // pred_region
                loop: start=0, step=1, limit=1
                $region48: #{percept_forward.9} parent=46 // loop_pre_header
                  _
                $region49: #{percept_forward.9} parent=46 // loop_header
                  %s438 = sphi 0, %s442
                  %p439 = scmp.ge.s32.totalorder %s438, 1
                  %s443 = sphi %s162, %s162
                  %s444 = sphi %s160, %s160
                $region50: #{percept_forward.9} parent=46 // loop_header_branch
                  %441 = sbr.rel (%p439) target = $region54
                $region51: #{percept_forward.9} parent=46 // loop_body
                  _
                $region52: #{percept_forward.9} parent=46 // loop_footer
                  %s442 = sadd.s32 1, %s438
                $region53: #{percept_forward.9} parent=46 // loop_footer_branch
                  %437 = sbr.rel target = $region49
                $region54: #{percept_forward.9} parent=46 // loop_exit
                  _
                %s446 = ssub.s32 16, 1
                loop: start=0, step=1, limit=1
                $region55: #{percept_forward.9} parent=46 // loop_pre_header
                  _
                $region56: #{percept_forward.9} parent=46 // loop_header
                  %s448 = sphi 0, %s452
                  %p449 = scmp.ge.s32.totalorder %s448, 1
                  %s453 = sphi %s162, %s162
                  %s454 = sphi %s160, %s160
                $region57: #{percept_forward.9} parent=46 // loop_header_branch
                  %451 = sbr.rel (%p449) target = $region61
                $region58: #{percept_forward.9} parent=46 // loop_body
                  %v455 = vld [vmem:[%s453] sm:%s446]
                  %456 = vst [vmem:[%s454] sm:%s446] %v455
                  %v457 = vld [vmem:[%s453 + $0x8] sm:%s446]
                  %458 = vst [vmem:[%s454 + $0x4] sm:%s446] %v457
                  %v459 = vld [vmem:[%s453 + $0x10] sm:%s446]
                  %460 = vst [vmem:[%s454 + $0x8] sm:%s446] %v459
                  %v461 = vld [vmem:[%s453 + $0x18] sm:%s446]
                  %462 = vst [vmem:[%s454 + $0xc] sm:%s446] %v461
                  %v463 = vld [vmem:[%s453 + $0x20] sm:%s446]
                  %464 = vst [vmem:[%s454 + $0x10] sm:%s446] %v463
                  %v465 = vld [vmem:[%s453 + $0x28] sm:%s446]
                  %466 = vst [vmem:[%s454 + $0x14] sm:%s446] %v465
                  %v467 = vld [vmem:[%s453 + $0x30] sm:%s446]
                  %468 = vst [vmem:[%s454 + $0x18] sm:%s446] %v467
                  %v469 = vld [vmem:[%s453 + $0x38] sm:%s446]
                  %470 = vst [vmem:[%s454 + $0x1c] sm:%s446] %v469
                  %v471 = vld [vmem:[%s453 + $0x40] sm:%s446]
                  %472 = vst [vmem:[%s454 + $0x20] sm:%s446] %v471
                  %v473 = vld [vmem:[%s453 + $0x48] sm:%s446]
                  %474 = vst [vmem:[%s454 + $0x24] sm:%s446] %v473
                  %v475 = vld [vmem:[%s453 + $0x50] sm:%s446]
                  %476 = vst [vmem:[%s454 + $0x28] sm:%s446] %v475
                  %v477 = vld [vmem:[%s453 + $0x58] sm:%s446]
                  %478 = vst [vmem:[%s454 + $0x2c] sm:%s446] %v477
                  %v479 = vld [vmem:[%s453 + $0x60] sm:%s446]
                  %480 = vst [vmem:[%s454 + $0x30] sm:%s446] %v479
                  %v481 = vld [vmem:[%s453 + $0x68] sm:%s446]
                  %482 = vst [vmem:[%s454 + $0x34] sm:%s446] %v481
                  %v483 = vld [vmem:[%s453 + $0x70] sm:%s446]
                  %484 = vst [vmem:[%s454 + $0x38] sm:%s446] %v483
                  %v485 = vld [vmem:[%s453 + $0x78] sm:%s446]
                  %486 = vst [vmem:[%s454 + $0x3c] sm:%s446] %v485
                  %v487 = vld [vmem:[%s453 + $0x80] sm:%s446]
                  %488 = vst [vmem:[%s454 + $0x40] sm:%s446] %v487
                  %v489 = vld [vmem:[%s453 + $0x88] sm:%s446]
                  %490 = vst [vmem:[%s454 + $0x44] sm:%s446] %v489
                  %v491 = vld [vmem:[%s453 + $0x90] sm:%s446]
                  %492 = vst [vmem:[%s454 + $0x48] sm:%s446] %v491
                  %v493 = vld [vmem:[%s453 + $0x98] sm:%s446]
                  %494 = vst [vmem:[%s454 + $0x4c] sm:%s446] %v493
                  %v495 = vld [vmem:[%s453 + $0xa0] sm:%s446]
                  %496 = vst [vmem:[%s454 + $0x50] sm:%s446] %v495
                  %v497 = vld [vmem:[%s453 + $0xa8] sm:%s446]
                  %498 = vst [vmem:[%s454 + $0x54] sm:%s446] %v497
                  %v499 = vld [vmem:[%s453 + $0xb0] sm:%s446]
                  %500 = vst [vmem:[%s454 + $0x58] sm:%s446] %v499
                  %v501 = vld [vmem:[%s453 + $0xb8] sm:%s446]
                  %502 = vst [vmem:[%s454 + $0x5c] sm:%s446] %v501
                  %v503 = vld [vmem:[%s453 + $0xc0] sm:%s446]
                  %504 = vst [vmem:[%s454 + $0x60] sm:%s446] %v503
                  %v505 = vld [vmem:[%s453 + $0xc8] sm:%s446]
                  %506 = vst [vmem:[%s454 + $0x64] sm:%s446] %v505
                  %v507 = vld [vmem:[%s453 + $0xd0] sm:%s446]
                  %508 = vst [vmem:[%s454 + $0x68] sm:%s446] %v507
                  %v509 = vld [vmem:[%s453 + $0xd8] sm:%s446]
                  %510 = vst [vmem:[%s454 + $0x6c] sm:%s446] %v509
                  %v511 = vld [vmem:[%s453 + $0xe0] sm:%s446]
                  %512 = vst [vmem:[%s454 + $0x70] sm:%s446] %v511
                  %v513 = vld [vmem:[%s453 + $0xe8] sm:%s446]
                  %514 = vst [vmem:[%s454 + $0x74] sm:%s446] %v513
                  %v515 = vld [vmem:[%s453 + $0xf0] sm:%s446]
                  %516 = vst [vmem:[%s454 + $0x78] sm:%s446] %v515
                  %v517 = vld [vmem:[%s453 + $0xf8] sm:%s446]
                  %518 = vst [vmem:[%s454 + $0x7c] sm:%s446] %v517
                  %v519 = vld [vmem:[%s453 + $0x100] sm:%s446]
                  %520 = vst [vmem:[%s454 + $0x80] sm:%s446] %v519
                  %v521 = vld [vmem:[%s453 + $0x108] sm:%s446]
                  %522 = vst [vmem:[%s454 + $0x84] sm:%s446] %v521
                  %v523 = vld [vmem:[%s453 + $0x110] sm:%s446]
                  %524 = vst [vmem:[%s454 + $0x88] sm:%s446] %v523
                  %v525 = vld [vmem:[%s453 + $0x118] sm:%s446]
                  %526 = vst [vmem:[%s454 + $0x8c] sm:%s446] %v525
                  %v527 = vld [vmem:[%s453 + $0x120] sm:%s446]
                  %528 = vst [vmem:[%s454 + $0x90] sm:%s446] %v527
                  %v529 = vld [vmem:[%s453 + $0x128] sm:%s446]
                  %530 = vst [vmem:[%s454 + $0x94] sm:%s446] %v529
                  %v531 = vld [vmem:[%s453 + $0x130] sm:%s446]
                  %532 = vst [vmem:[%s454 + $0x98] sm:%s446] %v531
                  %v533 = vld [vmem:[%s453 + $0x138] sm:%s446]
                  %534 = vst [vmem:[%s454 + $0x9c] sm:%s446] %v533
                  %v535 = vld [vmem:[%s453 + $0x140] sm:%s446]
                  %536 = vst [vmem:[%s454 + $0xa0] sm:%s446] %v535
                  %v537 = vld [vmem:[%s453 + $0x148] sm:%s446]
                  %538 = vst [vmem:[%s454 + $0xa4] sm:%s446] %v537
                  %v539 = vld [vmem:[%s453 + $0x150] sm:%s446]
                  %540 = vst [vmem:[%s454 + $0xa8] sm:%s446] %v539
                  %v541 = vld [vmem:[%s453 + $0x158] sm:%s446]
                  %542 = vst [vmem:[%s454 + $0xac] sm:%s446] %v541
                  %v543 = vld [vmem:[%s453 + $0x160] sm:%s446]
                  %544 = vst [vmem:[%s454 + $0xb0] sm:%s446] %v543
                  %v545 = vld [vmem:[%s453 + $0x168] sm:%s446]
                  %546 = vst [vmem:[%s454 + $0xb4] sm:%s446] %v545
                  %v547 = vld [vmem:[%s453 + $0x170] sm:%s446]
                  %548 = vst [vmem:[%s454 + $0xb8] sm:%s446] %v547
                  %v549 = vld [vmem:[%s453 + $0x178] sm:%s446]
                  %550 = vst [vmem:[%s454 + $0xbc] sm:%s446] %v549
                  %v551 = vld [vmem:[%s453 + $0x180] sm:%s446]
                  %552 = vst [vmem:[%s454 + $0xc0] sm:%s446] %v551
                  %v553 = vld [vmem:[%s453 + $0x188] sm:%s446]
                  %554 = vst [vmem:[%s454 + $0xc4] sm:%s446] %v553
                  %v555 = vld [vmem:[%s453 + $0x190] sm:%s446]
                  %556 = vst [vmem:[%s454 + $0xc8] sm:%s446] %v555
                  %v557 = vld [vmem:[%s453 + $0x198] sm:%s446]
                  %558 = vst [vmem:[%s454 + $0xcc] sm:%s446] %v557
                  %v559 = vld [vmem:[%s453 + $0x1a0] sm:%s446]
                  %560 = vst [vmem:[%s454 + $0xd0] sm:%s446] %v559
                  %v561 = vld [vmem:[%s453 + $0x1a8] sm:%s446]
                  %562 = vst [vmem:[%s454 + $0xd4] sm:%s446] %v561
                  %v563 = vld [vmem:[%s453 + $0x1b0] sm:%s446]
                  %564 = vst [vmem:[%s454 + $0xd8] sm:%s446] %v563
                  %v565 = vld [vmem:[%s453 + $0x1b8] sm:%s446]
                  %566 = vst [vmem:[%s454 + $0xdc] sm:%s446] %v565
                  %v567 = vld [vmem:[%s453 + $0x1c0] sm:%s446]
                  %568 = vst [vmem:[%s454 + $0xe0] sm:%s446] %v567
                  %v569 = vld [vmem:[%s453 + $0x1c8] sm:%s446]
                  %570 = vst [vmem:[%s454 + $0xe4] sm:%s446] %v569
                  %v571 = vld [vmem:[%s453 + $0x1d0] sm:%s446]
                  %572 = vst [vmem:[%s454 + $0xe8] sm:%s446] %v571
                  %v573 = vld [vmem:[%s453 + $0x1d8] sm:%s446]
                  %574 = vst [vmem:[%s454 + $0xec] sm:%s446] %v573
                  %v575 = vld [vmem:[%s453 + $0x1e0] sm:%s446]
                  %576 = vst [vmem:[%s454 + $0xf0] sm:%s446] %v575
                  %v577 = vld [vmem:[%s453 + $0x1e8] sm:%s446]
                  %578 = vst [vmem:[%s454 + $0xf4] sm:%s446] %v577
                  %v579 = vld [vmem:[%s453 + $0x1f0] sm:%s446]
                  %580 = vst [vmem:[%s454 + $0xf8] sm:%s446] %v579
                  %v581 = vld [vmem:[%s453 + $0x1f8] sm:%s446]
                  %582 = vst [vmem:[%s454 + $0xfc] sm:%s446] %v581
                  %v583 = vld [vmem:[%s453 + $0x200] sm:%s446]
                  %584 = vst [vmem:[%s454 + $0x100] sm:%s446] %v583
                  %v585 = vld [vmem:[%s453 + $0x208] sm:%s446]
                  %586 = vst [vmem:[%s454 + $0x104] sm:%s446] %v585
                  %v587 = vld [vmem:[%s453 + $0x210] sm:%s446]
                  %588 = vst [vmem:[%s454 + $0x108] sm:%s446] %v587
                  %v589 = vld [vmem:[%s453 + $0x218] sm:%s446]
                  %590 = vst [vmem:[%s454 + $0x10c] sm:%s446] %v589
                  %v591 = vld [vmem:[%s453 + $0x220] sm:%s446]
                  %592 = vst [vmem:[%s454 + $0x110] sm:%s446] %v591
                  %v593 = vld [vmem:[%s453 + $0x228] sm:%s446]
                  %594 = vst [vmem:[%s454 + $0x114] sm:%s446] %v593
                  %v595 = vld [vmem:[%s453 + $0x230] sm:%s446]
                  %596 = vst [vmem:[%s454 + $0x118] sm:%s446] %v595
                  %v597 = vld [vmem:[%s453 + $0x238] sm:%s446]
                  %598 = vst [vmem:[%s454 + $0x11c] sm:%s446] %v597
                  %v599 = vld [vmem:[%s453 + $0x240] sm:%s446]
                  %600 = vst [vmem:[%s454 + $0x120] sm:%s446] %v599
                  %v601 = vld [vmem:[%s453 + $0x248] sm:%s446]
                  %602 = vst [vmem:[%s454 + $0x124] sm:%s446] %v601
                  %v603 = vld [vmem:[%s453 + $0x250] sm:%s446]
                  %604 = vst [vmem:[%s454 + $0x128] sm:%s446] %v603
                  %v605 = vld [vmem:[%s453 + $0x258] sm:%s446]
                  %606 = vst [vmem:[%s454 + $0x12c] sm:%s446] %v605
                  %v607 = vld [vmem:[%s453 + $0x260] sm:%s446]
                  %608 = vst [vmem:[%s454 + $0x130] sm:%s446] %v607
                  %v609 = vld [vmem:[%s453 + $0x268] sm:%s446]
                  %610 = vst [vmem:[%s454 + $0x134] sm:%s446] %v609
                  %v611 = vld [vmem:[%s453 + $0x270] sm:%s446]
                  %612 = vst [vmem:[%s454 + $0x138] sm:%s446] %v611
                  %v613 = vld [vmem:[%s453 + $0x278] sm:%s446]
                  %614 = vst [vmem:[%s454 + $0x13c] sm:%s446] %v613
                  %v615 = vld [vmem:[%s453 + $0x280] sm:%s446]
                  %616 = vst [vmem:[%s454 + $0x140] sm:%s446] %v615
                  %v617 = vld [vmem:[%s453 + $0x288] sm:%s446]
                  %618 = vst [vmem:[%s454 + $0x144] sm:%s446] %v617
                  %v619 = vld [vmem:[%s453 + $0x290] sm:%s446]
                  %620 = vst [vmem:[%s454 + $0x148] sm:%s446] %v619
                  %v621 = vld [vmem:[%s453 + $0x298] sm:%s446]
                  %622 = vst [vmem:[%s454 + $0x14c] sm:%s446] %v621
                  %v623 = vld [vmem:[%s453 + $0x2a0] sm:%s446]
                  %624 = vst [vmem:[%s454 + $0x150] sm:%s446] %v623
                  %v625 = vld [vmem:[%s453 + $0x2a8] sm:%s446]
                  %626 = vst [vmem:[%s454 + $0x154] sm:%s446] %v625
                  %v627 = vld [vmem:[%s453 + $0x2b0] sm:%s446]
                  %628 = vst [vmem:[%s454 + $0x158] sm:%s446] %v627
                  %v629 = vld [vmem:[%s453 + $0x2b8] sm:%s446]
                  %630 = vst [vmem:[%s454 + $0x15c] sm:%s446] %v629
                  %v631 = vld [vmem:[%s453 + $0x2c0] sm:%s446]
                  %632 = vst [vmem:[%s454 + $0x160] sm:%s446] %v631
                  %v633 = vld [vmem:[%s453 + $0x2c8] sm:%s446]
                  %634 = vst [vmem:[%s454 + $0x164] sm:%s446] %v633
                  %v635 = vld [vmem:[%s453 + $0x2d0] sm:%s446]
                  %636 = vst [vmem:[%s454 + $0x168] sm:%s446] %v635
                  %v637 = vld [vmem:[%s453 + $0x2d8] sm:%s446]
                  %638 = vst [vmem:[%s454 + $0x16c] sm:%s446] %v637
                  %v639 = vld [vmem:[%s453 + $0x2e0] sm:%s446]
                  %640 = vst [vmem:[%s454 + $0x170] sm:%s446] %v639
                  %v641 = vld [vmem:[%s453 + $0x2e8] sm:%s446]
                  %642 = vst [vmem:[%s454 + $0x174] sm:%s446] %v641
                  %v643 = vld [vmem:[%s453 + $0x2f0] sm:%s446]
                  %644 = vst [vmem:[%s454 + $0x178] sm:%s446] %v643
                  %v645 = vld [vmem:[%s453 + $0x2f8] sm:%s446]
                  %646 = vst [vmem:[%s454 + $0x17c] sm:%s446] %v645
                  %v647 = vld [vmem:[%s453 + $0x300] sm:%s446]
                  %648 = vst [vmem:[%s454 + $0x180] sm:%s446] %v647
                  %v649 = vld [vmem:[%s453 + $0x308] sm:%s446]
                  %650 = vst [vmem:[%s454 + $0x184] sm:%s446] %v649
                  %v651 = vld [vmem:[%s453 + $0x310] sm:%s446]
                  %652 = vst [vmem:[%s454 + $0x188] sm:%s446] %v651
                  %v653 = vld [vmem:[%s453 + $0x318] sm:%s446]
                  %654 = vst [vmem:[%s454 + $0x18c] sm:%s446] %v653
                  %v655 = vld [vmem:[%s453 + $0x320] sm:%s446]
                  %656 = vst [vmem:[%s454 + $0x190] sm:%s446] %v655
                  %v657 = vld [vmem:[%s453 + $0x328] sm:%s446]
                  %658 = vst [vmem:[%s454 + $0x194] sm:%s446] %v657
                  %v659 = vld [vmem:[%s453 + $0x330] sm:%s446]
                  %660 = vst [vmem:[%s454 + $0x198] sm:%s446] %v659
                  %v661 = vld [vmem:[%s453 + $0x338] sm:%s446]
                  %662 = vst [vmem:[%s454 + $0x19c] sm:%s446] %v661
                  %v663 = vld [vmem:[%s453 + $0x340] sm:%s446]
                  %664 = vst [vmem:[%s454 + $0x1a0] sm:%s446] %v663
                  %v665 = vld [vmem:[%s453 + $0x348] sm:%s446]
                  %666 = vst [vmem:[%s454 + $0x1a4] sm:%s446] %v665
                  %v667 = vld [vmem:[%s453 + $0x350] sm:%s446]
                  %668 = vst [vmem:[%s454 + $0x1a8] sm:%s446] %v667
                  %v669 = vld [vmem:[%s453 + $0x358] sm:%s446]
                  %670 = vst [vmem:[%s454 + $0x1ac] sm:%s446] %v669
                  %v671 = vld [vmem:[%s453 + $0x360] sm:%s446]
                  %672 = vst [vmem:[%s454 + $0x1b0] sm:%s446] %v671
                  %v673 = vld [vmem:[%s453 + $0x368] sm:%s446]
                  %674 = vst [vmem:[%s454 + $0x1b4] sm:%s446] %v673
                  %v675 = vld [vmem:[%s453 + $0x370] sm:%s446]
                  %676 = vst [vmem:[%s454 + $0x1b8] sm:%s446] %v675
                  %v677 = vld [vmem:[%s453 + $0x378] sm:%s446]
                  %678 = vst [vmem:[%s454 + $0x1bc] sm:%s446] %v677
                  %v679 = vld [vmem:[%s453 + $0x380] sm:%s446]
                  %680 = vst [vmem:[%s454 + $0x1c0] sm:%s446] %v679
                  %v681 = vld [vmem:[%s453 + $0x388] sm:%s446]
                  %682 = vst [vmem:[%s454 + $0x1c4] sm:%s446] %v681
                  %v683 = vld [vmem:[%s453 + $0x390] sm:%s446]
                  %684 = vst [vmem:[%s454 + $0x1c8] sm:%s446] %v683
                  %v685 = vld [vmem:[%s453 + $0x398] sm:%s446]
                  %686 = vst [vmem:[%s454 + $0x1cc] sm:%s446] %v685
                  %v687 = vld [vmem:[%s453 + $0x3a0] sm:%s446]
                  %688 = vst [vmem:[%s454 + $0x1d0] sm:%s446] %v687
                  %v689 = vld [vmem:[%s453 + $0x3a8] sm:%s446]
                  %690 = vst [vmem:[%s454 + $0x1d4] sm:%s446] %v689
                  %v691 = vld [vmem:[%s453 + $0x3b0] sm:%s446]
                  %692 = vst [vmem:[%s454 + $0x1d8] sm:%s446] %v691
                  %v693 = vld [vmem:[%s453 + $0x3b8] sm:%s446]
                  %694 = vst [vmem:[%s454 + $0x1dc] sm:%s446] %v693
                  %v695 = vld [vmem:[%s453 + $0x3c0] sm:%s446]
                  %696 = vst [vmem:[%s454 + $0x1e0] sm:%s446] %v695
                  %v697 = vld [vmem:[%s453 + $0x3c8] sm:%s446]
                  %698 = vst [vmem:[%s454 + $0x1e4] sm:%s446] %v697
                  %v699 = vld [vmem:[%s453 + $0x3d0] sm:%s446]
                  %700 = vst [vmem:[%s454 + $0x1e8] sm:%s446] %v699
                  %v701 = vld [vmem:[%s453 + $0x3d8] sm:%s446]
                  %702 = vst [vmem:[%s454 + $0x1ec] sm:%s446] %v701
                  %v703 = vld [vmem:[%s453 + $0x3e0] sm:%s446]
                  %704 = vst [vmem:[%s454 + $0x1f0] sm:%s446] %v703
                  %v705 = vld [vmem:[%s453 + $0x3e8] sm:%s446]
                  %706 = vst [vmem:[%s454 + $0x1f4] sm:%s446] %v705
                  %v707 = vld [vmem:[%s453 + $0x3f0] sm:%s446]
                  %708 = vst [vmem:[%s454 + $0x1f8] sm:%s446] %v707
                  %v709 = vld [vmem:[%s453 + $0x3f8] sm:%s446]
                  %710 = vst [vmem:[%s454 + $0x1fc] sm:%s446] %v709
                $region59: #{percept_forward.9} parent=46 // loop_footer
                  %s452 = sadd.s32 1, %s448
                $region60: #{percept_forward.9} parent=46 // loop_footer_branch
                  %447 = sbr.rel target = $region56
                $region61: #{percept_forward.9} parent=46 // loop_exit
                  _
              $region47: #{percept_forward.9} parent=31 // pred_fallthru
                _
            $region32: #{percept_forward.9} parent=27 // pred_fallthru
              _
            // Predicated region
            $region33: #{percept_forward.9} parent=27 // pred_check
              _
            $region34: #{percept_forward.9} parent=27 // pred_check_branch
              %168 = sbr.rel (0) target = $region36
            $region35: #{percept_forward.9} parent=27 // pred_region
              %s170 = ssub.s32 16, 1
              loop: start=0, step=1, limit=1
              $region37: #{percept_forward.9} parent=35 // loop_pre_header
                _
              $region38: #{percept_forward.9} parent=35 // loop_header
                %s172 = sphi 0, %s176
                %p173 = scmp.ge.s32.totalorder %s172, 1
                %s177 = sphi %s162, %s162
                %s178 = sphi %s160, %s160
              $region39: #{percept_forward.9} parent=35 // loop_header_branch
                %175 = sbr.rel (%p173) target = $region43
              $region40: #{percept_forward.9} parent=35 // loop_body
                %v179 = vld [vmem:[%s177] sm:%s170]
                %180 = vst [vmem:[%s178] sm:%s170] %v179
                %v181 = vld [vmem:[%s177 + $0x8] sm:%s170]
                %182 = vst [vmem:[%s178 + $0x4] sm:%s170] %v181
                %v183 = vld [vmem:[%s177 + $0x10] sm:%s170]
                %184 = vst [vmem:[%s178 + $0x8] sm:%s170] %v183
                %v185 = vld [vmem:[%s177 + $0x18] sm:%s170]
                %186 = vst [vmem:[%s178 + $0xc] sm:%s170] %v185
                %v187 = vld [vmem:[%s177 + $0x20] sm:%s170]
                %188 = vst [vmem:[%s178 + $0x10] sm:%s170] %v187
                %v189 = vld [vmem:[%s177 + $0x28] sm:%s170]
                %190 = vst [vmem:[%s178 + $0x14] sm:%s170] %v189
                %v191 = vld [vmem:[%s177 + $0x30] sm:%s170]
                %192 = vst [vmem:[%s178 + $0x18] sm:%s170] %v191
                %v193 = vld [vmem:[%s177 + $0x38] sm:%s170]
                %194 = vst [vmem:[%s178 + $0x1c] sm:%s170] %v193
                %v195 = vld [vmem:[%s177 + $0x40] sm:%s170]
                %196 = vst [vmem:[%s178 + $0x20] sm:%s170] %v195
                %v197 = vld [vmem:[%s177 + $0x48] sm:%s170]
                %198 = vst [vmem:[%s178 + $0x24] sm:%s170] %v197
                %v199 = vld [vmem:[%s177 + $0x50] sm:%s170]
                %200 = vst [vmem:[%s178 + $0x28] sm:%s170] %v199
                %v201 = vld [vmem:[%s177 + $0x58] sm:%s170]
                %202 = vst [vmem:[%s178 + $0x2c] sm:%s170] %v201
                %v203 = vld [vmem:[%s177 + $0x60] sm:%s170]
                %204 = vst [vmem:[%s178 + $0x30] sm:%s170] %v203
                %v205 = vld [vmem:[%s177 + $0x68] sm:%s170]
                %206 = vst [vmem:[%s178 + $0x34] sm:%s170] %v205
                %v207 = vld [vmem:[%s177 + $0x70] sm:%s170]
                %208 = vst [vmem:[%s178 + $0x38] sm:%s170] %v207
                %v209 = vld [vmem:[%s177 + $0x78] sm:%s170]
                %210 = vst [vmem:[%s178 + $0x3c] sm:%s170] %v209
                %v211 = vld [vmem:[%s177 + $0x80] sm:%s170]
                %212 = vst [vmem:[%s178 + $0x40] sm:%s170] %v211
                %v213 = vld [vmem:[%s177 + $0x88] sm:%s170]
                %214 = vst [vmem:[%s178 + $0x44] sm:%s170] %v213
                %v215 = vld [vmem:[%s177 + $0x90] sm:%s170]
                %216 = vst [vmem:[%s178 + $0x48] sm:%s170] %v215
                %v217 = vld [vmem:[%s177 + $0x98] sm:%s170]
                %218 = vst [vmem:[%s178 + $0x4c] sm:%s170] %v217
                %v219 = vld [vmem:[%s177 + $0xa0] sm:%s170]
                %220 = vst [vmem:[%s178 + $0x50] sm:%s170] %v219
                %v221 = vld [vmem:[%s177 + $0xa8] sm:%s170]
                %222 = vst [vmem:[%s178 + $0x54] sm:%s170] %v221
                %v223 = vld [vmem:[%s177 + $0xb0] sm:%s170]
                %224 = vst [vmem:[%s178 + $0x58] sm:%s170] %v223
                %v225 = vld [vmem:[%s177 + $0xb8] sm:%s170]
                %226 = vst [vmem:[%s178 + $0x5c] sm:%s170] %v225
                %v227 = vld [vmem:[%s177 + $0xc0] sm:%s170]
                %228 = vst [vmem:[%s178 + $0x60] sm:%s170] %v227
                %v229 = vld [vmem:[%s177 + $0xc8] sm:%s170]
                %230 = vst [vmem:[%s178 + $0x64] sm:%s170] %v229
                %v231 = vld [vmem:[%s177 + $0xd0] sm:%s170]
                %232 = vst [vmem:[%s178 + $0x68] sm:%s170] %v231
                %v233 = vld [vmem:[%s177 + $0xd8] sm:%s170]
                %234 = vst [vmem:[%s178 + $0x6c] sm:%s170] %v233
                %v235 = vld [vmem:[%s177 + $0xe0] sm:%s170]
                %236 = vst [vmem:[%s178 + $0x70] sm:%s170] %v235
                %v237 = vld [vmem:[%s177 + $0xe8] sm:%s170]
                %238 = vst [vmem:[%s178 + $0x74] sm:%s170] %v237
                %v239 = vld [vmem:[%s177 + $0xf0] sm:%s170]
                %240 = vst [vmem:[%s178 + $0x78] sm:%s170] %v239
                %v241 = vld [vmem:[%s177 + $0xf8] sm:%s170]
                %242 = vst [vmem:[%s178 + $0x7c] sm:%s170] %v241
                %v243 = vld [vmem:[%s177 + $0x100] sm:%s170]
                %244 = vst [vmem:[%s178 + $0x80] sm:%s170] %v243
                %v245 = vld [vmem:[%s177 + $0x108] sm:%s170]
                %246 = vst [vmem:[%s178 + $0x84] sm:%s170] %v245
                %v247 = vld [vmem:[%s177 + $0x110] sm:%s170]
                %248 = vst [vmem:[%s178 + $0x88] sm:%s170] %v247
                %v249 = vld [vmem:[%s177 + $0x118] sm:%s170]
                %250 = vst [vmem:[%s178 + $0x8c] sm:%s170] %v249
                %v251 = vld [vmem:[%s177 + $0x120] sm:%s170]
                %252 = vst [vmem:[%s178 + $0x90] sm:%s170] %v251
                %v253 = vld [vmem:[%s177 + $0x128] sm:%s170]
                %254 = vst [vmem:[%s178 + $0x94] sm:%s170] %v253
                %v255 = vld [vmem:[%s177 + $0x130] sm:%s170]
                %256 = vst [vmem:[%s178 + $0x98] sm:%s170] %v255
                %v257 = vld [vmem:[%s177 + $0x138] sm:%s170]
                %258 = vst [vmem:[%s178 + $0x9c] sm:%s170] %v257
                %v259 = vld [vmem:[%s177 + $0x140] sm:%s170]
                %260 = vst [vmem:[%s178 + $0xa0] sm:%s170] %v259
                %v261 = vld [vmem:[%s177 + $0x148] sm:%s170]
                %262 = vst [vmem:[%s178 + $0xa4] sm:%s170] %v261
                %v263 = vld [vmem:[%s177 + $0x150] sm:%s170]
                %264 = vst [vmem:[%s178 + $0xa8] sm:%s170] %v263
                %v265 = vld [vmem:[%s177 + $0x158] sm:%s170]
                %266 = vst [vmem:[%s178 + $0xac] sm:%s170] %v265
                %v267 = vld [vmem:[%s177 + $0x160] sm:%s170]
                %268 = vst [vmem:[%s178 + $0xb0] sm:%s170] %v267
                %v269 = vld [vmem:[%s177 + $0x168] sm:%s170]
                %270 = vst [vmem:[%s178 + $0xb4] sm:%s170] %v269
                %v271 = vld [vmem:[%s177 + $0x170] sm:%s170]
                %272 = vst [vmem:[%s178 + $0xb8] sm:%s170] %v271
                %v273 = vld [vmem:[%s177 + $0x178] sm:%s170]
                %274 = vst [vmem:[%s178 + $0xbc] sm:%s170] %v273
                %v275 = vld [vmem:[%s177 + $0x180] sm:%s170]
                %276 = vst [vmem:[%s178 + $0xc0] sm:%s170] %v275
                %v277 = vld [vmem:[%s177 + $0x188] sm:%s170]
                %278 = vst [vmem:[%s178 + $0xc4] sm:%s170] %v277
                %v279 = vld [vmem:[%s177 + $0x190] sm:%s170]
                %280 = vst [vmem:[%s178 + $0xc8] sm:%s170] %v279
                %v281 = vld [vmem:[%s177 + $0x198] sm:%s170]
                %282 = vst [vmem:[%s178 + $0xcc] sm:%s170] %v281
                %v283 = vld [vmem:[%s177 + $0x1a0] sm:%s170]
                %284 = vst [vmem:[%s178 + $0xd0] sm:%s170] %v283
                %v285 = vld [vmem:[%s177 + $0x1a8] sm:%s170]
                %286 = vst [vmem:[%s178 + $0xd4] sm:%s170] %v285
                %v287 = vld [vmem:[%s177 + $0x1b0] sm:%s170]
                %288 = vst [vmem:[%s178 + $0xd8] sm:%s170] %v287
                %v289 = vld [vmem:[%s177 + $0x1b8] sm:%s170]
                %290 = vst [vmem:[%s178 + $0xdc] sm:%s170] %v289
                %v291 = vld [vmem:[%s177 + $0x1c0] sm:%s170]
                %292 = vst [vmem:[%s178 + $0xe0] sm:%s170] %v291
                %v293 = vld [vmem:[%s177 + $0x1c8] sm:%s170]
                %294 = vst [vmem:[%s178 + $0xe4] sm:%s170] %v293
                %v295 = vld [vmem:[%s177 + $0x1d0] sm:%s170]
                %296 = vst [vmem:[%s178 + $0xe8] sm:%s170] %v295
                %v297 = vld [vmem:[%s177 + $0x1d8] sm:%s170]
                %298 = vst [vmem:[%s178 + $0xec] sm:%s170] %v297
                %v299 = vld [vmem:[%s177 + $0x1e0] sm:%s170]
                %300 = vst [vmem:[%s178 + $0xf0] sm:%s170] %v299
                %v301 = vld [vmem:[%s177 + $0x1e8] sm:%s170]
                %302 = vst [vmem:[%s178 + $0xf4] sm:%s170] %v301
                %v303 = vld [vmem:[%s177 + $0x1f0] sm:%s170]
                %304 = vst [vmem:[%s178 + $0xf8] sm:%s170] %v303
                %v305 = vld [vmem:[%s177 + $0x1f8] sm:%s170]
                %306 = vst [vmem:[%s178 + $0xfc] sm:%s170] %v305
                %v307 = vld [vmem:[%s177 + $0x200] sm:%s170]
                %308 = vst [vmem:[%s178 + $0x100] sm:%s170] %v307
                %v309 = vld [vmem:[%s177 + $0x208] sm:%s170]
                %310 = vst [vmem:[%s178 + $0x104] sm:%s170] %v309
                %v311 = vld [vmem:[%s177 + $0x210] sm:%s170]
                %312 = vst [vmem:[%s178 + $0x108] sm:%s170] %v311
                %v313 = vld [vmem:[%s177 + $0x218] sm:%s170]
                %314 = vst [vmem:[%s178 + $0x10c] sm:%s170] %v313
                %v315 = vld [vmem:[%s177 + $0x220] sm:%s170]
                %316 = vst [vmem:[%s178 + $0x110] sm:%s170] %v315
                %v317 = vld [vmem:[%s177 + $0x228] sm:%s170]
                %318 = vst [vmem:[%s178 + $0x114] sm:%s170] %v317
                %v319 = vld [vmem:[%s177 + $0x230] sm:%s170]
                %320 = vst [vmem:[%s178 + $0x118] sm:%s170] %v319
                %v321 = vld [vmem:[%s177 + $0x238] sm:%s170]
                %322 = vst [vmem:[%s178 + $0x11c] sm:%s170] %v321
                %v323 = vld [vmem:[%s177 + $0x240] sm:%s170]
                %324 = vst [vmem:[%s178 + $0x120] sm:%s170] %v323
                %v325 = vld [vmem:[%s177 + $0x248] sm:%s170]
                %326 = vst [vmem:[%s178 + $0x124] sm:%s170] %v325
                %v327 = vld [vmem:[%s177 + $0x250] sm:%s170]
                %328 = vst [vmem:[%s178 + $0x128] sm:%s170] %v327
                %v329 = vld [vmem:[%s177 + $0x258] sm:%s170]
                %330 = vst [vmem:[%s178 + $0x12c] sm:%s170] %v329
                %v331 = vld [vmem:[%s177 + $0x260] sm:%s170]
                %332 = vst [vmem:[%s178 + $0x130] sm:%s170] %v331
                %v333 = vld [vmem:[%s177 + $0x268] sm:%s170]
                %334 = vst [vmem:[%s178 + $0x134] sm:%s170] %v333
                %v335 = vld [vmem:[%s177 + $0x270] sm:%s170]
                %336 = vst [vmem:[%s178 + $0x138] sm:%s170] %v335
                %v337 = vld [vmem:[%s177 + $0x278] sm:%s170]
                %338 = vst [vmem:[%s178 + $0x13c] sm:%s170] %v337
                %v339 = vld [vmem:[%s177 + $0x280] sm:%s170]
                %340 = vst [vmem:[%s178 + $0x140] sm:%s170] %v339
                %v341 = vld [vmem:[%s177 + $0x288] sm:%s170]
                %342 = vst [vmem:[%s178 + $0x144] sm:%s170] %v341
                %v343 = vld [vmem:[%s177 + $0x290] sm:%s170]
                %344 = vst [vmem:[%s178 + $0x148] sm:%s170] %v343
                %v345 = vld [vmem:[%s177 + $0x298] sm:%s170]
                %346 = vst [vmem:[%s178 + $0x14c] sm:%s170] %v345
                %v347 = vld [vmem:[%s177 + $0x2a0] sm:%s170]
                %348 = vst [vmem:[%s178 + $0x150] sm:%s170] %v347
                %v349 = vld [vmem:[%s177 + $0x2a8] sm:%s170]
                %350 = vst [vmem:[%s178 + $0x154] sm:%s170] %v349
                %v351 = vld [vmem:[%s177 + $0x2b0] sm:%s170]
                %352 = vst [vmem:[%s178 + $0x158] sm:%s170] %v351
                %v353 = vld [vmem:[%s177 + $0x2b8] sm:%s170]
                %354 = vst [vmem:[%s178 + $0x15c] sm:%s170] %v353
                %v355 = vld [vmem:[%s177 + $0x2c0] sm:%s170]
                %356 = vst [vmem:[%s178 + $0x160] sm:%s170] %v355
                %v357 = vld [vmem:[%s177 + $0x2c8] sm:%s170]
                %358 = vst [vmem:[%s178 + $0x164] sm:%s170] %v357
                %v359 = vld [vmem:[%s177 + $0x2d0] sm:%s170]
                %360 = vst [vmem:[%s178 + $0x168] sm:%s170] %v359
                %v361 = vld [vmem:[%s177 + $0x2d8] sm:%s170]
                %362 = vst [vmem:[%s178 + $0x16c] sm:%s170] %v361
                %v363 = vld [vmem:[%s177 + $0x2e0] sm:%s170]
                %364 = vst [vmem:[%s178 + $0x170] sm:%s170] %v363
                %v365 = vld [vmem:[%s177 + $0x2e8] sm:%s170]
                %366 = vst [vmem:[%s178 + $0x174] sm:%s170] %v365
                %v367 = vld [vmem:[%s177 + $0x2f0] sm:%s170]
                %368 = vst [vmem:[%s178 + $0x178] sm:%s170] %v367
                %v369 = vld [vmem:[%s177 + $0x2f8] sm:%s170]
                %370 = vst [vmem:[%s178 + $0x17c] sm:%s170] %v369
                %v371 = vld [vmem:[%s177 + $0x300] sm:%s170]
                %372 = vst [vmem:[%s178 + $0x180] sm:%s170] %v371
                %v373 = vld [vmem:[%s177 + $0x308] sm:%s170]
                %374 = vst [vmem:[%s178 + $0x184] sm:%s170] %v373
                %v375 = vld [vmem:[%s177 + $0x310] sm:%s170]
                %376 = vst [vmem:[%s178 + $0x188] sm:%s170] %v375
                %v377 = vld [vmem:[%s177 + $0x318] sm:%s170]
                %378 = vst [vmem:[%s178 + $0x18c] sm:%s170] %v377
                %v379 = vld [vmem:[%s177 + $0x320] sm:%s170]
                %380 = vst [vmem:[%s178 + $0x190] sm:%s170] %v379
                %v381 = vld [vmem:[%s177 + $0x328] sm:%s170]
                %382 = vst [vmem:[%s178 + $0x194] sm:%s170] %v381
                %v383 = vld [vmem:[%s177 + $0x330] sm:%s170]
                %384 = vst [vmem:[%s178 + $0x198] sm:%s170] %v383
                %v385 = vld [vmem:[%s177 + $0x338] sm:%s170]
                %386 = vst [vmem:[%s178 + $0x19c] sm:%s170] %v385
                %v387 = vld [vmem:[%s177 + $0x340] sm:%s170]
                %388 = vst [vmem:[%s178 + $0x1a0] sm:%s170] %v387
                %v389 = vld [vmem:[%s177 + $0x348] sm:%s170]
                %390 = vst [vmem:[%s178 + $0x1a4] sm:%s170] %v389
                %v391 = vld [vmem:[%s177 + $0x350] sm:%s170]
                %392 = vst [vmem:[%s178 + $0x1a8] sm:%s170] %v391
                %v393 = vld [vmem:[%s177 + $0x358] sm:%s170]
                %394 = vst [vmem:[%s178 + $0x1ac] sm:%s170] %v393
                %v395 = vld [vmem:[%s177 + $0x360] sm:%s170]
                %396 = vst [vmem:[%s178 + $0x1b0] sm:%s170] %v395
                %v397 = vld [vmem:[%s177 + $0x368] sm:%s170]
                %398 = vst [vmem:[%s178 + $0x1b4] sm:%s170] %v397
                %v399 = vld [vmem:[%s177 + $0x370] sm:%s170]
                %400 = vst [vmem:[%s178 + $0x1b8] sm:%s170] %v399
                %v401 = vld [vmem:[%s177 + $0x378] sm:%s170]
                %402 = vst [vmem:[%s178 + $0x1bc] sm:%s170] %v401
                %v403 = vld [vmem:[%s177 + $0x380] sm:%s170]
                %404 = vst [vmem:[%s178 + $0x1c0] sm:%s170] %v403
                %v405 = vld [vmem:[%s177 + $0x388] sm:%s170]
                %406 = vst [vmem:[%s178 + $0x1c4] sm:%s170] %v405
                %v407 = vld [vmem:[%s177 + $0x390] sm:%s170]
                %408 = vst [vmem:[%s178 + $0x1c8] sm:%s170] %v407
                %v409 = vld [vmem:[%s177 + $0x398] sm:%s170]
                %410 = vst [vmem:[%s178 + $0x1cc] sm:%s170] %v409
                %v411 = vld [vmem:[%s177 + $0x3a0] sm:%s170]
                %412 = vst [vmem:[%s178 + $0x1d0] sm:%s170] %v411
                %v413 = vld [vmem:[%s177 + $0x3a8] sm:%s170]
                %414 = vst [vmem:[%s178 + $0x1d4] sm:%s170] %v413
                %v415 = vld [vmem:[%s177 + $0x3b0] sm:%s170]
                %416 = vst [vmem:[%s178 + $0x1d8] sm:%s170] %v415
                %v417 = vld [vmem:[%s177 + $0x3b8] sm:%s170]
                %418 = vst [vmem:[%s178 + $0x1dc] sm:%s170] %v417
                %v419 = vld [vmem:[%s177 + $0x3c0] sm:%s170]
                %420 = vst [vmem:[%s178 + $0x1e0] sm:%s170] %v419
                %v421 = vld [vmem:[%s177 + $0x3c8] sm:%s170]
                %422 = vst [vmem:[%s178 + $0x1e4] sm:%s170] %v421
                %v423 = vld [vmem:[%s177 + $0x3d0] sm:%s170]
                %424 = vst [vmem:[%s178 + $0x1e8] sm:%s170] %v423
                %v425 = vld [vmem:[%s177 + $0x3d8] sm:%s170]
                %426 = vst [vmem:[%s178 + $0x1ec] sm:%s170] %v425
                %v427 = vld [vmem:[%s177 + $0x3e0] sm:%s170]
                %428 = vst [vmem:[%s178 + $0x1f0] sm:%s170] %v427
                %v429 = vld [vmem:[%s177 + $0x3e8] sm:%s170]
                %430 = vst [vmem:[%s178 + $0x1f4] sm:%s170] %v429
                %v431 = vld [vmem:[%s177 + $0x3f0] sm:%s170]
                %432 = vst [vmem:[%s178 + $0x1f8] sm:%s170] %v431
                %v433 = vld [vmem:[%s177 + $0x3f8] sm:%s170]
                %434 = vst [vmem:[%s178 + $0x1fc] sm:%s170] %v433
              $region41: #{percept_forward.9} parent=35 // loop_footer
                %s176 = sadd.s32 1, %s172
              $region42: #{percept_forward.9} parent=35 // loop_footer_branch
                %171 = sbr.rel target = $region38
              $region43: #{percept_forward.9} parent=35 // loop_exit
                _
            $region36: #{percept_forward.9} parent=27 // pred_fallthru
              _
          $region28: #{percept_forward.9} parent=23 // pred_fallthru
            _
          %711 = vnop
        $region24: #{percept_forward.9} parent=19 // pred_fallthru
          _
        // Predicated region
        $region62: #{percept_forward.9} parent=19 // pred_check
          %p712 = pneg %p93
        $region63: #{percept_forward.9} parent=19 // pred_check_branch
          %714 = sbr.rel (%p712) target = $region65
        $region64: #{percept_forward.9} parent=19 // pred_region
          %p715 = scmp.lt.s32.totalorder %s17, 1
          %s716 = scalar_select %p715, %s17, 1
          %s717 = scalar_lea.vmem %s2, %s716
        $region65: #{percept_forward.9} parent=19 // pred_fallthru
          _
      $region20: #{percept_forward.9} parent=5 // pred_fallthru
        _
      %p718 = scmp.le.s32.totalorder 1, %s9
      %p719 = scmp.lt.s32.totalorder %s9, 3
      %p720 = pnand %p718, %p719
      %p721 = pneg %p720
      // Predicated region
      $region66: #{percept_forward.9} parent=5 // pred_check
        _
      $region67: #{percept_forward.9} parent=5 // pred_check_branch
        %723 = sbr.rel (%p720) target = $region69
      $region68: #{percept_forward.9} parent=5 // pred_region
        %s724 = ssub.s32 %s9, 1
        %s725 = sand.u32 %s60, 1
        %s726 = sand.u32 %s60, 1
        %s727 = smul.addr %s726, 512
        %s728 = scalar_lea.vmem [#allocation2], %s727
        // Predicated region
        $region70: #{percept_forward.9} parent=68 // pred_check
          %p729 = pneg %p73
        $region71: #{percept_forward.9} parent=68 // pred_check_branch
          %731 = sbr.rel (%p729) target = $region73
        $region72: #{percept_forward.9} parent=68 // pred_region
          _
        $region73: #{percept_forward.9} parent=68 // pred_fallthru
          _
        %p732 = scmp.lt.s32.totalorder %s18, 0
        %s733 = scalar_select %p732, %s18, 0
        %s734 = smul.addr %s733, 8
        %s735 = smul.addr %s734, 4
        %s736 = scalar_lea.vmem %s0, %s735
        %p737 = pneg %p47
        %p738 = pneg %p44
        %s739 = sand.u32 %s60, 1
        %s740 = sand.u32 %s60, 1
        %s741 = smul.addr %s740, 512
        %s742 = scalar_lea.vmem [#allocation2], %s741
        %p743 = pneg %p73
        %p744 = pneg %p70
        %p745 = scmp.lt.s32.totalorder %s19, 1
        %s746 = scalar_select %p745, %s19, 1
        %s747 = scalar_lea.vmem %s2, %s746
        %p748 = pneg %p99
        %p749 = pneg %p96
        %p750 = pneg %p127
        %p751 = pneg %p124
        %p752 = scmp.lt.s32.totalorder %s18, 0
        %s753 = scalar_select %p752, %s18, 0
        %p754 = scmp.lt.s32.totalorder %s19, 1
        %s755 = scalar_select %p754, %s19, 1
        %s756 = smul.addr %s753, 2
        %s757 = sadd.s32 %s755, %s756
        %s758 = smul.addr %s757, 8
        %s759 = scalar_lea.vmem %s3, %s758
        %p760 = scmp.lt.s32.totalorder %s18, 0
        %s761 = scalar_select %p760, %s18, 0
        %s762 = smul.addr %s761, 8
        %s763 = smul.addr %s762, 4
        %s764 = scalar_lea.vmem %s0, %s763
        %p765 = scmp.lt.s32.totalorder %s19, 1
        %s766 = scalar_select %p765, %s19, 1
        %s767 = scalar_lea.vmem %s2, %s766
        %p768 = scmp.lt.s32.totalorder %s18, 0
        %s769 = scalar_select %p768, %s18, 0
        %p770 = scmp.lt.s32.totalorder %s19, 1
        %s771 = scalar_select %p770, %s19, 1
        %s772 = smul.addr %s769, 2
        %s773 = sadd.s32 %s771, %s772
        %s774 = smul.addr %s773, 8
        %s775 = scalar_lea.vmem %s3, %s774
        %v777 = vld [vmem:[%s764] sm:$0xff]
        %v778 = vld [vmem:[%s764 + $0x8] sm:$0xff]
        %v779 = vld [vmem:[%s764 + $0x10] sm:$0xff]
        %v780 = vld [vmem:[%s764 + $0x18] sm:$0xff]
        %v781 = vld [vmem:[%s728] sm:$0xf]
        %v782 = vld [vmem:[%s728 + $0x4] sm:$0xf]
        %v783 = vld [vmem:[%s728 + $0x8] sm:$0xf]
        %v784 = vld [vmem:[%s728 + $0xc] sm:$0xf]
        %v785 = vld [vmem:[%s728 + $0x10] sm:$0xf]
        %v786 = vld [vmem:[%s728 + $0x14] sm:$0xf]
        %v787 = vld [vmem:[%s728 + $0x18] sm:$0xf]
        %v788 = vld [vmem:[%s728 + $0x1c] sm:$0xf]
        %v789 = vld [vmem:[%s728 + $0x20] sm:$0xf]
        %v790 = vld [vmem:[%s728 + $0x24] sm:$0xf]
        %v791 = vld [vmem:[%s728 + $0x28] sm:$0xf]
        %v792 = vld [vmem:[%s728 + $0x2c] sm:$0xf]
        %v793 = vld [vmem:[%s728 + $0x30] sm:$0xf]
        %v794 = vld [vmem:[%s728 + $0x34] sm:$0xf]
        %v795 = vld [vmem:[%s728 + $0x38] sm:$0xf]
        %v796 = vld [vmem:[%s728 + $0x3c] sm:$0xf]
        %v797 = vld [vmem:[%s728 + $0x40] sm:$0xf]
        %v798 = vld [vmem:[%s728 + $0x44] sm:$0xf]
        %v799 = vld [vmem:[%s728 + $0x48] sm:$0xf]
        %v800 = vld [vmem:[%s728 + $0x4c] sm:$0xf]
        %v801 = vld [vmem:[%s728 + $0x50] sm:$0xf]
        %v802 = vld [vmem:[%s728 + $0x54] sm:$0xf]
        %v803 = vld [vmem:[%s728 + $0x58] sm:$0xf]
        %v804 = vld [vmem:[%s728 + $0x5c] sm:$0xf]
        %v805 = vld [vmem:[%s728 + $0x60] sm:$0xf]
        %v806 = vld [vmem:[%s728 + $0x64] sm:$0xf]
        %v807 = vld [vmem:[%s728 + $0x68] sm:$0xf]
        %v808 = vld [vmem:[%s728 + $0x6c] sm:$0xf]
        %v809 = vld [vmem:[%s728 + $0x70] sm:$0xf]
        %v810 = vld [vmem:[%s728 + $0x74] sm:$0xf]
        %v811 = vld [vmem:[%s728 + $0x78] sm:$0xf]
        %v812 = vld [vmem:[%s728 + $0x7c] sm:$0xf]
        %v813 = vld [vmem:[%s728 + $0x80] sm:$0xf]
        %v814 = vld [vmem:[%s728 + $0x84] sm:$0xf]
        %v815 = vld [vmem:[%s728 + $0x88] sm:$0xf]
        %v816 = vld [vmem:[%s728 + $0x8c] sm:$0xf]
        %v817 = vld [vmem:[%s728 + $0x90] sm:$0xf]
        %v818 = vld [vmem:[%s728 + $0x94] sm:$0xf]
        %v819 = vld [vmem:[%s728 + $0x98] sm:$0xf]
        %v820 = vld [vmem:[%s728 + $0x9c] sm:$0xf]
        %v821 = vld [vmem:[%s728 + $0xa0] sm:$0xf]
        %v822 = vld [vmem:[%s728 + $0xa4] sm:$0xf]
        %v823 = vld [vmem:[%s728 + $0xa8] sm:$0xf]
        %v824 = vld [vmem:[%s728 + $0xac] sm:$0xf]
        %v825 = vld [vmem:[%s728 + $0xb0] sm:$0xf]
        %v826 = vld [vmem:[%s728 + $0xb4] sm:$0xf]
        %v827 = vld [vmem:[%s728 + $0xb8] sm:$0xf]
        %v828 = vld [vmem:[%s728 + $0xbc] sm:$0xf]
        %v829 = vld [vmem:[%s728 + $0xc0] sm:$0xf]
        %v830 = vld [vmem:[%s728 + $0xc4] sm:$0xf]
        %v831 = vld [vmem:[%s728 + $0xc8] sm:$0xf]
        %v832 = vld [vmem:[%s728 + $0xcc] sm:$0xf]
        %v833 = vld [vmem:[%s728 + $0xd0] sm:$0xf]
        %v834 = vld [vmem:[%s728 + $0xd4] sm:$0xf]
        %v835 = vld [vmem:[%s728 + $0xd8] sm:$0xf]
        %v836 = vld [vmem:[%s728 + $0xdc] sm:$0xf]
        %v837 = vld [vmem:[%s728 + $0xe0] sm:$0xf]
        %v838 = vld [vmem:[%s728 + $0xe4] sm:$0xf]
        %v839 = vld [vmem:[%s728 + $0xe8] sm:$0xf]
        %v840 = vld [vmem:[%s728 + $0xec] sm:$0xf]
        %v841 = vld [vmem:[%s728 + $0xf0] sm:$0xf]
        %v842 = vld [vmem:[%s728 + $0xf4] sm:$0xf]
        %v843 = vld [vmem:[%s728 + $0xf8] sm:$0xf]
        %v844 = vld [vmem:[%s728 + $0xfc] sm:$0xf]
        %v845 = vld [vmem:[%s728 + $0x100] sm:$0xf]
        %v846 = vld [vmem:[%s728 + $0x104] sm:$0xf]
        %v847 = vld [vmem:[%s728 + $0x108] sm:$0xf]
        %v848 = vld [vmem:[%s728 + $0x10c] sm:$0xf]
        %v849 = vld [vmem:[%s728 + $0x110] sm:$0xf]
        %v850 = vld [vmem:[%s728 + $0x114] sm:$0xf]
        %v851 = vld [vmem:[%s728 + $0x118] sm:$0xf]
        %v852 = vld [vmem:[%s728 + $0x11c] sm:$0xf]
        %v853 = vld [vmem:[%s728 + $0x120] sm:$0xf]
        %v854 = vld [vmem:[%s728 + $0x124] sm:$0xf]
        %v855 = vld [vmem:[%s728 + $0x128] sm:$0xf]
        %v856 = vld [vmem:[%s728 + $0x12c] sm:$0xf]
        %v857 = vld [vmem:[%s728 + $0x130] sm:$0xf]
        %v858 = vld [vmem:[%s728 + $0x134] sm:$0xf]
        %v859 = vld [vmem:[%s728 + $0x138] sm:$0xf]
        %v860 = vld [vmem:[%s728 + $0x13c] sm:$0xf]
        %v861 = vld [vmem:[%s728 + $0x140] sm:$0xf]
        %v862 = vld [vmem:[%s728 + $0x144] sm:$0xf]
        %v863 = vld [vmem:[%s728 + $0x148] sm:$0xf]
        %v864 = vld [vmem:[%s728 + $0x14c] sm:$0xf]
        %v865 = vld [vmem:[%s728 + $0x150] sm:$0xf]
        %v866 = vld [vmem:[%s728 + $0x154] sm:$0xf]
        %v867 = vld [vmem:[%s728 + $0x158] sm:$0xf]
        %v868 = vld [vmem:[%s728 + $0x15c] sm:$0xf]
        %v869 = vld [vmem:[%s728 + $0x160] sm:$0xf]
        %v870 = vld [vmem:[%s728 + $0x164] sm:$0xf]
        %v871 = vld [vmem:[%s728 + $0x168] sm:$0xf]
        %v872 = vld [vmem:[%s728 + $0x16c] sm:$0xf]
        %v873 = vld [vmem:[%s728 + $0x170] sm:$0xf]
        %v874 = vld [vmem:[%s728 + $0x174] sm:$0xf]
        %v875 = vld [vmem:[%s728 + $0x178] sm:$0xf]
        %v876 = vld [vmem:[%s728 + $0x17c] sm:$0xf]
        %v877 = vld [vmem:[%s728 + $0x180] sm:$0xf]
        %v878 = vld [vmem:[%s728 + $0x184] sm:$0xf]
        %v879 = vld [vmem:[%s728 + $0x188] sm:$0xf]
        %v880 = vld [vmem:[%s728 + $0x18c] sm:$0xf]
        %v881 = vld [vmem:[%s728 + $0x190] sm:$0xf]
        %v882 = vld [vmem:[%s728 + $0x194] sm:$0xf]
        %v883 = vld [vmem:[%s728 + $0x198] sm:$0xf]
        %v884 = vld [vmem:[%s728 + $0x19c] sm:$0xf]
        %v885 = vld [vmem:[%s728 + $0x1a0] sm:$0xf]
        %v886 = vld [vmem:[%s728 + $0x1a4] sm:$0xf]
        %v887 = vld [vmem:[%s728 + $0x1a8] sm:$0xf]
        %v888 = vld [vmem:[%s728 + $0x1ac] sm:$0xf]
        %v889 = vld [vmem:[%s728 + $0x1b0] sm:$0xf]
        %v890 = vld [vmem:[%s728 + $0x1b4] sm:$0xf]
        %v891 = vld [vmem:[%s728 + $0x1b8] sm:$0xf]
        %v892 = vld [vmem:[%s728 + $0x1bc] sm:$0xf]
        %v893 = vld [vmem:[%s728 + $0x1c0] sm:$0xf]
        %v894 = vld [vmem:[%s728 + $0x1c4] sm:$0xf]
        %v895 = vld [vmem:[%s728 + $0x1c8] sm:$0xf]
        %v896 = vld [vmem:[%s728 + $0x1cc] sm:$0xf]
        %v897 = vld [vmem:[%s728 + $0x1d0] sm:$0xf]
        %v898 = vld [vmem:[%s728 + $0x1d4] sm:$0xf]
        %v899 = vld [vmem:[%s728 + $0x1d8] sm:$0xf]
        %v900 = vld [vmem:[%s728 + $0x1dc] sm:$0xf]
        %v901 = vld [vmem:[%s728 + $0x1e0] sm:$0xf]
        %v902 = vld [vmem:[%s728 + $0x1e4] sm:$0xf]
        %v903 = vld [vmem:[%s728 + $0x1e8] sm:$0xf]
        %v904 = vld [vmem:[%s728 + $0x1ec] sm:$0xf]
        %v905 = vld [vmem:[%s728 + $0x1f0] sm:$0xf]
        %v906 = vld [vmem:[%s728 + $0x1f4] sm:$0xf]
        %v907 = vld [vmem:[%s728 + $0x1f8] sm:$0xf]
        %v908 = vld [vmem:[%s728 + $0x1fc] sm:$0xf]
        %v909 = vld [vmem:[%s767] sm:$0x1]
        %v911 = vlaneseq
        %v912 = vshrl.u32 %v911, 7
        %v913 = vsub.s32 0, %v912
        %v914 = vrot.slane %v909, %v913
        %v920 = vunpack.c.l.b16 %v777
        %v921 = vunpack.c.h.b16 %v777
        %v922 = vunpack.c.l.b16 %v778
        %v923 = vunpack.c.h.b16 %v778
        %v924 = vunpack.c.l.b16 %v779
        %v925 = vunpack.c.h.b16 %v779
        %v926 = vunpack.c.l.b16 %v780
        %v927 = vunpack.c.h.b16 %v780
        %v928 = vpack.c.b16 %v920, %v920
        %v929 = vpack.c.b16 %v921, %v921
        %v930 = vpack.c.b16 %v922, %v922
        %v931 = vpack.c.b16 %v923, %v923
        %v932 = vpack.c.b16 %v924, %v924
        %v933 = vpack.c.b16 %v925, %v925
        %v934 = vpack.c.b16 %v926, %v926
        %v935 = vpack.c.b16 %v927, %v927
        %v1072 = vunpack.c.l.b16 %v781
        %v1073 = vunpack.c.l.b16 %v782
        %v1074 = vunpack.c.l.b16 %v783
        %v1075 = vunpack.c.l.b16 %v784
        %v1076 = vunpack.c.l.b16 %v785
        %v1077 = vunpack.c.l.b16 %v786
        %v1078 = vunpack.c.l.b16 %v787
        %v1079 = vunpack.c.l.b16 %v788
        %v1080 = vunpack.c.l.b16 %v789
        %v1081 = vunpack.c.l.b16 %v790
        %v1082 = vunpack.c.l.b16 %v791
        %v1083 = vunpack.c.l.b16 %v792
        %v1084 = vunpack.c.l.b16 %v793
        %v1085 = vunpack.c.l.b16 %v794
        %v1086 = vunpack.c.l.b16 %v795
        %v1087 = vunpack.c.l.b16 %v796
        %v1088 = vunpack.c.l.b16 %v797
        %v1089 = vunpack.c.l.b16 %v798
        %v1090 = vunpack.c.l.b16 %v799
        %v1091 = vunpack.c.l.b16 %v800
        %v1092 = vunpack.c.l.b16 %v801
        %v1093 = vunpack.c.l.b16 %v802
        %v1094 = vunpack.c.l.b16 %v803
        %v1095 = vunpack.c.l.b16 %v804
        %v1096 = vunpack.c.l.b16 %v805
        %v1097 = vunpack.c.l.b16 %v806
        %v1098 = vunpack.c.l.b16 %v807
        %v1099 = vunpack.c.l.b16 %v808
        %v1100 = vunpack.c.l.b16 %v809
        %v1101 = vunpack.c.l.b16 %v810
        %v1102 = vunpack.c.l.b16 %v811
        %v1103 = vunpack.c.l.b16 %v812
        %v1104 = vunpack.c.l.b16 %v813
        %v1105 = vunpack.c.l.b16 %v814
        %v1106 = vunpack.c.l.b16 %v815
        %v1107 = vunpack.c.l.b16 %v816
        %v1108 = vunpack.c.l.b16 %v817
        %v1109 = vunpack.c.l.b16 %v818
        %v1110 = vunpack.c.l.b16 %v819
        %v1111 = vunpack.c.l.b16 %v820
        %v1112 = vunpack.c.l.b16 %v821
        %v1113 = vunpack.c.l.b16 %v822
        %v1114 = vunpack.c.l.b16 %v823
        %v1115 = vunpack.c.l.b16 %v824
        %v1116 = vunpack.c.l.b16 %v825
        %v1117 = vunpack.c.l.b16 %v826
        %v1118 = vunpack.c.l.b16 %v827
        %v1119 = vunpack.c.l.b16 %v828
        %v1120 = vunpack.c.l.b16 %v829
        %v1121 = vunpack.c.l.b16 %v830
        %v1122 = vunpack.c.l.b16 %v831
        %v1123 = vunpack.c.l.b16 %v832
        %v1124 = vunpack.c.l.b16 %v833
        %v1125 = vunpack.c.l.b16 %v834
        %v1126 = vunpack.c.l.b16 %v835
        %v1127 = vunpack.c.l.b16 %v836
        %v1128 = vunpack.c.l.b16 %v837
        %v1129 = vunpack.c.l.b16 %v838
        %v1130 = vunpack.c.l.b16 %v839
        %v1131 = vunpack.c.l.b16 %v840
        %v1132 = vunpack.c.l.b16 %v841
        %v1133 = vunpack.c.l.b16 %v842
        %v1134 = vunpack.c.l.b16 %v843
        %v1135 = vunpack.c.l.b16 %v844
        %v1136 = vunpack.c.l.b16 %v845
        %v1137 = vunpack.c.l.b16 %v846
        %v1138 = vunpack.c.l.b16 %v847
        %v1139 = vunpack.c.l.b16 %v848
        %v1140 = vunpack.c.l.b16 %v849
        %v1141 = vunpack.c.l.b16 %v850
        %v1142 = vunpack.c.l.b16 %v851
        %v1143 = vunpack.c.l.b16 %v852
        %v1144 = vunpack.c.l.b16 %v853
        %v1145 = vunpack.c.l.b16 %v854
        %v1146 = vunpack.c.l.b16 %v855
        %v1147 = vunpack.c.l.b16 %v856
        %v1148 = vunpack.c.l.b16 %v857
        %v1149 = vunpack.c.l.b16 %v858
        %v1150 = vunpack.c.l.b16 %v859
        %v1151 = vunpack.c.l.b16 %v860
        %v1152 = vunpack.c.l.b16 %v861
        %v1153 = vunpack.c.l.b16 %v862
        %v1154 = vunpack.c.l.b16 %v863
        %v1155 = vunpack.c.l.b16 %v864
        %v1156 = vunpack.c.l.b16 %v865
        %v1157 = vunpack.c.l.b16 %v866
        %v1158 = vunpack.c.l.b16 %v867
        %v1159 = vunpack.c.l.b16 %v868
        %v1160 = vunpack.c.l.b16 %v869
        %v1161 = vunpack.c.l.b16 %v870
        %v1162 = vunpack.c.l.b16 %v871
        %v1163 = vunpack.c.l.b16 %v872
        %v1164 = vunpack.c.l.b16 %v873
        %v1165 = vunpack.c.l.b16 %v874
        %v1166 = vunpack.c.l.b16 %v875
        %v1167 = vunpack.c.l.b16 %v876
        %v1168 = vunpack.c.l.b16 %v877
        %v1169 = vunpack.c.l.b16 %v878
        %v1170 = vunpack.c.l.b16 %v879
        %v1171 = vunpack.c.l.b16 %v880
        %v1172 = vunpack.c.l.b16 %v881
        %v1173 = vunpack.c.l.b16 %v882
        %v1174 = vunpack.c.l.b16 %v883
        %v1175 = vunpack.c.l.b16 %v884
        %v1176 = vunpack.c.l.b16 %v885
        %v1177 = vunpack.c.l.b16 %v886
        %v1178 = vunpack.c.l.b16 %v887
        %v1179 = vunpack.c.l.b16 %v888
        %v1180 = vunpack.c.l.b16 %v889
        %v1181 = vunpack.c.l.b16 %v890
        %v1182 = vunpack.c.l.b16 %v891
        %v1183 = vunpack.c.l.b16 %v892
        %v1184 = vunpack.c.l.b16 %v893
        %v1185 = vunpack.c.l.b16 %v894
        %v1186 = vunpack.c.l.b16 %v895
        %v1187 = vunpack.c.l.b16 %v896
        %v1188 = vunpack.c.l.b16 %v897
        %v1189 = vunpack.c.l.b16 %v898
        %v1190 = vunpack.c.l.b16 %v899
        %v1191 = vunpack.c.l.b16 %v900
        %v1192 = vunpack.c.l.b16 %v901
        %v1193 = vunpack.c.l.b16 %v902
        %v1194 = vunpack.c.l.b16 %v903
        %v1195 = vunpack.c.l.b16 %v904
        %v1196 = vunpack.c.l.b16 %v905
        %v1197 = vunpack.c.l.b16 %v906
        %v1198 = vunpack.c.l.b16 %v907
        %v1199 = vunpack.c.l.b16 %v908
        %v1200 = vpack.c.b16 %v1073, %v1072
        %v1201 = vpack.c.b16 %v1075, %v1074
        %v1202 = vpack.c.b16 %v1077, %v1076
        %v1203 = vpack.c.b16 %v1079, %v1078
        %v1204 = vpack.c.b16 %v1081, %v1080
        %v1205 = vpack.c.b16 %v1083, %v1082
        %v1206 = vpack.c.b16 %v1085, %v1084
        %v1207 = vpack.c.b16 %v1087, %v1086
        %v1208 = vpack.c.b16 %v1089, %v1088
        %v1209 = vpack.c.b16 %v1091, %v1090
        %v1210 = vpack.c.b16 %v1093, %v1092
        %v1211 = vpack.c.b16 %v1095, %v1094
        %v1212 = vpack.c.b16 %v1097, %v1096
        %v1213 = vpack.c.b16 %v1099, %v1098
        %v1214 = vpack.c.b16 %v1101, %v1100
        %v1215 = vpack.c.b16 %v1103, %v1102
        %v1216 = vpack.c.b16 %v1105, %v1104
        %v1217 = vpack.c.b16 %v1107, %v1106
        %v1218 = vpack.c.b16 %v1109, %v1108
        %v1219 = vpack.c.b16 %v1111, %v1110
        %v1220 = vpack.c.b16 %v1113, %v1112
        %v1221 = vpack.c.b16 %v1115, %v1114
        %v1222 = vpack.c.b16 %v1117, %v1116
        %v1223 = vpack.c.b16 %v1119, %v1118
        %v1224 = vpack.c.b16 %v1121, %v1120
        %v1225 = vpack.c.b16 %v1123, %v1122
        %v1226 = vpack.c.b16 %v1125, %v1124
        %v1227 = vpack.c.b16 %v1127, %v1126
        %v1228 = vpack.c.b16 %v1129, %v1128
        %v1229 = vpack.c.b16 %v1131, %v1130
        %v1230 = vpack.c.b16 %v1133, %v1132
        %v1231 = vpack.c.b16 %v1135, %v1134
        %v1232 = vpack.c.b16 %v1137, %v1136
        %v1233 = vpack.c.b16 %v1139, %v1138
        %v1234 = vpack.c.b16 %v1141, %v1140
        %v1235 = vpack.c.b16 %v1143, %v1142
        %v1236 = vpack.c.b16 %v1145, %v1144
        %v1237 = vpack.c.b16 %v1147, %v1146
        %v1238 = vpack.c.b16 %v1149, %v1148
        %v1239 = vpack.c.b16 %v1151, %v1150
        %v1240 = vpack.c.b16 %v1153, %v1152
        %v1241 = vpack.c.b16 %v1155, %v1154
        %v1242 = vpack.c.b16 %v1157, %v1156
        %v1243 = vpack.c.b16 %v1159, %v1158
        %v1244 = vpack.c.b16 %v1161, %v1160
        %v1245 = vpack.c.b16 %v1163, %v1162
        %v1246 = vpack.c.b16 %v1165, %v1164
        %v1247 = vpack.c.b16 %v1167, %v1166
        %v1248 = vpack.c.b16 %v1169, %v1168
        %v1249 = vpack.c.b16 %v1171, %v1170
        %v1250 = vpack.c.b16 %v1173, %v1172
        %v1251 = vpack.c.b16 %v1175, %v1174
        %v1252 = vpack.c.b16 %v1177, %v1176
        %v1253 = vpack.c.b16 %v1179, %v1178
        %v1254 = vpack.c.b16 %v1181, %v1180
        %v1255 = vpack.c.b16 %v1183, %v1182
        %v1256 = vpack.c.b16 %v1185, %v1184
        %v1257 = vpack.c.b16 %v1187, %v1186
        %v1258 = vpack.c.b16 %v1189, %v1188
        %v1259 = vpack.c.b16 %v1191, %v1190
        %v1260 = vpack.c.b16 %v1193, %v1192
        %v1261 = vpack.c.b16 %v1195, %v1194
        %v1262 = vpack.c.b16 %v1197, %v1196
        %v1263 = vpack.c.b16 %v1199, %v1198
        %1328 = vmatprep.subr.bf16.mxu0 0
        %1329 = vmatpush1.bf16.msra.mxu0 %v1207
        %1330 = vmatprep.subr.bf16.mxu0 0
        %1331 = vmatpush1.bf16.msra.mxu0 %v1206
        %1332 = vmatprep.subr.bf16.mxu0 0
        %1333 = vmatpush1.bf16.msra.mxu0 %v1205
        %1334 = vmatprep.subr.bf16.mxu0 0
        %1335 = vmatpush1.bf16.msra.mxu0 %v1204
        %1336 = vmatprep.subr.bf16.mxu0 0
        %1337 = vmatpush1.bf16.msra.mxu0 %v1203
        %1338 = vmatprep.subr.bf16.mxu0 0
        %1339 = vmatpush1.bf16.msra.mxu0 %v1202
        %1340 = vmatprep.subr.bf16.mxu0 0
        %1341 = vmatpush1.bf16.msra.mxu0 %v1201
        %1342 = vmatprep.subr.bf16.mxu0 0
        %1343 = vmatpush1.bf16.msra.mxu0 %v1200
        %1344 = vmatprep.subr.bf16.mxu0 0
        %1345 = vmatpush2.bf16.msra.mxu0 %v1215
        %1346 = vmatprep.subr.bf16.mxu0 0
        %1347 = vmatpush2.bf16.msra.mxu0 %v1214
        %1348 = vmatprep.subr.bf16.mxu0 0
        %1349 = vmatpush2.bf16.msra.mxu0 %v1213
        %1350 = vmatprep.subr.bf16.mxu0 0
        %1351 = vmatpush2.bf16.msra.mxu0 %v1212
        %1352 = vmatprep.subr.bf16.mxu0 0
        %1353 = vmatpush2.bf16.msra.mxu0 %v1211
        %1354 = vmatprep.subr.bf16.mxu0 0
        %1355 = vmatpush2.bf16.msra.mxu0 %v1210
        %1356 = vmatprep.subr.bf16.mxu0 0
        %1357 = vmatpush2.bf16.msra.mxu0 %v1209
        %1358 = vmatprep.subr.bf16.mxu0 0
        %1359 = vmatpush2.bf16.msra.mxu0 %v1208
        %1360 = vmatprep.mubr.bf16.mxu0 %v929
        %1361 = vmatmul.mubr.bf16.gmra.mxu0 %v928
        %v1362 = vpop.f32.mrf.mxu0
        %v1363 = vadd.f32 %v914, %v1362
        %v1364 = vpop.f32.mrf.mxu0
        %v1365 = vpop.f32.mrf.mxu0
        %v1366 = vpop.f32.mrf.mxu0
        %1367 = vdwg.mxu0
        %1368 = vmatprep.subr.bf16.mxu0 0
        %1369 = vmatpush1.bf16.msra.mxu0 %v1223
        %1370 = vmatprep.subr.bf16.mxu0 0
        %1371 = vmatpush1.bf16.msra.mxu0 %v1222
        %1372 = vmatprep.subr.bf16.mxu0 0
        %1373 = vmatpush1.bf16.msra.mxu0 %v1221
        %1374 = vmatprep.subr.bf16.mxu0 0
        %1375 = vmatpush1.bf16.msra.mxu0 %v1220
        %1376 = vmatprep.subr.bf16.mxu0 0
        %1377 = vmatpush1.bf16.msra.mxu0 %v1219
        %1378 = vmatprep.subr.bf16.mxu0 0
        %1379 = vmatpush1.bf16.msra.mxu0 %v1218
        %1380 = vmatprep.subr.bf16.mxu0 0
        %1381 = vmatpush1.bf16.msra.mxu0 %v1217
        %1382 = vmatprep.subr.bf16.mxu0 0
        %1383 = vmatpush1.bf16.msra.mxu0 %v1216
        %1384 = vmatprep.subr.bf16.mxu0 0
        %1385 = vmatpush2.bf16.msra.mxu0 %v1231
        %1386 = vmatprep.subr.bf16.mxu0 0
        %1387 = vmatpush2.bf16.msra.mxu0 %v1230
        %1388 = vmatprep.subr.bf16.mxu0 0
        %1389 = vmatpush2.bf16.msra.mxu0 %v1229
        %1390 = vmatprep.subr.bf16.mxu0 0
        %1391 = vmatpush2.bf16.msra.mxu0 %v1228
        %1392 = vmatprep.subr.bf16.mxu0 0
        %1393 = vmatpush2.bf16.msra.mxu0 %v1227
        %1394 = vmatprep.subr.bf16.mxu0 0
        %1395 = vmatpush2.bf16.msra.mxu0 %v1226
        %1396 = vmatprep.subr.bf16.mxu0 0
        %1397 = vmatpush2.bf16.msra.mxu0 %v1225
        %1398 = vmatprep.subr.bf16.mxu0 0
        %1399 = vmatpush2.bf16.msra.mxu0 %v1224
        %1400 = vmatprep.mubr.bf16.mxu0 %v931
        %1401 = vmatmul.mubr.bf16.gmra.mxu0 %v930
        %v1402 = vpop.f32.mrf.mxu0
        %v1403 = vadd.f32 %v1363, %v1402
        %v1404 = vpop.f32.mrf.mxu0
        %v1405 = vpop.f32.mrf.mxu0
        %v1406 = vpop.f32.mrf.mxu0
        %1407 = vdwg.mxu0
        %1408 = vmatprep.subr.bf16.mxu0 0
        %1409 = vmatpush1.bf16.msra.mxu0 %v1239
        %1410 = vmatprep.subr.bf16.mxu0 0
        %1411 = vmatpush1.bf16.msra.mxu0 %v1238
        %1412 = vmatprep.subr.bf16.mxu0 0
        %1413 = vmatpush1.bf16.msra.mxu0 %v1237
        %1414 = vmatprep.subr.bf16.mxu0 0
        %1415 = vmatpush1.bf16.msra.mxu0 %v1236
        %1416 = vmatprep.subr.bf16.mxu0 0
        %1417 = vmatpush1.bf16.msra.mxu0 %v1235
        %1418 = vmatprep.subr.bf16.mxu0 0
        %1419 = vmatpush1.bf16.msra.mxu0 %v1234
        %1420 = vmatprep.subr.bf16.mxu0 0
        %1421 = vmatpush1.bf16.msra.mxu0 %v1233
        %1422 = vmatprep.subr.bf16.mxu0 0
        %1423 = vmatpush1.bf16.msra.mxu0 %v1232
        %1424 = vmatprep.subr.bf16.mxu0 0
        %1425 = vmatpush2.bf16.msra.mxu0 %v1247
        %1426 = vmatprep.subr.bf16.mxu0 0
        %1427 = vmatpush2.bf16.msra.mxu0 %v1246
        %1428 = vmatprep.subr.bf16.mxu0 0
        %1429 = vmatpush2.bf16.msra.mxu0 %v1245
        %1430 = vmatprep.subr.bf16.mxu0 0
        %1431 = vmatpush2.bf16.msra.mxu0 %v1244
        %1432 = vmatprep.subr.bf16.mxu0 0
        %1433 = vmatpush2.bf16.msra.mxu0 %v1243
        %1434 = vmatprep.subr.bf16.mxu0 0
        %1435 = vmatpush2.bf16.msra.mxu0 %v1242
        %1436 = vmatprep.subr.bf16.mxu0 0
        %1437 = vmatpush2.bf16.msra.mxu0 %v1241
        %1438 = vmatprep.subr.bf16.mxu0 0
        %1439 = vmatpush2.bf16.msra.mxu0 %v1240
        %1440 = vmatprep.mubr.bf16.mxu0 %v933
        %1441 = vmatmul.mubr.bf16.gmra.mxu0 %v932
        %v1442 = vpop.f32.mrf.mxu0
        %v1443 = vadd.f32 %v1403, %v1442
        %v1444 = vpop.f32.mrf.mxu0
        %v1445 = vpop.f32.mrf.mxu0
        %v1446 = vpop.f32.mrf.mxu0
        %1447 = vdwg.mxu0
        %1448 = vmatprep.subr.bf16.mxu0 0
        %1449 = vmatpush1.bf16.msra.mxu0 %v1255
        %1450 = vmatprep.subr.bf16.mxu0 0
        %1451 = vmatpush1.bf16.msra.mxu0 %v1254
        %1452 = vmatprep.subr.bf16.mxu0 0
        %1453 = vmatpush1.bf16.msra.mxu0 %v1253
        %1454 = vmatprep.subr.bf16.mxu0 0
        %1455 = vmatpush1.bf16.msra.mxu0 %v1252
        %1456 = vmatprep.subr.bf16.mxu0 0
        %1457 = vmatpush1.bf16.msra.mxu0 %v1251
        %1458 = vmatprep.subr.bf16.mxu0 0
        %1459 = vmatpush1.bf16.msra.mxu0 %v1250
        %1460 = vmatprep.subr.bf16.mxu0 0
        %1461 = vmatpush1.bf16.msra.mxu0 %v1249
        %1462 = vmatprep.subr.bf16.mxu0 0
        %1463 = vmatpush1.bf16.msra.mxu0 %v1248
        %1464 = vmatprep.subr.bf16.mxu0 0
        %1465 = vmatpush2.bf16.msra.mxu0 %v1263
        %1466 = vmatprep.subr.bf16.mxu0 0
        %1467 = vmatpush2.bf16.msra.mxu0 %v1262
        %1468 = vmatprep.subr.bf16.mxu0 0
        %1469 = vmatpush2.bf16.msra.mxu0 %v1261
        %1470 = vmatprep.subr.bf16.mxu0 0
        %1471 = vmatpush2.bf16.msra.mxu0 %v1260
        %1472 = vmatprep.subr.bf16.mxu0 0
        %1473 = vmatpush2.bf16.msra.mxu0 %v1259
        %1474 = vmatprep.subr.bf16.mxu0 0
        %1475 = vmatpush2.bf16.msra.mxu0 %v1258
        %1476 = vmatprep.subr.bf16.mxu0 0
        %1477 = vmatpush2.bf16.msra.mxu0 %v1257
        %1478 = vmatprep.subr.bf16.mxu0 0
        %1479 = vmatpush2.bf16.msra.mxu0 %v1256
        %1480 = vmatprep.mubr.bf16.mxu0 %v935
        %1481 = vmatmul.mubr.bf16.gmra.mxu0 %v934
        %v1482 = vpop.f32.mrf.mxu0
        %v1483 = vadd.f32 %v1443, %v1482
        %v1484 = vpop.f32.mrf.mxu0
        %v1485 = vpop.f32.mrf.mxu0
        %v1486 = vpop.f32.mrf.mxu0
        %1487 = vdwg.mxu0
        %v1488 = vmax.f32 %v1483, 0.0
        %1489 = vst [vmem:[%s775] sm:$0xff] %v1488
        %p1490 = scmp.lt.s32.totalorder %s18, 0
        %s1491 = scalar_select %p1490, %s18, 0
        %p1492 = scmp.lt.s32.totalorder %s19, 1
        %s1493 = scalar_select %p1492, %s19, 1
        %s1494 = smul.addr %s1491, 2
        %s1495 = sadd.s32 %s1493, %s1494
        %s1496 = smul.addr %s1495, 8
        %s1497 = scalar_lea.vmem %s3, %s1496
        // Predicated region
        $region74: #{percept_forward.9} parent=68 // pred_check
          %p1498 = pneg %p124
        $region75: #{percept_forward.9} parent=68 // pred_check_branch
          %1500 = sbr.rel (%p1498) target = $region77
        $region76: #{percept_forward.9} parent=68 // pred_region
          _
        $region77: #{percept_forward.9} parent=68 // pred_fallthru
          _
      $region69: #{percept_forward.9} parent=5 // pred_fallthru
        _
      %p1501 = scmp.le.s32.totalorder 2, %s9
      // Predicated region
      $region78: #{percept_forward.9} parent=5 // pred_check
        %p1502 = pneg %p1501
      $region79: #{percept_forward.9} parent=5 // pred_check_branch
        %1504 = sbr.rel (%p1502) target = $region81
      $region80: #{percept_forward.9} parent=5 // pred_region
        %s1505 = ssub.s32 %s9, 2
        // Predicated region
        $region82: #{percept_forward.9} parent=80 // pred_check
          %p1506 = pneg %p130
        $region83: #{percept_forward.9} parent=80 // pred_check_branch
          %1508 = sbr.rel (%p1506) target = $region85
        $region84: #{percept_forward.9} parent=80 // pred_region
          %p1509 = scmp.lt.s32.totalorder %s20, 0
          %s1510 = scalar_select %p1509, %s20, 0
          %p1511 = scmp.lt.s32.totalorder %s21, 1
          %s1512 = scalar_select %p1511, %s21, 1
          %s1513 = smul.addr %s1510, 2
          %s1514 = sadd.s32 %s1512, %s1513
          %s1515 = smul.addr %s1514, 8
          %s1516 = scalar_lea.vmem %s3, %s1515
        $region85: #{percept_forward.9} parent=80 // pred_fallthru
          _
      $region81: #{percept_forward.9} parent=5 // pred_fallthru
        _
    $region6: #{percept_forward.9} parent=1 // loop_footer
      %s13 = sadd.s32 1, %s9
    $region7: #{percept_forward.9} parent=1 // loop_footer_branch
      %8 = sbr.rel target = $region3
    $region8: #{percept_forward.9} parent=1 // loop_exit
      _

// kernel: percept_forward.8
$region0: #{percept_forward.8}
  #allocation0 [shape = 'u32[]', space=smem, size = 0x4, offset = 0x4, fixed_abs, tag = 'smem constant byte address 0x4 - core index']
  #allocation1 [shape = 'u32[144,128]{1,0:T(1,128)}', space=vmem, size = 0x12000, scoped, tag = 'internal scratch']
  %s0 = inlined_call_operand.vmem [shape: bf16[16,2048], index: 0, kind: input, shape index: {}]
  %s1 = inlined_call_operand.vmem [shape: bf16[2048,256], index: 1, kind: input, shape index: {}]
  %s2 = inlined_call_operand.vmem [shape: f32[1,256], index: 2, kind: input, shape index: {}]
  %s3 = inlined_call_operand.vmem [shape: bf16[16,256], index: 3, kind: output, shape index: {}]
  %s4 = sld [smem:[#allocation0]]
  $region123: #{percept_forward.8} parent=0
    _
  %s6 = ssub.s32 1, %s4
  %s7 = scalar_select 0, %s6, %s4
  $region1: #{percept_forward.8} parent=0
    #allocation2 [shape = 'u8[1048576]{0}', space=vmem, size = 0x100000, scoped, tag = 'input window, operand 1']
    #allocation3 [shape = 'u8[8192]{0}', space=vmem, size = 0x2000, scoped, tag = 'output window, operand 0']
    loop: start=0, step=1, limit=4
    $region2: #{percept_forward.8} parent=1 // loop_pre_header
      _
    $region3: #{percept_forward.8} parent=1 // loop_header
      %s9 = sphi 0, %s13
      %p10 = scmp.ge.s32.totalorder %s9, 4
      %s16 = sphi 0, %s28
      %s17 = sphi 0, %s24
      %s18 = sphi 0, %s16
      %s19 = sphi 0, %s17
      %s20 = sphi 0, %s18
      %s21 = sphi 0, %s19
      %s31 = sphi 0, %s33
      %s34 = sphi 0, %s31
      %s35 = sphi 0, %s34
      %s51 = sphi 0, %s35
      %s57 = sphi 0, %s59
      %s60 = sphi 0, %s57
      %s61 = sphi 0, %s60
      %s77 = sphi 0, %s61
      %s83 = sphi 0, %s85
      %s86 = sphi 0, %s83
      %s87 = sphi 0, %s86
      %s103 = sphi 0, %s87
      %s111 = sphi 0, %s113
      %s114 = sphi 0, %s111
      %s115 = sphi 0, %s114
      %s131 = sphi 0, %s115
    $region4: #{percept_forward.8} parent=1 // loop_header_branch
      %12 = sbr.rel (%p10) target = $region8
    $region5: #{percept_forward.8} parent=1 // loop_body
      %s14 = ssub.s32 %s9, 1
      %s15 = ssub.s32 %s9, 2
      %s22 = sadd.s32 1, %s17
      %p23 = scmp.ge.s32.totalorder %s22, 2
      %s24 = scalar_select %p23, 0, %s22
      %s25 = sadd.s32 1, %s16
      %s26 = scalar_select %p23, %s25, %s16
      %p27 = scmp.ge.s32.totalorder %s26, 1
      %s28 = scalar_select %p27, 0, %s26
      %s29 = ssub.s32 %s16, %s28
      %p30 = scmp.eq.s32.totalorder %s29, 0
      %s32 = sadd.s32 %s31, 1
      %s33 = scalar_select %p30, %s31, %s32
      %p36 = pneg %p30
      %p37 = scmp.eq.s32.totalorder %s9, 1
      %p38 = por %p36, %p37
      %p39 = scmp.ne.s32.totalorder %s31, %s34
      %p40 = scmp.eq.s32.totalorder %s9, 0
      %p41 = por %p39, %p40
      %p42 = scmp.ne.s32.totalorder %s31, %s34
      %p43 = scmp.eq.s32.totalorder %s14, 1
      %p44 = por %p42, %p43
      %p45 = scmp.ne.s32.totalorder %s34, %s35
      %p46 = scmp.eq.s32.totalorder %s14, 0
      %p47 = por %p45, %p46
      %p48 = scmp.ne.s32.totalorder %s34, %s35
      %p49 = scmp.eq.s32.totalorder %s15, 1
      %p50 = por %p48, %p49
      %p52 = scmp.ne.s32.totalorder %s35, %s51
      %p53 = scmp.eq.s32.totalorder %s15, 0
      %p54 = por %p52, %p53
      %s55 = ssub.s32 %s17, %s24
      %p56 = scmp.eq.s32.totalorder %s55, 0
      %s58 = sadd.s32 %s57, 1
      %s59 = scalar_select %p56, %s57, %s58
      %p62 = pneg %p56
      %p63 = scmp.eq.s32.totalorder %s9, 1
      %p64 = por %p62, %p63
      %p65 = scmp.ne.s32.totalorder %s57, %s60
      %p66 = scmp.eq.s32.totalorder %s9, 0
      %p67 = por %p65, %p66
      %p68 = scmp.ne.s32.totalorder %s57, %s60
      %p69 = scmp.eq.s32.totalorder %s14, 1
      %p70 = por %p68, %p69
      %p71 = scmp.ne.s32.totalorder %s60, %s61
      %p72 = scmp.eq.s32.totalorder %s14, 0
      %p73 = por %p71, %p72
      %p74 = scmp.ne.s32.totalorder %s60, %s61
      %p75 = scmp.eq.s32.totalorder %s15, 1
      %p76 = por %p74, %p75
      %p78 = scmp.ne.s32.totalorder %s61, %s77
      %p79 = scmp.eq.s32.totalorder %s15, 0
      %p80 = por %p78, %p79
      %s81 = ssub.s32 %s17, %s24
      %p82 = scmp.eq.s32.totalorder %s81, 0
      %s84 = sadd.s32 %s83, 1
      %s85 = scalar_select %p82, %s83, %s84
      %p88 = pneg %p82
      %p89 = scmp.eq.s32.totalorder %s9, 1
      %p90 = por %p88, %p89
      %p91 = scmp.ne.s32.totalorder %s83, %s86
      %p92 = scmp.eq.s32.totalorder %s9, 0
      %p93 = por %p91, %p92
      %p94 = scmp.ne.s32.totalorder %s83, %s86
      %p95 = scmp.eq.s32.totalorder %s14, 1
      %p96 = por %p94, %p95
      %p97 = scmp.ne.s32.totalorder %s86, %s87
      %p98 = scmp.eq.s32.totalorder %s14, 0
      %p99 = por %p97, %p98
      %p100 = scmp.ne.s32.totalorder %s86, %s87
      %p101 = scmp.eq.s32.totalorder %s15, 1
      %p102 = por %p100, %p101
      %p104 = scmp.ne.s32.totalorder %s87, %s103
      %p105 = scmp.eq.s32.totalorder %s15, 0
      %p106 = por %p104, %p105
      %s107 = ssub.s32 %s16, %s28
      %s108 = ssub.s32 %s17, %s24
      %s109 = sor.u32 %s107, %s108
      %p110 = scmp.eq.s32.totalorder %s109, 0
      %s112 = sadd.s32 %s111, 1
      %s113 = scalar_select %p110, %s111, %s112
      %p116 = pneg %p110
      %p117 = scmp.eq.s32.totalorder %s9, 1
      %p118 = por %p116, %p117
      %p119 = scmp.ne.s32.totalorder %s111, %s114
      %p120 = scmp.eq.s32.totalorder %s9, 0
      %p121 = por %p119, %p120
      %p122 = scmp.ne.s32.totalorder %s111, %s114
      %p123 = scmp.eq.s32.totalorder %s14, 1
      %p124 = por %p122, %p123
      %p125 = scmp.ne.s32.totalorder %s114, %s115
      %p126 = scmp.eq.s32.totalorder %s14, 0
      %p127 = por %p125, %p126
      %p128 = scmp.ne.s32.totalorder %s114, %s115
      %p129 = scmp.eq.s32.totalorder %s15, 1
      %p130 = por %p128, %p129
      %p132 = scmp.ne.s32.totalorder %s115, %s131
      %p133 = scmp.eq.s32.totalorder %s15, 0
      %p134 = por %p132, %p133
      %p135 = scmp.le.s32.totalorder 1, %s9
      %p136 = scmp.lt.s32.totalorder %s9, 3
      %p137 = pnand %p135, %p136
      %p138 = pneg %p137
      // Predicated region
      $region9: #{percept_forward.8} parent=5 // pred_check
        _
      $region10: #{percept_forward.8} parent=5 // pred_check_branch
        %140 = sbr.rel (%p137) target = $region12
      $region11: #{percept_forward.8} parent=5 // pred_region
        %s141 = ssub.s32 %s9, 1
        // Predicated region
        $region13: #{percept_forward.8} parent=11 // pred_check
          %p142 = pneg %p47
        $region14: #{percept_forward.8} parent=11 // pred_check_branch
          %144 = sbr.rel (%p142) target = $region16
        $region15: #{percept_forward.8} parent=11 // pred_region
          %s145 = smul.u32 2, %s18
          %p146 = scmp.lt.s32.totalorder %s145, 1
          %s147 = scalar_select %p146, %s145, 1
          %s148 = smul.addr %s147, 16
          %s149 = smul.addr %s148, 4
          %s150 = scalar_lea.vmem %s0, %s149
          %s151 = smul.u32 2, %s18
        $region16: #{percept_forward.8} parent=11 // pred_fallthru
          _
      $region12: #{percept_forward.8} parent=5 // pred_fallthru
        _
      %p152 = scmp.lt.s32.totalorder %s9, 2
      // Predicated region
      $region17: #{percept_forward.8} parent=5 // pred_check
        %p153 = pneg %p152
      $region18: #{percept_forward.8} parent=5 // pred_check_branch
        %155 = sbr.rel (%p153) target = $region20
      $region19: #{percept_forward.8} parent=5 // pred_region
        // Predicated region
        $region21: #{percept_forward.8} parent=19 // pred_check
          %p156 = pneg %p67
        $region22: #{percept_forward.8} parent=19 // pred_check_branch
          %158 = sbr.rel (%p156) target = $region24
        $region23: #{percept_forward.8} parent=19 // pred_region
          %s159 = sand.u32 %s57, 1
          %s160 = sand.u32 %s57, 1
          %s161 = smul.addr %s160, 1024
          %s162 = scalar_lea.vmem [#allocation2], %s161
          %s163 = smul.addr %s17, 4
          %s164 = scalar_lea.vmem %s1, %s163
          // Predicated region
          $region25: #{percept_forward.8} parent=23 // pred_check
            _
          $region26: #{percept_forward.8} parent=23 // pred_check_branch
            %166 = sbr.rel (0) target = $region28
          $region27: #{percept_forward.8} parent=23 // pred_region
            // Predicated region
            $region29: #{percept_forward.8} parent=27 // pred_check
              _
            $region30: #{percept_forward.8} parent=27 // pred_check_branch
              %168 = sbr.rel target = $region32
            $region31: #{percept_forward.8} parent=27 // pred_region
              // Predicated region
              $region44: #{percept_forward.8} parent=31 // pred_check
                _
              $region45: #{percept_forward.8} parent=31 // pred_check_branch
                %694 = sbr.rel (0) target = $region47
              $region46: #{percept_forward.8} parent=31 // pred_region
                loop: start=0, step=1, limit=1
                $region48: #{percept_forward.8} parent=46 // loop_pre_header
                  _
                $region49: #{percept_forward.8} parent=46 // loop_header
                  %s696 = sphi 0, %s700
                  %p697 = scmp.ge.s32.totalorder %s696, 1
                  %s701 = sphi %s164, %s164
                  %s702 = sphi %s162, %s162
                $region50: #{percept_forward.8} parent=46 // loop_header_branch
                  %699 = sbr.rel (%p697) target = $region54
                $region51: #{percept_forward.8} parent=46 // loop_body
                  _
                $region52: #{percept_forward.8} parent=46 // loop_footer
                  %s700 = sadd.s32 1, %s696
                $region53: #{percept_forward.8} parent=46 // loop_footer_branch
                  %695 = sbr.rel target = $region49
                $region54: #{percept_forward.8} parent=46 // loop_exit
                  _
                %s704 = ssub.s32 16, 1
                loop: start=0, step=1, limit=1
                $region55: #{percept_forward.8} parent=46 // loop_pre_header
                  _
                $region56: #{percept_forward.8} parent=46 // loop_header
                  %s706 = sphi 0, %s710
                  %p707 = scmp.ge.s32.totalorder %s706, 1
                  %s711 = sphi %s164, %s164
                  %s712 = sphi %s162, %s162
                $region57: #{percept_forward.8} parent=46 // loop_header_branch
                  %709 = sbr.rel (%p707) target = $region61
                $region58: #{percept_forward.8} parent=46 // loop_body
                  %v713 = vld [vmem:[%s711] sm:%s704]
                  %714 = vst [vmem:[%s712] sm:%s704] %v713
                  %v715 = vld [vmem:[%s711 + $0x8] sm:%s704]
                  %716 = vst [vmem:[%s712 + $0x4] sm:%s704] %v715
                  %v717 = vld [vmem:[%s711 + $0x10] sm:%s704]
                  %718 = vst [vmem:[%s712 + $0x8] sm:%s704] %v717
                  %v719 = vld [vmem:[%s711 + $0x18] sm:%s704]
                  %720 = vst [vmem:[%s712 + $0xc] sm:%s704] %v719
                  %v721 = vld [vmem:[%s711 + $0x20] sm:%s704]
                  %722 = vst [vmem:[%s712 + $0x10] sm:%s704] %v721
                  %v723 = vld [vmem:[%s711 + $0x28] sm:%s704]
                  %724 = vst [vmem:[%s712 + $0x14] sm:%s704] %v723
                  %v725 = vld [vmem:[%s711 + $0x30] sm:%s704]
                  %726 = vst [vmem:[%s712 + $0x18] sm:%s704] %v725
                  %v727 = vld [vmem:[%s711 + $0x38] sm:%s704]
                  %728 = vst [vmem:[%s712 + $0x1c] sm:%s704] %v727
                  %v729 = vld [vmem:[%s711 + $0x40] sm:%s704]
                  %730 = vst [vmem:[%s712 + $0x20] sm:%s704] %v729
                  %v731 = vld [vmem:[%s711 + $0x48] sm:%s704]
                  %732 = vst [vmem:[%s712 + $0x24] sm:%s704] %v731
                  %v733 = vld [vmem:[%s711 + $0x50] sm:%s704]
                  %734 = vst [vmem:[%s712 + $0x28] sm:%s704] %v733
                  %v735 = vld [vmem:[%s711 + $0x58] sm:%s704]
                  %736 = vst [vmem:[%s712 + $0x2c] sm:%s704] %v735
                  %v737 = vld [vmem:[%s711 + $0x60] sm:%s704]
                  %738 = vst [vmem:[%s712 + $0x30] sm:%s704] %v737
                  %v739 = vld [vmem:[%s711 + $0x68] sm:%s704]
                  %740 = vst [vmem:[%s712 + $0x34] sm:%s704] %v739
                  %v741 = vld [vmem:[%s711 + $0x70] sm:%s704]
                  %742 = vst [vmem:[%s712 + $0x38] sm:%s704] %v741
                  %v743 = vld [vmem:[%s711 + $0x78] sm:%s704]
                  %744 = vst [vmem:[%s712 + $0x3c] sm:%s704] %v743
                  %v745 = vld [vmem:[%s711 + $0x80] sm:%s704]
                  %746 = vst [vmem:[%s712 + $0x40] sm:%s704] %v745
                  %v747 = vld [vmem:[%s711 + $0x88] sm:%s704]
                  %748 = vst [vmem:[%s712 + $0x44] sm:%s704] %v747
                  %v749 = vld [vmem:[%s711 + $0x90] sm:%s704]
                  %750 = vst [vmem:[%s712 + $0x48] sm:%s704] %v749
                  %v751 = vld [vmem:[%s711 + $0x98] sm:%s704]
                  %752 = vst [vmem:[%s712 + $0x4c] sm:%s704] %v751
                  %v753 = vld [vmem:[%s711 + $0xa0] sm:%s704]
                  %754 = vst [vmem:[%s712 + $0x50] sm:%s704] %v753
                  %v755 = vld [vmem:[%s711 + $0xa8] sm:%s704]
                  %756 = vst [vmem:[%s712 + $0x54] sm:%s704] %v755
                  %v757 = vld [vmem:[%s711 + $0xb0] sm:%s704]
                  %758 = vst [vmem:[%s712 + $0x58] sm:%s704] %v757
                  %v759 = vld [vmem:[%s711 + $0xb8] sm:%s704]
                  %760 = vst [vmem:[%s712 + $0x5c] sm:%s704] %v759
                  %v761 = vld [vmem:[%s711 + $0xc0] sm:%s704]
                  %762 = vst [vmem:[%s712 + $0x60] sm:%s704] %v761
                  %v763 = vld [vmem:[%s711 + $0xc8] sm:%s704]
                  %764 = vst [vmem:[%s712 + $0x64] sm:%s704] %v763
                  %v765 = vld [vmem:[%s711 + $0xd0] sm:%s704]
                  %766 = vst [vmem:[%s712 + $0x68] sm:%s704] %v765
                  %v767 = vld [vmem:[%s711 + $0xd8] sm:%s704]
                  %768 = vst [vmem:[%s712 + $0x6c] sm:%s704] %v767
                  %v769 = vld [vmem:[%s711 + $0xe0] sm:%s704]
                  %770 = vst [vmem:[%s712 + $0x70] sm:%s704] %v769
                  %v771 = vld [vmem:[%s711 + $0xe8] sm:%s704]
                  %772 = vst [vmem:[%s712 + $0x74] sm:%s704] %v771
                  %v773 = vld [vmem:[%s711 + $0xf0] sm:%s704]
                  %774 = vst [vmem:[%s712 + $0x78] sm:%s704] %v773
                  %v775 = vld [vmem:[%s711 + $0xf8] sm:%s704]
                  %776 = vst [vmem:[%s712 + $0x7c] sm:%s704] %v775
                  %v777 = vld [vmem:[%s711 + $0x100] sm:%s704]
                  %778 = vst [vmem:[%s712 + $0x80] sm:%s704] %v777
                  %v779 = vld [vmem:[%s711 + $0x108] sm:%s704]
                  %780 = vst [vmem:[%s712 + $0x84] sm:%s704] %v779
                  %v781 = vld [vmem:[%s711 + $0x110] sm:%s704]
                  %782 = vst [vmem:[%s712 + $0x88] sm:%s704] %v781
                  %v783 = vld [vmem:[%s711 + $0x118] sm:%s704]
                  %784 = vst [vmem:[%s712 + $0x8c] sm:%s704] %v783
                  %v785 = vld [vmem:[%s711 + $0x120] sm:%s704]
                  %786 = vst [vmem:[%s712 + $0x90] sm:%s704] %v785
                  %v787 = vld [vmem:[%s711 + $0x128] sm:%s704]
                  %788 = vst [vmem:[%s712 + $0x94] sm:%s704] %v787
                  %v789 = vld [vmem:[%s711 + $0x130] sm:%s704]
                  %790 = vst [vmem:[%s712 + $0x98] sm:%s704] %v789
                  %v791 = vld [vmem:[%s711 + $0x138] sm:%s704]
                  %792 = vst [vmem:[%s712 + $0x9c] sm:%s704] %v791
                  %v793 = vld [vmem:[%s711 + $0x140] sm:%s704]
                  %794 = vst [vmem:[%s712 + $0xa0] sm:%s704] %v793
                  %v795 = vld [vmem:[%s711 + $0x148] sm:%s704]
                  %796 = vst [vmem:[%s712 + $0xa4] sm:%s704] %v795
                  %v797 = vld [vmem:[%s711 + $0x150] sm:%s704]
                  %798 = vst [vmem:[%s712 + $0xa8] sm:%s704] %v797
                  %v799 = vld [vmem:[%s711 + $0x158] sm:%s704]
                  %800 = vst [vmem:[%s712 + $0xac] sm:%s704] %v799
                  %v801 = vld [vmem:[%s711 + $0x160] sm:%s704]
                  %802 = vst [vmem:[%s712 + $0xb0] sm:%s704] %v801
                  %v803 = vld [vmem:[%s711 + $0x168] sm:%s704]
                  %804 = vst [vmem:[%s712 + $0xb4] sm:%s704] %v803
                  %v805 = vld [vmem:[%s711 + $0x170] sm:%s704]
                  %806 = vst [vmem:[%s712 + $0xb8] sm:%s704] %v805
                  %v807 = vld [vmem:[%s711 + $0x178] sm:%s704]
                  %808 = vst [vmem:[%s712 + $0xbc] sm:%s704] %v807
                  %v809 = vld [vmem:[%s711 + $0x180] sm:%s704]
                  %810 = vst [vmem:[%s712 + $0xc0] sm:%s704] %v809
                  %v811 = vld [vmem:[%s711 + $0x188] sm:%s704]
                  %812 = vst [vmem:[%s712 + $0xc4] sm:%s704] %v811
                  %v813 = vld [vmem:[%s711 + $0x190] sm:%s704]
                  %814 = vst [vmem:[%s712 + $0xc8] sm:%s704] %v813
                  %v815 = vld [vmem:[%s711 + $0x198] sm:%s704]
                  %816 = vst [vmem:[%s712 + $0xcc] sm:%s704] %v815
                  %v817 = vld [vmem:[%s711 + $0x1a0] sm:%s704]
                  %818 = vst [vmem:[%s712 + $0xd0] sm:%s704] %v817
                  %v819 = vld [vmem:[%s711 + $0x1a8] sm:%s704]
                  %820 = vst [vmem:[%s712 + $0xd4] sm:%s704] %v819
                  %v821 = vld [vmem:[%s711 + $0x1b0] sm:%s704]
                  %822 = vst [vmem:[%s712 + $0xd8] sm:%s704] %v821
                  %v823 = vld [vmem:[%s711 + $0x1b8] sm:%s704]
                  %824 = vst [vmem:[%s712 + $0xdc] sm:%s704] %v823
                  %v825 = vld [vmem:[%s711 + $0x1c0] sm:%s704]
                  %826 = vst [vmem:[%s712 + $0xe0] sm:%s704] %v825
                  %v827 = vld [vmem:[%s711 + $0x1c8] sm:%s704]
                  %828 = vst [vmem:[%s712 + $0xe4] sm:%s704] %v827
                  %v829 = vld [vmem:[%s711 + $0x1d0] sm:%s704]
                  %830 = vst [vmem:[%s712 + $0xe8] sm:%s704] %v829
                  %v831 = vld [vmem:[%s711 + $0x1d8] sm:%s704]
                  %832 = vst [vmem:[%s712 + $0xec] sm:%s704] %v831
                  %v833 = vld [vmem:[%s711 + $0x1e0] sm:%s704]
                  %834 = vst [vmem:[%s712 + $0xf0] sm:%s704] %v833
                  %v835 = vld [vmem:[%s711 + $0x1e8] sm:%s704]
                  %836 = vst [vmem:[%s712 + $0xf4] sm:%s704] %v835
                  %v837 = vld [vmem:[%s711 + $0x1f0] sm:%s704]
                  %838 = vst [vmem:[%s712 + $0xf8] sm:%s704] %v837
                  %v839 = vld [vmem:[%s711 + $0x1f8] sm:%s704]
                  %840 = vst [vmem:[%s712 + $0xfc] sm:%s704] %v839
                  %v841 = vld [vmem:[%s711 + $0x200] sm:%s704]
                  %842 = vst [vmem:[%s712 + $0x100] sm:%s704] %v841
                  %v843 = vld [vmem:[%s711 + $0x208] sm:%s704]
                  %844 = vst [vmem:[%s712 + $0x104] sm:%s704] %v843
                  %v845 = vld [vmem:[%s711 + $0x210] sm:%s704]
                  %846 = vst [vmem:[%s712 + $0x108] sm:%s704] %v845
                  %v847 = vld [vmem:[%s711 + $0x218] sm:%s704]
                  %848 = vst [vmem:[%s712 + $0x10c] sm:%s704] %v847
                  %v849 = vld [vmem:[%s711 + $0x220] sm:%s704]
                  %850 = vst [vmem:[%s712 + $0x110] sm:%s704] %v849
                  %v851 = vld [vmem:[%s711 + $0x228] sm:%s704]
                  %852 = vst [vmem:[%s712 + $0x114] sm:%s704] %v851
                  %v853 = vld [vmem:[%s711 + $0x230] sm:%s704]
                  %854 = vst [vmem:[%s712 + $0x118] sm:%s704] %v853
                  %v855 = vld [vmem:[%s711 + $0x238] sm:%s704]
                  %856 = vst [vmem:[%s712 + $0x11c] sm:%s704] %v855
                  %v857 = vld [vmem:[%s711 + $0x240] sm:%s704]
                  %858 = vst [vmem:[%s712 + $0x120] sm:%s704] %v857
                  %v859 = vld [vmem:[%s711 + $0x248] sm:%s704]
                  %860 = vst [vmem:[%s712 + $0x124] sm:%s704] %v859
                  %v861 = vld [vmem:[%s711 + $0x250] sm:%s704]
                  %862 = vst [vmem:[%s712 + $0x128] sm:%s704] %v861
                  %v863 = vld [vmem:[%s711 + $0x258] sm:%s704]
                  %864 = vst [vmem:[%s712 + $0x12c] sm:%s704] %v863
                  %v865 = vld [vmem:[%s711 + $0x260] sm:%s704]
                  %866 = vst [vmem:[%s712 + $0x130] sm:%s704] %v865
                  %v867 = vld [vmem:[%s711 + $0x268] sm:%s704]
                  %868 = vst [vmem:[%s712 + $0x134] sm:%s704] %v867
                  %v869 = vld [vmem:[%s711 + $0x270] sm:%s704]
                  %870 = vst [vmem:[%s712 + $0x138] sm:%s704] %v869
                  %v871 = vld [vmem:[%s711 + $0x278] sm:%s704]
                  %872 = vst [vmem:[%s712 + $0x13c] sm:%s704] %v871
                  %v873 = vld [vmem:[%s711 + $0x280] sm:%s704]
                  %874 = vst [vmem:[%s712 + $0x140] sm:%s704] %v873
                  %v875 = vld [vmem:[%s711 + $0x288] sm:%s704]
                  %876 = vst [vmem:[%s712 + $0x144] sm:%s704] %v875
                  %v877 = vld [vmem:[%s711 + $0x290] sm:%s704]
                  %878 = vst [vmem:[%s712 + $0x148] sm:%s704] %v877
                  %v879 = vld [vmem:[%s711 + $0x298] sm:%s704]
                  %880 = vst [vmem:[%s712 + $0x14c] sm:%s704] %v879
                  %v881 = vld [vmem:[%s711 + $0x2a0] sm:%s704]
                  %882 = vst [vmem:[%s712 + $0x150] sm:%s704] %v881
                  %v883 = vld [vmem:[%s711 + $0x2a8] sm:%s704]
                  %884 = vst [vmem:[%s712 + $0x154] sm:%s704] %v883
                  %v885 = vld [vmem:[%s711 + $0x2b0] sm:%s704]
                  %886 = vst [vmem:[%s712 + $0x158] sm:%s704] %v885
                  %v887 = vld [vmem:[%s711 + $0x2b8] sm:%s704]
                  %888 = vst [vmem:[%s712 + $0x15c] sm:%s704] %v887
                  %v889 = vld [vmem:[%s711 + $0x2c0] sm:%s704]
                  %890 = vst [vmem:[%s712 + $0x160] sm:%s704] %v889
                  %v891 = vld [vmem:[%s711 + $0x2c8] sm:%s704]
                  %892 = vst [vmem:[%s712 + $0x164] sm:%s704] %v891
                  %v893 = vld [vmem:[%s711 + $0x2d0] sm:%s704]
                  %894 = vst [vmem:[%s712 + $0x168] sm:%s704] %v893
                  %v895 = vld [vmem:[%s711 + $0x2d8] sm:%s704]
                  %896 = vst [vmem:[%s712 + $0x16c] sm:%s704] %v895
                  %v897 = vld [vmem:[%s711 + $0x2e0] sm:%s704]
                  %898 = vst [vmem:[%s712 + $0x170] sm:%s704] %v897
                  %v899 = vld [vmem:[%s711 + $0x2e8] sm:%s704]
                  %900 = vst [vmem:[%s712 + $0x174] sm:%s704] %v899
                  %v901 = vld [vmem:[%s711 + $0x2f0] sm:%s704]
                  %902 = vst [vmem:[%s712 + $0x178] sm:%s704] %v901
                  %v903 = vld [vmem:[%s711 + $0x2f8] sm:%s704]
                  %904 = vst [vmem:[%s712 + $0x17c] sm:%s704] %v903
                  %v905 = vld [vmem:[%s711 + $0x300] sm:%s704]
                  %906 = vst [vmem:[%s712 + $0x180] sm:%s704] %v905
                  %v907 = vld [vmem:[%s711 + $0x308] sm:%s704]
                  %908 = vst [vmem:[%s712 + $0x184] sm:%s704] %v907
                  %v909 = vld [vmem:[%s711 + $0x310] sm:%s704]
                  %910 = vst [vmem:[%s712 + $0x188] sm:%s704] %v909
                  %v911 = vld [vmem:[%s711 + $0x318] sm:%s704]
                  %912 = vst [vmem:[%s712 + $0x18c] sm:%s704] %v911
                  %v913 = vld [vmem:[%s711 + $0x320] sm:%s704]
                  %914 = vst [vmem:[%s712 + $0x190] sm:%s704] %v913
                  %v915 = vld [vmem:[%s711 + $0x328] sm:%s704]
                  %916 = vst [vmem:[%s712 + $0x194] sm:%s704] %v915
                  %v917 = vld [vmem:[%s711 + $0x330] sm:%s704]
                  %918 = vst [vmem:[%s712 + $0x198] sm:%s704] %v917
                  %v919 = vld [vmem:[%s711 + $0x338] sm:%s704]
                  %920 = vst [vmem:[%s712 + $0x19c] sm:%s704] %v919
                  %v921 = vld [vmem:[%s711 + $0x340] sm:%s704]
                  %922 = vst [vmem:[%s712 + $0x1a0] sm:%s704] %v921
                  %v923 = vld [vmem:[%s711 + $0x348] sm:%s704]
                  %924 = vst [vmem:[%s712 + $0x1a4] sm:%s704] %v923
                  %v925 = vld [vmem:[%s711 + $0x350] sm:%s704]
                  %926 = vst [vmem:[%s712 + $0x1a8] sm:%s704] %v925
                  %v927 = vld [vmem:[%s711 + $0x358] sm:%s704]
                  %928 = vst [vmem:[%s712 + $0x1ac] sm:%s704] %v927
                  %v929 = vld [vmem:[%s711 + $0x360] sm:%s704]
                  %930 = vst [vmem:[%s712 + $0x1b0] sm:%s704] %v929
                  %v931 = vld [vmem:[%s711 + $0x368] sm:%s704]
                  %932 = vst [vmem:[%s712 + $0x1b4] sm:%s704] %v931
                  %v933 = vld [vmem:[%s711 + $0x370] sm:%s704]
                  %934 = vst [vmem:[%s712 + $0x1b8] sm:%s704] %v933
                  %v935 = vld [vmem:[%s711 + $0x378] sm:%s704]
                  %936 = vst [vmem:[%s712 + $0x1bc] sm:%s704] %v935
                  %v937 = vld [vmem:[%s711 + $0x380] sm:%s704]
                  %938 = vst [vmem:[%s712 + $0x1c0] sm:%s704] %v937
                  %v939 = vld [vmem:[%s711 + $0x388] sm:%s704]
                  %940 = vst [vmem:[%s712 + $0x1c4] sm:%s704] %v939
                  %v941 = vld [vmem:[%s711 + $0x390] sm:%s704]
                  %942 = vst [vmem:[%s712 + $0x1c8] sm:%s704] %v941
                  %v943 = vld [vmem:[%s711 + $0x398] sm:%s704]
                  %944 = vst [vmem:[%s712 + $0x1cc] sm:%s704] %v943
                  %v945 = vld [vmem:[%s711 + $0x3a0] sm:%s704]
                  %946 = vst [vmem:[%s712 + $0x1d0] sm:%s704] %v945
                  %v947 = vld [vmem:[%s711 + $0x3a8] sm:%s704]
                  %948 = vst [vmem:[%s712 + $0x1d4] sm:%s704] %v947
                  %v949 = vld [vmem:[%s711 + $0x3b0] sm:%s704]
                  %950 = vst [vmem:[%s712 + $0x1d8] sm:%s704] %v949
                  %v951 = vld [vmem:[%s711 + $0x3b8] sm:%s704]
                  %952 = vst [vmem:[%s712 + $0x1dc] sm:%s704] %v951
                  %v953 = vld [vmem:[%s711 + $0x3c0] sm:%s704]
                  %954 = vst [vmem:[%s712 + $0x1e0] sm:%s704] %v953
                  %v955 = vld [vmem:[%s711 + $0x3c8] sm:%s704]
                  %956 = vst [vmem:[%s712 + $0x1e4] sm:%s704] %v955
                  %v957 = vld [vmem:[%s711 + $0x3d0] sm:%s704]
                  %958 = vst [vmem:[%s712 + $0x1e8] sm:%s704] %v957
                  %v959 = vld [vmem:[%s711 + $0x3d8] sm:%s704]
                  %960 = vst [vmem:[%s712 + $0x1ec] sm:%s704] %v959
                  %v961 = vld [vmem:[%s711 + $0x3e0] sm:%s704]
                  %962 = vst [vmem:[%s712 + $0x1f0] sm:%s704] %v961
                  %v963 = vld [vmem:[%s711 + $0x3e8] sm:%s704]
                  %964 = vst [vmem:[%s712 + $0x1f4] sm:%s704] %v963
                  %v965 = vld [vmem:[%s711 + $0x3f0] sm:%s704]
                  %966 = vst [vmem:[%s712 + $0x1f8] sm:%s704] %v965
                  %v967 = vld [vmem:[%s711 + $0x3f8] sm:%s704]
                  %968 = vst [vmem:[%s712 + $0x1fc] sm:%s704] %v967
                  %v969 = vld [vmem:[%s711 + $0x400] sm:%s704]
                  %970 = vst [vmem:[%s712 + $0x200] sm:%s704] %v969
                  %v971 = vld [vmem:[%s711 + $0x408] sm:%s704]
                  %972 = vst [vmem:[%s712 + $0x204] sm:%s704] %v971
                  %v973 = vld [vmem:[%s711 + $0x410] sm:%s704]
                  %974 = vst [vmem:[%s712 + $0x208] sm:%s704] %v973
                  %v975 = vld [vmem:[%s711 + $0x418] sm:%s704]
                  %976 = vst [vmem:[%s712 + $0x20c] sm:%s704] %v975
                  %v977 = vld [vmem:[%s711 + $0x420] sm:%s704]
                  %978 = vst [vmem:[%s712 + $0x210] sm:%s704] %v977
                  %v979 = vld [vmem:[%s711 + $0x428] sm:%s704]
                  %980 = vst [vmem:[%s712 + $0x214] sm:%s704] %v979
                  %v981 = vld [vmem:[%s711 + $0x430] sm:%s704]
                  %982 = vst [vmem:[%s712 + $0x218] sm:%s704] %v981
                  %v983 = vld [vmem:[%s711 + $0x438] sm:%s704]
                  %984 = vst [vmem:[%s712 + $0x21c] sm:%s704] %v983
                  %v985 = vld [vmem:[%s711 + $0x440] sm:%s704]
                  %986 = vst [vmem:[%s712 + $0x220] sm:%s704] %v985
                  %v987 = vld [vmem:[%s711 + $0x448] sm:%s704]
                  %988 = vst [vmem:[%s712 + $0x224] sm:%s704] %v987
                  %v989 = vld [vmem:[%s711 + $0x450] sm:%s704]
                  %990 = vst [vmem:[%s712 + $0x228] sm:%s704] %v989
                  %v991 = vld [vmem:[%s711 + $0x458] sm:%s704]
                  %992 = vst [vmem:[%s712 + $0x22c] sm:%s704] %v991
                  %v993 = vld [vmem:[%s711 + $0x460] sm:%s704]
                  %994 = vst [vmem:[%s712 + $0x230] sm:%s704] %v993
                  %v995 = vld [vmem:[%s711 + $0x468] sm:%s704]
                  %996 = vst [vmem:[%s712 + $0x234] sm:%s704] %v995
                  %v997 = vld [vmem:[%s711 + $0x470] sm:%s704]
                  %998 = vst [vmem:[%s712 + $0x238] sm:%s704] %v997
                  %v999 = vld [vmem:[%s711 + $0x478] sm:%s704]
                  %1000 = vst [vmem:[%s712 + $0x23c] sm:%s704] %v999
                  %v1001 = vld [vmem:[%s711 + $0x480] sm:%s704]
                  %1002 = vst [vmem:[%s712 + $0x240] sm:%s704] %v1001
                  %v1003 = vld [vmem:[%s711 + $0x488] sm:%s704]
                  %1004 = vst [vmem:[%s712 + $0x244] sm:%s704] %v1003
                  %v1005 = vld [vmem:[%s711 + $0x490] sm:%s704]
                  %1006 = vst [vmem:[%s712 + $0x248] sm:%s704] %v1005
                  %v1007 = vld [vmem:[%s711 + $0x498] sm:%s704]
                  %1008 = vst [vmem:[%s712 + $0x24c] sm:%s704] %v1007
                  %v1009 = vld [vmem:[%s711 + $0x4a0] sm:%s704]
                  %1010 = vst [vmem:[%s712 + $0x250] sm:%s704] %v1009
                  %v1011 = vld [vmem:[%s711 + $0x4a8] sm:%s704]
                  %1012 = vst [vmem:[%s712 + $0x254] sm:%s704] %v1011
                  %v1013 = vld [vmem:[%s711 + $0x4b0] sm:%s704]
                  %1014 = vst [vmem:[%s712 + $0x258] sm:%s704] %v1013
                  %v1015 = vld [vmem:[%s711 + $0x4b8] sm:%s704]
                  %1016 = vst [vmem:[%s712 + $0x25c] sm:%s704] %v1015
                  %v1017 = vld [vmem:[%s711 + $0x4c0] sm:%s704]
                  %1018 = vst [vmem:[%s712 + $0x260] sm:%s704] %v1017
                  %v1019 = vld [vmem:[%s711 + $0x4c8] sm:%s704]
                  %1020 = vst [vmem:[%s712 + $0x264] sm:%s704] %v1019
                  %v1021 = vld [vmem:[%s711 + $0x4d0] sm:%s704]
                  %1022 = vst [vmem:[%s712 + $0x268] sm:%s704] %v1021
                  %v1023 = vld [vmem:[%s711 + $0x4d8] sm:%s704]
                  %1024 = vst [vmem:[%s712 + $0x26c] sm:%s704] %v1023
                  %v1025 = vld [vmem:[%s711 + $0x4e0] sm:%s704]
                  %1026 = vst [vmem:[%s712 + $0x270] sm:%s704] %v1025
                  %v1027 = vld [vmem:[%s711 + $0x4e8] sm:%s704]
                  %1028 = vst [vmem:[%s712 + $0x274] sm:%s704] %v1027
                  %v1029 = vld [vmem:[%s711 + $0x4f0] sm:%s704]
                  %1030 = vst [vmem:[%s712 + $0x278] sm:%s704] %v1029
                  %v1031 = vld [vmem:[%s711 + $0x4f8] sm:%s704]
                  %1032 = vst [vmem:[%s712 + $0x27c] sm:%s704] %v1031
                  %v1033 = vld [vmem:[%s711 + $0x500] sm:%s704]
                  %1034 = vst [vmem:[%s712 + $0x280] sm:%s704] %v1033
                  %v1035 = vld [vmem:[%s711 + $0x508] sm:%s704]
                  %1036 = vst [vmem:[%s712 + $0x284] sm:%s704] %v1035
                  %v1037 = vld [vmem:[%s711 + $0x510] sm:%s704]
                  %1038 = vst [vmem:[%s712 + $0x288] sm:%s704] %v1037
                  %v1039 = vld [vmem:[%s711 + $0x518] sm:%s704]
                  %1040 = vst [vmem:[%s712 + $0x28c] sm:%s704] %v1039
                  %v1041 = vld [vmem:[%s711 + $0x520] sm:%s704]
                  %1042 = vst [vmem:[%s712 + $0x290] sm:%s704] %v1041
                  %v1043 = vld [vmem:[%s711 + $0x528] sm:%s704]
                  %1044 = vst [vmem:[%s712 + $0x294] sm:%s704] %v1043
                  %v1045 = vld [vmem:[%s711 + $0x530] sm:%s704]
                  %1046 = vst [vmem:[%s712 + $0x298] sm:%s704] %v1045
                  %v1047 = vld [vmem:[%s711 + $0x538] sm:%s704]
                  %1048 = vst [vmem:[%s712 + $0x29c] sm:%s704] %v1047
                  %v1049 = vld [vmem:[%s711 + $0x540] sm:%s704]
                  %1050 = vst [vmem:[%s712 + $0x2a0] sm:%s704] %v1049
                  %v1051 = vld [vmem:[%s711 + $0x548] sm:%s704]
                  %1052 = vst [vmem:[%s712 + $0x2a4] sm:%s704] %v1051
                  %v1053 = vld [vmem:[%s711 + $0x550] sm:%s704]
                  %1054 = vst [vmem:[%s712 + $0x2a8] sm:%s704] %v1053
                  %v1055 = vld [vmem:[%s711 + $0x558] sm:%s704]
                  %1056 = vst [vmem:[%s712 + $0x2ac] sm:%s704] %v1055
                  %v1057 = vld [vmem:[%s711 + $0x560] sm:%s704]
                  %1058 = vst [vmem:[%s712 + $0x2b0] sm:%s704] %v1057
                  %v1059 = vld [vmem:[%s711 + $0x568] sm:%s704]
                  %1060 = vst [vmem:[%s712 + $0x2b4] sm:%s704] %v1059
                  %v1061 = vld [vmem:[%s711 + $0x570] sm:%s704]
                  %1062 = vst [vmem:[%s712 + $0x2b8] sm:%s704] %v1061
                  %v1063 = vld [vmem:[%s711 + $0x578] sm:%s704]
                  %1064 = vst [vmem:[%s712 + $0x2bc] sm:%s704] %v1063
                  %v1065 = vld [vmem:[%s711 + $0x580] sm:%s704]
                  %1066 = vst [vmem:[%s712 + $0x2c0] sm:%s704] %v1065
                  %v1067 = vld [vmem:[%s711 + $0x588] sm:%s704]
                  %1068 = vst [vmem:[%s712 + $0x2c4] sm:%s704] %v1067
                  %v1069 = vld [vmem:[%s711 + $0x590] sm:%s704]
                  %1070 = vst [vmem:[%s712 + $0x2c8] sm:%s704] %v1069
                  %v1071 = vld [vmem:[%s711 + $0x598] sm:%s704]
                  %1072 = vst [vmem:[%s712 + $0x2cc] sm:%s704] %v1071
                  %v1073 = vld [vmem:[%s711 + $0x5a0] sm:%s704]
                  %1074 = vst [vmem:[%s712 + $0x2d0] sm:%s704] %v1073
                  %v1075 = vld [vmem:[%s711 + $0x5a8] sm:%s704]
                  %1076 = vst [vmem:[%s712 + $0x2d4] sm:%s704] %v1075
                  %v1077 = vld [vmem:[%s711 + $0x5b0] sm:%s704]
                  %1078 = vst [vmem:[%s712 + $0x2d8] sm:%s704] %v1077
                  %v1079 = vld [vmem:[%s711 + $0x5b8] sm:%s704]
                  %1080 = vst [vmem:[%s712 + $0x2dc] sm:%s704] %v1079
                  %v1081 = vld [vmem:[%s711 + $0x5c0] sm:%s704]
                  %1082 = vst [vmem:[%s712 + $0x2e0] sm:%s704] %v1081
                  %v1083 = vld [vmem:[%s711 + $0x5c8] sm:%s704]
                  %1084 = vst [vmem:[%s712 + $0x2e4] sm:%s704] %v1083
                  %v1085 = vld [vmem:[%s711 + $0x5d0] sm:%s704]
                  %1086 = vst [vmem:[%s712 + $0x2e8] sm:%s704] %v1085
                  %v1087 = vld [vmem:[%s711 + $0x5d8] sm:%s704]
                  %1088 = vst [vmem:[%s712 + $0x2ec] sm:%s704] %v1087
                  %v1089 = vld [vmem:[%s711 + $0x5e0] sm:%s704]
                  %1090 = vst [vmem:[%s712 + $0x2f0] sm:%s704] %v1089
                  %v1091 = vld [vmem:[%s711 + $0x5e8] sm:%s704]
                  %1092 = vst [vmem:[%s712 + $0x2f4] sm:%s704] %v1091
                  %v1093 = vld [vmem:[%s711 + $0x5f0] sm:%s704]
                  %1094 = vst [vmem:[%s712 + $0x2f8] sm:%s704] %v1093
                  %v1095 = vld [vmem:[%s711 + $0x5f8] sm:%s704]
                  %1096 = vst [vmem:[%s712 + $0x2fc] sm:%s704] %v1095
                  %v1097 = vld [vmem:[%s711 + $0x600] sm:%s704]
                  %1098 = vst [vmem:[%s712 + $0x300] sm:%s704] %v1097
                  %v1099 = vld [vmem:[%s711 + $0x608] sm:%s704]
                  %1100 = vst [vmem:[%s712 + $0x304] sm:%s704] %v1099
                  %v1101 = vld [vmem:[%s711 + $0x610] sm:%s704]
                  %1102 = vst [vmem:[%s712 + $0x308] sm:%s704] %v1101
                  %v1103 = vld [vmem:[%s711 + $0x618] sm:%s704]
                  %1104 = vst [vmem:[%s712 + $0x30c] sm:%s704] %v1103
                  %v1105 = vld [vmem:[%s711 + $0x620] sm:%s704]
                  %1106 = vst [vmem:[%s712 + $0x310] sm:%s704] %v1105
                  %v1107 = vld [vmem:[%s711 + $0x628] sm:%s704]
                  %1108 = vst [vmem:[%s712 + $0x314] sm:%s704] %v1107
                  %v1109 = vld [vmem:[%s711 + $0x630] sm:%s704]
                  %1110 = vst [vmem:[%s712 + $0x318] sm:%s704] %v1109
                  %v1111 = vld [vmem:[%s711 + $0x638] sm:%s704]
                  %1112 = vst [vmem:[%s712 + $0x31c] sm:%s704] %v1111
                  %v1113 = vld [vmem:[%s711 + $0x640] sm:%s704]
                  %1114 = vst [vmem:[%s712 + $0x320] sm:%s704] %v1113
                  %v1115 = vld [vmem:[%s711 + $0x648] sm:%s704]
                  %1116 = vst [vmem:[%s712 + $0x324] sm:%s704] %v1115
                  %v1117 = vld [vmem:[%s711 + $0x650] sm:%s704]
                  %1118 = vst [vmem:[%s712 + $0x328] sm:%s704] %v1117
                  %v1119 = vld [vmem:[%s711 + $0x658] sm:%s704]
                  %1120 = vst [vmem:[%s712 + $0x32c] sm:%s704] %v1119
                  %v1121 = vld [vmem:[%s711 + $0x660] sm:%s704]
                  %1122 = vst [vmem:[%s712 + $0x330] sm:%s704] %v1121
                  %v1123 = vld [vmem:[%s711 + $0x668] sm:%s704]
                  %1124 = vst [vmem:[%s712 + $0x334] sm:%s704] %v1123
                  %v1125 = vld [vmem:[%s711 + $0x670] sm:%s704]
                  %1126 = vst [vmem:[%s712 + $0x338] sm:%s704] %v1125
                  %v1127 = vld [vmem:[%s711 + $0x678] sm:%s704]
                  %1128 = vst [vmem:[%s712 + $0x33c] sm:%s704] %v1127
                  %v1129 = vld [vmem:[%s711 + $0x680] sm:%s704]
                  %1130 = vst [vmem:[%s712 + $0x340] sm:%s704] %v1129
                  %v1131 = vld [vmem:[%s711 + $0x688] sm:%s704]
                  %1132 = vst [vmem:[%s712 + $0x344] sm:%s704] %v1131
                  %v1133 = vld [vmem:[%s711 + $0x690] sm:%s704]
                  %1134 = vst [vmem:[%s712 + $0x348] sm:%s704] %v1133
                  %v1135 = vld [vmem:[%s711 + $0x698] sm:%s704]
                  %1136 = vst [vmem:[%s712 + $0x34c] sm:%s704] %v1135
                  %v1137 = vld [vmem:[%s711 + $0x6a0] sm:%s704]
                  %1138 = vst [vmem:[%s712 + $0x350] sm:%s704] %v1137
                  %v1139 = vld [vmem:[%s711 + $0x6a8] sm:%s704]
                  %1140 = vst [vmem:[%s712 + $0x354] sm:%s704] %v1139
                  %v1141 = vld [vmem:[%s711 + $0x6b0] sm:%s704]
                  %1142 = vst [vmem:[%s712 + $0x358] sm:%s704] %v1141
                  %v1143 = vld [vmem:[%s711 + $0x6b8] sm:%s704]
                  %1144 = vst [vmem:[%s712 + $0x35c] sm:%s704] %v1143
                  %v1145 = vld [vmem:[%s711 + $0x6c0] sm:%s704]
                  %1146 = vst [vmem:[%s712 + $0x360] sm:%s704] %v1145
                  %v1147 = vld [vmem:[%s711 + $0x6c8] sm:%s704]
                  %1148 = vst [vmem:[%s712 + $0x364] sm:%s704] %v1147
                  %v1149 = vld [vmem:[%s711 + $0x6d0] sm:%s704]
                  %1150 = vst [vmem:[%s712 + $0x368] sm:%s704] %v1149
                  %v1151 = vld [vmem:[%s711 + $0x6d8] sm:%s704]
                  %1152 = vst [vmem:[%s712 + $0x36c] sm:%s704] %v1151
                  %v1153 = vld [vmem:[%s711 + $0x6e0] sm:%s704]
                  %1154 = vst [vmem:[%s712 + $0x370] sm:%s704] %v1153
                  %v1155 = vld [vmem:[%s711 + $0x6e8] sm:%s704]
                  %1156 = vst [vmem:[%s712 + $0x374] sm:%s704] %v1155
                  %v1157 = vld [vmem:[%s711 + $0x6f0] sm:%s704]
                  %1158 = vst [vmem:[%s712 + $0x378] sm:%s704] %v1157
                  %v1159 = vld [vmem:[%s711 + $0x6f8] sm:%s704]
                  %1160 = vst [vmem:[%s712 + $0x37c] sm:%s704] %v1159
                  %v1161 = vld [vmem:[%s711 + $0x700] sm:%s704]
                  %1162 = vst [vmem:[%s712 + $0x380] sm:%s704] %v1161
                  %v1163 = vld [vmem:[%s711 + $0x708] sm:%s704]
                  %1164 = vst [vmem:[%s712 + $0x384] sm:%s704] %v1163
                  %v1165 = vld [vmem:[%s711 + $0x710] sm:%s704]
                  %1166 = vst [vmem:[%s712 + $0x388] sm:%s704] %v1165
                  %v1167 = vld [vmem:[%s711 + $0x718] sm:%s704]
                  %1168 = vst [vmem:[%s712 + $0x38c] sm:%s704] %v1167
                  %v1169 = vld [vmem:[%s711 + $0x720] sm:%s704]
                  %1170 = vst [vmem:[%s712 + $0x390] sm:%s704] %v1169
                  %v1171 = vld [vmem:[%s711 + $0x728] sm:%s704]
                  %1172 = vst [vmem:[%s712 + $0x394] sm:%s704] %v1171
                  %v1173 = vld [vmem:[%s711 + $0x730] sm:%s704]
                  %1174 = vst [vmem:[%s712 + $0x398] sm:%s704] %v1173
                  %v1175 = vld [vmem:[%s711 + $0x738] sm:%s704]
                  %1176 = vst [vmem:[%s712 + $0x39c] sm:%s704] %v1175
                  %v1177 = vld [vmem:[%s711 + $0x740] sm:%s704]
                  %1178 = vst [vmem:[%s712 + $0x3a0] sm:%s704] %v1177
                  %v1179 = vld [vmem:[%s711 + $0x748] sm:%s704]
                  %1180 = vst [vmem:[%s712 + $0x3a4] sm:%s704] %v1179
                  %v1181 = vld [vmem:[%s711 + $0x750] sm:%s704]
                  %1182 = vst [vmem:[%s712 + $0x3a8] sm:%s704] %v1181
                  %v1183 = vld [vmem:[%s711 + $0x758] sm:%s704]
                  %1184 = vst [vmem:[%s712 + $0x3ac] sm:%s704] %v1183
                  %v1185 = vld [vmem:[%s711 + $0x760] sm:%s704]
                  %1186 = vst [vmem:[%s712 + $0x3b0] sm:%s704] %v1185
                  %v1187 = vld [vmem:[%s711 + $0x768] sm:%s704]
                  %1188 = vst [vmem:[%s712 + $0x3b4] sm:%s704] %v1187
                  %v1189 = vld [vmem:[%s711 + $0x770] sm:%s704]
                  %1190 = vst [vmem:[%s712 + $0x3b8] sm:%s704] %v1189
                  %v1191 = vld [vmem:[%s711 + $0x778] sm:%s704]
                  %1192 = vst [vmem:[%s712 + $0x3bc] sm:%s704] %v1191
                  %v1193 = vld [vmem:[%s711 + $0x780] sm:%s704]
                  %1194 = vst [vmem:[%s712 + $0x3c0] sm:%s704] %v1193
                  %v1195 = vld [vmem:[%s711 + $0x788] sm:%s704]
                  %1196 = vst [vmem:[%s712 + $0x3c4] sm:%s704] %v1195
                  %v1197 = vld [vmem:[%s711 + $0x790] sm:%s704]
                  %1198 = vst [vmem:[%s712 + $0x3c8] sm:%s704] %v1197
                  %v1199 = vld [vmem:[%s711 + $0x798] sm:%s704]
                  %1200 = vst [vmem:[%s712 + $0x3cc] sm:%s704] %v1199
                  %v1201 = vld [vmem:[%s711 + $0x7a0] sm:%s704]
                  %1202 = vst [vmem:[%s712 + $0x3d0] sm:%s704] %v1201
                  %v1203 = vld [vmem:[%s711 + $0x7a8] sm:%s704]
                  %1204 = vst [vmem:[%s712 + $0x3d4] sm:%s704] %v1203
                  %v1205 = vld [vmem:[%s711 + $0x7b0] sm:%s704]
                  %1206 = vst [vmem:[%s712 + $0x3d8] sm:%s704] %v1205
                  %v1207 = vld [vmem:[%s711 + $0x7b8] sm:%s704]
                  %1208 = vst [vmem:[%s712 + $0x3dc] sm:%s704] %v1207
                  %v1209 = vld [vmem:[%s711 + $0x7c0] sm:%s704]
                  %1210 = vst [vmem:[%s712 + $0x3e0] sm:%s704] %v1209
                  %v1211 = vld [vmem:[%s711 + $0x7c8] sm:%s704]
                  %1212 = vst [vmem:[%s712 + $0x3e4] sm:%s704] %v1211
                  %v1213 = vld [vmem:[%s711 + $0x7d0] sm:%s704]
                  %1214 = vst [vmem:[%s712 + $0x3e8] sm:%s704] %v1213
                  %v1215 = vld [vmem:[%s711 + $0x7d8] sm:%s704]
                  %1216 = vst [vmem:[%s712 + $0x3ec] sm:%s704] %v1215
                  %v1217 = vld [vmem:[%s711 + $0x7e0] sm:%s704]
                  %1218 = vst [vmem:[%s712 + $0x3f0] sm:%s704] %v1217
                  %v1219 = vld [vmem:[%s711 + $0x7e8] sm:%s704]
                  %1220 = vst [vmem:[%s712 + $0x3f4] sm:%s704] %v1219
                  %v1221 = vld [vmem:[%s711 + $0x7f0] sm:%s704]
                  %1222 = vst [vmem:[%s712 + $0x3f8] sm:%s704] %v1221
                  %v1223 = vld [vmem:[%s711 + $0x7f8] sm:%s704]
                  %1224 = vst [vmem:[%s712 + $0x3fc] sm:%s704] %v1223
                $region59: #{percept_forward.8} parent=46 // loop_footer
                  %s710 = sadd.s32 1, %s706
                $region60: #{percept_forward.8} parent=46 // loop_footer_branch
                  %705 = sbr.rel target = $region56
                $region61: #{percept_forward.8} parent=46 // loop_exit
                  _
              $region47: #{percept_forward.8} parent=31 // pred_fallthru
                _
            $region32: #{percept_forward.8} parent=27 // pred_fallthru
              _
            // Predicated region
            $region33: #{percept_forward.8} parent=27 // pred_check
              _
            $region34: #{percept_forward.8} parent=27 // pred_check_branch
              %170 = sbr.rel (0) target = $region36
            $region35: #{percept_forward.8} parent=27 // pred_region
              %s172 = ssub.s32 16, 1
              loop: start=0, step=1, limit=1
              $region37: #{percept_forward.8} parent=35 // loop_pre_header
                _
              $region38: #{percept_forward.8} parent=35 // loop_header
                %s174 = sphi 0, %s178
                %p175 = scmp.ge.s32.totalorder %s174, 1
                %s179 = sphi %s164, %s164
                %s180 = sphi %s162, %s162
              $region39: #{percept_forward.8} parent=35 // loop_header_branch
                %177 = sbr.rel (%p175) target = $region43
              $region40: #{percept_forward.8} parent=35 // loop_body
                %v181 = vld [vmem:[%s179] sm:%s172]
                %182 = vst [vmem:[%s180] sm:%s172] %v181
                %v183 = vld [vmem:[%s179 + $0x8] sm:%s172]
                %184 = vst [vmem:[%s180 + $0x4] sm:%s172] %v183
                %v185 = vld [vmem:[%s179 + $0x10] sm:%s172]
                %186 = vst [vmem:[%s180 + $0x8] sm:%s172] %v185
                %v187 = vld [vmem:[%s179 + $0x18] sm:%s172]
                %188 = vst [vmem:[%s180 + $0xc] sm:%s172] %v187
                %v189 = vld [vmem:[%s179 + $0x20] sm:%s172]
                %190 = vst [vmem:[%s180 + $0x10] sm:%s172] %v189
                %v191 = vld [vmem:[%s179 + $0x28] sm:%s172]
                %192 = vst [vmem:[%s180 + $0x14] sm:%s172] %v191
                %v193 = vld [vmem:[%s179 + $0x30] sm:%s172]
                %194 = vst [vmem:[%s180 + $0x18] sm:%s172] %v193
                %v195 = vld [vmem:[%s179 + $0x38] sm:%s172]
                %196 = vst [vmem:[%s180 + $0x1c] sm:%s172] %v195
                %v197 = vld [vmem:[%s179 + $0x40] sm:%s172]
                %198 = vst [vmem:[%s180 + $0x20] sm:%s172] %v197
                %v199 = vld [vmem:[%s179 + $0x48] sm:%s172]
                %200 = vst [vmem:[%s180 + $0x24] sm:%s172] %v199
                %v201 = vld [vmem:[%s179 + $0x50] sm:%s172]
                %202 = vst [vmem:[%s180 + $0x28] sm:%s172] %v201
                %v203 = vld [vmem:[%s179 + $0x58] sm:%s172]
                %204 = vst [vmem:[%s180 + $0x2c] sm:%s172] %v203
                %v205 = vld [vmem:[%s179 + $0x60] sm:%s172]
                %206 = vst [vmem:[%s180 + $0x30] sm:%s172] %v205
                %v207 = vld [vmem:[%s179 + $0x68] sm:%s172]
                %208 = vst [vmem:[%s180 + $0x34] sm:%s172] %v207
                %v209 = vld [vmem:[%s179 + $0x70] sm:%s172]
                %210 = vst [vmem:[%s180 + $0x38] sm:%s172] %v209
                %v211 = vld [vmem:[%s179 + $0x78] sm:%s172]
                %212 = vst [vmem:[%s180 + $0x3c] sm:%s172] %v211
                %v213 = vld [vmem:[%s179 + $0x80] sm:%s172]
                %214 = vst [vmem:[%s180 + $0x40] sm:%s172] %v213
                %v215 = vld [vmem:[%s179 + $0x88] sm:%s172]
                %216 = vst [vmem:[%s180 + $0x44] sm:%s172] %v215
                %v217 = vld [vmem:[%s179 + $0x90] sm:%s172]
                %218 = vst [vmem:[%s180 + $0x48] sm:%s172] %v217
                %v219 = vld [vmem:[%s179 + $0x98] sm:%s172]
                %220 = vst [vmem:[%s180 + $0x4c] sm:%s172] %v219
                %v221 = vld [vmem:[%s179 + $0xa0] sm:%s172]
                %222 = vst [vmem:[%s180 + $0x50] sm:%s172] %v221
                %v223 = vld [vmem:[%s179 + $0xa8] sm:%s172]
                %224 = vst [vmem:[%s180 + $0x54] sm:%s172] %v223
                %v225 = vld [vmem:[%s179 + $0xb0] sm:%s172]
                %226 = vst [vmem:[%s180 + $0x58] sm:%s172] %v225
                %v227 = vld [vmem:[%s179 + $0xb8] sm:%s172]
                %228 = vst [vmem:[%s180 + $0x5c] sm:%s172] %v227
                %v229 = vld [vmem:[%s179 + $0xc0] sm:%s172]
                %230 = vst [vmem:[%s180 + $0x60] sm:%s172] %v229
                %v231 = vld [vmem:[%s179 + $0xc8] sm:%s172]
                %232 = vst [vmem:[%s180 + $0x64] sm:%s172] %v231
                %v233 = vld [vmem:[%s179 + $0xd0] sm:%s172]
                %234 = vst [vmem:[%s180 + $0x68] sm:%s172] %v233
                %v235 = vld [vmem:[%s179 + $0xd8] sm:%s172]
                %236 = vst [vmem:[%s180 + $0x6c] sm:%s172] %v235
                %v237 = vld [vmem:[%s179 + $0xe0] sm:%s172]
                %238 = vst [vmem:[%s180 + $0x70] sm:%s172] %v237
                %v239 = vld [vmem:[%s179 + $0xe8] sm:%s172]
                %240 = vst [vmem:[%s180 + $0x74] sm:%s172] %v239
                %v241 = vld [vmem:[%s179 + $0xf0] sm:%s172]
                %242 = vst [vmem:[%s180 + $0x78] sm:%s172] %v241
                %v243 = vld [vmem:[%s179 + $0xf8] sm:%s172]
                %244 = vst [vmem:[%s180 + $0x7c] sm:%s172] %v243
                %v245 = vld [vmem:[%s179 + $0x100] sm:%s172]
                %246 = vst [vmem:[%s180 + $0x80] sm:%s172] %v245
                %v247 = vld [vmem:[%s179 + $0x108] sm:%s172]
                %248 = vst [vmem:[%s180 + $0x84] sm:%s172] %v247
                %v249 = vld [vmem:[%s179 + $0x110] sm:%s172]
                %250 = vst [vmem:[%s180 + $0x88] sm:%s172] %v249
                %v251 = vld [vmem:[%s179 + $0x118] sm:%s172]
                %252 = vst [vmem:[%s180 + $0x8c] sm:%s172] %v251
                %v253 = vld [vmem:[%s179 + $0x120] sm:%s172]
                %254 = vst [vmem:[%s180 + $0x90] sm:%s172] %v253
                %v255 = vld [vmem:[%s179 + $0x128] sm:%s172]
                %256 = vst [vmem:[%s180 + $0x94] sm:%s172] %v255
                %v257 = vld [vmem:[%s179 + $0x130] sm:%s172]
                %258 = vst [vmem:[%s180 + $0x98] sm:%s172] %v257
                %v259 = vld [vmem:[%s179 + $0x138] sm:%s172]
                %260 = vst [vmem:[%s180 + $0x9c] sm:%s172] %v259
                %v261 = vld [vmem:[%s179 + $0x140] sm:%s172]
                %262 = vst [vmem:[%s180 + $0xa0] sm:%s172] %v261
                %v263 = vld [vmem:[%s179 + $0x148] sm:%s172]
                %264 = vst [vmem:[%s180 + $0xa4] sm:%s172] %v263
                %v265 = vld [vmem:[%s179 + $0x150] sm:%s172]
                %266 = vst [vmem:[%s180 + $0xa8] sm:%s172] %v265
                %v267 = vld [vmem:[%s179 + $0x158] sm:%s172]
                %268 = vst [vmem:[%s180 + $0xac] sm:%s172] %v267
                %v269 = vld [vmem:[%s179 + $0x160] sm:%s172]
                %270 = vst [vmem:[%s180 + $0xb0] sm:%s172] %v269
                %v271 = vld [vmem:[%s179 + $0x168] sm:%s172]
                %272 = vst [vmem:[%s180 + $0xb4] sm:%s172] %v271
                %v273 = vld [vmem:[%s179 + $0x170] sm:%s172]
                %274 = vst [vmem:[%s180 + $0xb8] sm:%s172] %v273
                %v275 = vld [vmem:[%s179 + $0x178] sm:%s172]
                %276 = vst [vmem:[%s180 + $0xbc] sm:%s172] %v275
                %v277 = vld [vmem:[%s179 + $0x180] sm:%s172]
                %278 = vst [vmem:[%s180 + $0xc0] sm:%s172] %v277
                %v279 = vld [vmem:[%s179 + $0x188] sm:%s172]
                %280 = vst [vmem:[%s180 + $0xc4] sm:%s172] %v279
                %v281 = vld [vmem:[%s179 + $0x190] sm:%s172]
                %282 = vst [vmem:[%s180 + $0xc8] sm:%s172] %v281
                %v283 = vld [vmem:[%s179 + $0x198] sm:%s172]
                %284 = vst [vmem:[%s180 + $0xcc] sm:%s172] %v283
                %v285 = vld [vmem:[%s179 + $0x1a0] sm:%s172]
                %286 = vst [vmem:[%s180 + $0xd0] sm:%s172] %v285
                %v287 = vld [vmem:[%s179 + $0x1a8] sm:%s172]
                %288 = vst [vmem:[%s180 + $0xd4] sm:%s172] %v287
                %v289 = vld [vmem:[%s179 + $0x1b0] sm:%s172]
                %290 = vst [vmem:[%s180 + $0xd8] sm:%s172] %v289
                %v291 = vld [vmem:[%s179 + $0x1b8] sm:%s172]
                %292 = vst [vmem:[%s180 + $0xdc] sm:%s172] %v291
                %v293 = vld [vmem:[%s179 + $0x1c0] sm:%s172]
                %294 = vst [vmem:[%s180 + $0xe0] sm:%s172] %v293
                %v295 = vld [vmem:[%s179 + $0x1c8] sm:%s172]
                %296 = vst [vmem:[%s180 + $0xe4] sm:%s172] %v295
                %v297 = vld [vmem:[%s179 + $0x1d0] sm:%s172]
                %298 = vst [vmem:[%s180 + $0xe8] sm:%s172] %v297
                %v299 = vld [vmem:[%s179 + $0x1d8] sm:%s172]
                %300 = vst [vmem:[%s180 + $0xec] sm:%s172] %v299
                %v301 = vld [vmem:[%s179 + $0x1e0] sm:%s172]
                %302 = vst [vmem:[%s180 + $0xf0] sm:%s172] %v301
                %v303 = vld [vmem:[%s179 + $0x1e8] sm:%s172]
                %304 = vst [vmem:[%s180 + $0xf4] sm:%s172] %v303
                %v305 = vld [vmem:[%s179 + $0x1f0] sm:%s172]
                %306 = vst [vmem:[%s180 + $0xf8] sm:%s172] %v305
                %v307 = vld [vmem:[%s179 + $0x1f8] sm:%s172]
                %308 = vst [vmem:[%s180 + $0xfc] sm:%s172] %v307
                %v309 = vld [vmem:[%s179 + $0x200] sm:%s172]
                %310 = vst [vmem:[%s180 + $0x100] sm:%s172] %v309
                %v311 = vld [vmem:[%s179 + $0x208] sm:%s172]
                %312 = vst [vmem:[%s180 + $0x104] sm:%s172] %v311
                %v313 = vld [vmem:[%s179 + $0x210] sm:%s172]
                %314 = vst [vmem:[%s180 + $0x108] sm:%s172] %v313
                %v315 = vld [vmem:[%s179 + $0x218] sm:%s172]
                %316 = vst [vmem:[%s180 + $0x10c] sm:%s172] %v315
                %v317 = vld [vmem:[%s179 + $0x220] sm:%s172]
                %318 = vst [vmem:[%s180 + $0x110] sm:%s172] %v317
                %v319 = vld [vmem:[%s179 + $0x228] sm:%s172]
                %320 = vst [vmem:[%s180 + $0x114] sm:%s172] %v319
                %v321 = vld [vmem:[%s179 + $0x230] sm:%s172]
                %322 = vst [vmem:[%s180 + $0x118] sm:%s172] %v321
                %v323 = vld [vmem:[%s179 + $0x238] sm:%s172]
                %324 = vst [vmem:[%s180 + $0x11c] sm:%s172] %v323
                %v325 = vld [vmem:[%s179 + $0x240] sm:%s172]
                %326 = vst [vmem:[%s180 + $0x120] sm:%s172] %v325
                %v327 = vld [vmem:[%s179 + $0x248] sm:%s172]
                %328 = vst [vmem:[%s180 + $0x124] sm:%s172] %v327
                %v329 = vld [vmem:[%s179 + $0x250] sm:%s172]
                %330 = vst [vmem:[%s180 + $0x128] sm:%s172] %v329
                %v331 = vld [vmem:[%s179 + $0x258] sm:%s172]
                %332 = vst [vmem:[%s180 + $0x12c] sm:%s172] %v331
                %v333 = vld [vmem:[%s179 + $0x260] sm:%s172]
                %334 = vst [vmem:[%s180 + $0x130] sm:%s172] %v333
                %v335 = vld [vmem:[%s179 + $0x268] sm:%s172]
                %336 = vst [vmem:[%s180 + $0x134] sm:%s172] %v335
                %v337 = vld [vmem:[%s179 + $0x270] sm:%s172]
                %338 = vst [vmem:[%s180 + $0x138] sm:%s172] %v337
                %v339 = vld [vmem:[%s179 + $0x278] sm:%s172]
                %340 = vst [vmem:[%s180 + $0x13c] sm:%s172] %v339
                %v341 = vld [vmem:[%s179 + $0x280] sm:%s172]
                %342 = vst [vmem:[%s180 + $0x140] sm:%s172] %v341
                %v343 = vld [vmem:[%s179 + $0x288] sm:%s172]
                %344 = vst [vmem:[%s180 + $0x144] sm:%s172] %v343
                %v345 = vld [vmem:[%s179 + $0x290] sm:%s172]
                %346 = vst [vmem:[%s180 + $0x148] sm:%s172] %v345
                %v347 = vld [vmem:[%s179 + $0x298] sm:%s172]
                %348 = vst [vmem:[%s180 + $0x14c] sm:%s172] %v347
                %v349 = vld [vmem:[%s179 + $0x2a0] sm:%s172]
                %350 = vst [vmem:[%s180 + $0x150] sm:%s172] %v349
                %v351 = vld [vmem:[%s179 + $0x2a8] sm:%s172]
                %352 = vst [vmem:[%s180 + $0x154] sm:%s172] %v351
                %v353 = vld [vmem:[%s179 + $0x2b0] sm:%s172]
                %354 = vst [vmem:[%s180 + $0x158] sm:%s172] %v353
                %v355 = vld [vmem:[%s179 + $0x2b8] sm:%s172]
                %356 = vst [vmem:[%s180 + $0x15c] sm:%s172] %v355
                %v357 = vld [vmem:[%s179 + $0x2c0] sm:%s172]
                %358 = vst [vmem:[%s180 + $0x160] sm:%s172] %v357
                %v359 = vld [vmem:[%s179 + $0x2c8] sm:%s172]
                %360 = vst [vmem:[%s180 + $0x164] sm:%s172] %v359
                %v361 = vld [vmem:[%s179 + $0x2d0] sm:%s172]
                %362 = vst [vmem:[%s180 + $0x168] sm:%s172] %v361
                %v363 = vld [vmem:[%s179 + $0x2d8] sm:%s172]
                %364 = vst [vmem:[%s180 + $0x16c] sm:%s172] %v363
                %v365 = vld [vmem:[%s179 + $0x2e0] sm:%s172]
                %366 = vst [vmem:[%s180 + $0x170] sm:%s172] %v365
                %v367 = vld [vmem:[%s179 + $0x2e8] sm:%s172]
                %368 = vst [vmem:[%s180 + $0x174] sm:%s172] %v367
                %v369 = vld [vmem:[%s179 + $0x2f0] sm:%s172]
                %370 = vst [vmem:[%s180 + $0x178] sm:%s172] %v369
                %v371 = vld [vmem:[%s179 + $0x2f8] sm:%s172]
                %372 = vst [vmem:[%s180 + $0x17c] sm:%s172] %v371
                %v373 = vld [vmem:[%s179 + $0x300] sm:%s172]
                %374 = vst [vmem:[%s180 + $0x180] sm:%s172] %v373
                %v375 = vld [vmem:[%s179 + $0x308] sm:%s172]
                %376 = vst [vmem:[%s180 + $0x184] sm:%s172] %v375
                %v377 = vld [vmem:[%s179 + $0x310] sm:%s172]
                %378 = vst [vmem:[%s180 + $0x188] sm:%s172] %v377
                %v379 = vld [vmem:[%s179 + $0x318] sm:%s172]
                %380 = vst [vmem:[%s180 + $0x18c] sm:%s172] %v379
                %v381 = vld [vmem:[%s179 + $0x320] sm:%s172]
                %382 = vst [vmem:[%s180 + $0x190] sm:%s172] %v381
                %v383 = vld [vmem:[%s179 + $0x328] sm:%s172]
                %384 = vst [vmem:[%s180 + $0x194] sm:%s172] %v383
                %v385 = vld [vmem:[%s179 + $0x330] sm:%s172]
                %386 = vst [vmem:[%s180 + $0x198] sm:%s172] %v385
                %v387 = vld [vmem:[%s179 + $0x338] sm:%s172]
                %388 = vst [vmem:[%s180 + $0x19c] sm:%s172] %v387
                %v389 = vld [vmem:[%s179 + $0x340] sm:%s172]
                %390 = vst [vmem:[%s180 + $0x1a0] sm:%s172] %v389
                %v391 = vld [vmem:[%s179 + $0x348] sm:%s172]
                %392 = vst [vmem:[%s180 + $0x1a4] sm:%s172] %v391
                %v393 = vld [vmem:[%s179 + $0x350] sm:%s172]
                %394 = vst [vmem:[%s180 + $0x1a8] sm:%s172] %v393
                %v395 = vld [vmem:[%s179 + $0x358] sm:%s172]
                %396 = vst [vmem:[%s180 + $0x1ac] sm:%s172] %v395
                %v397 = vld [vmem:[%s179 + $0x360] sm:%s172]
                %398 = vst [vmem:[%s180 + $0x1b0] sm:%s172] %v397
                %v399 = vld [vmem:[%s179 + $0x368] sm:%s172]
                %400 = vst [vmem:[%s180 + $0x1b4] sm:%s172] %v399
                %v401 = vld [vmem:[%s179 + $0x370] sm:%s172]
                %402 = vst [vmem:[%s180 + $0x1b8] sm:%s172] %v401
                %v403 = vld [vmem:[%s179 + $0x378] sm:%s172]
                %404 = vst [vmem:[%s180 + $0x1bc] sm:%s172] %v403
                %v405 = vld [vmem:[%s179 + $0x380] sm:%s172]
                %406 = vst [vmem:[%s180 + $0x1c0] sm:%s172] %v405
                %v407 = vld [vmem:[%s179 + $0x388] sm:%s172]
                %408 = vst [vmem:[%s180 + $0x1c4] sm:%s172] %v407
                %v409 = vld [vmem:[%s179 + $0x390] sm:%s172]
                %410 = vst [vmem:[%s180 + $0x1c8] sm:%s172] %v409
                %v411 = vld [vmem:[%s179 + $0x398] sm:%s172]
                %412 = vst [vmem:[%s180 + $0x1cc] sm:%s172] %v411
                %v413 = vld [vmem:[%s179 + $0x3a0] sm:%s172]
                %414 = vst [vmem:[%s180 + $0x1d0] sm:%s172] %v413
                %v415 = vld [vmem:[%s179 + $0x3a8] sm:%s172]
                %416 = vst [vmem:[%s180 + $0x1d4] sm:%s172] %v415
                %v417 = vld [vmem:[%s179 + $0x3b0] sm:%s172]
                %418 = vst [vmem:[%s180 + $0x1d8] sm:%s172] %v417
                %v419 = vld [vmem:[%s179 + $0x3b8] sm:%s172]
                %420 = vst [vmem:[%s180 + $0x1dc] sm:%s172] %v419
                %v421 = vld [vmem:[%s179 + $0x3c0] sm:%s172]
                %422 = vst [vmem:[%s180 + $0x1e0] sm:%s172] %v421
                %v423 = vld [vmem:[%s179 + $0x3c8] sm:%s172]
                %424 = vst [vmem:[%s180 + $0x1e4] sm:%s172] %v423
                %v425 = vld [vmem:[%s179 + $0x3d0] sm:%s172]
                %426 = vst [vmem:[%s180 + $0x1e8] sm:%s172] %v425
                %v427 = vld [vmem:[%s179 + $0x3d8] sm:%s172]
                %428 = vst [vmem:[%s180 + $0x1ec] sm:%s172] %v427
                %v429 = vld [vmem:[%s179 + $0x3e0] sm:%s172]
                %430 = vst [vmem:[%s180 + $0x1f0] sm:%s172] %v429
                %v431 = vld [vmem:[%s179 + $0x3e8] sm:%s172]
                %432 = vst [vmem:[%s180 + $0x1f4] sm:%s172] %v431
                %v433 = vld [vmem:[%s179 + $0x3f0] sm:%s172]
                %434 = vst [vmem:[%s180 + $0x1f8] sm:%s172] %v433
                %v435 = vld [vmem:[%s179 + $0x3f8] sm:%s172]
                %436 = vst [vmem:[%s180 + $0x1fc] sm:%s172] %v435
                %v437 = vld [vmem:[%s179 + $0x400] sm:%s172]
                %438 = vst [vmem:[%s180 + $0x200] sm:%s172] %v437
                %v439 = vld [vmem:[%s179 + $0x408] sm:%s172]
                %440 = vst [vmem:[%s180 + $0x204] sm:%s172] %v439
                %v441 = vld [vmem:[%s179 + $0x410] sm:%s172]
                %442 = vst [vmem:[%s180 + $0x208] sm:%s172] %v441
                %v443 = vld [vmem:[%s179 + $0x418] sm:%s172]
                %444 = vst [vmem:[%s180 + $0x20c] sm:%s172] %v443
                %v445 = vld [vmem:[%s179 + $0x420] sm:%s172]
                %446 = vst [vmem:[%s180 + $0x210] sm:%s172] %v445
                %v447 = vld [vmem:[%s179 + $0x428] sm:%s172]
                %448 = vst [vmem:[%s180 + $0x214] sm:%s172] %v447
                %v449 = vld [vmem:[%s179 + $0x430] sm:%s172]
                %450 = vst [vmem:[%s180 + $0x218] sm:%s172] %v449
                %v451 = vld [vmem:[%s179 + $0x438] sm:%s172]
                %452 = vst [vmem:[%s180 + $0x21c] sm:%s172] %v451
                %v453 = vld [vmem:[%s179 + $0x440] sm:%s172]
                %454 = vst [vmem:[%s180 + $0x220] sm:%s172] %v453
                %v455 = vld [vmem:[%s179 + $0x448] sm:%s172]
                %456 = vst [vmem:[%s180 + $0x224] sm:%s172] %v455
                %v457 = vld [vmem:[%s179 + $0x450] sm:%s172]
                %458 = vst [vmem:[%s180 + $0x228] sm:%s172] %v457
                %v459 = vld [vmem:[%s179 + $0x458] sm:%s172]
                %460 = vst [vmem:[%s180 + $0x22c] sm:%s172] %v459
                %v461 = vld [vmem:[%s179 + $0x460] sm:%s172]
                %462 = vst [vmem:[%s180 + $0x230] sm:%s172] %v461
                %v463 = vld [vmem:[%s179 + $0x468] sm:%s172]
                %464 = vst [vmem:[%s180 + $0x234] sm:%s172] %v463
                %v465 = vld [vmem:[%s179 + $0x470] sm:%s172]
                %466 = vst [vmem:[%s180 + $0x238] sm:%s172] %v465
                %v467 = vld [vmem:[%s179 + $0x478] sm:%s172]
                %468 = vst [vmem:[%s180 + $0x23c] sm:%s172] %v467
                %v469 = vld [vmem:[%s179 + $0x480] sm:%s172]
                %470 = vst [vmem:[%s180 + $0x240] sm:%s172] %v469
                %v471 = vld [vmem:[%s179 + $0x488] sm:%s172]
                %472 = vst [vmem:[%s180 + $0x244] sm:%s172] %v471
                %v473 = vld [vmem:[%s179 + $0x490] sm:%s172]
                %474 = vst [vmem:[%s180 + $0x248] sm:%s172] %v473
                %v475 = vld [vmem:[%s179 + $0x498] sm:%s172]
                %476 = vst [vmem:[%s180 + $0x24c] sm:%s172] %v475
                %v477 = vld [vmem:[%s179 + $0x4a0] sm:%s172]
                %478 = vst [vmem:[%s180 + $0x250] sm:%s172] %v477
                %v479 = vld [vmem:[%s179 + $0x4a8] sm:%s172]
                %480 = vst [vmem:[%s180 + $0x254] sm:%s172] %v479
                %v481 = vld [vmem:[%s179 + $0x4b0] sm:%s172]
                %482 = vst [vmem:[%s180 + $0x258] sm:%s172] %v481
                %v483 = vld [vmem:[%s179 + $0x4b8] sm:%s172]
                %484 = vst [vmem:[%s180 + $0x25c] sm:%s172] %v483
                %v485 = vld [vmem:[%s179 + $0x4c0] sm:%s172]
                %486 = vst [vmem:[%s180 + $0x260] sm:%s172] %v485
                %v487 = vld [vmem:[%s179 + $0x4c8] sm:%s172]
                %488 = vst [vmem:[%s180 + $0x264] sm:%s172] %v487
                %v489 = vld [vmem:[%s179 + $0x4d0] sm:%s172]
                %490 = vst [vmem:[%s180 + $0x268] sm:%s172] %v489
                %v491 = vld [vmem:[%s179 + $0x4d8] sm:%s172]
                %492 = vst [vmem:[%s180 + $0x26c] sm:%s172] %v491
                %v493 = vld [vmem:[%s179 + $0x4e0] sm:%s172]
                %494 = vst [vmem:[%s180 + $0x270] sm:%s172] %v493
                %v495 = vld [vmem:[%s179 + $0x4e8] sm:%s172]
                %496 = vst [vmem:[%s180 + $0x274] sm:%s172] %v495
                %v497 = vld [vmem:[%s179 + $0x4f0] sm:%s172]
                %498 = vst [vmem:[%s180 + $0x278] sm:%s172] %v497
                %v499 = vld [vmem:[%s179 + $0x4f8] sm:%s172]
                %500 = vst [vmem:[%s180 + $0x27c] sm:%s172] %v499
                %v501 = vld [vmem:[%s179 + $0x500] sm:%s172]
                %502 = vst [vmem:[%s180 + $0x280] sm:%s172] %v501
                %v503 = vld [vmem:[%s179 + $0x508] sm:%s172]
                %504 = vst [vmem:[%s180 + $0x284] sm:%s172] %v503
                %v505 = vld [vmem:[%s179 + $0x510] sm:%s172]
                %506 = vst [vmem:[%s180 + $0x288] sm:%s172] %v505
                %v507 = vld [vmem:[%s179 + $0x518] sm:%s172]
                %508 = vst [vmem:[%s180 + $0x28c] sm:%s172] %v507
                %v509 = vld [vmem:[%s179 + $0x520] sm:%s172]
                %510 = vst [vmem:[%s180 + $0x290] sm:%s172] %v509
                %v511 = vld [vmem:[%s179 + $0x528] sm:%s172]
                %512 = vst [vmem:[%s180 + $0x294] sm:%s172] %v511
                %v513 = vld [vmem:[%s179 + $0x530] sm:%s172]
                %514 = vst [vmem:[%s180 + $0x298] sm:%s172] %v513
                %v515 = vld [vmem:[%s179 + $0x538] sm:%s172]
                %516 = vst [vmem:[%s180 + $0x29c] sm:%s172] %v515
                %v517 = vld [vmem:[%s179 + $0x540] sm:%s172]
                %518 = vst [vmem:[%s180 + $0x2a0] sm:%s172] %v517
                %v519 = vld [vmem:[%s179 + $0x548] sm:%s172]
                %520 = vst [vmem:[%s180 + $0x2a4] sm:%s172] %v519
                %v521 = vld [vmem:[%s179 + $0x550] sm:%s172]
                %522 = vst [vmem:[%s180 + $0x2a8] sm:%s172] %v521
                %v523 = vld [vmem:[%s179 + $0x558] sm:%s172]
                %524 = vst [vmem:[%s180 + $0x2ac] sm:%s172] %v523
                %v525 = vld [vmem:[%s179 + $0x560] sm:%s172]
                %526 = vst [vmem:[%s180 + $0x2b0] sm:%s172] %v525
                %v527 = vld [vmem:[%s179 + $0x568] sm:%s172]
                %528 = vst [vmem:[%s180 + $0x2b4] sm:%s172] %v527
                %v529 = vld [vmem:[%s179 + $0x570] sm:%s172]
                %530 = vst [vmem:[%s180 + $0x2b8] sm:%s172] %v529
                %v531 = vld [vmem:[%s179 + $0x578] sm:%s172]
                %532 = vst [vmem:[%s180 + $0x2bc] sm:%s172] %v531
                %v533 = vld [vmem:[%s179 + $0x580] sm:%s172]
                %534 = vst [vmem:[%s180 + $0x2c0] sm:%s172] %v533
                %v535 = vld [vmem:[%s179 + $0x588] sm:%s172]
                %536 = vst [vmem:[%s180 + $0x2c4] sm:%s172] %v535
                %v537 = vld [vmem:[%s179 + $0x590] sm:%s172]
                %538 = vst [vmem:[%s180 + $0x2c8] sm:%s172] %v537
                %v539 = vld [vmem:[%s179 + $0x598] sm:%s172]
                %540 = vst [vmem:[%s180 + $0x2cc] sm:%s172] %v539
                %v541 = vld [vmem:[%s179 + $0x5a0] sm:%s172]
                %542 = vst [vmem:[%s180 + $0x2d0] sm:%s172] %v541
                %v543 = vld [vmem:[%s179 + $0x5a8] sm:%s172]
                %544 = vst [vmem:[%s180 + $0x2d4] sm:%s172] %v543
                %v545 = vld [vmem:[%s179 + $0x5b0] sm:%s172]
                %546 = vst [vmem:[%s180 + $0x2d8] sm:%s172] %v545
                %v547 = vld [vmem:[%s179 + $0x5b8] sm:%s172]
                %548 = vst [vmem:[%s180 + $0x2dc] sm:%s172] %v547
                %v549 = vld [vmem:[%s179 + $0x5c0] sm:%s172]
                %550 = vst [vmem:[%s180 + $0x2e0] sm:%s172] %v549
                %v551 = vld [vmem:[%s179 + $0x5c8] sm:%s172]
                %552 = vst [vmem:[%s180 + $0x2e4] sm:%s172] %v551
                %v553 = vld [vmem:[%s179 + $0x5d0] sm:%s172]
                %554 = vst [vmem:[%s180 + $0x2e8] sm:%s172] %v553
                %v555 = vld [vmem:[%s179 + $0x5d8] sm:%s172]
                %556 = vst [vmem:[%s180 + $0x2ec] sm:%s172] %v555
                %v557 = vld [vmem:[%s179 + $0x5e0] sm:%s172]
                %558 = vst [vmem:[%s180 + $0x2f0] sm:%s172] %v557
                %v559 = vld [vmem:[%s179 + $0x5e8] sm:%s172]
                %560 = vst [vmem:[%s180 + $0x2f4] sm:%s172] %v559
                %v561 = vld [vmem:[%s179 + $0x5f0] sm:%s172]
                %562 = vst [vmem:[%s180 + $0x2f8] sm:%s172] %v561
                %v563 = vld [vmem:[%s179 + $0x5f8] sm:%s172]
                %564 = vst [vmem:[%s180 + $0x2fc] sm:%s172] %v563
                %v565 = vld [vmem:[%s179 + $0x600] sm:%s172]
                %566 = vst [vmem:[%s180 + $0x300] sm:%s172] %v565
                %v567 = vld [vmem:[%s179 + $0x608] sm:%s172]
                %568 = vst [vmem:[%s180 + $0x304] sm:%s172] %v567
                %v569 = vld [vmem:[%s179 + $0x610] sm:%s172]
                %570 = vst [vmem:[%s180 + $0x308] sm:%s172] %v569
                %v571 = vld [vmem:[%s179 + $0x618] sm:%s172]
                %572 = vst [vmem:[%s180 + $0x30c] sm:%s172] %v571
                %v573 = vld [vmem:[%s179 + $0x620] sm:%s172]
                %574 = vst [vmem:[%s180 + $0x310] sm:%s172] %v573
                %v575 = vld [vmem:[%s179 + $0x628] sm:%s172]
                %576 = vst [vmem:[%s180 + $0x314] sm:%s172] %v575
                %v577 = vld [vmem:[%s179 + $0x630] sm:%s172]
                %578 = vst [vmem:[%s180 + $0x318] sm:%s172] %v577
                %v579 = vld [vmem:[%s179 + $0x638] sm:%s172]
                %580 = vst [vmem:[%s180 + $0x31c] sm:%s172] %v579
                %v581 = vld [vmem:[%s179 + $0x640] sm:%s172]
                %582 = vst [vmem:[%s180 + $0x320] sm:%s172] %v581
                %v583 = vld [vmem:[%s179 + $0x648] sm:%s172]
                %584 = vst [vmem:[%s180 + $0x324] sm:%s172] %v583
                %v585 = vld [vmem:[%s179 + $0x650] sm:%s172]
                %586 = vst [vmem:[%s180 + $0x328] sm:%s172] %v585
                %v587 = vld [vmem:[%s179 + $0x658] sm:%s172]
                %588 = vst [vmem:[%s180 + $0x32c] sm:%s172] %v587
                %v589 = vld [vmem:[%s179 + $0x660] sm:%s172]
                %590 = vst [vmem:[%s180 + $0x330] sm:%s172] %v589
                %v591 = vld [vmem:[%s179 + $0x668] sm:%s172]
                %592 = vst [vmem:[%s180 + $0x334] sm:%s172] %v591
                %v593 = vld [vmem:[%s179 + $0x670] sm:%s172]
                %594 = vst [vmem:[%s180 + $0x338] sm:%s172] %v593
                %v595 = vld [vmem:[%s179 + $0x678] sm:%s172]
                %596 = vst [vmem:[%s180 + $0x33c] sm:%s172] %v595
                %v597 = vld [vmem:[%s179 + $0x680] sm:%s172]
                %598 = vst [vmem:[%s180 + $0x340] sm:%s172] %v597
                %v599 = vld [vmem:[%s179 + $0x688] sm:%s172]
                %600 = vst [vmem:[%s180 + $0x344] sm:%s172] %v599
                %v601 = vld [vmem:[%s179 + $0x690] sm:%s172]
                %602 = vst [vmem:[%s180 + $0x348] sm:%s172] %v601
                %v603 = vld [vmem:[%s179 + $0x698] sm:%s172]
                %604 = vst [vmem:[%s180 + $0x34c] sm:%s172] %v603
                %v605 = vld [vmem:[%s179 + $0x6a0] sm:%s172]
                %606 = vst [vmem:[%s180 + $0x350] sm:%s172] %v605
                %v607 = vld [vmem:[%s179 + $0x6a8] sm:%s172]
                %608 = vst [vmem:[%s180 + $0x354] sm:%s172] %v607
                %v609 = vld [vmem:[%s179 + $0x6b0] sm:%s172]
                %610 = vst [vmem:[%s180 + $0x358] sm:%s172] %v609
                %v611 = vld [vmem:[%s179 + $0x6b8] sm:%s172]
                %612 = vst [vmem:[%s180 + $0x35c] sm:%s172] %v611
                %v613 = vld [vmem:[%s179 + $0x6c0] sm:%s172]
                %614 = vst [vmem:[%s180 + $0x360] sm:%s172] %v613
                %v615 = vld [vmem:[%s179 + $0x6c8] sm:%s172]
                %616 = vst [vmem:[%s180 + $0x364] sm:%s172] %v615
                %v617 = vld [vmem:[%s179 + $0x6d0] sm:%s172]
                %618 = vst [vmem:[%s180 + $0x368] sm:%s172] %v617
                %v619 = vld [vmem:[%s179 + $0x6d8] sm:%s172]
                %620 = vst [vmem:[%s180 + $0x36c] sm:%s172] %v619
                %v621 = vld [vmem:[%s179 + $0x6e0] sm:%s172]
                %622 = vst [vmem:[%s180 + $0x370] sm:%s172] %v621
                %v623 = vld [vmem:[%s179 + $0x6e8] sm:%s172]
                %624 = vst [vmem:[%s180 + $0x374] sm:%s172] %v623
                %v625 = vld [vmem:[%s179 + $0x6f0] sm:%s172]
                %626 = vst [vmem:[%s180 + $0x378] sm:%s172] %v625
                %v627 = vld [vmem:[%s179 + $0x6f8] sm:%s172]
                %628 = vst [vmem:[%s180 + $0x37c] sm:%s172] %v627
                %v629 = vld [vmem:[%s179 + $0x700] sm:%s172]
                %630 = vst [vmem:[%s180 + $0x380] sm:%s172] %v629
                %v631 = vld [vmem:[%s179 + $0x708] sm:%s172]
                %632 = vst [vmem:[%s180 + $0x384] sm:%s172] %v631
                %v633 = vld [vmem:[%s179 + $0x710] sm:%s172]
                %634 = vst [vmem:[%s180 + $0x388] sm:%s172] %v633
                %v635 = vld [vmem:[%s179 + $0x718] sm:%s172]
                %636 = vst [vmem:[%s180 + $0x38c] sm:%s172] %v635
                %v637 = vld [vmem:[%s179 + $0x720] sm:%s172]
                %638 = vst [vmem:[%s180 + $0x390] sm:%s172] %v637
                %v639 = vld [vmem:[%s179 + $0x728] sm:%s172]
                %640 = vst [vmem:[%s180 + $0x394] sm:%s172] %v639
                %v641 = vld [vmem:[%s179 + $0x730] sm:%s172]
                %642 = vst [vmem:[%s180 + $0x398] sm:%s172] %v641
                %v643 = vld [vmem:[%s179 + $0x738] sm:%s172]
                %644 = vst [vmem:[%s180 + $0x39c] sm:%s172] %v643
                %v645 = vld [vmem:[%s179 + $0x740] sm:%s172]
                %646 = vst [vmem:[%s180 + $0x3a0] sm:%s172] %v645
                %v647 = vld [vmem:[%s179 + $0x748] sm:%s172]
                %648 = vst [vmem:[%s180 + $0x3a4] sm:%s172] %v647
                %v649 = vld [vmem:[%s179 + $0x750] sm:%s172]
                %650 = vst [vmem:[%s180 + $0x3a8] sm:%s172] %v649
                %v651 = vld [vmem:[%s179 + $0x758] sm:%s172]
                %652 = vst [vmem:[%s180 + $0x3ac] sm:%s172] %v651
                %v653 = vld [vmem:[%s179 + $0x760] sm:%s172]
                %654 = vst [vmem:[%s180 + $0x3b0] sm:%s172] %v653
                %v655 = vld [vmem:[%s179 + $0x768] sm:%s172]
                %656 = vst [vmem:[%s180 + $0x3b4] sm:%s172] %v655
                %v657 = vld [vmem:[%s179 + $0x770] sm:%s172]
                %658 = vst [vmem:[%s180 + $0x3b8] sm:%s172] %v657
                %v659 = vld [vmem:[%s179 + $0x778] sm:%s172]
                %660 = vst [vmem:[%s180 + $0x3bc] sm:%s172] %v659
                %v661 = vld [vmem:[%s179 + $0x780] sm:%s172]
                %662 = vst [vmem:[%s180 + $0x3c0] sm:%s172] %v661
                %v663 = vld [vmem:[%s179 + $0x788] sm:%s172]
                %664 = vst [vmem:[%s180 + $0x3c4] sm:%s172] %v663
                %v665 = vld [vmem:[%s179 + $0x790] sm:%s172]
                %666 = vst [vmem:[%s180 + $0x3c8] sm:%s172] %v665
                %v667 = vld [vmem:[%s179 + $0x798] sm:%s172]
                %668 = vst [vmem:[%s180 + $0x3cc] sm:%s172] %v667
                %v669 = vld [vmem:[%s179 + $0x7a0] sm:%s172]
                %670 = vst [vmem:[%s180 + $0x3d0] sm:%s172] %v669
                %v671 = vld [vmem:[%s179 + $0x7a8] sm:%s172]
                %672 = vst [vmem:[%s180 + $0x3d4] sm:%s172] %v671
                %v673 = vld [vmem:[%s179 + $0x7b0] sm:%s172]
                %674 = vst [vmem:[%s180 + $0x3d8] sm:%s172] %v673
                %v675 = vld [vmem:[%s179 + $0x7b8] sm:%s172]
                %676 = vst [vmem:[%s180 + $0x3dc] sm:%s172] %v675
                %v677 = vld [vmem:[%s179 + $0x7c0] sm:%s172]
                %678 = vst [vmem:[%s180 + $0x3e0] sm:%s172] %v677
                %v679 = vld [vmem:[%s179 + $0x7c8] sm:%s172]
                %680 = vst [vmem:[%s180 + $0x3e4] sm:%s172] %v679
                %v681 = vld [vmem:[%s179 + $0x7d0] sm:%s172]
                %682 = vst [vmem:[%s180 + $0x3e8] sm:%s172] %v681
                %v683 = vld [vmem:[%s179 + $0x7d8] sm:%s172]
                %684 = vst [vmem:[%s180 + $0x3ec] sm:%s172] %v683
                %v685 = vld [vmem:[%s179 + $0x7e0] sm:%s172]
                %686 = vst [vmem:[%s180 + $0x3f0] sm:%s172] %v685
                %v687 = vld [vmem:[%s179 + $0x7e8] sm:%s172]
                %688 = vst [vmem:[%s180 + $0x3f4] sm:%s172] %v687
                %v689 = vld [vmem:[%s179 + $0x7f0] sm:%s172]
                %690 = vst [vmem:[%s180 + $0x3f8] sm:%s172] %v689
                %v691 = vld [vmem:[%s179 + $0x7f8] sm:%s172]
                %692 = vst [vmem:[%s180 + $0x3fc] sm:%s172] %v691
              $region41: #{percept_forward.8} parent=35 // loop_footer
                %s178 = sadd.s32 1, %s174
              $region42: #{percept_forward.8} parent=35 // loop_footer_branch
                %173 = sbr.rel target = $region38
              $region43: #{percept_forward.8} parent=35 // loop_exit
                _
            $region36: #{percept_forward.8} parent=27 // pred_fallthru
              _
          $region28: #{percept_forward.8} parent=23 // pred_fallthru
            _
          %1225 = vnop
        $region24: #{percept_forward.8} parent=19 // pred_fallthru
          _
        // Predicated region
        $region62: #{percept_forward.8} parent=19 // pred_check
          %p1226 = pneg %p93
        $region63: #{percept_forward.8} parent=19 // pred_check_branch
          %1228 = sbr.rel (%p1226) target = $region65
        $region64: #{percept_forward.8} parent=19 // pred_region
          %p1229 = scmp.lt.s32.totalorder %s17, 1
          %s1230 = scalar_select %p1229, %s17, 1
          %s1231 = scalar_lea.vmem %s2, %s1230
        $region65: #{percept_forward.8} parent=19 // pred_fallthru
          _
      $region20: #{percept_forward.8} parent=5 // pred_fallthru
        _
      %p1232 = scmp.le.s32.totalorder 1, %s9
      %p1233 = scmp.lt.s32.totalorder %s9, 3
      %p1234 = pnand %p1232, %p1233
      %p1235 = pneg %p1234
      // Predicated region
      $region66: #{percept_forward.8} parent=5 // pred_check
        _
      $region67: #{percept_forward.8} parent=5 // pred_check_branch
        %1237 = sbr.rel (%p1234) target = $region69
      $region68: #{percept_forward.8} parent=5 // pred_region
        %s1238 = ssub.s32 %s9, 1
        %s1239 = sand.u32 %s60, 1
        %s1240 = sand.u32 %s60, 1
        %s1241 = smul.addr %s1240, 1024
        %s1242 = scalar_lea.vmem [#allocation2], %s1241
        // Predicated region
        $region70: #{percept_forward.8} parent=68 // pred_check
          %p1243 = pneg %p73
        $region71: #{percept_forward.8} parent=68 // pred_check_branch
          %1245 = sbr.rel (%p1243) target = $region73
        $region72: #{percept_forward.8} parent=68 // pred_region
          _
        $region73: #{percept_forward.8} parent=68 // pred_fallthru
          _
        %s1246 = smul.u32 2, %s18
        %p1247 = scmp.lt.s32.totalorder %s1246, 1
        %s1248 = scalar_select %p1247, %s1246, 1
        %s1249 = smul.addr %s1248, 16
        %s1250 = smul.addr %s1249, 4
        %s1251 = scalar_lea.vmem %s0, %s1250
        %p1252 = pneg %p47
        %p1253 = pneg %p44
        %s1254 = sand.u32 %s60, 1
        %s1255 = sand.u32 %s60, 1
        %s1256 = smul.addr %s1255, 1024
        %s1257 = scalar_lea.vmem [#allocation2], %s1256
        %p1258 = pneg %p73
        %p1259 = pneg %p70
        %p1260 = scmp.lt.s32.totalorder %s19, 1
        %s1261 = scalar_select %p1260, %s19, 1
        %s1262 = scalar_lea.vmem %s2, %s1261
        %p1263 = pneg %p99
        %p1264 = pneg %p96
        %p1265 = pneg %p127
        %p1266 = pneg %p124
        %s1267 = sand.u32 %s114, 1
        %s1268 = sand.u32 %s114, 1
        %s1269 = smul.addr %s1268, 8
        %s1270 = scalar_lea.vmem [#allocation3], %s1269
        %s1271 = smul.u32 2, %s18
        %p1272 = scmp.lt.s32.totalorder %s1271, 1
        %s1273 = scalar_select %p1272, %s1271, 1
        %s1274 = smul.addr %s1273, 16
        %s1275 = smul.addr %s1274, 4
        %s1276 = scalar_lea.vmem %s0, %s1275
        %s1277 = smul.u32 2, %s18
        %p1278 = scmp.lt.s32.totalorder %s19, 1
        %s1279 = scalar_select %p1278, %s19, 1
        %s1280 = scalar_lea.vmem %s2, %s1279
        %s1281 = smul.u32 2, %s18
        %v1283 = vld [vmem:[%s1276] sm:$0xff]
        %v1284 = vld [vmem:[%s1276 + $0x8] sm:$0xff]
        %v1285 = vld [vmem:[%s1276 + $0x10] sm:$0xff]
        %v1286 = vld [vmem:[%s1276 + $0x18] sm:$0xff]
        %v1287 = vld [vmem:[%s1276 + $0x20] sm:$0xff]
        %v1288 = vld [vmem:[%s1276 + $0x28] sm:$0xff]
        %v1289 = vld [vmem:[%s1276 + $0x30] sm:$0xff]
        %v1290 = vld [vmem:[%s1276 + $0x38] sm:$0xff]
        %v1291 = vld [vmem:[%s1276 + $0x40] sm:$0xff]
        %v1292 = vld [vmem:[%s1276 + $0x48] sm:$0xff]
        %v1293 = vld [vmem:[%s1276 + $0x50] sm:$0xff]
        %v1294 = vld [vmem:[%s1276 + $0x58] sm:$0xff]
        %v1295 = vld [vmem:[%s1276 + $0x60] sm:$0xff]
        %v1296 = vld [vmem:[%s1276 + $0x68] sm:$0xff]
        %v1297 = vld [vmem:[%s1276 + $0x70] sm:$0xff]
        %v1298 = vld [vmem:[%s1276 + $0x78] sm:$0xff]
        %v1299 = vld [vmem:[%s1242] sm:$0xf]
        %v1300 = vld [vmem:[%s1242 + $0x4] sm:$0xf]
        %v1301 = vld [vmem:[%s1242 + $0x8] sm:$0xf]
        %v1302 = vld [vmem:[%s1242 + $0xc] sm:$0xf]
        %v1303 = vld [vmem:[%s1242 + $0x10] sm:$0xf]
        %v1304 = vld [vmem:[%s1242 + $0x14] sm:$0xf]
        %v1305 = vld [vmem:[%s1242 + $0x18] sm:$0xf]
        %v1306 = vld [vmem:[%s1242 + $0x1c] sm:$0xf]
        %v1307 = vld [vmem:[%s1242 + $0x20] sm:$0xf]
        %v1308 = vld [vmem:[%s1242 + $0x24] sm:$0xf]
        %v1309 = vld [vmem:[%s1242 + $0x28] sm:$0xf]
        %v1310 = vld [vmem:[%s1242 + $0x2c] sm:$0xf]
        %v1311 = vld [vmem:[%s1242 + $0x30] sm:$0xf]
        %v1312 = vld [vmem:[%s1242 + $0x34] sm:$0xf]
        %v1313 = vld [vmem:[%s1242 + $0x38] sm:$0xf]
        %v1314 = vld [vmem:[%s1242 + $0x3c] sm:$0xf]
        %v1315 = vld [vmem:[%s1242 + $0x40] sm:$0xf]
        %v1316 = vld [vmem:[%s1242 + $0x44] sm:$0xf]
        %v1317 = vld [vmem:[%s1242 + $0x48] sm:$0xf]
        %v1318 = vld [vmem:[%s1242 + $0x4c] sm:$0xf]
        %v1319 = vld [vmem:[%s1242 + $0x50] sm:$0xf]
        %v1320 = vld [vmem:[%s1242 + $0x54] sm:$0xf]
        %v1321 = vld [vmem:[%s1242 + $0x58] sm:$0xf]
        %v1322 = vld [vmem:[%s1242 + $0x5c] sm:$0xf]
        %v1323 = vld [vmem:[%s1242 + $0x60] sm:$0xf]
        %v1324 = vld [vmem:[%s1242 + $0x64] sm:$0xf]
        %v1325 = vld [vmem:[%s1242 + $0x68] sm:$0xf]
        %v1326 = vld [vmem:[%s1242 + $0x6c] sm:$0xf]
        %v1327 = vld [vmem:[%s1242 + $0x70] sm:$0xf]
        %v1328 = vld [vmem:[%s1242 + $0x74] sm:$0xf]
        %v1329 = vld [vmem:[%s1242 + $0x78] sm:$0xf]
        %v1330 = vld [vmem:[%s1242 + $0x7c] sm:$0xf]
        %v1331 = vld [vmem:[%s1242 + $0x80] sm:$0xf]
        %v1332 = vld [vmem:[%s1242 + $0x84] sm:$0xf]
        %v1333 = vld [vmem:[%s1242 + $0x88] sm:$0xf]
        %v1334 = vld [vmem:[%s1242 + $0x8c] sm:$0xf]
        %v1335 = vld [vmem:[%s1242 + $0x90] sm:$0xf]
        %v1336 = vld [vmem:[%s1242 + $0x94] sm:$0xf]
        %v1337 = vld [vmem:[%s1242 + $0x98] sm:$0xf]
        %v1338 = vld [vmem:[%s1242 + $0x9c] sm:$0xf]
        %v1339 = vld [vmem:[%s1242 + $0xa0] sm:$0xf]
        %v1340 = vld [vmem:[%s1242 + $0xa4] sm:$0xf]
        %v1341 = vld [vmem:[%s1242 + $0xa8] sm:$0xf]
        %v1342 = vld [vmem:[%s1242 + $0xac] sm:$0xf]
        %v1343 = vld [vmem:[%s1242 + $0xb0] sm:$0xf]
        %v1344 = vld [vmem:[%s1242 + $0xb4] sm:$0xf]
        %v1345 = vld [vmem:[%s1242 + $0xb8] sm:$0xf]
        %v1346 = vld [vmem:[%s1242 + $0xbc] sm:$0xf]
        %v1347 = vld [vmem:[%s1242 + $0xc0] sm:$0xf]
        %v1348 = vld [vmem:[%s1242 + $0xc4] sm:$0xf]
        %v1349 = vld [vmem:[%s1242 + $0xc8] sm:$0xf]
        %v1350 = vld [vmem:[%s1242 + $0xcc] sm:$0xf]
        %v1351 = vld [vmem:[%s1242 + $0xd0] sm:$0xf]
        %v1352 = vld [vmem:[%s1242 + $0xd4] sm:$0xf]
        %v1353 = vld [vmem:[%s1242 + $0xd8] sm:$0xf]
        %v1354 = vld [vmem:[%s1242 + $0xdc] sm:$0xf]
        %v1355 = vld [vmem:[%s1242 + $0xe0] sm:$0xf]
        %v1356 = vld [vmem:[%s1242 + $0xe4] sm:$0xf]
        %v1357 = vld [vmem:[%s1242 + $0xe8] sm:$0xf]
        %v1358 = vld [vmem:[%s1242 + $0xec] sm:$0xf]
        %v1359 = vld [vmem:[%s1242 + $0xf0] sm:$0xf]
        %v1360 = vld [vmem:[%s1242 + $0xf4] sm:$0xf]
        %v1361 = vld [vmem:[%s1242 + $0xf8] sm:$0xf]
        %v1362 = vld [vmem:[%s1242 + $0xfc] sm:$0xf]
        %v1363 = vld [vmem:[%s1242 + $0x100] sm:$0xf]
        %v1364 = vld [vmem:[%s1242 + $0x104] sm:$0xf]
        %v1365 = vld [vmem:[%s1242 + $0x108] sm:$0xf]
        %v1366 = vld [vmem:[%s1242 + $0x10c] sm:$0xf]
        %v1367 = vld [vmem:[%s1242 + $0x110] sm:$0xf]
        %v1368 = vld [vmem:[%s1242 + $0x114] sm:$0xf]
        %v1369 = vld [vmem:[%s1242 + $0x118] sm:$0xf]
        %v1370 = vld [vmem:[%s1242 + $0x11c] sm:$0xf]
        %v1371 = vld [vmem:[%s1242 + $0x120] sm:$0xf]
        %v1372 = vld [vmem:[%s1242 + $0x124] sm:$0xf]
        %v1373 = vld [vmem:[%s1242 + $0x128] sm:$0xf]
        %v1374 = vld [vmem:[%s1242 + $0x12c] sm:$0xf]
        %v1375 = vld [vmem:[%s1242 + $0x130] sm:$0xf]
        %v1376 = vld [vmem:[%s1242 + $0x134] sm:$0xf]
        %v1377 = vld [vmem:[%s1242 + $0x138] sm:$0xf]
        %v1378 = vld [vmem:[%s1242 + $0x13c] sm:$0xf]
        %v1379 = vld [vmem:[%s1242 + $0x140] sm:$0xf]
        %v1380 = vld [vmem:[%s1242 + $0x144] sm:$0xf]
        %v1381 = vld [vmem:[%s1242 + $0x148] sm:$0xf]
        %v1382 = vld [vmem:[%s1242 + $0x14c] sm:$0xf]
        %v1383 = vld [vmem:[%s1242 + $0x150] sm:$0xf]
        %v1384 = vld [vmem:[%s1242 + $0x154] sm:$0xf]
        %v1385 = vld [vmem:[%s1242 + $0x158] sm:$0xf]
        %v1386 = vld [vmem:[%s1242 + $0x15c] sm:$0xf]
        %v1387 = vld [vmem:[%s1242 + $0x160] sm:$0xf]
        %v1388 = vld [vmem:[%s1242 + $0x164] sm:$0xf]
        %v1389 = vld [vmem:[%s1242 + $0x168] sm:$0xf]
        %v1390 = vld [vmem:[%s1242 + $0x16c] sm:$0xf]
        %v1391 = vld [vmem:[%s1242 + $0x170] sm:$0xf]
        %v1392 = vld [vmem:[%s1242 + $0x174] sm:$0xf]
        %v1393 = vld [vmem:[%s1242 + $0x178] sm:$0xf]
        %v1394 = vld [vmem:[%s1242 + $0x17c] sm:$0xf]
        %v1395 = vld [vmem:[%s1242 + $0x180] sm:$0xf]
        %v1396 = vld [vmem:[%s1242 + $0x184] sm:$0xf]
        %v1397 = vld [vmem:[%s1242 + $0x188] sm:$0xf]
        %v1398 = vld [vmem:[%s1242 + $0x18c] sm:$0xf]
        %v1399 = vld [vmem:[%s1242 + $0x190] sm:$0xf]
        %v1400 = vld [vmem:[%s1242 + $0x194] sm:$0xf]
        %v1401 = vld [vmem:[%s1242 + $0x198] sm:$0xf]
        %v1402 = vld [vmem:[%s1242 + $0x19c] sm:$0xf]
        %v1403 = vld [vmem:[%s1242 + $0x1a0] sm:$0xf]
        %v1404 = vld [vmem:[%s1242 + $0x1a4] sm:$0xf]
        %v1405 = vld [vmem:[%s1242 + $0x1a8] sm:$0xf]
        %v1406 = vld [vmem:[%s1242 + $0x1ac] sm:$0xf]
        %v1407 = vld [vmem:[%s1242 + $0x1b0] sm:$0xf]
        %v1408 = vld [vmem:[%s1242 + $0x1b4] sm:$0xf]
        %v1409 = vld [vmem:[%s1242 + $0x1b8] sm:$0xf]
        %v1410 = vld [vmem:[%s1242 + $0x1bc] sm:$0xf]
        %v1411 = vld [vmem:[%s1242 + $0x1c0] sm:$0xf]
        %v1412 = vld [vmem:[%s1242 + $0x1c4] sm:$0xf]
        %v1413 = vld [vmem:[%s1242 + $0x1c8] sm:$0xf]
        %v1414 = vld [vmem:[%s1242 + $0x1cc] sm:$0xf]
        %v1415 = vld [vmem:[%s1242 + $0x1d0] sm:$0xf]
        %v1416 = vld [vmem:[%s1242 + $0x1d4] sm:$0xf]
        %v1417 = vld [vmem:[%s1242 + $0x1d8] sm:$0xf]
        %v1418 = vld [vmem:[%s1242 + $0x1dc] sm:$0xf]
        %v1419 = vld [vmem:[%s1242 + $0x1e0] sm:$0xf]
        %v1420 = vld [vmem:[%s1242 + $0x1e4] sm:$0xf]
        %v1421 = vld [vmem:[%s1242 + $0x1e8] sm:$0xf]
        %v1422 = vld [vmem:[%s1242 + $0x1ec] sm:$0xf]
        %v1423 = vld [vmem:[%s1242 + $0x1f0] sm:$0xf]
        %v1424 = vld [vmem:[%s1242 + $0x1f4] sm:$0xf]
        %v1425 = vld [vmem:[%s1242 + $0x1f8] sm:$0xf]
        %v1426 = vld [vmem:[%s1242 + $0x1fc] sm:$0xf]
        %v1427 = vld [vmem:[%s1242 + $0x200] sm:$0xf]
        %v1428 = vld [vmem:[%s1242 + $0x204] sm:$0xf]
        %v1429 = vld [vmem:[%s1242 + $0x208] sm:$0xf]
        %v1430 = vld [vmem:[%s1242 + $0x20c] sm:$0xf]
        %v1431 = vld [vmem:[%s1242 + $0x210] sm:$0xf]
        %v1432 = vld [vmem:[%s1242 + $0x214] sm:$0xf]
        %v1433 = vld [vmem:[%s1242 + $0x218] sm:$0xf]
        %v1434 = vld [vmem:[%s1242 + $0x21c] sm:$0xf]
        %v1435 = vld [vmem:[%s1242 + $0x220] sm:$0xf]
        %v1436 = vld [vmem:[%s1242 + $0x224] sm:$0xf]
        %v1437 = vld [vmem:[%s1242 + $0x228] sm:$0xf]
        %v1438 = vld [vmem:[%s1242 + $0x22c] sm:$0xf]
        %v1439 = vld [vmem:[%s1242 + $0x230] sm:$0xf]
        %v1440 = vld [vmem:[%s1242 + $0x234] sm:$0xf]
        %v1441 = vld [vmem:[%s1242 + $0x238] sm:$0xf]
        %v1442 = vld [vmem:[%s1242 + $0x23c] sm:$0xf]
        %v1443 = vld [vmem:[%s1242 + $0x240] sm:$0xf]
        %v1444 = vld [vmem:[%s1242 + $0x244] sm:$0xf]
        %v1445 = vld [vmem:[%s1242 + $0x248] sm:$0xf]
        %v1446 = vld [vmem:[%s1242 + $0x24c] sm:$0xf]
        %v1447 = vld [vmem:[%s1242 + $0x250] sm:$0xf]
        %v1448 = vld [vmem:[%s1242 + $0x254] sm:$0xf]
        %v1449 = vld [vmem:[%s1242 + $0x258] sm:$0xf]
        %v1450 = vld [vmem:[%s1242 + $0x25c] sm:$0xf]
        %v1451 = vld [vmem:[%s1242 + $0x260] sm:$0xf]
        %v1452 = vld [vmem:[%s1242 + $0x264] sm:$0xf]
        %v1453 = vld [vmem:[%s1242 + $0x268] sm:$0xf]
        %v1454 = vld [vmem:[%s1242 + $0x26c] sm:$0xf]
        %v1455 = vld [vmem:[%s1242 + $0x270] sm:$0xf]
        %v1456 = vld [vmem:[%s1242 + $0x274] sm:$0xf]
        %v1457 = vld [vmem:[%s1242 + $0x278] sm:$0xf]
        %v1458 = vld [vmem:[%s1242 + $0x27c] sm:$0xf]
        %v1459 = vld [vmem:[%s1242 + $0x280] sm:$0xf]
        %v1460 = vld [vmem:[%s1242 + $0x284] sm:$0xf]
        %v1461 = vld [vmem:[%s1242 + $0x288] sm:$0xf]
        %v1462 = vld [vmem:[%s1242 + $0x28c] sm:$0xf]
        %v1463 = vld [vmem:[%s1242 + $0x290] sm:$0xf]
        %v1464 = vld [vmem:[%s1242 + $0x294] sm:$0xf]
        %v1465 = vld [vmem:[%s1242 + $0x298] sm:$0xf]
        %v1466 = vld [vmem:[%s1242 + $0x29c] sm:$0xf]
        %v1467 = vld [vmem:[%s1242 + $0x2a0] sm:$0xf]
        %v1468 = vld [vmem:[%s1242 + $0x2a4] sm:$0xf]
        %v1469 = vld [vmem:[%s1242 + $0x2a8] sm:$0xf]
        %v1470 = vld [vmem:[%s1242 + $0x2ac] sm:$0xf]
        %v1471 = vld [vmem:[%s1242 + $0x2b0] sm:$0xf]
        %v1472 = vld [vmem:[%s1242 + $0x2b4] sm:$0xf]
        %v1473 = vld [vmem:[%s1242 + $0x2b8] sm:$0xf]
        %v1474 = vld [vmem:[%s1242 + $0x2bc] sm:$0xf]
        %v1475 = vld [vmem:[%s1242 + $0x2c0] sm:$0xf]
        %v1476 = vld [vmem:[%s1242 + $0x2c4] sm:$0xf]
        %v1477 = vld [vmem:[%s1242 + $0x2c8] sm:$0xf]
        %v1478 = vld [vmem:[%s1242 + $0x2cc] sm:$0xf]
        %v1479 = vld [vmem:[%s1242 + $0x2d0] sm:$0xf]
        %v1480 = vld [vmem:[%s1242 + $0x2d4] sm:$0xf]
        %v1481 = vld [vmem:[%s1242 + $0x2d8] sm:$0xf]
        %v1482 = vld [vmem:[%s1242 + $0x2dc] sm:$0xf]
        %v1483 = vld [vmem:[%s1242 + $0x2e0] sm:$0xf]
        %v1484 = vld [vmem:[%s1242 + $0x2e4] sm:$0xf]
        %v1485 = vld [vmem:[%s1242 + $0x2e8] sm:$0xf]
        %v1486 = vld [vmem:[%s1242 + $0x2ec] sm:$0xf]
        %v1487 = vld [vmem:[%s1242 + $0x2f0] sm:$0xf]
        %v1488 = vld [vmem:[%s1242 + $0x2f4] sm:$0xf]
        %v1489 = vld [vmem:[%s1242 + $0x2f8] sm:$0xf]
        %v1490 = vld [vmem:[%s1242 + $0x2fc] sm:$0xf]
        %v1491 = vld [vmem:[%s1242 + $0x300] sm:$0xf]
        %v1492 = vld [vmem:[%s1242 + $0x304] sm:$0xf]
        %v1493 = vld [vmem:[%s1242 + $0x308] sm:$0xf]
        %v1494 = vld [vmem:[%s1242 + $0x30c] sm:$0xf]
        %v1495 = vld [vmem:[%s1242 + $0x310] sm:$0xf]
        %v1496 = vld [vmem:[%s1242 + $0x314] sm:$0xf]
        %v1497 = vld [vmem:[%s1242 + $0x318] sm:$0xf]
        %v1498 = vld [vmem:[%s1242 + $0x31c] sm:$0xf]
        %v1499 = vld [vmem:[%s1242 + $0x320] sm:$0xf]
        %v1500 = vld [vmem:[%s1242 + $0x324] sm:$0xf]
        %v1501 = vld [vmem:[%s1242 + $0x328] sm:$0xf]
        %v1502 = vld [vmem:[%s1242 + $0x32c] sm:$0xf]
        %v1503 = vld [vmem:[%s1242 + $0x330] sm:$0xf]
        %v1504 = vld [vmem:[%s1242 + $0x334] sm:$0xf]
        %v1505 = vld [vmem:[%s1242 + $0x338] sm:$0xf]
        %v1506 = vld [vmem:[%s1242 + $0x33c] sm:$0xf]
        %v1507 = vld [vmem:[%s1242 + $0x340] sm:$0xf]
        %v1508 = vld [vmem:[%s1242 + $0x344] sm:$0xf]
        %v1509 = vld [vmem:[%s1242 + $0x348] sm:$0xf]
        %v1510 = vld [vmem:[%s1242 + $0x34c] sm:$0xf]
        %v1511 = vld [vmem:[%s1242 + $0x350] sm:$0xf]
        %v1512 = vld [vmem:[%s1242 + $0x354] sm:$0xf]
        %v1513 = vld [vmem:[%s1242 + $0x358] sm:$0xf]
        %v1514 = vld [vmem:[%s1242 + $0x35c] sm:$0xf]
        %v1515 = vld [vmem:[%s1242 + $0x360] sm:$0xf]
        %v1516 = vld [vmem:[%s1242 + $0x364] sm:$0xf]
        %v1517 = vld [vmem:[%s1242 + $0x368] sm:$0xf]
        %v1518 = vld [vmem:[%s1242 + $0x36c] sm:$0xf]
        %v1519 = vld [vmem:[%s1242 + $0x370] sm:$0xf]
        %v1520 = vld [vmem:[%s1242 + $0x374] sm:$0xf]
        %v1521 = vld [vmem:[%s1242 + $0x378] sm:$0xf]
        %v1522 = vld [vmem:[%s1242 + $0x37c] sm:$0xf]
        %v1523 = vld [vmem:[%s1242 + $0x380] sm:$0xf]
        %v1524 = vld [vmem:[%s1242 + $0x384] sm:$0xf]
        %v1525 = vld [vmem:[%s1242 + $0x388] sm:$0xf]
        %v1526 = vld [vmem:[%s1242 + $0x38c] sm:$0xf]
        %v1527 = vld [vmem:[%s1242 + $0x390] sm:$0xf]
        %v1528 = vld [vmem:[%s1242 + $0x394] sm:$0xf]
        %v1529 = vld [vmem:[%s1242 + $0x398] sm:$0xf]
        %v1530 = vld [vmem:[%s1242 + $0x39c] sm:$0xf]
        %v1531 = vld [vmem:[%s1242 + $0x3a0] sm:$0xf]
        %v1532 = vld [vmem:[%s1242 + $0x3a4] sm:$0xf]
        %v1533 = vld [vmem:[%s1242 + $0x3a8] sm:$0xf]
        %v1534 = vld [vmem:[%s1242 + $0x3ac] sm:$0xf]
        %v1535 = vld [vmem:[%s1242 + $0x3b0] sm:$0xf]
        %v1536 = vld [vmem:[%s1242 + $0x3b4] sm:$0xf]
        %v1537 = vld [vmem:[%s1242 + $0x3b8] sm:$0xf]
        %v1538 = vld [vmem:[%s1242 + $0x3bc] sm:$0xf]
        %v1539 = vld [vmem:[%s1242 + $0x3c0] sm:$0xf]
        %v1540 = vld [vmem:[%s1242 + $0x3c4] sm:$0xf]
        %v1541 = vld [vmem:[%s1242 + $0x3c8] sm:$0xf]
        %v1542 = vld [vmem:[%s1242 + $0x3cc] sm:$0xf]
        %v1543 = vld [vmem:[%s1242 + $0x3d0] sm:$0xf]
        %v1544 = vld [vmem:[%s1242 + $0x3d4] sm:$0xf]
        %v1545 = vld [vmem:[%s1242 + $0x3d8] sm:$0xf]
        %v1546 = vld [vmem:[%s1242 + $0x3dc] sm:$0xf]
        %v1547 = vld [vmem:[%s1242 + $0x3e0] sm:$0xf]
        %v1548 = vld [vmem:[%s1242 + $0x3e4] sm:$0xf]
        %v1549 = vld [vmem:[%s1242 + $0x3e8] sm:$0xf]
        %v1550 = vld [vmem:[%s1242 + $0x3ec] sm:$0xf]
        %v1551 = vld [vmem:[%s1242 + $0x3f0] sm:$0xf]
        %v1552 = vld [vmem:[%s1242 + $0x3f4] sm:$0xf]
        %v1553 = vld [vmem:[%s1242 + $0x3f8] sm:$0xf]
        %v1554 = vld [vmem:[%s1242 + $0x3fc] sm:$0xf]
        %v1555 = vld [vmem:[%s1280] sm:$0x1]
        %v1557 = vlaneseq
        %v1558 = vshrl.u32 %v1557, 7
        %v1559 = vsub.s32 0, %v1558
        %v1560 = vrot.slane %v1555, %v1559
        %v1578 = vunpack.c.l.b16 %v1283
        %v1579 = vunpack.c.h.b16 %v1283
        %v1580 = vunpack.c.l.b16 %v1284
        %v1581 = vunpack.c.h.b16 %v1284
        %v1582 = vunpack.c.l.b16 %v1285
        %v1583 = vunpack.c.h.b16 %v1285
        %v1584 = vunpack.c.l.b16 %v1286
        %v1585 = vunpack.c.h.b16 %v1286
        %v1586 = vunpack.c.l.b16 %v1287
        %v1587 = vunpack.c.h.b16 %v1287
        %v1588 = vunpack.c.l.b16 %v1288
        %v1589 = vunpack.c.h.b16 %v1288
        %v1590 = vunpack.c.l.b16 %v1289
        %v1591 = vunpack.c.h.b16 %v1289
        %v1592 = vunpack.c.l.b16 %v1290
        %v1593 = vunpack.c.h.b16 %v1290
        %v1594 = vunpack.c.l.b16 %v1291
        %v1595 = vunpack.c.h.b16 %v1291
        %v1596 = vunpack.c.l.b16 %v1292
        %v1597 = vunpack.c.h.b16 %v1292
        %v1598 = vunpack.c.l.b16 %v1293
        %v1599 = vunpack.c.h.b16 %v1293
        %v1600 = vunpack.c.l.b16 %v1294
        %v1601 = vunpack.c.h.b16 %v1294
        %v1602 = vunpack.c.l.b16 %v1295
        %v1603 = vunpack.c.h.b16 %v1295
        %v1604 = vunpack.c.l.b16 %v1296
        %v1605 = vunpack.c.h.b16 %v1296
        %v1606 = vunpack.c.l.b16 %v1297
        %v1607 = vunpack.c.h.b16 %v1297
        %v1608 = vunpack.c.l.b16 %v1298
        %v1609 = vunpack.c.h.b16 %v1298
        %v1610 = vpack.c.b16 %v1594, %v1578
        %v1611 = vpack.c.b16 %v1595, %v1579
        %v1612 = vpack.c.b16 %v1596, %v1580
        %v1613 = vpack.c.b16 %v1597, %v1581
        %v1614 = vpack.c.b16 %v1598, %v1582
        %v1615 = vpack.c.b16 %v1599, %v1583
        %v1616 = vpack.c.b16 %v1600, %v1584
        %v1617 = vpack.c.b16 %v1601, %v1585
        %v1618 = vpack.c.b16 %v1602, %v1586
        %v1619 = vpack.c.b16 %v1603, %v1587
        %v1620 = vpack.c.b16 %v1604, %v1588
        %v1621 = vpack.c.b16 %v1605, %v1589
        %v1622 = vpack.c.b16 %v1606, %v1590
        %v1623 = vpack.c.b16 %v1607, %v1591
        %v1624 = vpack.c.b16 %v1608, %v1592
        %v1625 = vpack.c.b16 %v1609, %v1593
        %v1898 = vunpack.c.l.b16 %v1299
        %v1899 = vunpack.c.l.b16 %v1300
        %v1900 = vunpack.c.l.b16 %v1301
        %v1901 = vunpack.c.l.b16 %v1302
        %v1902 = vunpack.c.l.b16 %v1303
        %v1903 = vunpack.c.l.b16 %v1304
        %v1904 = vunpack.c.l.b16 %v1305
        %v1905 = vunpack.c.l.b16 %v1306
        %v1906 = vunpack.c.l.b16 %v1307
        %v1907 = vunpack.c.l.b16 %v1308
        %v1908 = vunpack.c.l.b16 %v1309
        %v1909 = vunpack.c.l.b16 %v1310
        %v1910 = vunpack.c.l.b16 %v1311
        %v1911 = vunpack.c.l.b16 %v1312
        %v1912 = vunpack.c.l.b16 %v1313
        %v1913 = vunpack.c.l.b16 %v1314
        %v1914 = vunpack.c.l.b16 %v1315
        %v1915 = vunpack.c.l.b16 %v1316
        %v1916 = vunpack.c.l.b16 %v1317
        %v1917 = vunpack.c.l.b16 %v1318
        %v1918 = vunpack.c.l.b16 %v1319
        %v1919 = vunpack.c.l.b16 %v1320
        %v1920 = vunpack.c.l.b16 %v1321
        %v1921 = vunpack.c.l.b16 %v1322
        %v1922 = vunpack.c.l.b16 %v1323
        %v1923 = vunpack.c.l.b16 %v1324
        %v1924 = vunpack.c.l.b16 %v1325
        %v1925 = vunpack.c.l.b16 %v1326
        %v1926 = vunpack.c.l.b16 %v1327
        %v1927 = vunpack.c.l.b16 %v1328
        %v1928 = vunpack.c.l.b16 %v1329
        %v1929 = vunpack.c.l.b16 %v1330
        %v1930 = vunpack.c.l.b16 %v1331
        %v1931 = vunpack.c.l.b16 %v1332
        %v1932 = vunpack.c.l.b16 %v1333
        %v1933 = vunpack.c.l.b16 %v1334
        %v1934 = vunpack.c.l.b16 %v1335
        %v1935 = vunpack.c.l.b16 %v1336
        %v1936 = vunpack.c.l.b16 %v1337
        %v1937 = vunpack.c.l.b16 %v1338
        %v1938 = vunpack.c.l.b16 %v1339
        %v1939 = vunpack.c.l.b16 %v1340
        %v1940 = vunpack.c.l.b16 %v1341
        %v1941 = vunpack.c.l.b16 %v1342
        %v1942 = vunpack.c.l.b16 %v1343
        %v1943 = vunpack.c.l.b16 %v1344
        %v1944 = vunpack.c.l.b16 %v1345
        %v1945 = vunpack.c.l.b16 %v1346
        %v1946 = vunpack.c.l.b16 %v1347
        %v1947 = vunpack.c.l.b16 %v1348
        %v1948 = vunpack.c.l.b16 %v1349
        %v1949 = vunpack.c.l.b16 %v1350
        %v1950 = vunpack.c.l.b16 %v1351
        %v1951 = vunpack.c.l.b16 %v1352
        %v1952 = vunpack.c.l.b16 %v1353
        %v1953 = vunpack.c.l.b16 %v1354
        %v1954 = vunpack.c.l.b16 %v1355
        %v1955 = vunpack.c.l.b16 %v1356
        %v1956 = vunpack.c.l.b16 %v1357
        %v1957 = vunpack.c.l.b16 %v1358
        %v1958 = vunpack.c.l.b16 %v1359
        %v1959 = vunpack.c.l.b16 %v1360
        %v1960 = vunpack.c.l.b16 %v1361
        %v1961 = vunpack.c.l.b16 %v1362
        %v1962 = vunpack.c.l.b16 %v1363
        %v1963 = vunpack.c.l.b16 %v1364
        %v1964 = vunpack.c.l.b16 %v1365
        %v1965 = vunpack.c.l.b16 %v1366
        %v1966 = vunpack.c.l.b16 %v1367
        %v1967 = vunpack.c.l.b16 %v1368
        %v1968 = vunpack.c.l.b16 %v1369
        %v1969 = vunpack.c.l.b16 %v1370
        %v1970 = vunpack.c.l.b16 %v1371
        %v1971 = vunpack.c.l.b16 %v1372
        %v1972 = vunpack.c.l.b16 %v1373
        %v1973 = vunpack.c.l.b16 %v1374
        %v1974 = vunpack.c.l.b16 %v1375
        %v1975 = vunpack.c.l.b16 %v1376
        %v1976 = vunpack.c.l.b16 %v1377
        %v1977 = vunpack.c.l.b16 %v1378
        %v1978 = vunpack.c.l.b16 %v1379
        %v1979 = vunpack.c.l.b16 %v1380
        %v1980 = vunpack.c.l.b16 %v1381
        %v1981 = vunpack.c.l.b16 %v1382
        %v1982 = vunpack.c.l.b16 %v1383
        %v1983 = vunpack.c.l.b16 %v1384
        %v1984 = vunpack.c.l.b16 %v1385
        %v1985 = vunpack.c.l.b16 %v1386
        %v1986 = vunpack.c.l.b16 %v1387
        %v1987 = vunpack.c.l.b16 %v1388
        %v1988 = vunpack.c.l.b16 %v1389
        %v1989 = vunpack.c.l.b16 %v1390
        %v1990 = vunpack.c.l.b16 %v1391
        %v1991 = vunpack.c.l.b16 %v1392
        %v1992 = vunpack.c.l.b16 %v1393
        %v1993 = vunpack.c.l.b16 %v1394
        %v1994 = vunpack.c.l.b16 %v1395
        %v1995 = vunpack.c.l.b16 %v1396
        %v1996 = vunpack.c.l.b16 %v1397
        %v1997 = vunpack.c.l.b16 %v1398
        %v1998 = vunpack.c.l.b16 %v1399
        %v1999 = vunpack.c.l.b16 %v1400
        %v2000 = vunpack.c.l.b16 %v1401
        %v2001 = vunpack.c.l.b16 %v1402
        %v2002 = vunpack.c.l.b16 %v1403
        %v2003 = vunpack.c.l.b16 %v1404
        %v2004 = vunpack.c.l.b16 %v1405
        %v2005 = vunpack.c.l.b16 %v1406
        %v2006 = vunpack.c.l.b16 %v1407
        %v2007 = vunpack.c.l.b16 %v1408
        %v2008 = vunpack.c.l.b16 %v1409
        %v2009 = vunpack.c.l.b16 %v1410
        %v2010 = vunpack.c.l.b16 %v1411
        %v2011 = vunpack.c.l.b16 %v1412
        %v2012 = vunpack.c.l.b16 %v1413
        %v2013 = vunpack.c.l.b16 %v1414
        %v2014 = vunpack.c.l.b16 %v1415
        %v2015 = vunpack.c.l.b16 %v1416
        %v2016 = vunpack.c.l.b16 %v1417
        %v2017 = vunpack.c.l.b16 %v1418
        %v2018 = vunpack.c.l.b16 %v1419
        %v2019 = vunpack.c.l.b16 %v1420
        %v2020 = vunpack.c.l.b16 %v1421
        %v2021 = vunpack.c.l.b16 %v1422
        %v2022 = vunpack.c.l.b16 %v1423
        %v2023 = vunpack.c.l.b16 %v1424
        %v2024 = vunpack.c.l.b16 %v1425
        %v2025 = vunpack.c.l.b16 %v1426
        %v2026 = vunpack.c.l.b16 %v1427
        %v2027 = vunpack.c.l.b16 %v1428
        %v2028 = vunpack.c.l.b16 %v1429
        %v2029 = vunpack.c.l.b16 %v1430
        %v2030 = vunpack.c.l.b16 %v1431
        %v2031 = vunpack.c.l.b16 %v1432
        %v2032 = vunpack.c.l.b16 %v1433
        %v2033 = vunpack.c.l.b16 %v1434
        %v2034 = vunpack.c.l.b16 %v1435
        %v2035 = vunpack.c.l.b16 %v1436
        %v2036 = vunpack.c.l.b16 %v1437
        %v2037 = vunpack.c.l.b16 %v1438
        %v2038 = vunpack.c.l.b16 %v1439
        %v2039 = vunpack.c.l.b16 %v1440
        %v2040 = vunpack.c.l.b16 %v1441
        %v2041 = vunpack.c.l.b16 %v1442
        %v2042 = vunpack.c.l.b16 %v1443
        %v2043 = vunpack.c.l.b16 %v1444
        %v2044 = vunpack.c.l.b16 %v1445
        %v2045 = vunpack.c.l.b16 %v1446
        %v2046 = vunpack.c.l.b16 %v1447
        %v2047 = vunpack.c.l.b16 %v1448
        %v2048 = vunpack.c.l.b16 %v1449
        %v2049 = vunpack.c.l.b16 %v1450
        %v2050 = vunpack.c.l.b16 %v1451
        %v2051 = vunpack.c.l.b16 %v1452
        %v2052 = vunpack.c.l.b16 %v1453
        %v2053 = vunpack.c.l.b16 %v1454
        %v2054 = vunpack.c.l.b16 %v1455
        %v2055 = vunpack.c.l.b16 %v1456
        %v2056 = vunpack.c.l.b16 %v1457
        %v2057 = vunpack.c.l.b16 %v1458
        %v2058 = vunpack.c.l.b16 %v1459
        %v2059 = vunpack.c.l.b16 %v1460
        %v2060 = vunpack.c.l.b16 %v1461
        %v2061 = vunpack.c.l.b16 %v1462
        %v2062 = vunpack.c.l.b16 %v1463
        %v2063 = vunpack.c.l.b16 %v1464
        %v2064 = vunpack.c.l.b16 %v1465
        %v2065 = vunpack.c.l.b16 %v1466
        %v2066 = vunpack.c.l.b16 %v1467
        %v2067 = vunpack.c.l.b16 %v1468
        %v2068 = vunpack.c.l.b16 %v1469
        %v2069 = vunpack.c.l.b16 %v1470
        %v2070 = vunpack.c.l.b16 %v1471
        %v2071 = vunpack.c.l.b16 %v1472
        %v2072 = vunpack.c.l.b16 %v1473
        %v2073 = vunpack.c.l.b16 %v1474
        %v2074 = vunpack.c.l.b16 %v1475
        %v2075 = vunpack.c.l.b16 %v1476
        %v2076 = vunpack.c.l.b16 %v1477
        %v2077 = vunpack.c.l.b16 %v1478
        %v2078 = vunpack.c.l.b16 %v1479
        %v2079 = vunpack.c.l.b16 %v1480
        %v2080 = vunpack.c.l.b16 %v1481
        %v2081 = vunpack.c.l.b16 %v1482
        %v2082 = vunpack.c.l.b16 %v1483
        %v2083 = vunpack.c.l.b16 %v1484
        %v2084 = vunpack.c.l.b16 %v1485
        %v2085 = vunpack.c.l.b16 %v1486
        %v2086 = vunpack.c.l.b16 %v1487
        %v2087 = vunpack.c.l.b16 %v1488
        %v2088 = vunpack.c.l.b16 %v1489
        %v2089 = vunpack.c.l.b16 %v1490
        %v2090 = vunpack.c.l.b16 %v1491
        %v2091 = vunpack.c.l.b16 %v1492
        %v2092 = vunpack.c.l.b16 %v1493
        %v2093 = vunpack.c.l.b16 %v1494
        %v2094 = vunpack.c.l.b16 %v1495
        %v2095 = vunpack.c.l.b16 %v1496
        %v2096 = vunpack.c.l.b16 %v1497
        %v2097 = vunpack.c.l.b16 %v1498
        %v2098 = vunpack.c.l.b16 %v1499
        %v2099 = vunpack.c.l.b16 %v1500
        %v2100 = vunpack.c.l.b16 %v1501
        %v2101 = vunpack.c.l.b16 %v1502
        %v2102 = vunpack.c.l.b16 %v1503
        %v2103 = vunpack.c.l.b16 %v1504
        %v2104 = vunpack.c.l.b16 %v1505
        %v2105 = vunpack.c.l.b16 %v1506
        %v2106 = vunpack.c.l.b16 %v1507
        %v2107 = vunpack.c.l.b16 %v1508
        %v2108 = vunpack.c.l.b16 %v1509
        %v2109 = vunpack.c.l.b16 %v1510
        %v2110 = vunpack.c.l.b16 %v1511
        %v2111 = vunpack.c.l.b16 %v1512
        %v2112 = vunpack.c.l.b16 %v1513
        %v2113 = vunpack.c.l.b16 %v1514
        %v2114 = vunpack.c.l.b16 %v1515
        %v2115 = vunpack.c.l.b16 %v1516
        %v2116 = vunpack.c.l.b16 %v1517
        %v2117 = vunpack.c.l.b16 %v1518
        %v2118 = vunpack.c.l.b16 %v1519
        %v2119 = vunpack.c.l.b16 %v1520
        %v2120 = vunpack.c.l.b16 %v1521
        %v2121 = vunpack.c.l.b16 %v1522
        %v2122 = vunpack.c.l.b16 %v1523
        %v2123 = vunpack.c.l.b16 %v1524
        %v2124 = vunpack.c.l.b16 %v1525
        %v2125 = vunpack.c.l.b16 %v1526
        %v2126 = vunpack.c.l.b16 %v1527
        %v2127 = vunpack.c.l.b16 %v1528
        %v2128 = vunpack.c.l.b16 %v1529
        %v2129 = vunpack.c.l.b16 %v1530
        %v2130 = vunpack.c.l.b16 %v1531
        %v2131 = vunpack.c.l.b16 %v1532
        %v2132 = vunpack.c.l.b16 %v1533
        %v2133 = vunpack.c.l.b16 %v1534
        %v2134 = vunpack.c.l.b16 %v1535
        %v2135 = vunpack.c.l.b16 %v1536
        %v2136 = vunpack.c.l.b16 %v1537
        %v2137 = vunpack.c.l.b16 %v1538
        %v2138 = vunpack.c.l.b16 %v1539
        %v2139 = vunpack.c.l.b16 %v1540
        %v2140 = vunpack.c.l.b16 %v1541
        %v2141 = vunpack.c.l.b16 %v1542
        %v2142 = vunpack.c.l.b16 %v1543
        %v2143 = vunpack.c.l.b16 %v1544
        %v2144 = vunpack.c.l.b16 %v1545
        %v2145 = vunpack.c.l.b16 %v1546
        %v2146 = vunpack.c.l.b16 %v1547
        %v2147 = vunpack.c.l.b16 %v1548
        %v2148 = vunpack.c.l.b16 %v1549
        %v2149 = vunpack.c.l.b16 %v1550
        %v2150 = vunpack.c.l.b16 %v1551
        %v2151 = vunpack.c.l.b16 %v1552
        %v2152 = vunpack.c.l.b16 %v1553
        %v2153 = vunpack.c.l.b16 %v1554
        %v2154 = vpack.c.b16 %v1899, %v1898
        %v2155 = vpack.c.b16 %v1901, %v1900
        %v2156 = vpack.c.b16 %v1903, %v1902
        %v2157 = vpack.c.b16 %v1905, %v1904
        %v2158 = vpack.c.b16 %v1907, %v1906
        %v2159 = vpack.c.b16 %v1909, %v1908
        %v2160 = vpack.c.b16 %v1911, %v1910
        %v2161 = vpack.c.b16 %v1913, %v1912
        %v2162 = vpack.c.b16 %v1915, %v1914
        %v2163 = vpack.c.b16 %v1917, %v1916
        %v2164 = vpack.c.b16 %v1919, %v1918
        %v2165 = vpack.c.b16 %v1921, %v1920
        %v2166 = vpack.c.b16 %v1923, %v1922
        %v2167 = vpack.c.b16 %v1925, %v1924
        %v2168 = vpack.c.b16 %v1927, %v1926
        %v2169 = vpack.c.b16 %v1929, %v1928
        %v2170 = vpack.c.b16 %v1931, %v1930
        %v2171 = vpack.c.b16 %v1933, %v1932
        %v2172 = vpack.c.b16 %v1935, %v1934
        %v2173 = vpack.c.b16 %v1937, %v1936
        %v2174 = vpack.c.b16 %v1939, %v1938
        %v2175 = vpack.c.b16 %v1941, %v1940
        %v2176 = vpack.c.b16 %v1943, %v1942
        %v2177 = vpack.c.b16 %v1945, %v1944
        %v2178 = vpack.c.b16 %v1947, %v1946
        %v2179 = vpack.c.b16 %v1949, %v1948
        %v2180 = vpack.c.b16 %v1951, %v1950
        %v2181 = vpack.c.b16 %v1953, %v1952
        %v2182 = vpack.c.b16 %v1955, %v1954
        %v2183 = vpack.c.b16 %v1957, %v1956
        %v2184 = vpack.c.b16 %v1959, %v1958
        %v2185 = vpack.c.b16 %v1961, %v1960
        %v2186 = vpack.c.b16 %v1963, %v1962
        %v2187 = vpack.c.b16 %v1965, %v1964
        %v2188 = vpack.c.b16 %v1967, %v1966
        %v2189 = vpack.c.b16 %v1969, %v1968
        %v2190 = vpack.c.b16 %v1971, %v1970
        %v2191 = vpack.c.b16 %v1973, %v1972
        %v2192 = vpack.c.b16 %v1975, %v1974
        %v2193 = vpack.c.b16 %v1977, %v1976
        %v2194 = vpack.c.b16 %v1979, %v1978
        %v2195 = vpack.c.b16 %v1981, %v1980
        %v2196 = vpack.c.b16 %v1983, %v1982
        %v2197 = vpack.c.b16 %v1985, %v1984
        %v2198 = vpack.c.b16 %v1987, %v1986
        %v2199 = vpack.c.b16 %v1989, %v1988
        %v2200 = vpack.c.b16 %v1991, %v1990
        %v2201 = vpack.c.b16 %v1993, %v1992
        %v2202 = vpack.c.b16 %v1995, %v1994
        %v2203 = vpack.c.b16 %v1997, %v1996
        %v2204 = vpack.c.b16 %v1999, %v1998
        %v2205 = vpack.c.b16 %v2001, %v2000
        %v2206 = vpack.c.b16 %v2003, %v2002
        %v2207 = vpack.c.b16 %v2005, %v2004
        %v2208 = vpack.c.b16 %v2007, %v2006
        %v2209 = vpack.c.b16 %v2009, %v2008
        %v2210 = vpack.c.b16 %v2011, %v2010
        %v2211 = vpack.c.b16 %v2013, %v2012
        %v2212 = vpack.c.b16 %v2015, %v2014
        %v2213 = vpack.c.b16 %v2017, %v2016
        %v2214 = vpack.c.b16 %v2019, %v2018
        %v2215 = vpack.c.b16 %v2021, %v2020
        %v2216 = vpack.c.b16 %v2023, %v2022
        %v2217 = vpack.c.b16 %v2025, %v2024
        %v2218 = vpack.c.b16 %v2027, %v2026
        %v2219 = vpack.c.b16 %v2029, %v2028
        %v2220 = vpack.c.b16 %v2031, %v2030
        %v2221 = vpack.c.b16 %v2033, %v2032
        %v2222 = vpack.c.b16 %v2035, %v2034
        %v2223 = vpack.c.b16 %v2037, %v2036
        %v2224 = vpack.c.b16 %v2039, %v2038
        %v2225 = vpack.c.b16 %v2041, %v2040
        %v2226 = vpack.c.b16 %v2043, %v2042
        %v2227 = vpack.c.b16 %v2045, %v2044
        %v2228 = vpack.c.b16 %v2047, %v2046
        %v2229 = vpack.c.b16 %v2049, %v2048
        %v2230 = vpack.c.b16 %v2051, %v2050
        %v2231 = vpack.c.b16 %v2053, %v2052
        %v2232 = vpack.c.b16 %v2055, %v2054
        %v2233 = vpack.c.b16 %v2057, %v2056
        %v2234 = vpack.c.b16 %v2059, %v2058
        %v2235 = vpack.c.b16 %v2061, %v2060
        %v2236 = vpack.c.b16 %v2063, %v2062
        %v2237 = vpack.c.b16 %v2065, %v2064
        %v2238 = vpack.c.b16 %v2067, %v2066
        %v2239 = vpack.c.b16 %v2069, %v2068
        %v2240 = vpack.c.b16 %v2071, %v2070
        %v2241 = vpack.c.b16 %v2073, %v2072
        %v2242 = vpack.c.b16 %v2075, %v2074
        %v2243 = vpack.c.b16 %v2077, %v2076
        %v2244 = vpack.c.b16 %v2079, %v2078
        %v2245 = vpack.c.b16 %v2081, %v2080
        %v2246 = vpack.c.b16 %v2083, %v2082
        %v2247 = vpack.c.b16 %v2085, %v2084
        %v2248 = vpack.c.b16 %v2087, %v2086
        %v2249 = vpack.c.b16 %v2089, %v2088
        %v2250 = vpack.c.b16 %v2091, %v2090
        %v2251 = vpack.c.b16 %v2093, %v2092
        %v2252 = vpack.c.b16 %v2095, %v2094
        %v2253 = vpack.c.b16 %v2097, %v2096
        %v2254 = vpack.c.b16 %v2099, %v2098
        %v2255 = vpack.c.b16 %v2101, %v2100
        %v2256 = vpack.c.b16 %v2103, %v2102
        %v2257 = vpack.c.b16 %v2105, %v2104
        %v2258 = vpack.c.b16 %v2107, %v2106
        %v2259 = vpack.c.b16 %v2109, %v2108
        %v2260 = vpack.c.b16 %v2111, %v2110
        %v2261 = vpack.c.b16 %v2113, %v2112
        %v2262 = vpack.c.b16 %v2115, %v2114
        %v2263 = vpack.c.b16 %v2117, %v2116
        %v2264 = vpack.c.b16 %v2119, %v2118
        %v2265 = vpack.c.b16 %v2121, %v2120
        %v2266 = vpack.c.b16 %v2123, %v2122
        %v2267 = vpack.c.b16 %v2125, %v2124
        %v2268 = vpack.c.b16 %v2127, %v2126
        %v2269 = vpack.c.b16 %v2129, %v2128
        %v2270 = vpack.c.b16 %v2131, %v2130
        %v2271 = vpack.c.b16 %v2133, %v2132
        %v2272 = vpack.c.b16 %v2135, %v2134
        %v2273 = vpack.c.b16 %v2137, %v2136
        %v2274 = vpack.c.b16 %v2139, %v2138
        %v2275 = vpack.c.b16 %v2141, %v2140
        %v2276 = vpack.c.b16 %v2143, %v2142
        %v2277 = vpack.c.b16 %v2145, %v2144
        %v2278 = vpack.c.b16 %v2147, %v2146
        %v2279 = vpack.c.b16 %v2149, %v2148
        %v2280 = vpack.c.b16 %v2151, %v2150
        %v2281 = vpack.c.b16 %v2153, %v2152
        %2410 = vmatprep.subr.bf16.mxu0 0
        %2411 = vmatpush1.bf16.msra.mxu0 %v2161
        %2412 = vmatprep.subr.bf16.mxu0 0
        %2413 = vmatpush1.bf16.msra.mxu0 %v2160
        %2414 = vmatprep.subr.bf16.mxu0 0
        %2415 = vmatpush1.bf16.msra.mxu0 %v2159
        %2416 = vmatprep.subr.bf16.mxu0 0
        %2417 = vmatpush1.bf16.msra.mxu0 %v2158
        %2418 = vmatprep.subr.bf16.mxu0 0
        %2419 = vmatpush1.bf16.msra.mxu0 %v2157
        %2420 = vmatprep.subr.bf16.mxu0 0
        %2421 = vmatpush1.bf16.msra.mxu0 %v2156
        %2422 = vmatprep.subr.bf16.mxu0 0
        %2423 = vmatpush1.bf16.msra.mxu0 %v2155
        %2424 = vmatprep.subr.bf16.mxu0 0
        %2425 = vmatpush1.bf16.msra.mxu0 %v2154
        %2426 = vmatprep.subr.bf16.mxu0 0
        %2427 = vmatpush2.bf16.msra.mxu0 %v2169
        %2428 = vmatprep.subr.bf16.mxu0 0
        %2429 = vmatpush2.bf16.msra.mxu0 %v2168
        %2430 = vmatprep.subr.bf16.mxu0 0
        %2431 = vmatpush2.bf16.msra.mxu0 %v2167
        %2432 = vmatprep.subr.bf16.mxu0 0
        %2433 = vmatpush2.bf16.msra.mxu0 %v2166
        %2434 = vmatprep.subr.bf16.mxu0 0
        %2435 = vmatpush2.bf16.msra.mxu0 %v2165
        %2436 = vmatprep.subr.bf16.mxu0 0
        %2437 = vmatpush2.bf16.msra.mxu0 %v2164
        %2438 = vmatprep.subr.bf16.mxu0 0
        %2439 = vmatpush2.bf16.msra.mxu0 %v2163
        %2440 = vmatprep.subr.bf16.mxu0 0
        %2441 = vmatpush2.bf16.msra.mxu0 %v2162
        %2442 = vmatprep.mubr.bf16.mxu0 %v1611
        %2443 = vmatmul.mubr.bf16.gmra.mxu0 %v1610
        %v2444 = vpop.f32.mrf.mxu0
        %v2445 = vadd.f32 %v1560, %v2444
        %v2446 = vpop.f32.mrf.mxu0
        %v2447 = vpop.f32.mrf.mxu0
        %v2448 = vadd.f32 %v1560, %v2447
        %v2449 = vpop.f32.mrf.mxu0
        %2450 = vdwg.mxu0
        %2451 = vmatprep.subr.bf16.mxu0 0
        %2452 = vmatpush1.bf16.msra.mxu0 %v2177
        %2453 = vmatprep.subr.bf16.mxu0 0
        %2454 = vmatpush1.bf16.msra.mxu0 %v2176
        %2455 = vmatprep.subr.bf16.mxu0 0
        %2456 = vmatpush1.bf16.msra.mxu0 %v2175
        %2457 = vmatprep.subr.bf16.mxu0 0
        %2458 = vmatpush1.bf16.msra.mxu0 %v2174
        %2459 = vmatprep.subr.bf16.mxu0 0
        %2460 = vmatpush1.bf16.msra.mxu0 %v2173
        %2461 = vmatprep.subr.bf16.mxu0 0
        %2462 = vmatpush1.bf16.msra.mxu0 %v2172
        %2463 = vmatprep.subr.bf16.mxu0 0
        %2464 = vmatpush1.bf16.msra.mxu0 %v2171
        %2465 = vmatprep.subr.bf16.mxu0 0
        %2466 = vmatpush1.bf16.msra.mxu0 %v2170
        %2467 = vmatprep.subr.bf16.mxu0 0
        %2468 = vmatpush2.bf16.msra.mxu0 %v2185
        %2469 = vmatprep.subr.bf16.mxu0 0
        %2470 = vmatpush2.bf16.msra.mxu0 %v2184
        %2471 = vmatprep.subr.bf16.mxu0 0
        %2472 = vmatpush2.bf16.msra.mxu0 %v2183
        %2473 = vmatprep.subr.bf16.mxu0 0
        %2474 = vmatpush2.bf16.msra.mxu0 %v2182
        %2475 = vmatprep.subr.bf16.mxu0 0
        %2476 = vmatpush2.bf16.msra.mxu0 %v2181
        %2477 = vmatprep.subr.bf16.mxu0 0
        %2478 = vmatpush2.bf16.msra.mxu0 %v2180
        %2479 = vmatprep.subr.bf16.mxu0 0
        %2480 = vmatpush2.bf16.msra.mxu0 %v2179
        %2481 = vmatprep.subr.bf16.mxu0 0
        %2482 = vmatpush2.bf16.msra.mxu0 %v2178
        %2483 = vmatprep.mubr.bf16.mxu0 %v1613
        %2484 = vmatmul.mubr.bf16.gmra.mxu0 %v1612
        %v2485 = vpop.f32.mrf.mxu0
        %v2486 = vadd.f32 %v2445, %v2485
        %v2487 = vpop.f32.mrf.mxu0
        %v2488 = vpop.f32.mrf.mxu0
        %v2489 = vadd.f32 %v2448, %v2488
        %v2490 = vpop.f32.mrf.mxu0
        %2491 = vdwg.mxu0
        %2492 = vmatprep.subr.bf16.mxu0 0
        %2493 = vmatpush1.bf16.msra.mxu0 %v2193
        %2494 = vmatprep.subr.bf16.mxu0 0
        %2495 = vmatpush1.bf16.msra.mxu0 %v2192
        %2496 = vmatprep.subr.bf16.mxu0 0
        %2497 = vmatpush1.bf16.msra.mxu0 %v2191
        %2498 = vmatprep.subr.bf16.mxu0 0
        %2499 = vmatpush1.bf16.msra.mxu0 %v2190
        %2500 = vmatprep.subr.bf16.mxu0 0
        %2501 = vmatpush1.bf16.msra.mxu0 %v2189
        %2502 = vmatprep.subr.bf16.mxu0 0
        %2503 = vmatpush1.bf16.msra.mxu0 %v2188
        %2504 = vmatprep.subr.bf16.mxu0 0
        %2505 = vmatpush1.bf16.msra.mxu0 %v2187
        %2506 = vmatprep.subr.bf16.mxu0 0
        %2507 = vmatpush1.bf16.msra.mxu0 %v2186
        %2508 = vmatprep.subr.bf16.mxu0 0
        %2509 = vmatpush2.bf16.msra.mxu0 %v2201
        %2510 = vmatprep.subr.bf16.mxu0 0
        %2511 = vmatpush2.bf16.msra.mxu0 %v2200
        %2512 = vmatprep.subr.bf16.mxu0 0
        %2513 = vmatpush2.bf16.msra.mxu0 %v2199
        %2514 = vmatprep.subr.bf16.mxu0 0
        %2515 = vmatpush2.bf16.msra.mxu0 %v2198
        %2516 = vmatprep.subr.bf16.mxu0 0
        %2517 = vmatpush2.bf16.msra.mxu0 %v2197
        %2518 = vmatprep.subr.bf16.mxu0 0
        %2519 = vmatpush2.bf16.msra.mxu0 %v2196
        %2520 = vmatprep.subr.bf16.mxu0 0
        %2521 = vmatpush2.bf16.msra.mxu0 %v2195
        %2522 = vmatprep.subr.bf16.mxu0 0
        %2523 = vmatpush2.bf16.msra.mxu0 %v2194
        %2524 = vmatprep.mubr.bf16.mxu0 %v1615
        %2525 = vmatmul.mubr.bf16.gmra.mxu0 %v1614
        %v2526 = vpop.f32.mrf.mxu0
        %v2527 = vadd.f32 %v2486, %v2526
        %v2528 = vpop.f32.mrf.mxu0
        %v2529 = vpop.f32.mrf.mxu0
        %v2530 = vadd.f32 %v2489, %v2529
        %v2531 = vpop.f32.mrf.mxu0
        %2532 = vdwg.mxu0
        %2533 = vmatprep.subr.bf16.mxu0 0
        %2534 = vmatpush1.bf16.msra.mxu0 %v2209
        %2535 = vmatprep.subr.bf16.mxu0 0
        %2536 = vmatpush1.bf16.msra.mxu0 %v2208
        %2537 = vmatprep.subr.bf16.mxu0 0
        %2538 = vmatpush1.bf16.msra.mxu0 %v2207
        %2539 = vmatprep.subr.bf16.mxu0 0
        %2540 = vmatpush1.bf16.msra.mxu0 %v2206
        %2541 = vmatprep.subr.bf16.mxu0 0
        %2542 = vmatpush1.bf16.msra.mxu0 %v2205
        %2543 = vmatprep.subr.bf16.mxu0 0
        %2544 = vmatpush1.bf16.msra.mxu0 %v2204
        %2545 = vmatprep.subr.bf16.mxu0 0
        %2546 = vmatpush1.bf16.msra.mxu0 %v2203
        %2547 = vmatprep.subr.bf16.mxu0 0
        %2548 = vmatpush1.bf16.msra.mxu0 %v2202
        %2549 = vmatprep.subr.bf16.mxu0 0
        %2550 = vmatpush2.bf16.msra.mxu0 %v2217
        %2551 = vmatprep.subr.bf16.mxu0 0
        %2552 = vmatpush2.bf16.msra.mxu0 %v2216
        %2553 = vmatprep.subr.bf16.mxu0 0
        %2554 = vmatpush2.bf16.msra.mxu0 %v2215
        %2555 = vmatprep.subr.bf16.mxu0 0
        %2556 = vmatpush2.bf16.msra.mxu0 %v2214
        %2557 = vmatprep.subr.bf16.mxu0 0
        %2558 = vmatpush2.bf16.msra.mxu0 %v2213
        %2559 = vmatprep.subr.bf16.mxu0 0
        %2560 = vmatpush2.bf16.msra.mxu0 %v2212
        %2561 = vmatprep.subr.bf16.mxu0 0
        %2562 = vmatpush2.bf16.msra.mxu0 %v2211
        %2563 = vmatprep.subr.bf16.mxu0 0
        %2564 = vmatpush2.bf16.msra.mxu0 %v2210
        %2565 = vmatprep.mubr.bf16.mxu0 %v1617
        %2566 = vmatmul.mubr.bf16.gmra.mxu0 %v1616
        %v2567 = vpop.f32.mrf.mxu0
        %v2568 = vadd.f32 %v2527, %v2567
        %v2569 = vpop.f32.mrf.mxu0
        %v2570 = vpop.f32.mrf.mxu0
        %v2571 = vadd.f32 %v2530, %v2570
        %v2572 = vpop.f32.mrf.mxu0
        %2573 = vdwg.mxu0
        %2574 = vmatprep.subr.bf16.mxu0 0
        %2575 = vmatpush1.bf16.msra.mxu0 %v2225
        %2576 = vmatprep.subr.bf16.mxu0 0
        %2577 = vmatpush1.bf16.msra.mxu0 %v2224
        %2578 = vmatprep.subr.bf16.mxu0 0
        %2579 = vmatpush1.bf16.msra.mxu0 %v2223
        %2580 = vmatprep.subr.bf16.mxu0 0
        %2581 = vmatpush1.bf16.msra.mxu0 %v2222
        %2582 = vmatprep.subr.bf16.mxu0 0
        %2583 = vmatpush1.bf16.msra.mxu0 %v2221
        %2584 = vmatprep.subr.bf16.mxu0 0
        %2585 = vmatpush1.bf16.msra.mxu0 %v2220
        %2586 = vmatprep.subr.bf16.mxu0 0
        %2587 = vmatpush1.bf16.msra.mxu0 %v2219
        %2588 = vmatprep.subr.bf16.mxu0 0
        %2589 = vmatpush1.bf16.msra.mxu0 %v2218
        %2590 = vmatprep.subr.bf16.mxu0 0
        %2591 = vmatpush2.bf16.msra.mxu0 %v2233
        %2592 = vmatprep.subr.bf16.mxu0 0
        %2593 = vmatpush2.bf16.msra.mxu0 %v2232
        %2594 = vmatprep.subr.bf16.mxu0 0
        %2595 = vmatpush2.bf16.msra.mxu0 %v2231
        %2596 = vmatprep.subr.bf16.mxu0 0
        %2597 = vmatpush2.bf16.msra.mxu0 %v2230
        %2598 = vmatprep.subr.bf16.mxu0 0
        %2599 = vmatpush2.bf16.msra.mxu0 %v2229
        %2600 = vmatprep.subr.bf16.mxu0 0
        %2601 = vmatpush2.bf16.msra.mxu0 %v2228
        %2602 = vmatprep.subr.bf16.mxu0 0
        %2603 = vmatpush2.bf16.msra.mxu0 %v2227
        %2604 = vmatprep.subr.bf16.mxu0 0
        %2605 = vmatpush2.bf16.msra.mxu0 %v2226
        %2606 = vmatprep.mubr.bf16.mxu0 %v1619
        %2607 = vmatmul.mubr.bf16.gmra.mxu0 %v1618
        %v2608 = vpop.f32.mrf.mxu0
        %v2609 = vadd.f32 %v2568, %v2608
        %v2610 = vpop.f32.mrf.mxu0
        %v2611 = vpop.f32.mrf.mxu0
        %v2612 = vadd.f32 %v2571, %v2611
        %v2613 = vpop.f32.mrf.mxu0
        %2614 = vdwg.mxu0
        %2615 = vmatprep.subr.bf16.mxu0 0
        %2616 = vmatpush1.bf16.msra.mxu0 %v2241
        %2617 = vmatprep.subr.bf16.mxu0 0
        %2618 = vmatpush1.bf16.msra.mxu0 %v2240
        %2619 = vmatprep.subr.bf16.mxu0 0
        %2620 = vmatpush1.bf16.msra.mxu0 %v2239
        %2621 = vmatprep.subr.bf16.mxu0 0
        %2622 = vmatpush1.bf16.msra.mxu0 %v2238
        %2623 = vmatprep.subr.bf16.mxu0 0
        %2624 = vmatpush1.bf16.msra.mxu0 %v2237
        %2625 = vmatprep.subr.bf16.mxu0 0
        %2626 = vmatpush1.bf16.msra.mxu0 %v2236
        %2627 = vmatprep.subr.bf16.mxu0 0
        %2628 = vmatpush1.bf16.msra.mxu0 %v2235
        %2629 = vmatprep.subr.bf16.mxu0 0
        %2630 = vmatpush1.bf16.msra.mxu0 %v2234
        %2631 = vmatprep.subr.bf16.mxu0 0
        %2632 = vmatpush2.bf16.msra.mxu0 %v2249
        %2633 = vmatprep.subr.bf16.mxu0 0
        %2634 = vmatpush2.bf16.msra.mxu0 %v2248
        %2635 = vmatprep.subr.bf16.mxu0 0
        %2636 = vmatpush2.bf16.msra.mxu0 %v2247
        %2637 = vmatprep.subr.bf16.mxu0 0
        %2638 = vmatpush2.bf16.msra.mxu0 %v2246
        %2639 = vmatprep.subr.bf16.mxu0 0
        %2640 = vmatpush2.bf16.msra.mxu0 %v2245
        %2641 = vmatprep.subr.bf16.mxu0 0
        %2642 = vmatpush2.bf16.msra.mxu0 %v2244
        %2643 = vmatprep.subr.bf16.mxu0 0
        %2644 = vmatpush2.bf16.msra.mxu0 %v2243
        %2645 = vmatprep.subr.bf16.mxu0 0
        %2646 = vmatpush2.bf16.msra.mxu0 %v2242
        %2647 = vmatprep.mubr.bf16.mxu0 %v1621
        %2648 = vmatmul.mubr.bf16.gmra.mxu0 %v1620
        %v2649 = vpop.f32.mrf.mxu0
        %v2650 = vadd.f32 %v2609, %v2649
        %v2651 = vpop.f32.mrf.mxu0
        %v2652 = vpop.f32.mrf.mxu0
        %v2653 = vadd.f32 %v2612, %v2652
        %v2654 = vpop.f32.mrf.mxu0
        %2655 = vdwg.mxu0
        %2656 = vmatprep.subr.bf16.mxu0 0
        %2657 = vmatpush1.bf16.msra.mxu0 %v2257
        %2658 = vmatprep.subr.bf16.mxu0 0
        %2659 = vmatpush1.bf16.msra.mxu0 %v2256
        %2660 = vmatprep.subr.bf16.mxu0 0
        %2661 = vmatpush1.bf16.msra.mxu0 %v2255
        %2662 = vmatprep.subr.bf16.mxu0 0
        %2663 = vmatpush1.bf16.msra.mxu0 %v2254
        %2664 = vmatprep.subr.bf16.mxu0 0
        %2665 = vmatpush1.bf16.msra.mxu0 %v2253
        %2666 = vmatprep.subr.bf16.mxu0 0
        %2667 = vmatpush1.bf16.msra.mxu0 %v2252
        %2668 = vmatprep.subr.bf16.mxu0 0
        %2669 = vmatpush1.bf16.msra.mxu0 %v2251
        %2670 = vmatprep.subr.bf16.mxu0 0
        %2671 = vmatpush1.bf16.msra.mxu0 %v2250
        %2672 = vmatprep.subr.bf16.mxu0 0
        %2673 = vmatpush2.bf16.msra.mxu0 %v2265
        %2674 = vmatprep.subr.bf16.mxu0 0
        %2675 = vmatpush2.bf16.msra.mxu0 %v2264
        %2676 = vmatprep.subr.bf16.mxu0 0
        %2677 = vmatpush2.bf16.msra.mxu0 %v2263
        %2678 = vmatprep.subr.bf16.mxu0 0
        %2679 = vmatpush2.bf16.msra.mxu0 %v2262
        %2680 = vmatprep.subr.bf16.mxu0 0
        %2681 = vmatpush2.bf16.msra.mxu0 %v2261
        %2682 = vmatprep.subr.bf16.mxu0 0
        %2683 = vmatpush2.bf16.msra.mxu0 %v2260
        %2684 = vmatprep.subr.bf16.mxu0 0
        %2685 = vmatpush2.bf16.msra.mxu0 %v2259
        %2686 = vmatprep.subr.bf16.mxu0 0
        %2687 = vmatpush2.bf16.msra.mxu0 %v2258
        %2688 = vmatprep.mubr.bf16.mxu0 %v1623
        %2689 = vmatmul.mubr.bf16.gmra.mxu0 %v1622
        %v2690 = vpop.f32.mrf.mxu0
        %v2691 = vadd.f32 %v2650, %v2690
        %v2692 = vpop.f32.mrf.mxu0
        %v2693 = vpop.f32.mrf.mxu0
        %v2694 = vadd.f32 %v2653, %v2693
        %v2695 = vpop.f32.mrf.mxu0
        %2696 = vdwg.mxu0
        %2697 = vmatprep.subr.bf16.mxu0 0
        %2698 = vmatpush1.bf16.msra.mxu0 %v2273
        %2699 = vmatprep.subr.bf16.mxu0 0
        %2700 = vmatpush1.bf16.msra.mxu0 %v2272
        %2701 = vmatprep.subr.bf16.mxu0 0
        %2702 = vmatpush1.bf16.msra.mxu0 %v2271
        %2703 = vmatprep.subr.bf16.mxu0 0
        %2704 = vmatpush1.bf16.msra.mxu0 %v2270
        %2705 = vmatprep.subr.bf16.mxu0 0
        %2706 = vmatpush1.bf16.msra.mxu0 %v2269
        %2707 = vmatprep.subr.bf16.mxu0 0
        %2708 = vmatpush1.bf16.msra.mxu0 %v2268
        %2709 = vmatprep.subr.bf16.mxu0 0
        %2710 = vmatpush1.bf16.msra.mxu0 %v2267
        %2711 = vmatprep.subr.bf16.mxu0 0
        %2712 = vmatpush1.bf16.msra.mxu0 %v2266
        %2713 = vmatprep.subr.bf16.mxu0 0
        %2714 = vmatpush2.bf16.msra.mxu0 %v2281
        %2715 = vmatprep.subr.bf16.mxu0 0
        %2716 = vmatpush2.bf16.msra.mxu0 %v2280
        %2717 = vmatprep.subr.bf16.mxu0 0
        %2718 = vmatpush2.bf16.msra.mxu0 %v2279
        %2719 = vmatprep.subr.bf16.mxu0 0
        %2720 = vmatpush2.bf16.msra.mxu0 %v2278
        %2721 = vmatprep.subr.bf16.mxu0 0
        %2722 = vmatpush2.bf16.msra.mxu0 %v2277
        %2723 = vmatprep.subr.bf16.mxu0 0
        %2724 = vmatpush2.bf16.msra.mxu0 %v2276
        %2725 = vmatprep.subr.bf16.mxu0 0
        %2726 = vmatpush2.bf16.msra.mxu0 %v2275
        %2727 = vmatprep.subr.bf16.mxu0 0
        %2728 = vmatpush2.bf16.msra.mxu0 %v2274
        %2729 = vmatprep.mubr.bf16.mxu0 %v1625
        %2730 = vmatmul.mubr.bf16.gmra.mxu0 %v1624
        %v2731 = vpop.f32.mrf.mxu0
        %v2732 = vadd.f32 %v2691, %v2731
        %v2733 = vpop.f32.mrf.mxu0
        %v2734 = vpop.f32.mrf.mxu0
        %v2735 = vadd.f32 %v2694, %v2734
        %v2736 = vpop.f32.mrf.mxu0
        %2737 = vdwg.mxu0
        %v2738 = vmax.f32 %v2732, 0.0
        %v2739 = vmax.f32 %v2735, 0.0
        %v2740 = vpack.c.bf16 %v2739, %v2738
        %v2742 = vunpack.c.l.b16 %v2740
        %v2743 = vunpack.c.h.b16 %v2740
        %v2744 = vpack.c.b16 %v2742, %v2742
        %v2745 = vpack.c.b16 %v2743, %v2743
        %2748 = vst [vmem:[%s1270] sm:$0xf] %v2744
        %2749 = vst [vmem:[%s1270 + $0x4] sm:$0xf] %v2745
        %s2750 = sand.u32 %s114, 1
        %s2751 = sand.u32 %s114, 1
        %s2752 = smul.addr %s2751, 8
        %s2753 = scalar_lea.vmem [#allocation3], %s2752
        // Predicated region
        $region74: #{percept_forward.8} parent=68 // pred_check
          %p2754 = pneg %p124
        $region75: #{percept_forward.8} parent=68 // pred_check_branch
          %2756 = sbr.rel (%p2754) target = $region77
        $region76: #{percept_forward.8} parent=68 // pred_region
          %s2757 = smul.u32 2, %s18
          %s2758 = smul.addr %s2757, 2
          %s2759 = sadd.s32 %s19, %s2758
          %s2760 = smul.addr %s2759, 4
          %s2761 = scalar_lea.vmem %s3, %s2760
          // Predicated region
          $region78: #{percept_forward.8} parent=76 // pred_check
            _
          $region79: #{percept_forward.8} parent=76 // pred_check_branch
            %2763 = sbr.rel (0) target = $region81
          $region80: #{percept_forward.8} parent=76 // pred_region
            // Predicated region
            $region82: #{percept_forward.8} parent=80 // pred_check
              _
            $region83: #{percept_forward.8} parent=80 // pred_check_branch
              %2765 = sbr.rel target = $region85
            $region84: #{percept_forward.8} parent=80 // pred_region
              // Predicated region
              $region97: #{percept_forward.8} parent=84 // pred_check
                _
              $region98: #{percept_forward.8} parent=84 // pred_check_branch
                %2783 = sbr.rel (0) target = $region100
              $region99: #{percept_forward.8} parent=84 // pred_region
                loop: start=0, step=1, limit=1
                $region101: #{percept_forward.8} parent=99 // loop_pre_header
                  _
                $region102: #{percept_forward.8} parent=99 // loop_header
                  %s2785 = sphi 0, %s2789
                  %p2786 = scmp.ge.s32.totalorder %s2785, 1
                  %s2790 = sphi %s2753, %s2753
                  %s2791 = sphi %s2761, %s2761
                $region103: #{percept_forward.8} parent=99 // loop_header_branch
                  %2788 = sbr.rel (%p2786) target = $region107
                $region104: #{percept_forward.8} parent=99 // loop_body
                  _
                $region105: #{percept_forward.8} parent=99 // loop_footer
                  %s2789 = sadd.s32 1, %s2785
                $region106: #{percept_forward.8} parent=99 // loop_footer_branch
                  %2784 = sbr.rel target = $region102
                $region107: #{percept_forward.8} parent=99 // loop_exit
                  _
                %s2793 = ssub.s32 16, 1
                loop: start=0, step=1, limit=1
                $region108: #{percept_forward.8} parent=99 // loop_pre_header
                  _
                $region109: #{percept_forward.8} parent=99 // loop_header
                  %s2795 = sphi 0, %s2799
                  %p2796 = scmp.ge.s32.totalorder %s2795, 1
                  %s2800 = sphi %s2753, %s2753
                  %s2801 = sphi %s2761, %s2761
                $region110: #{percept_forward.8} parent=99 // loop_header_branch
                  %2798 = sbr.rel (%p2796) target = $region114
                $region111: #{percept_forward.8} parent=99 // loop_body
                  %v2802 = vld [vmem:[%s2800] sm:%s2793]
                  %2803 = vst [vmem:[%s2801] sm:%s2793] %v2802
                  %v2804 = vld [vmem:[%s2800 + $0x4] sm:%s2793]
                  %2805 = vst [vmem:[%s2801 + $0x8] sm:%s2793] %v2804
                $region112: #{percept_forward.8} parent=99 // loop_footer
                  %s2799 = sadd.s32 1, %s2795
                $region113: #{percept_forward.8} parent=99 // loop_footer_branch
                  %2794 = sbr.rel target = $region109
                $region114: #{percept_forward.8} parent=99 // loop_exit
                  _
              $region100: #{percept_forward.8} parent=84 // pred_fallthru
                _
            $region85: #{percept_forward.8} parent=80 // pred_fallthru
              _
            // Predicated region
            $region86: #{percept_forward.8} parent=80 // pred_check
              _
            $region87: #{percept_forward.8} parent=80 // pred_check_branch
              %2767 = sbr.rel (0) target = $region89
            $region88: #{percept_forward.8} parent=80 // pred_region
              %s2769 = ssub.s32 16, 1
              loop: start=0, step=1, limit=1
              $region90: #{percept_forward.8} parent=88 // loop_pre_header
                _
              $region91: #{percept_forward.8} parent=88 // loop_header
                %s2771 = sphi 0, %s2775
                %p2772 = scmp.ge.s32.totalorder %s2771, 1
                %s2776 = sphi %s2753, %s2753
                %s2777 = sphi %s2761, %s2761
              $region92: #{percept_forward.8} parent=88 // loop_header_branch
                %2774 = sbr.rel (%p2772) target = $region96
              $region93: #{percept_forward.8} parent=88 // loop_body
                %v2778 = vld [vmem:[%s2776] sm:%s2769]
                %2779 = vst [vmem:[%s2777] sm:%s2769] %v2778
                %v2780 = vld [vmem:[%s2776 + $0x4] sm:%s2769]
                %2781 = vst [vmem:[%s2777 + $0x8] sm:%s2769] %v2780
              $region94: #{percept_forward.8} parent=88 // loop_footer
                %s2775 = sadd.s32 1, %s2771
              $region95: #{percept_forward.8} parent=88 // loop_footer_branch
                %2770 = sbr.rel target = $region91
              $region96: #{percept_forward.8} parent=88 // loop_exit
                _
            $region89: #{percept_forward.8} parent=80 // pred_fallthru
              _
          $region81: #{percept_forward.8} parent=76 // pred_fallthru
            _
          %2806 = vnop
        $region77: #{percept_forward.8} parent=68 // pred_fallthru
          _
      $region69: #{percept_forward.8} parent=5 // pred_fallthru
        _
      %p2807 = scmp.le.s32.totalorder 2, %s9
      // Predicated region
      $region115: #{percept_forward.8} parent=5 // pred_check
        %p2808 = pneg %p2807
      $region116: #{percept_forward.8} parent=5 // pred_check_branch
        %2810 = sbr.rel (%p2808) target = $region118
      $region117: #{percept_forward.8} parent=5 // pred_region
        %s2811 = ssub.s32 %s9, 2
        // Predicated region
        $region119: #{percept_forward.8} parent=117 // pred_check
          %p2812 = pneg %p130
        $region120: #{percept_forward.8} parent=117 // pred_check_branch
          %2814 = sbr.rel (%p2812) target = $region122
        $region121: #{percept_forward.8} parent=117 // pred_region
          %s2815 = sand.u32 %s115, 1
          %s2816 = sand.u32 %s115, 1
          %s2817 = smul.addr %s2816, 8
          %s2818 = scalar_lea.vmem [#allocation3], %s2817
        $region122: #{percept_forward.8} parent=117 // pred_fallthru
          _
      $region118: #{percept_forward.8} parent=5 // pred_fallthru
        _
    $region6: #{percept_forward.8} parent=1 // loop_footer
      %s13 = sadd.s32 1, %s9
    $region7: #{percept_forward.8} parent=1 // loop_footer_branch
      %8 = sbr.rel target = $region3
    $region8: #{percept_forward.8} parent=1 // loop_exit
      _

</llo_original>
